<compile_context>
chip_gen: v7x
topology: tpu7x:2x2x1
jax: 0.10.0
libtpu: 0.0.40
codegen_flags: <defaults>
</compile_context>

<pallas_src>
import functools

import jax
import jax.numpy as jnp
from jax import lax
from jax.experimental import pallas as pl
from jax.experimental.pallas import tpu as pltpu


LANE = 128
_VMEM_LIMIT = 32 * 1024 * 1024


def _round_up(x, m):
    return ((x + m - 1) // m) * m


def _bf16_round(x):
    # Make parameters exactly bf16-representable so the Pallas (bf16 MXU) path
    # and the f32 reference share identical weights.
    return x.astype(jnp.bfloat16).astype(jnp.float32)


# ----------------------------------------------------------------------------
# Kernel 1: row-tiled matmul + per-channel affine (+ReLU) epilogue
# ----------------------------------------------------------------------------
def _matmul_affine_kernel(a_ref, w_ref, s_ref, b_ref, o_ref, *, relu):
    acc = jnp.dot(a_ref[...].astype(jnp.bfloat16), w_ref[...],
                  preferred_element_type=jnp.float32)
    out = acc * s_ref[...] + b_ref[...]
    if relu:
        out = jnp.maximum(out, 0.0)
    o_ref[...] = out.astype(o_ref.dtype)


def _matmul_bias_kernel(a_ref, w_ref, b_ref, o_ref, *, relu):
    acc = jnp.dot(a_ref[...].astype(jnp.bfloat16), w_ref[...],
                  preferred_element_type=jnp.float32)
    out = acc + b_ref[...]
    if relu:
        out = jnp.maximum(out, 0.0)
    o_ref[...] = out.astype(o_ref.dtype)


def matmul_fused(a, w_bf16, bias, scale=None, *, relu=False,
                 out_dtype=jnp.float32, tm_max=512):
    """out = maybe_relu((a @ w) [* scale] + bias).  a: (M, K), w: (K, N) bf16."""
    M, K = a.shape
    Kw, N = w_bf16.shape
    assert K == Kw, (K, Kw)
    Mp = _round_up(M, 8)
    if Mp != M:                      # tiny (only the M=batch fc path needs it)
        a = jnp.pad(a, ((0, Mp - M), (0, 0)))
    TM = min(tm_max, Mp)
    while Mp % TM:
        TM -= 8
    grid = (Mp // TM,)

    extra = [bias.reshape(1, N).astype(jnp.float32)]
    extra_specs = [pl.BlockSpec((1, N), lambda i: (0, 0))]
    if scale is None:
        kernel = functools.partial(_matmul_bias_kernel, relu=relu)
    else:
        kernel = functools.partial(_matmul_affine_kernel, relu=relu)
        extra = [scale.reshape(1, N).astype(jnp.float32)] + extra
        extra_specs = [pl.BlockSpec((1, N), lambda i: (0, 0))] + extra_specs

    out = pl.pallas_call(
        kernel,
        out_shape=jax.ShapeDtypeStruct((Mp, N), out_dtype),
        grid=grid,
        in_specs=[pl.BlockSpec((TM, K), lambda i: (i, 0)),
                  pl.BlockSpec((K, N), lambda i: (0, 0))] + extra_specs,
        out_specs=pl.BlockSpec((TM, N), lambda i: (i, 0)),
        compiler_params=pltpu.CompilerParams(
            dimension_semantics=("parallel",),
            vmem_limit_bytes=_VMEM_LIMIT),
    )(a, w_bf16, *extra)
    return out[:M] if Mp != M else out


# ----------------------------------------------------------------------------
# Kernel 2: fused backbone per batch element:
#   last conv-block layer (2x2/s2 as patch matmul) + BN + ReLU
#   -> l residual blocks (3x3 conv as ONE im2col matmul each) -> bf16 features
# ----------------------------------------------------------------------------
def _backbone_kernel(p_ref, w0_ref, a0_ref, wr_ref, ar_ref, o_ref, lhs_ref,
                     *, H, W, C):
    M = H * W
    L2 = wr_ref.shape[0]            # 2 * l residual convs

    # ---- last conv-block layer: one MXU matmul + folded-BN + ReLU ----------
    a0 = a0_ref[...]                                           # (2, C) f32
    acc0 = jnp.dot(p_ref[0], w0_ref[...], preferred_element_type=jnp.float32)
    x = jnp.maximum(acc0 * a0[0:1, :] + a0[1:2, :], 0.0)       # (M, C) f32

    # Column-validity masks for the 3x3 SAME conv (built once; cheap VPU selects).
    w_idx = lax.broadcasted_iota(jnp.int32, (M, 1), 0) % W
    col_ok = {-1: w_idx >= 1, 0: None, 1: w_idx <= W - 2}

    def shift_rows(v, k):
        # t[m] = v[m + k], zero-filled at the ends.  |k| == W shifts are
        # vreg-tile-aligned plane selections; |k| == 1 shifts are single
        # sublane shifts (XLU/VPU), never masked VMEM copies.
        if k == 0:
            return v
        z = jnp.zeros((abs(k), C), v.dtype)
        if k > 0:
            return jnp.concatenate([v[k:], z], axis=0)
        return jnp.concatenate([z, v[:k]], axis=0)

    def conv3x3(x_f32, w2d, scale, bias, *, relu, res=None):
        xb = x_f32.astype(jnp.bfloat16)                        # one cast per conv
        # 3 column-shifted (+masked) variants, reused across kernel rows.
        cvar = {}
        for dc in (-1, 0, 1):
            t = shift_rows(xb, dc)
            if col_ok[dc] is not None:
                t = jnp.where(col_ok[dc], t, 0)
            cvar[dc] = t
        # Build the (M, 9C) im2col LHS with full-width, lane-aligned stores.
        for di in range(3):
            for dj in range(3):
                tap = 3 * di + dj
                lhs_ref[:, tap * C:(tap + 1) * C] = shift_rows(cvar[dj - 1],
                                                               (di - 1) * W)
        # One streaming MXU matmul, K = 9*C, f32 accumulation + f32 epilogue.
        y = jnp.dot(lhs_ref[...], w2d, preferred_element_type=jnp.float32)
        y = y * scale + bias
        if res is not None:
            y = y + res
        if relu:
            y = jnp.maximum(y, 0.0)
        return y

    ar = ar_ref[...]                                           # (L2, 2, C) f32
    for k in range(0, L2, 2):
        y = conv3x3(x, wr_ref[k], ar[k, 0:1, :], ar[k, 1:2, :], relu=True)
        x = conv3x3(y, wr_ref[k + 1], ar[k + 1, 0:1, :], ar[k + 1, 1:2, :],
                    relu=True, res=x)                          # +x then ReLU

    o_ref[...] = x.reshape(1, M, C).astype(o_ref.dtype)


def backbone_fused(patches, w0, a0, wr, ar, *, H, W, C):
    """patches: (N, H*W, K0P) bf16.  Returns (N, H*W, C) bf16 features."""
    N, M, K0P = patches.shape
    L2 = wr.shape[0]
    kernel = functools.partial(_backbone_kernel, H=H, W=W, C=C)
    return pl.pallas_call(
        kernel,
        out_shape=jax.ShapeDtypeStruct((N, M, C), jnp.bfloat16),
        grid=(N,),
        in_specs=[
            pl.BlockSpec((1, M, K0P), lambda b: (b, 0, 0)),
            pl.BlockSpec((K0P, C), lambda b: (0, 0)),
            pl.BlockSpec((2, C), lambda b: (0, 0)),
            pl.BlockSpec((L2, 9 * C, C), lambda b: (0, 0, 0)),
            pl.BlockSpec((L2, 2, C), lambda b: (0, 0, 0)),
        ],
        out_specs=pl.BlockSpec((1, M, C), lambda b: (b, 0, 0)),
        scratch_shapes=[pltpu.VMEM((M, 9 * C), jnp.bfloat16)],   # im2col LHS
        compiler_params=pltpu.CompilerParams(
            dimension_semantics=("parallel",),          # batch across TCs on v7x
            vmem_limit_bytes=_VMEM_LIMIT),
    )(patches, w0, a0, wr, ar)


# ----------------------------------------------------------------------------
# Stride-2 2x2 patch extraction (tiny wrapper-side reshape, K zero-padded to 128)
# ----------------------------------------------------------------------------
def extract_patches_2x2_s2(x, k_pad):
    """(N, H, W, Cin) -> (N, (H//2)*(W//2), k_pad) bf16."""
    N, H, W, Ci = x.shape
    Ho, Wo = H // 2, W // 2
    p = (x.reshape(N, Ho, 2, Wo, 2, Ci)
          .transpose(0, 1, 3, 2, 4, 5)
          .reshape(N, Ho * Wo, 4 * Ci)).astype(jnp.bfloat16)
    if k_pad != 4 * Ci:
        p = jnp.pad(p, ((0, 0), (0, 0), (0, k_pad - 4 * Ci)))
    return p


# ----------------------------------------------------------------------------
# Forward pass
# ----------------------------------------------------------------------------
@functools.partial(jax.jit, static_argnames=("out_dim",))
def resnlh_forward(x_nchw, kparams, *, out_dim):
    x = jnp.transpose(x_nchw, (0, 2, 3, 1)).astype(jnp.float32)   # NCHW -> NHWC

    # conv-block layers 0 .. n-2 (empty when n == 1): patch matmul + BN + ReLU.
    for (wf, s, b) in kparams["conv_mid"]:
        N, H, W, _ = x.shape
        Ho, Wo = H // 2, W // 2
        p = extract_patches_2x2_s2(x, wf.shape[0]).reshape(N * Ho * Wo, -1)
        x = matmul_fused(p, wf, b, s, relu=True, out_dtype=jnp.bfloat16)
        x = x.reshape(N, Ho, Wo, -1)

    # last conv-block layer + all residual blocks: ONE fused per-batch kernel.
    N, H, W, _ = x.shape
    Ho, Wo = H // 2, W // 2
    w0, a0 = kparams["conv_last"]
    C = w0.shape[1]
    patches = extract_patches_2x2_s2(x, w0.shape[0])
    feat = backbone_fused(patches, w0, a0, kparams["res_w"], kparams["res_a"],
                          H=Ho, W=Wo, C=C)                        # (N, Ho*Wo, C) bf16

    # Flatten (NHWC order; fc weights were pre-permuted/padded to match) + fc.
    flat = feat.reshape(N, Ho * Wo * C)
    out = matmul_fused(flat, kparams["fc_w"], kparams["fc_b"], relu=False)
    return out[:, :out_dim]


# ----------------------------------------------------------------------------
# Parameter init (torch semantics, eval-mode BN folded) + kernel-side packing
# ----------------------------------------------------------------------------
def init_params(key, n, l, h, out_dim, in_dim):
    keys = iter(jax.random.split(key, 4 * (n + 2 * l) + 2))
    eps = 1e-5

    def conv_bn(cin, cout, k):
        w = jax.random.normal(next(keys), (k, k, cin, cout), jnp.float32) / ((k * k * cin) ** 0.5)
        w = _bf16_round(w)
        conv_b = 0.1 * jax.random.normal(next(keys), (cout,), jnp.float32)
        gamma = 1.0 + 0.1 * jax.random.normal(next(keys), (cout,), jnp.float32)
        beta = 0.1 * jax.random.normal(next(keys), (cout,), jnp.float32)
        run_mean = jnp.zeros((cout,), jnp.float32)
        run_var = jnp.ones((cout,), jnp.float32)
        scale = gamma / jnp.sqrt(run_var + eps)
        bias = (conv_b - run_mean) * scale + beta
        return (w, scale, bias)

    conv_block = [conv_bn(in_dim, h, 2)]
    for _ in range(n - 1):
        conv_block.append(conv_bn(h, h, 2))
    residuals = [(conv_bn(h, h, 3), conv_bn(h, h, 3)) for _ in range(l)]

    fc_in = 6400
    fc_w = _bf16_round(jax.random.normal(next(keys), (fc_in, out_dim), jnp.float32) / (fc_in ** 0.5))
    fc_b = 0.1 * jax.random.normal(next(keys), (out_dim,), jnp.float32)
    return {"conv_block": conv_block, "residuals": residuals, "fc_w": fc_w, "fc_b": fc_b}


def pad_params(params, *, h, out_dim, n, spatial):
    """Channel-pad to 128 lanes, bf16 weights, pack for the fused kernels."""
    C = _round_up(h, LANE)
    OUT = _round_up(out_dim, LANE)

    def pad_vec(v, cnt):
        return jnp.zeros((C,), jnp.float32).at[:cnt].set(v)

    def conv_flat(w, cin_p, cout):
        kh, kw, cin, _ = w.shape
        wp = jnp.zeros((kh, kw, cin_p, C), jnp.float32).at[:, :, :cin, :cout].set(w)
        K = kh * kw * cin_p
        Kp = _round_up(K, LANE)
        wflat = jnp.zeros((Kp, C), jnp.float32).at[:K, :].set(wp.reshape(K, C))
        return wflat.astype(jnp.bfloat16)

    conv_block = params["conv_block"]
    conv_mid = []
    for idx in range(n - 1):
        w, s, b = conv_block[idx]
        cout = w.shape[3]
        cin_p = w.shape[2] if idx == 0 else C
        conv_mid.append((conv_flat(w, cin_p, cout), pad_vec(s, cout), pad_vec(b, cout)))

    w, s, b = conv_block[n - 1]
    cout = w.shape[3]
    cin_p = w.shape[2] if n == 1 else C
    w0 = conv_flat(w, cin_p, cout)
    a0 = jnp.stack([pad_vec(s, cout), pad_vec(b, cout)], axis=0)     # (2, C)

    res_w, res_a = [], []
    for (c1, c2) in params["residuals"]:
        for (w_, s_, b_) in (c1, c2):
            wp = jnp.zeros((3, 3, C, C), jnp.float32).at[:, :, :h, :h].set(w_)
            res_w.append(wp.reshape(9 * C, C).astype(jnp.bfloat16))  # im2col order
            res_a.append(jnp.stack([pad_vec(s_, h), pad_vec(b_, h)], axis=0))
    res_w = jnp.stack(res_w, axis=0)                                 # (2l, 9C, C)
    res_a = jnp.stack(res_a, axis=0)                                 # (2l, 2, C)

    fh = fw = spatial // (2 ** n)
    fc_w = params["fc_w"].reshape(h, fh, fw, out_dim).transpose(1, 2, 0, 3)
    fc_wp = jnp.zeros((fh, fw, C, OUT), jnp.float32).at[:, :, :h, :out_dim].set(fc_w)
    fc_b = jnp.zeros((OUT,), jnp.float32).at[:out_dim].set(params["fc_b"])
    return {"conv_mid": conv_mid,
            "conv_last": (w0, a0),
            "res_w": res_w, "res_a": res_a,
            "fc_w": fc_wp.reshape(fh * fw * C, OUT).astype(jnp.bfloat16),
            "fc_b": fc_b}


# ----------------------------------------------------------------------------
# Pure-JAX reference (same folded-BN semantics, f32, unpadded params)
# ----------------------------------------------------------------------------
def ref_forward(x_nchw, params):
    hi = jax.lax.Precision.HIGHEST
    dn = ("NHWC", "HWIO", "NHWC")
    x = jnp.transpose(x_nchw, (0, 2, 3, 1))
    for (w, s, b) in params["conv_block"]:
        y = jax.lax.conv_general_dilated(x, w, (2, 2), "VALID",
                                         dimension_numbers=dn, precision=hi)
        x = jnp.maximum(y * s + b, 0.0)
    for ((w1, s1, b1), (w2, s2, b2)) in params["residuals"]:
        y = jax.lax.conv_general_dilated(x, w1, (1, 1), "SAME",
                                         dimension_numbers=dn, precision=hi)
        y = jnp.maximum(y * s1 + b1, 0.0)
        y = jax.lax.conv_general_dilated(y, w2, (1, 1), "SAME",
                                         dimension_numbers=dn, precision=hi)
        y = y * s2 + b2
        x = jnp.maximum(x + y, 0.0)
    flat = jnp.transpose(x, (0, 3, 1, 2)).reshape(x.shape[0], -1)
    return jnp.dot(flat, params["fc_w"], precision=hi) + params["fc_b"]


# ----------------------------------------------------------------------------
if __name__ == "__main__":
    # ResNLH(n=1, l=2, h=100, out_dim=8, in_dim=3); 16x16 input so the flattened
    # feature size is h * (16 / 2**n)**2 = 6400, matching nn.Linear(6400, out_dim).
    n, l, h, out_dim, in_dim = 1, 2, 100, 8, 3
    spatial, batch = 16, 2

    key = jax.random.PRNGKey(0)
    kp, kx = jax.random.split(key)
    params = init_params(kp, n, l, h, out_dim, in_dim)
    kparams = pad_params(params, h=h, out_dim=out_dim, n=n, spatial=spatial)
    x = jax.random.normal(kx, (batch, in_dim, spatial, spatial), jnp.float32)

    out = jax.block_until_ready(resnlh_forward(x, kparams, out_dim=out_dim))
    ref = jax.block_until_ready(ref_forward(x, params))

    assert out.shape == (batch, out_dim), out.shape
    assert jnp.all(jnp.isfinite(out))
    assert jnp.allclose(out, ref, rtol=2e-2, atol=2e-2), (out, ref)
    print("KERNEL_OK")
</pallas_src>

<mosaic_0001>
module attributes {stable_mosaic.version = 11 : i64} {
  func.func @_backbone_kernel(%arg0: i32, %arg1: memref<1x64x128xbf16, #tpu.memory_space<vmem>>, %arg2: memref<128x128xbf16, #tpu.memory_space<vmem>>, %arg3: memref<2x128xf32, #tpu.memory_space<vmem>>, %arg4: memref<4x1152x128xbf16, #tpu.memory_space<vmem>>, %arg5: memref<4x2x128xf32, #tpu.memory_space<vmem>>, %arg6: memref<1x64x128xbf16, #tpu.memory_space<vmem>>, %arg7: memref<64x1152xbf16, #tpu.memory_space<vmem>>) attributes {dimension_semantics = [#tpu.dimension_semantics<parallel>], iteration_bounds = array<i64: 2>, scalar_prefetch = 0 : i64, scratch_operands = 1 : i64, tpu.core_type = #tpu.core_type<tc>, window_params = [{transform_indices = @transform_0, window_bounds = array<i64: 1, 64, 128>}, {pipeline_mode = #tpu.pipeline_mode<synchronous>, transform_indices = @transform_1, window_bounds = array<i64: 128, 128>}, {pipeline_mode = #tpu.pipeline_mode<synchronous>, transform_indices = @transform_2, window_bounds = array<i64: 2, 128>}, {pipeline_mode = #tpu.pipeline_mode<synchronous>, transform_indices = @transform_3, window_bounds = array<i64: 4, 1152, 128>}, {pipeline_mode = #tpu.pipeline_mode<synchronous>, transform_indices = @transform_4, window_bounds = array<i64: 4, 2, 128>}, {transform_indices = @transform_5, window_bounds = array<i64: 1, 64, 128>}]} {
    %c0 = arith.constant 0 : index
    %c0_0 = arith.constant 0 : index
    %0 = vector.load %arg3[%c0, %c0_0] : memref<2x128xf32, #tpu.memory_space<vmem>>, vector<2x128xf32>
    %c0_1 = arith.constant 0 : index
    %c0_2 = arith.constant 0 : index
    %c0_3 = arith.constant 0 : index
    %1 = vector.load %arg1[%c0_1, %c0_2, %c0_3] : memref<1x64x128xbf16, #tpu.memory_space<vmem>>, vector<1x64x128xbf16>
    %2 = vector.shape_cast %1 : vector<1x64x128xbf16> to vector<64x128xbf16>
    %c0_4 = arith.constant 0 : index
    %c0_5 = arith.constant 0 : index
    %3 = vector.load %arg2[%c0_4, %c0_5] : memref<128x128xbf16, #tpu.memory_space<vmem>>, vector<128x128xbf16>
    %cst = arith.constant dense<0.000000e+00> : vector<64x128xf32>
    %4 = tpu.matmul %2, %3, %cst {dimension_numbers = #tpu.dot_dimension_numbers<[1], [0], [0], [1], [0, 0, 1, 1], [], []>} : vector<64x128xbf16>, vector<128x128xbf16>, vector<64x128xf32> -> vector<64x128xf32>
    %5 = vector.extract_strided_slice %0 {offsets = [0, 0], sizes = [1, 128], strides = [1, 1]} : vector<2x128xf32> to vector<1x128xf32>
    %6 = vector.broadcast %5 : vector<1x128xf32> to vector<64x128xf32>
    %7 = arith.mulf %4, %6 : vector<64x128xf32>
    %8 = vector.extract_strided_slice %0 {offsets = [1, 0], sizes = [1, 128], strides = [1, 1]} : vector<2x128xf32> to vector<1x128xf32>
    %9 = vector.broadcast %8 : vector<1x128xf32> to vector<64x128xf32>
    %10 = arith.addf %7, %9 : vector<64x128xf32>
    %cst_6 = arith.constant 0.000000e+00 : f32
    %11 = vector.broadcast %cst_6 : f32 to vector<64x128xf32>
    %12 = arith.maximumf %10, %11 : vector<64x128xf32>
    %13 = tpu.iota {dimensions = array<i32: 0>} : vector<64x1xi32>
    %c8_i32 = arith.constant 8 : i32
    %c0_i32 = arith.constant 0 : i32
    %14 = arith.cmpi eq, %c8_i32, %c0_i32 : i32
    %c1_i32 = arith.constant 1 : i32
    %15 = arith.select %14, %c1_i32, %c8_i32 : i32
    %16 = vector.broadcast %15 : i32 to vector<64x1xi32>
    %17 = arith.remsi %13, %16 : vector<64x1xi32>
    %c0_i32_7 = arith.constant 0 : i32
    %18 = vector.broadcast %c0_i32_7 : i32 to vector<64x1xi32>
    %19 = arith.cmpi ne, %17, %18 : vector<64x1xi32>
    %c0_i32_8 = arith.constant 0 : i32
    %20 = vector.broadcast %c0_i32_8 : i32 to vector<64x1xi32>
    %21 = arith.cmpi slt, %17, %20 : vector<64x1xi32>
    %c0_i32_9 = arith.constant 0 : i32
    %22 = arith.cmpi slt, %15, %c0_i32_9 : i32
    %23 = vector.broadcast %22 : i1 to vector<64x1xi1>
    %24 = vector.broadcast %23 : vector<64x1xi1> to vector<64x1xi1>
    %25 = arith.xori %21, %24 : vector<64x1xi1>
    %26 = arith.andi %25, %19 : vector<64x1xi1>
    %27 = vector.broadcast %15 : i32 to vector<64x1xi32>
    %28 = arith.addi %17, %27 : vector<64x1xi32>
    %29 = arith.select %26, %28, %17 : vector<64x1xi1>, vector<64x1xi32>
    %c1_i32_10 = arith.constant 1 : i32
    %30 = vector.broadcast %c1_i32_10 : i32 to vector<64x1xi32>
    %31 = arith.cmpi sge, %29, %30 : vector<64x1xi32>
    %c6_i32 = arith.constant 6 : i32
    %32 = vector.broadcast %c6_i32 : i32 to vector<64x1xi32>
    %33 = arith.cmpi sle, %29, %32 : vector<64x1xi32>
    %c0_11 = arith.constant 0 : index
    %c0_12 = arith.constant 0 : index
    %c0_13 = arith.constant 0 : index
    %34 = vector.load %arg5[%c0_11, %c0_12, %c0_13] : memref<4x2x128xf32, #tpu.memory_space<vmem>>, vector<4x2x128xf32>
    %c0_14 = arith.constant 0 : index
    %c0_15 = arith.constant 0 : index
    %c0_16 = arith.constant 0 : index
    %35 = vector.load %arg4[%c0_14, %c0_15, %c0_16] : memref<4x1152x128xbf16, #tpu.memory_space<vmem>>, vector<1x1152x128xbf16>
    %36 = vector.shape_cast %35 : vector<1x1152x128xbf16> to vector<1152x128xbf16>
    %37 = vector.extract_strided_slice %34 {offsets = [0, 0, 0], sizes = [1, 1, 128], strides = [1, 1, 1]} : vector<4x2x128xf32> to vector<1x1x128xf32>
    %38 = vector.shape_cast %37 : vector<1x1x128xf32> to vector<1x128xf32>
    %39 = vector.extract_strided_slice %34 {offsets = [0, 1, 0], sizes = [1, 1, 128], strides = [1, 1, 1]} : vector<4x2x128xf32> to vector<1x1x128xf32>
    %40 = vector.shape_cast %39 : vector<1x1x128xf32> to vector<1x128xf32>
    %41 = arith.truncf %12 : vector<64x128xf32> to vector<64x128xbf16>
    %cst_17 = arith.constant 0.000000e+00 : bf16
    %42 = vector.broadcast %cst_17 : bf16 to vector<1x128xbf16>
    %43 = vector.extract_strided_slice %41 {offsets = [0, 0], sizes = [63, 128], strides = [1, 1]} : vector<64x128xbf16> to vector<63x128xbf16>
    %44 = tpu.concatenate %42, %43 in 0 : vector<1x128xbf16>, vector<63x128xbf16> -> vector<64x128xbf16>
    %c0_i32_18 = arith.constant 0 : i32
    %45 = arith.sitofp %c0_i32_18 : i32 to bf16
    %46 = vector.shape_cast %31 : vector<64x1xi1> to vector<64x1xi1>
    %47 = vector.broadcast %46 : vector<64x1xi1> to vector<64x128xi1>
    %48 = vector.broadcast %45 : bf16 to vector<64x128xbf16>
    %49 = arith.select %47, %44, %48 : vector<64x128xi1>, vector<64x128xbf16>
    %cst_19 = arith.constant 0.000000e+00 : bf16
    %50 = vector.broadcast %cst_19 : bf16 to vector<1x128xbf16>
    %51 = vector.extract_strided_slice %41 {offsets = [1, 0], sizes = [63, 128], strides = [1, 1]} : vector<64x128xbf16> to vector<63x128xbf16>
    %52 = tpu.concatenate %51, %50 in 0 : vector<63x128xbf16>, vector<1x128xbf16> -> vector<64x128xbf16>
    %c0_i32_20 = arith.constant 0 : i32
    %53 = arith.sitofp %c0_i32_20 : i32 to bf16
    %54 = vector.shape_cast %33 : vector<64x1xi1> to vector<64x1xi1>
    %55 = vector.broadcast %54 : vector<64x1xi1> to vector<64x128xi1>
    %56 = vector.broadcast %53 : bf16 to vector<64x128xbf16>
    %57 = arith.select %55, %52, %56 : vector<64x128xi1>, vector<64x128xbf16>
    %cst_21 = arith.constant 0.000000e+00 : bf16
    %58 = vector.broadcast %cst_21 : bf16 to vector<8x128xbf16>
    %59 = vector.extract_strided_slice %49 {offsets = [0, 0], sizes = [56, 128], strides = [1, 1]} : vector<64x128xbf16> to vector<56x128xbf16>
    %60 = tpu.concatenate %58, %59 in 0 : vector<8x128xbf16>, vector<56x128xbf16> -> vector<64x128xbf16>
    %c0_22 = arith.constant 0 : index
    %c0_23 = arith.constant 0 : index
    %61 = vector.load %arg7[%c0_22, %c0_23] : memref<64x1152xbf16, #tpu.memory_space<vmem>>, vector<64x128xbf16>
    tpu.vector_store %arg7[%c0_22, %c0_23], %60 {strides = array<i32>} : memref<64x1152xbf16, #tpu.memory_space<vmem>>, vector<64x128xbf16>,
    %cst_24 = arith.constant 0.000000e+00 : bf16
    %62 = vector.broadcast %cst_24 : bf16 to vector<8x128xbf16>
    %63 = vector.extract_strided_slice %41 {offsets = [0, 0], sizes = [56, 128], strides = [1, 1]} : vector<64x128xbf16> to vector<56x128xbf16>
    %64 = tpu.concatenate %62, %63 in 0 : vector<8x128xbf16>, vector<56x128xbf16> -> vector<64x128xbf16>
    %c0_25 = arith.constant 0 : index
    %c128 = arith.constant 128 : index
    %65 = vector.load %arg7[%c0_25, %c128] : memref<64x1152xbf16, #tpu.memory_space<vmem>>, vector<64x128xbf16>
    tpu.vector_store %arg7[%c0_25, %c128], %64 {strides = array<i32>} : memref<64x1152xbf16, #tpu.memory_space<vmem>>, vector<64x128xbf16>,
    %cst_26 = arith.constant 0.000000e+00 : bf16
    %66 = vector.broadcast %cst_26 : bf16 to vector<8x128xbf16>
    %67 = vector.extract_strided_slice %57 {offsets = [0, 0], sizes = [56, 128], strides = [1, 1]} : vector<64x128xbf16> to vector<56x128xbf16>
    %68 = tpu.concatenate %66, %67 in 0 : vector<8x128xbf16>, vector<56x128xbf16> -> vector<64x128xbf16>
    %c0_27 = arith.constant 0 : index
    %c256 = arith.constant 256 : index
    %69 = vector.load %arg7[%c0_27, %c256] : memref<64x1152xbf16, #tpu.memory_space<vmem>>, vector<64x128xbf16>
    tpu.vector_store %arg7[%c0_27, %c256], %68 {strides = array<i32>} : memref<64x1152xbf16, #tpu.memory_space<vmem>>, vector<64x128xbf16>,
    %c0_28 = arith.constant 0 : index
    %c384 = arith.constant 384 : index
    %70 = vector.load %arg7[%c0_28, %c384] : memref<64x1152xbf16, #tpu.memory_space<vmem>>, vector<64x128xbf16>
    tpu.vector_store %arg7[%c0_28, %c384], %49 {strides = array<i32>} : memref<64x1152xbf16, #tpu.memory_space<vmem>>, vector<64x128xbf16>,
    %c0_29 = arith.constant 0 : index
    %c512 = arith.constant 512 : index
    %71 = vector.load %arg7[%c0_29, %c512] : memref<64x1152xbf16, #tpu.memory_space<vmem>>, vector<64x128xbf16>
    tpu.vector_store %arg7[%c0_29, %c512], %41 {strides = array<i32>} : memref<64x1152xbf16, #tpu.memory_space<vmem>>, vector<64x128xbf16>,
    %c0_30 = arith.constant 0 : index
    %c640 = arith.constant 640 : index
    %72 = vector.load %arg7[%c0_30, %c640] : memref<64x1152xbf16, #tpu.memory_space<vmem>>, vector<64x128xbf16>
    tpu.vector_store %arg7[%c0_30, %c640], %57 {strides = array<i32>} : memref<64x1152xbf16, #tpu.memory_space<vmem>>, vector<64x128xbf16>,
    %cst_31 = arith.constant 0.000000e+00 : bf16
    %73 = vector.broadcast %cst_31 : bf16 to vector<8x128xbf16>
    %74 = vector.extract_strided_slice %49 {offsets = [8, 0], sizes = [56, 128], strides = [1, 1]} : vector<64x128xbf16> to vector<56x128xbf16>
    %75 = tpu.concatenate %74, %73 in 0 : vector<56x128xbf16>, vector<8x128xbf16> -> vector<64x128xbf16>
    %c0_32 = arith.constant 0 : index
    %c768 = arith.constant 768 : index
    %76 = vector.load %arg7[%c0_32, %c768] : memref<64x1152xbf16, #tpu.memory_space<vmem>>, vector<64x128xbf16>
    tpu.vector_store %arg7[%c0_32, %c768], %75 {strides = array<i32>} : memref<64x1152xbf16, #tpu.memory_space<vmem>>, vector<64x128xbf16>,
    %cst_33 = arith.constant 0.000000e+00 : bf16
    %77 = vector.broadcast %cst_33 : bf16 to vector<8x128xbf16>
    %78 = vector.extract_strided_slice %41 {offsets = [8, 0], sizes = [56, 128], strides = [1, 1]} : vector<64x128xbf16> to vector<56x128xbf16>
    %79 = tpu.concatenate %78, %77 in 0 : vector<56x128xbf16>, vector<8x128xbf16> -> vector<64x128xbf16>
    %c0_34 = arith.constant 0 : index
    %c896 = arith.constant 896 : index
    %80 = vector.load %arg7[%c0_34, %c896] : memref<64x1152xbf16, #tpu.memory_space<vmem>>, vector<64x128xbf16>
    tpu.vector_store %arg7[%c0_34, %c896], %79 {strides = array<i32>} : memref<64x1152xbf16, #tpu.memory_space<vmem>>, vector<64x128xbf16>,
    %cst_35 = arith.constant 0.000000e+00 : bf16
    %81 = vector.broadcast %cst_35 : bf16 to vector<8x128xbf16>
    %82 = vector.extract_strided_slice %57 {offsets = [8, 0], sizes = [56, 128], strides = [1, 1]} : vector<64x128xbf16> to vector<56x128xbf16>
    %83 = tpu.concatenate %82, %81 in 0 : vector<56x128xbf16>, vector<8x128xbf16> -> vector<64x128xbf16>
    %c0_36 = arith.constant 0 : index
    %c1024 = arith.constant 1024 : index
    %84 = vector.load %arg7[%c0_36, %c1024] : memref<64x1152xbf16, #tpu.memory_space<vmem>>, vector<64x128xbf16>
    tpu.vector_store %arg7[%c0_36, %c1024], %83 {strides = array<i32>} : memref<64x1152xbf16, #tpu.memory_space<vmem>>, vector<64x128xbf16>,
    %c0_37 = arith.constant 0 : index
    %c0_38 = arith.constant 0 : index
    %85 = vector.load %arg7[%c0_37, %c0_38] : memref<64x1152xbf16, #tpu.memory_space<vmem>>, vector<64x1152xbf16>
    %cst_39 = arith.constant dense<0.000000e+00> : vector<64x128xf32>
    %86 = tpu.matmul %85, %36, %cst_39 {dimension_numbers = #tpu.dot_dimension_numbers<[1], [0], [0], [1], [0, 0, 1, 1], [], []>} : vector<64x1152xbf16>, vector<1152x128xbf16>, vector<64x128xf32> -> vector<64x128xf32>
    %87 = vector.broadcast %38 : vector<1x128xf32> to vector<64x128xf32>
    %88 = arith.mulf %86, %87 : vector<64x128xf32>
    %89 = vector.broadcast %40 : vector<1x128xf32> to vector<64x128xf32>
    %90 = arith.addf %88, %89 : vector<64x128xf32>
    %cst_40 = arith.constant 0.000000e+00 : f32
    %91 = vector.broadcast %cst_40 : f32 to vector<64x128xf32>
    %92 = arith.maximumf %90, %91 : vector<64x128xf32>
    %c1 = arith.constant 1 : index
    %c0_41 = arith.constant 0 : index
    %c0_42 = arith.constant 0 : index
    %93 = vector.load %arg4[%c1, %c0_41, %c0_42] : memref<4x1152x128xbf16, #tpu.memory_space<vmem>>, vector<1x1152x128xbf16>
    %94 = vector.shape_cast %93 : vector<1x1152x128xbf16> to vector<1152x128xbf16>
    %95 = vector.extract_strided_slice %34 {offsets = [1, 0, 0], sizes = [1, 1, 128], strides = [1, 1, 1]} : vector<4x2x128xf32> to vector<1x1x128xf32>
    %96 = vector.shape_cast %95 : vector<1x1x128xf32> to vector<1x128xf32>
    %97 = vector.extract_strided_slice %34 {offsets = [1, 1, 0], sizes = [1, 1, 128], strides = [1, 1, 1]} : vector<4x2x128xf32> to vector<1x1x128xf32>
    %98 = vector.shape_cast %97 : vector<1x1x128xf32> to vector<1x128xf32>
    %99 = arith.truncf %92 : vector<64x128xf32> to vector<64x128xbf16>
    %cst_43 = arith.constant 0.000000e+00 : bf16
    %100 = vector.broadcast %cst_43 : bf16 to vector<1x128xbf16>
    %101 = vector.extract_strided_slice %99 {offsets = [0, 0], sizes = [63, 128], strides = [1, 1]} : vector<64x128xbf16> to vector<63x128xbf16>
    %102 = tpu.concatenate %100, %101 in 0 : vector<1x128xbf16>, vector<63x128xbf16> -> vector<64x128xbf16>
    %c0_i32_44 = arith.constant 0 : i32
    %103 = arith.sitofp %c0_i32_44 : i32 to bf16
    %104 = vector.shape_cast %31 : vector<64x1xi1> to vector<64x1xi1>
    %105 = vector.broadcast %104 : vector<64x1xi1> to vector<64x128xi1>
    %106 = vector.broadcast %103 : bf16 to vector<64x128xbf16>
    %107 = arith.select %105, %102, %106 : vector<64x128xi1>, vector<64x128xbf16>
    %cst_45 = arith.constant 0.000000e+00 : bf16
    %108 = vector.broadcast %cst_45 : bf16 to vector<1x128xbf16>
    %109 = vector.extract_strided_slice %99 {offsets = [1, 0], sizes = [63, 128], strides = [1, 1]} : vector<64x128xbf16> to vector<63x128xbf16>
    %110 = tpu.concatenate %109, %108 in 0 : vector<63x128xbf16>, vector<1x128xbf16> -> vector<64x128xbf16>
    %c0_i32_46 = arith.constant 0 : i32
    %111 = arith.sitofp %c0_i32_46 : i32 to bf16
    %112 = vector.shape_cast %33 : vector<64x1xi1> to vector<64x1xi1>
    %113 = vector.broadcast %112 : vector<64x1xi1> to vector<64x128xi1>
    %114 = vector.broadcast %111 : bf16 to vector<64x128xbf16>
    %115 = arith.select %113, %110, %114 : vector<64x128xi1>, vector<64x128xbf16>
    %cst_47 = arith.constant 0.000000e+00 : bf16
    %116 = vector.broadcast %cst_47 : bf16 to vector<8x128xbf16>
    %117 = vector.extract_strided_slice %107 {offsets = [0, 0], sizes = [56, 128], strides = [1, 1]} : vector<64x128xbf16> to vector<56x128xbf16>
    %118 = tpu.concatenate %116, %117 in 0 : vector<8x128xbf16>, vector<56x128xbf16> -> vector<64x128xbf16>
    %c0_48 = arith.constant 0 : index
    %c0_49 = arith.constant 0 : index
    %119 = vector.load %arg7[%c0_48, %c0_49] : memref<64x1152xbf16, #tpu.memory_space<vmem>>, vector<64x128xbf16>
    tpu.vector_store %arg7[%c0_48, %c0_49], %118 {strides = array<i32>} : memref<64x1152xbf16, #tpu.memory_space<vmem>>, vector<64x128xbf16>,
    %cst_50 = arith.constant 0.000000e+00 : bf16
    %120 = vector.broadcast %cst_50 : bf16 to vector<8x128xbf16>
    %121 = vector.extract_strided_slice %99 {offsets = [0, 0], sizes = [56, 128], strides = [1, 1]} : vector<64x128xbf16> to vector<56x128xbf16>
    %122 = tpu.concatenate %120, %121 in 0 : vector<8x128xbf16>, vector<56x128xbf16> -> vector<64x128xbf16>
    %c0_51 = arith.constant 0 : index
    %c128_52 = arith.constant 128 : index
    %123 = vector.load %arg7[%c0_51, %c128_52] : memref<64x1152xbf16, #tpu.memory_space<vmem>>, vector<64x128xbf16>
    tpu.vector_store %arg7[%c0_51, %c128_52], %122 {strides = array<i32>} : memref<64x1152xbf16, #tpu.memory_space<vmem>>, vector<64x128xbf16>,
    %cst_53 = arith.constant 0.000000e+00 : bf16
    %124 = vector.broadcast %cst_53 : bf16 to vector<8x128xbf16>
    %125 = vector.extract_strided_slice %115 {offsets = [0, 0], sizes = [56, 128], strides = [1, 1]} : vector<64x128xbf16> to vector<56x128xbf16>
    %126 = tpu.concatenate %124, %125 in 0 : vector<8x128xbf16>, vector<56x128xbf16> -> vector<64x128xbf16>
    %c0_54 = arith.constant 0 : index
    %c256_55 = arith.constant 256 : index
    %127 = vector.load %arg7[%c0_54, %c256_55] : memref<64x1152xbf16, #tpu.memory_space<vmem>>, vector<64x128xbf16>
    tpu.vector_store %arg7[%c0_54, %c256_55], %126 {strides = array<i32>} : memref<64x1152xbf16, #tpu.memory_space<vmem>>, vector<64x128xbf16>,
    %c0_56 = arith.constant 0 : index
    %c384_57 = arith.constant 384 : index
    %128 = vector.load %arg7[%c0_56, %c384_57] : memref<64x1152xbf16, #tpu.memory_space<vmem>>, vector<64x128xbf16>
    tpu.vector_store %arg7[%c0_56, %c384_57], %107 {strides = array<i32>} : memref<64x1152xbf16, #tpu.memory_space<vmem>>, vector<64x128xbf16>,
    %c0_58 = arith.constant 0 : index
    %c512_59 = arith.constant 512 : index
    %129 = vector.load %arg7[%c0_58, %c512_59] : memref<64x1152xbf16, #tpu.memory_space<vmem>>, vector<64x128xbf16>
    tpu.vector_store %arg7[%c0_58, %c512_59], %99 {strides = array<i32>} : memref<64x1152xbf16, #tpu.memory_space<vmem>>, vector<64x128xbf16>,
    %c0_60 = arith.constant 0 : index
    %c640_61 = arith.constant 640 : index
    %130 = vector.load %arg7[%c0_60, %c640_61] : memref<64x1152xbf16, #tpu.memory_space<vmem>>, vector<64x128xbf16>
    tpu.vector_store %arg7[%c0_60, %c640_61], %115 {strides = array<i32>} : memref<64x1152xbf16, #tpu.memory_space<vmem>>, vector<64x128xbf16>,
    %cst_62 = arith.constant 0.000000e+00 : bf16
    %131 = vector.broadcast %cst_62 : bf16 to vector<8x128xbf16>
    %132 = vector.extract_strided_slice %107 {offsets = [8, 0], sizes = [56, 128], strides = [1, 1]} : vector<64x128xbf16> to vector<56x128xbf16>
    %133 = tpu.concatenate %132, %131 in 0 : vector<56x128xbf16>, vector<8x128xbf16> -> vector<64x128xbf16>
    %c0_63 = arith.constant 0 : index
    %c768_64 = arith.constant 768 : index
    %134 = vector.load %arg7[%c0_63, %c768_64] : memref<64x1152xbf16, #tpu.memory_space<vmem>>, vector<64x128xbf16>
    tpu.vector_store %arg7[%c0_63, %c768_64], %133 {strides = array<i32>} : memref<64x1152xbf16, #tpu.memory_space<vmem>>, vector<64x128xbf16>,
    %cst_65 = arith.constant 0.000000e+00 : bf16
    %135 = vector.broadcast %cst_65 : bf16 to vector<8x128xbf16>
    %136 = vector.extract_strided_slice %99 {offsets = [8, 0], sizes = [56, 128], strides = [1, 1]} : vector<64x128xbf16> to vector<56x128xbf16>
    %137 = tpu.concatenate %136, %135 in 0 : vector<56x128xbf16>, vector<8x128xbf16> -> vector<64x128xbf16>
    %c0_66 = arith.constant 0 : index
    %c896_67 = arith.constant 896 : index
    %138 = vector.load %arg7[%c0_66, %c896_67] : memref<64x1152xbf16, #tpu.memory_space<vmem>>, vector<64x128xbf16>
    tpu.vector_store %arg7[%c0_66, %c896_67], %137 {strides = array<i32>} : memref<64x1152xbf16, #tpu.memory_space<vmem>>, vector<64x128xbf16>,
    %cst_68 = arith.constant 0.000000e+00 : bf16
    %139 = vector.broadcast %cst_68 : bf16 to vector<8x128xbf16>
    %140 = vector.extract_strided_slice %115 {offsets = [8, 0], sizes = [56, 128], strides = [1, 1]} : vector<64x128xbf16> to vector<56x128xbf16>
    %141 = tpu.concatenate %140, %139 in 0 : vector<56x128xbf16>, vector<8x128xbf16> -> vector<64x128xbf16>
    %c0_69 = arith.constant 0 : index
    %c1024_70 = arith.constant 1024 : index
    %142 = vector.load %arg7[%c0_69, %c1024_70] : memref<64x1152xbf16, #tpu.memory_space<vmem>>, vector<64x128xbf16>
    tpu.vector_store %arg7[%c0_69, %c1024_70], %141 {strides = array<i32>} : memref<64x1152xbf16, #tpu.memory_space<vmem>>, vector<64x128xbf16>,
    %c0_71 = arith.constant 0 : index
    %c0_72 = arith.constant 0 : index
    %143 = vector.load %arg7[%c0_71, %c0_72] : memref<64x1152xbf16, #tpu.memory_space<vmem>>, vector<64x1152xbf16>
    %cst_73 = arith.constant dense<0.000000e+00> : vector<64x128xf32>
    %144 = tpu.matmul %143, %94, %cst_73 {dimension_numbers = #tpu.dot_dimension_numbers<[1], [0], [0], [1], [0, 0, 1, 1], [], []>} : vector<64x1152xbf16>, vector<1152x128xbf16>, vector<64x128xf32> -> vector<64x128xf32>
    %145 = vector.broadcast %96 : vector<1x128xf32> to vector<64x128xf32>
    %146 = arith.mulf %144, %145 : vector<64x128xf32>
    %147 = vector.broadcast %98 : vector<1x128xf32> to vector<64x128xf32>
    %148 = arith.addf %146, %147 : vector<64x128xf32>
    %149 = arith.addf %148, %12 : vector<64x128xf32>
    %cst_74 = arith.constant 0.000000e+00 : f32
    %150 = vector.broadcast %cst_74 : f32 to vector<64x128xf32>
    %151 = arith.maximumf %149, %150 : vector<64x128xf32>
    %c2 = arith.constant 2 : index
    %c0_75 = arith.constant 0 : index
    %c0_76 = arith.constant 0 : index
    %152 = vector.load %arg4[%c2, %c0_75, %c0_76] : memref<4x1152x128xbf16, #tpu.memory_space<vmem>>, vector<1x1152x128xbf16>
    %153 = vector.shape_cast %152 : vector<1x1152x128xbf16> to vector<1152x128xbf16>
    %154 = vector.extract_strided_slice %34 {offsets = [2, 0, 0], sizes = [1, 1, 128], strides = [1, 1, 1]} : vector<4x2x128xf32> to vector<1x1x128xf32>
    %155 = vector.shape_cast %154 : vector<1x1x128xf32> to vector<1x128xf32>
    %156 = vector.extract_strided_slice %34 {offsets = [2, 1, 0], sizes = [1, 1, 128], strides = [1, 1, 1]} : vector<4x2x128xf32> to vector<1x1x128xf32>
    %157 = vector.shape_cast %156 : vector<1x1x128xf32> to vector<1x128xf32>
    %158 = arith.truncf %151 : vector<64x128xf32> to vector<64x128xbf16>
    %cst_77 = arith.constant 0.000000e+00 : bf16
    %159 = vector.broadcast %cst_77 : bf16 to vector<1x128xbf16>
    %160 = vector.extract_strided_slice %158 {offsets = [0, 0], sizes = [63, 128], strides = [1, 1]} : vector<64x128xbf16> to vector<63x128xbf16>
    %161 = tpu.concatenate %159, %160 in 0 : vector<1x128xbf16>, vector<63x128xbf16> -> vector<64x128xbf16>
    %c0_i32_78 = arith.constant 0 : i32
    %162 = arith.sitofp %c0_i32_78 : i32 to bf16
    %163 = vector.shape_cast %31 : vector<64x1xi1> to vector<64x1xi1>
    %164 = vector.broadcast %163 : vector<64x1xi1> to vector<64x128xi1>
    %165 = vector.broadcast %162 : bf16 to vector<64x128xbf16>
    %166 = arith.select %164, %161, %165 : vector<64x128xi1>, vector<64x128xbf16>
    %cst_79 = arith.constant 0.000000e+00 : bf16
    %167 = vector.broadcast %cst_79 : bf16 to vector<1x128xbf16>
    %168 = vector.extract_strided_slice %158 {offsets = [1, 0], sizes = [63, 128], strides = [1, 1]} : vector<64x128xbf16> to vector<63x128xbf16>
    %169 = tpu.concatenate %168, %167 in 0 : vector<63x128xbf16>, vector<1x128xbf16> -> vector<64x128xbf16>
    %c0_i32_80 = arith.constant 0 : i32
    %170 = arith.sitofp %c0_i32_80 : i32 to bf16
    %171 = vector.shape_cast %33 : vector<64x1xi1> to vector<64x1xi1>
    %172 = vector.broadcast %171 : vector<64x1xi1> to vector<64x128xi1>
    %173 = vector.broadcast %170 : bf16 to vector<64x128xbf16>
    %174 = arith.select %172, %169, %173 : vector<64x128xi1>, vector<64x128xbf16>
    %cst_81 = arith.constant 0.000000e+00 : bf16
    %175 = vector.broadcast %cst_81 : bf16 to vector<8x128xbf16>
    %176 = vector.extract_strided_slice %166 {offsets = [0, 0], sizes = [56, 128], strides = [1, 1]} : vector<64x128xbf16> to vector<56x128xbf16>
    %177 = tpu.concatenate %175, %176 in 0 : vector<8x128xbf16>, vector<56x128xbf16> -> vector<64x128xbf16>
    %c0_82 = arith.constant 0 : index
    %c0_83 = arith.constant 0 : index
    %178 = vector.load %arg7[%c0_82, %c0_83] : memref<64x1152xbf16, #tpu.memory_space<vmem>>, vector<64x128xbf16>
    tpu.vector_store %arg7[%c0_82, %c0_83], %177 {strides = array<i32>} : memref<64x1152xbf16, #tpu.memory_space<vmem>>, vector<64x128xbf16>,
    %cst_84 = arith.constant 0.000000e+00 : bf16
    %179 = vector.broadcast %cst_84 : bf16 to vector<8x128xbf16>
    %180 = vector.extract_strided_slice %158 {offsets = [0, 0], sizes = [56, 128], strides = [1, 1]} : vector<64x128xbf16> to vector<56x128xbf16>
    %181 = tpu.concatenate %179, %180 in 0 : vector<8x128xbf16>, vector<56x128xbf16> -> vector<64x128xbf16>
    %c0_85 = arith.constant 0 : index
    %c128_86 = arith.constant 128 : index
    %182 = vector.load %arg7[%c0_85, %c128_86] : memref<64x1152xbf16, #tpu.memory_space<vmem>>, vector<64x128xbf16>
    tpu.vector_store %arg7[%c0_85, %c128_86], %181 {strides = array<i32>} : memref<64x1152xbf16, #tpu.memory_space<vmem>>, vector<64x128xbf16>,
    %cst_87 = arith.constant 0.000000e+00 : bf16
    %183 = vector.broadcast %cst_87 : bf16 to vector<8x128xbf16>
    %184 = vector.extract_strided_slice %174 {offsets = [0, 0], sizes = [56, 128], strides = [1, 1]} : vector<64x128xbf16> to vector<56x128xbf16>
    %185 = tpu.concatenate %183, %184 in 0 : vector<8x128xbf16>, vector<56x128xbf16> -> vector<64x128xbf16>
    %c0_88 = arith.constant 0 : index
    %c256_89 = arith.constant 256 : index
    %186 = vector.load %arg7[%c0_88, %c256_89] : memref<64x1152xbf16, #tpu.memory_space<vmem>>, vector<64x128xbf16>
    tpu.vector_store %arg7[%c0_88, %c256_89], %185 {strides = array<i32>} : memref<64x1152xbf16, #tpu.memory_space<vmem>>, vector<64x128xbf16>,
    %c0_90 = arith.constant 0 : index
    %c384_91 = arith.constant 384 : index
    %187 = vector.load %arg7[%c0_90, %c384_91] : memref<64x1152xbf16, #tpu.memory_space<vmem>>, vector<64x128xbf16>
    tpu.vector_store %arg7[%c0_90, %c384_91], %166 {strides = array<i32>} : memref<64x1152xbf16, #tpu.memory_space<vmem>>, vector<64x128xbf16>,
    %c0_92 = arith.constant 0 : index
    %c512_93 = arith.constant 512 : index
    %188 = vector.load %arg7[%c0_92, %c512_93] : memref<64x1152xbf16, #tpu.memory_space<vmem>>, vector<64x128xbf16>
    tpu.vector_store %arg7[%c0_92, %c512_93], %158 {strides = array<i32>} : memref<64x1152xbf16, #tpu.memory_space<vmem>>, vector<64x128xbf16>,
    %c0_94 = arith.constant 0 : index
    %c640_95 = arith.constant 640 : index
    %189 = vector.load %arg7[%c0_94, %c640_95] : memref<64x1152xbf16, #tpu.memory_space<vmem>>, vector<64x128xbf16>
    tpu.vector_store %arg7[%c0_94, %c640_95], %174 {strides = array<i32>} : memref<64x1152xbf16, #tpu.memory_space<vmem>>, vector<64x128xbf16>,
    %cst_96 = arith.constant 0.000000e+00 : bf16
    %190 = vector.broadcast %cst_96 : bf16 to vector<8x128xbf16>
    %191 = vector.extract_strided_slice %166 {offsets = [8, 0], sizes = [56, 128], strides = [1, 1]} : vector<64x128xbf16> to vector<56x128xbf16>
    %192 = tpu.concatenate %191, %190 in 0 : vector<56x128xbf16>, vector<8x128xbf16> -> vector<64x128xbf16>
    %c0_97 = arith.constant 0 : index
    %c768_98 = arith.constant 768 : index
    %193 = vector.load %arg7[%c0_97, %c768_98] : memref<64x1152xbf16, #tpu.memory_space<vmem>>, vector<64x128xbf16>
    tpu.vector_store %arg7[%c0_97, %c768_98], %192 {strides = array<i32>} : memref<64x1152xbf16, #tpu.memory_space<vmem>>, vector<64x128xbf16>,
    %cst_99 = arith.constant 0.000000e+00 : bf16
    %194 = vector.broadcast %cst_99 : bf16 to vector<8x128xbf16>
    %195 = vector.extract_strided_slice %158 {offsets = [8, 0], sizes = [56, 128], strides = [1, 1]} : vector<64x128xbf16> to vector<56x128xbf16>
    %196 = tpu.concatenate %195, %194 in 0 : vector<56x128xbf16>, vector<8x128xbf16> -> vector<64x128xbf16>
    %c0_100 = arith.constant 0 : index
    %c896_101 = arith.constant 896 : index
    %197 = vector.load %arg7[%c0_100, %c896_101] : memref<64x1152xbf16, #tpu.memory_space<vmem>>, vector<64x128xbf16>
    tpu.vector_store %arg7[%c0_100, %c896_101], %196 {strides = array<i32>} : memref<64x1152xbf16, #tpu.memory_space<vmem>>, vector<64x128xbf16>,
    %cst_102 = arith.constant 0.000000e+00 : bf16
    %198 = vector.broadcast %cst_102 : bf16 to vector<8x128xbf16>
    %199 = vector.extract_strided_slice %174 {offsets = [8, 0], sizes = [56, 128], strides = [1, 1]} : vector<64x128xbf16> to vector<56x128xbf16>
    %200 = tpu.concatenate %199, %198 in 0 : vector<56x128xbf16>, vector<8x128xbf16> -> vector<64x128xbf16>
    %c0_103 = arith.constant 0 : index
    %c1024_104 = arith.constant 1024 : index
    %201 = vector.load %arg7[%c0_103, %c1024_104] : memref<64x1152xbf16, #tpu.memory_space<vmem>>, vector<64x128xbf16>
    tpu.vector_store %arg7[%c0_103, %c1024_104], %200 {strides = array<i32>} : memref<64x1152xbf16, #tpu.memory_space<vmem>>, vector<64x128xbf16>,
    %c0_105 = arith.constant 0 : index
    %c0_106 = arith.constant 0 : index
    %202 = vector.load %arg7[%c0_105, %c0_106] : memref<64x1152xbf16, #tpu.memory_space<vmem>>, vector<64x1152xbf16>
    %cst_107 = arith.constant dense<0.000000e+00> : vector<64x128xf32>
    %203 = tpu.matmul %202, %153, %cst_107 {dimension_numbers = #tpu.dot_dimension_numbers<[1], [0], [0], [1], [0, 0, 1, 1], [], []>} : vector<64x1152xbf16>, vector<1152x128xbf16>, vector<64x128xf32> -> vector<64x128xf32>
    %204 = vector.broadcast %155 : vector<1x128xf32> to vector<64x128xf32>
    %205 = arith.mulf %203, %204 : vector<64x128xf32>
    %206 = vector.broadcast %157 : vector<1x128xf32> to vector<64x128xf32>
    %207 = arith.addf %205, %206 : vector<64x128xf32>
    %cst_108 = arith.constant 0.000000e+00 : f32
    %208 = vector.broadcast %cst_108 : f32 to vector<64x128xf32>
    %209 = arith.maximumf %207, %208 : vector<64x128xf32>
    %c3 = arith.constant 3 : index
    %c0_109 = arith.constant 0 : index
    %c0_110 = arith.constant 0 : index
    %210 = vector.load %arg4[%c3, %c0_109, %c0_110] : memref<4x1152x128xbf16, #tpu.memory_space<vmem>>, vector<1x1152x128xbf16>
    %211 = vector.shape_cast %210 : vector<1x1152x128xbf16> to vector<1152x128xbf16>
    %212 = vector.extract_strided_slice %34 {offsets = [3, 0, 0], sizes = [1, 1, 128], strides = [1, 1, 1]} : vector<4x2x128xf32> to vector<1x1x128xf32>
    %213 = vector.shape_cast %212 : vector<1x1x128xf32> to vector<1x128xf32>
    %214 = vector.extract_strided_slice %34 {offsets = [3, 1, 0], sizes = [1, 1, 128], strides = [1, 1, 1]} : vector<4x2x128xf32> to vector<1x1x128xf32>
    %215 = vector.shape_cast %214 : vector<1x1x128xf32> to vector<1x128xf32>
    %216 = arith.truncf %209 : vector<64x128xf32> to vector<64x128xbf16>
    %cst_111 = arith.constant 0.000000e+00 : bf16
    %217 = vector.broadcast %cst_111 : bf16 to vector<1x128xbf16>
    %218 = vector.extract_strided_slice %216 {offsets = [0, 0], sizes = [63, 128], strides = [1, 1]} : vector<64x128xbf16> to vector<63x128xbf16>
    %219 = tpu.concatenate %217, %218 in 0 : vector<1x128xbf16>, vector<63x128xbf16> -> vector<64x128xbf16>
    %c0_i32_112 = arith.constant 0 : i32
    %220 = arith.sitofp %c0_i32_112 : i32 to bf16
    %221 = vector.shape_cast %31 : vector<64x1xi1> to vector<64x1xi1>
    %222 = vector.broadcast %221 : vector<64x1xi1> to vector<64x128xi1>
    %223 = vector.broadcast %220 : bf16 to vector<64x128xbf16>
    %224 = arith.select %222, %219, %223 : vector<64x128xi1>, vector<64x128xbf16>
    %cst_113 = arith.constant 0.000000e+00 : bf16
    %225 = vector.broadcast %cst_113 : bf16 to vector<1x128xbf16>
    %226 = vector.extract_strided_slice %216 {offsets = [1, 0], sizes = [63, 128], strides = [1, 1]} : vector<64x128xbf16> to vector<63x128xbf16>
    %227 = tpu.concatenate %226, %225 in 0 : vector<63x128xbf16>, vector<1x128xbf16> -> vector<64x128xbf16>
    %c0_i32_114 = arith.constant 0 : i32
    %228 = arith.sitofp %c0_i32_114 : i32 to bf16
    %229 = vector.shape_cast %33 : vector<64x1xi1> to vector<64x1xi1>
    %230 = vector.broadcast %229 : vector<64x1xi1> to vector<64x128xi1>
    %231 = vector.broadcast %228 : bf16 to vector<64x128xbf16>
    %232 = arith.select %230, %227, %231 : vector<64x128xi1>, vector<64x128xbf16>
    %cst_115 = arith.constant 0.000000e+00 : bf16
    %233 = vector.broadcast %cst_115 : bf16 to vector<8x128xbf16>
    %234 = vector.extract_strided_slice %224 {offsets = [0, 0], sizes = [56, 128], strides = [1, 1]} : vector<64x128xbf16> to vector<56x128xbf16>
    %235 = tpu.concatenate %233, %234 in 0 : vector<8x128xbf16>, vector<56x128xbf16> -> vector<64x128xbf16>
    %c0_116 = arith.constant 0 : index
    %c0_117 = arith.constant 0 : index
    %236 = vector.load %arg7[%c0_116, %c0_117] : memref<64x1152xbf16, #tpu.memory_space<vmem>>, vector<64x128xbf16>
    tpu.vector_store %arg7[%c0_116, %c0_117], %235 {strides = array<i32>} : memref<64x1152xbf16, #tpu.memory_space<vmem>>, vector<64x128xbf16>,
    %cst_118 = arith.constant 0.000000e+00 : bf16
    %237 = vector.broadcast %cst_118 : bf16 to vector<8x128xbf16>
    %238 = vector.extract_strided_slice %216 {offsets = [0, 0], sizes = [56, 128], strides = [1, 1]} : vector<64x128xbf16> to vector<56x128xbf16>
    %239 = tpu.concatenate %237, %238 in 0 : vector<8x128xbf16>, vector<56x128xbf16> -> vector<64x128xbf16>
    %c0_119 = arith.constant 0 : index
    %c128_120 = arith.constant 128 : index
    %240 = vector.load %arg7[%c0_119, %c128_120] : memref<64x1152xbf16, #tpu.memory_space<vmem>>, vector<64x128xbf16>
    tpu.vector_store %arg7[%c0_119, %c128_120], %239 {strides = array<i32>} : memref<64x1152xbf16, #tpu.memory_space<vmem>>, vector<64x128xbf16>,
    %cst_121 = arith.constant 0.000000e+00 : bf16
    %241 = vector.broadcast %cst_121 : bf16 to vector<8x128xbf16>
    %242 = vector.extract_strided_slice %232 {offsets = [0, 0], sizes = [56, 128], strides = [1, 1]} : vector<64x128xbf16> to vector<56x128xbf16>
    %243 = tpu.concatenate %241, %242 in 0 : vector<8x128xbf16>, vector<56x128xbf16> -> vector<64x128xbf16>
    %c0_122 = arith.constant 0 : index
    %c256_123 = arith.constant 256 : index
    %244 = vector.load %arg7[%c0_122, %c256_123] : memref<64x1152xbf16, #tpu.memory_space<vmem>>, vector<64x128xbf16>
    tpu.vector_store %arg7[%c0_122, %c256_123], %243 {strides = array<i32>} : memref<64x1152xbf16, #tpu.memory_space<vmem>>, vector<64x128xbf16>,
    %c0_124 = arith.constant 0 : index
    %c384_125 = arith.constant 384 : index
    %245 = vector.load %arg7[%c0_124, %c384_125] : memref<64x1152xbf16, #tpu.memory_space<vmem>>, vector<64x128xbf16>
    tpu.vector_store %arg7[%c0_124, %c384_125], %224 {strides = array<i32>} : memref<64x1152xbf16, #tpu.memory_space<vmem>>, vector<64x128xbf16>,
    %c0_126 = arith.constant 0 : index
    %c512_127 = arith.constant 512 : index
    %246 = vector.load %arg7[%c0_126, %c512_127] : memref<64x1152xbf16, #tpu.memory_space<vmem>>, vector<64x128xbf16>
    tpu.vector_store %arg7[%c0_126, %c512_127], %216 {strides = array<i32>} : memref<64x1152xbf16, #tpu.memory_space<vmem>>, vector<64x128xbf16>,
    %c0_128 = arith.constant 0 : index
    %c640_129 = arith.constant 640 : index
    %247 = vector.load %arg7[%c0_128, %c640_129] : memref<64x1152xbf16, #tpu.memory_space<vmem>>, vector<64x128xbf16>
    tpu.vector_store %arg7[%c0_128, %c640_129], %232 {strides = array<i32>} : memref<64x1152xbf16, #tpu.memory_space<vmem>>, vector<64x128xbf16>,
    %cst_130 = arith.constant 0.000000e+00 : bf16
    %248 = vector.broadcast %cst_130 : bf16 to vector<8x128xbf16>
    %249 = vector.extract_strided_slice %224 {offsets = [8, 0], sizes = [56, 128], strides = [1, 1]} : vector<64x128xbf16> to vector<56x128xbf16>
    %250 = tpu.concatenate %249, %248 in 0 : vector<56x128xbf16>, vector<8x128xbf16> -> vector<64x128xbf16>
    %c0_131 = arith.constant 0 : index
    %c768_132 = arith.constant 768 : index
    %251 = vector.load %arg7[%c0_131, %c768_132] : memref<64x1152xbf16, #tpu.memory_space<vmem>>, vector<64x128xbf16>
    tpu.vector_store %arg7[%c0_131, %c768_132], %250 {strides = array<i32>} : memref<64x1152xbf16, #tpu.memory_space<vmem>>, vector<64x128xbf16>,
    %cst_133 = arith.constant 0.000000e+00 : bf16
    %252 = vector.broadcast %cst_133 : bf16 to vector<8x128xbf16>
    %253 = vector.extract_strided_slice %216 {offsets = [8, 0], sizes = [56, 128], strides = [1, 1]} : vector<64x128xbf16> to vector<56x128xbf16>
    %254 = tpu.concatenate %253, %252 in 0 : vector<56x128xbf16>, vector<8x128xbf16> -> vector<64x128xbf16>
    %c0_134 = arith.constant 0 : index
    %c896_135 = arith.constant 896 : index
    %255 = vector.load %arg7[%c0_134, %c896_135] : memref<64x1152xbf16, #tpu.memory_space<vmem>>, vector<64x128xbf16>
    tpu.vector_store %arg7[%c0_134, %c896_135], %254 {strides = array<i32>} : memref<64x1152xbf16, #tpu.memory_space<vmem>>, vector<64x128xbf16>,
    %cst_136 = arith.constant 0.000000e+00 : bf16
    %256 = vector.broadcast %cst_136 : bf16 to vector<8x128xbf16>
    %257 = vector.extract_strided_slice %232 {offsets = [8, 0], sizes = [56, 128], strides = [1, 1]} : vector<64x128xbf16> to vector<56x128xbf16>
    %258 = tpu.concatenate %257, %256 in 0 : vector<56x128xbf16>, vector<8x128xbf16> -> vector<64x128xbf16>
    %c0_137 = arith.constant 0 : index
    %c1024_138 = arith.constant 1024 : index
    %259 = vector.load %arg7[%c0_137, %c1024_138] : memref<64x1152xbf16, #tpu.memory_space<vmem>>, vector<64x128xbf16>
    tpu.vector_store %arg7[%c0_137, %c1024_138], %258 {strides = array<i32>} : memref<64x1152xbf16, #tpu.memory_space<vmem>>, vector<64x128xbf16>,
    %c0_139 = arith.constant 0 : index
    %c0_140 = arith.constant 0 : index
    %260 = vector.load %arg7[%c0_139, %c0_140] : memref<64x1152xbf16, #tpu.memory_space<vmem>>, vector<64x1152xbf16>
    %cst_141 = arith.constant dense<0.000000e+00> : vector<64x128xf32>
    %261 = tpu.matmul %260, %211, %cst_141 {dimension_numbers = #tpu.dot_dimension_numbers<[1], [0], [0], [1], [0, 0, 1, 1], [], []>} : vector<64x1152xbf16>, vector<1152x128xbf16>, vector<64x128xf32> -> vector<64x128xf32>
    %262 = vector.broadcast %213 : vector<1x128xf32> to vector<64x128xf32>
    %263 = arith.mulf %261, %262 : vector<64x128xf32>
    %264 = vector.broadcast %215 : vector<1x128xf32> to vector<64x128xf32>
    %265 = arith.addf %263, %264 : vector<64x128xf32>
    %266 = arith.addf %265, %151 : vector<64x128xf32>
    %cst_142 = arith.constant 0.000000e+00 : f32
    %267 = vector.broadcast %cst_142 : f32 to vector<64x128xf32>
    %268 = arith.maximumf %266, %267 : vector<64x128xf32>
    %269 = vector.shape_cast %268 : vector<64x128xf32> to vector<1x64x128xf32>
    %270 = arith.truncf %269 : vector<1x64x128xf32> to vector<1x64x128xbf16>
    %c0_143 = arith.constant 0 : index
    %c0_144 = arith.constant 0 : index
    %c0_145 = arith.constant 0 : index
    %271 = vector.load %arg6[%c0_143, %c0_144, %c0_145] : memref<1x64x128xbf16, #tpu.memory_space<vmem>>, vector<1x64x128xbf16>
    tpu.vector_store %arg6[%c0_143, %c0_144, %c0_145], %270 {strides = array<i32>} : memref<1x64x128xbf16, #tpu.memory_space<vmem>>, vector<1x64x128xbf16>,
    return
  }
  func.func @transform_0(%arg0: i32) -> (i32, i32, i32) {
    %c0_i32 = arith.constant 0 : i32
    %c0_i32_0 = arith.constant 0 : i32
    %c0_i32_1 = arith.constant 0 : i32
    return %arg0, %c0_i32, %c0_i32_0 : i32, i32, i32
  }
  func.func @transform_1(%arg0: i32) -> (i32, i32) {
    %c0_i32 = arith.constant 0 : i32
    %c0_i32_0 = arith.constant 0 : i32
    %c0_i32_1 = arith.constant 0 : i32
    return %c0_i32, %c0_i32_0 : i32, i32
  }
  func.func @transform_2(%arg0: i32) -> (i32, i32) {
    %c0_i32 = arith.constant 0 : i32
    %c0_i32_0 = arith.constant 0 : i32
    %c0_i32_1 = arith.constant 0 : i32
    return %c0_i32, %c0_i32_0 : i32, i32
  }
  func.func @transform_3(%arg0: i32) -> (i32, i32, i32) {
    %c0_i32 = arith.constant 0 : i32
    %c0_i32_0 = arith.constant 0 : i32
    %c0_i32_1 = arith.constant 0 : i32
    %c0_i32_2 = arith.constant 0 : i32
    return %c0_i32, %c0_i32_0, %c0_i32_1 : i32, i32, i32
  }
  func.func @transform_4(%arg0: i32) -> (i32, i32, i32) {
    %c0_i32 = arith.constant 0 : i32
    %c0_i32_0 = arith.constant 0 : i32
    %c0_i32_1 = arith.constant 0 : i32
    %c0_i32_2 = arith.constant 0 : i32
    return %c0_i32, %c0_i32_0, %c0_i32_1 : i32, i32, i32
  }
  func.func @transform_5(%arg0: i32) -> (i32, i32, i32) {
    %c0_i32 = arith.constant 0 : i32
    %c0_i32_0 = arith.constant 0 : i32
    %c0_i32_1 = arith.constant 0 : i32
    return %arg0, %c0_i32, %c0_i32_0 : i32, i32, i32
  }
}

module attributes {stable_mosaic.version = 11 : i64} {
  func.func @_matmul_bias_kernel(%arg0: i32, %arg1: memref<8x8192xbf16, #tpu.memory_space<vmem>>, %arg2: memref<8192x128xbf16, #tpu.memory_space<vmem>>, %arg3: memref<1x128xf32, #tpu.memory_space<vmem>>, %arg4: memref<8x128xf32, #tpu.memory_space<vmem>>) attributes {dimension_semantics = [#tpu.dimension_semantics<parallel>], iteration_bounds = array<i64: 1>, scalar_prefetch = 0 : i64, scratch_operands = 0 : i64, tpu.core_type = #tpu.core_type<tc>, window_params = [{transform_indices = @transform_0, window_bounds = array<i64: 8, 8192>}, {pipeline_mode = #tpu.pipeline_mode<synchronous>, transform_indices = @transform_1, window_bounds = array<i64: 8192, 128>}, {pipeline_mode = #tpu.pipeline_mode<synchronous>, transform_indices = @transform_2, window_bounds = array<i64: 1, 128>}, {transform_indices = @transform_3, window_bounds = array<i64: 8, 128>}]} {
    %c0 = arith.constant 0 : index
    %c0_0 = arith.constant 0 : index
    %0 = vector.load %arg1[%c0, %c0_0] : memref<8x8192xbf16, #tpu.memory_space<vmem>>, vector<8x8192xbf16>
    %c0_1 = arith.constant 0 : index
    %c0_2 = arith.constant 0 : index
    %1 = vector.load %arg2[%c0_1, %c0_2] : memref<8192x128xbf16, #tpu.memory_space<vmem>>, vector<8192x128xbf16>
    %cst = arith.constant dense<0.000000e+00> : vector<8x128xf32>
    %2 = tpu.matmul %0, %1, %cst {dimension_numbers = #tpu.dot_dimension_numbers<[1], [0], [0], [1], [0, 0, 1, 1], [], []>} : vector<8x8192xbf16>, vector<8192x128xbf16>, vector<8x128xf32> -> vector<8x128xf32>
    %c0_3 = arith.constant 0 : index
    %c0_4 = arith.constant 0 : index
    %3 = vector.load %arg3[%c0_3, %c0_4] : memref<1x128xf32, #tpu.memory_space<vmem>>, vector<1x128xf32>
    %4 = vector.broadcast %3 : vector<1x128xf32> to vector<8x128xf32>
    %5 = arith.addf %2, %4 : vector<8x128xf32>
    %c0_5 = arith.constant 0 : index
    %c0_6 = arith.constant 0 : index
    %6 = vector.load %arg4[%c0_5, %c0_6] : memref<8x128xf32, #tpu.memory_space<vmem>>, vector<8x128xf32>
    tpu.vector_store %arg4[%c0_5, %c0_6], %5 {strides = array<i32>} : memref<8x128xf32, #tpu.memory_space<vmem>>, vector<8x128xf32>,
    return
  }
  func.func @transform_0(%arg0: i32) -> (i32, i32) {
    %c0_i32 = arith.constant 0 : i32
    %c0_i32_0 = arith.constant 0 : i32
    return %arg0, %c0_i32 : i32, i32
  }
  func.func @transform_1(%arg0: i32) -> (i32, i32) {
    %c0_i32 = arith.constant 0 : i32
    %c0_i32_0 = arith.constant 0 : i32
    %c0_i32_1 = arith.constant 0 : i32
    return %c0_i32, %c0_i32_0 : i32, i32
  }
  func.func @transform_2(%arg0: i32) -> (i32, i32) {
    %c0_i32 = arith.constant 0 : i32
    %c0_i32_0 = arith.constant 0 : i32
    %c0_i32_1 = arith.constant 0 : i32
    return %c0_i32, %c0_i32_0 : i32, i32
  }
  func.func @transform_3(%arg0: i32) -> (i32, i32) {
    %c0_i32 = arith.constant 0 : i32
    %c0_i32_0 = arith.constant 0 : i32
    return %arg0, %c0_i32 : i32, i32
  }
}

</mosaic_0001>

<llo_original>
// kernel: resnlh_forward.2
$region0: #{resnlh_forward.2}
  #allocation0 [shape = 'u32[]', space=smem, size = 0x4, offset = 0x4, fixed_abs, tag = 'smem constant byte address 0x4 - core index']
  #allocation1 [shape = 'u32[144,128]{1,0:T(1,128)}', space=vmem, size = 0x12000, scoped, tag = 'internal scratch']
  #allocation2 [shape = 'bf16[64,1152]{1,0:T(16,128)(2,1)}', space=vmem, size = 0x24000, scoped, tag = 'scratch operand']
  %s0 = inlined_call_operand.vmem [shape: bf16[2,64,128], index: 0, kind: input, shape index: {}]
  %s1 = inlined_call_operand.hbm [shape: bf16[128,128], index: 1, kind: input, shape index: {}]
  %s2 = inlined_call_operand.hbm [shape: f32[2,128], index: 2, kind: input, shape index: {}]
  %s3 = inlined_call_operand.hbm [shape: bf16[4,1152,128], index: 3, kind: input, shape index: {}]
  %s4 = inlined_call_operand.hbm [shape: f32[4,2,128], index: 4, kind: input, shape index: {}]
  %s5 = inlined_call_operand.vmem [shape: bf16[2,64,128], index: 5, kind: output, shape index: {}]
  %s6 = sld [smem:[#allocation0]]
  $region69: #{resnlh_forward.2} parent=0
    _
  %s8 = ssub.s32 1, %s6
  %s9 = scalar_select 0, %s8, %s6
  $region1: #{resnlh_forward.2} parent=0
    #allocation3 [shape = 'u8[32768]{0}', space=vmem, size = 0x8000, scoped, tag = 'input window, operand 1, single buffered']
    #allocation4 [shape = 's32[2]{0}', space=sflag, size = 0x8, scoped, tag = 'scoped memory for resnlh_forward.2']
    #allocation5 [shape = 'u8[1024]{0}', space=vmem, size = 0x400, scoped, tag = 'input window, operand 2, single buffered']
    #allocation6 [shape = 's32[1]{0}', space=sflag, size = 0x4, scoped, tag = 'scoped memory for resnlh_forward.2']
    #allocation7 [shape = 'u8[1179648]{0}', space=vmem, size = 0x120000, scoped, tag = 'input window, operand 3, single buffered']
    #allocation8 [shape = 'u8[4096]{0}', space=vmem, size = 0x1000, scoped, tag = 'input window, operand 4, single buffered']
    #allocation9 [shape = 's32[1]{0}', space=sflag, size = 0x4, scoped, tag = 'scoped memory for resnlh_forward.2']
    %10 = vsyncpa [#allocation4], 0
    %11 = vsyncpa [#allocation6], 0
    %12 = vsyncpa [#allocation9], 0
    loop: start=0, step=1, limit=4
    $region2: #{resnlh_forward.2} parent=1 // loop_pre_header
      _
    $region3: #{resnlh_forward.2} parent=1 // loop_header
      %s14 = sphi 0, %s18
      %p15 = scmp.ge.s32.totalorder %s14, 4
      %s24 = sphi 0, %s26
      %s27 = sphi 0, %s24
      %s28 = sphi 0, %s27
      %s44 = sphi 0, %s28
      %s48 = sphi 0, %s48
      %s50 = sphi 0, %s48
      %s51 = sphi 0, %s50
      %s65 = sphi 0, %s51
      %s69 = sphi 0, %s69
      %s71 = sphi 0, %s69
      %s72 = sphi 0, %s71
      %s86 = sphi 0, %s72
      %s90 = sphi 0, %s90
      %s92 = sphi 0, %s90
      %s93 = sphi 0, %s92
      %s107 = sphi 0, %s93
      %s111 = sphi 0, %s111
      %s113 = sphi 0, %s111
      %s114 = sphi 0, %s113
      %s128 = sphi 0, %s114
      %s134 = sphi 0, %s136
      %s137 = sphi 0, %s134
      %s138 = sphi 0, %s137
      %s154 = sphi 0, %s138
    $region4: #{resnlh_forward.2} parent=1 // loop_header_branch
      %17 = sbr.rel (%p15) target = $region8
    $region5: #{resnlh_forward.2} parent=1 // loop_body
      %s19 = ssub.s32 %s14, 1
      %s20 = ssub.s32 %s14, 2
      %s21 = sadd.s32 %s14, 1
      %s22 = ssub.s32 %s14, %s21
      %p23 = scmp.eq.s32.totalorder %s22, 0
      %s25 = sadd.s32 %s24, 1
      %s26 = scalar_select %p23, %s24, %s25
      %p29 = pneg %p23
      %p30 = scmp.eq.s32.totalorder %s14, 1
      %p31 = por %p29, %p30
      %p32 = scmp.ne.s32.totalorder %s24, %s27
      %p33 = scmp.eq.s32.totalorder %s14, 0
      %p34 = por %p32, %p33
      %p35 = scmp.ne.s32.totalorder %s24, %s27
      %p36 = scmp.eq.s32.totalorder %s19, 1
      %p37 = por %p35, %p36
      %p38 = scmp.ne.s32.totalorder %s27, %s28
      %p39 = scmp.eq.s32.totalorder %s19, 0
      %p40 = por %p38, %p39
      %p41 = scmp.ne.s32.totalorder %s27, %s28
      %p42 = scmp.eq.s32.totalorder %s20, 1
      %p43 = por %p41, %p42
      %p45 = scmp.ne.s32.totalorder %s28, %s44
      %p46 = scmp.eq.s32.totalorder %s20, 0
      %p47 = por %p45, %p46
      %s49 = sadd.s32 %s48, 1
      %p52 = scmp.eq.s32.totalorder %s14, 1
      %p53 = scmp.ne.s32.totalorder %s48, %s50
      %p54 = scmp.eq.s32.totalorder %s14, 0
      %p55 = por %p53, %p54
      %p56 = scmp.ne.s32.totalorder %s48, %s50
      %p57 = scmp.eq.s32.totalorder %s19, 1
      %p58 = por %p56, %p57
      %p59 = scmp.ne.s32.totalorder %s50, %s51
      %p60 = scmp.eq.s32.totalorder %s19, 0
      %p61 = por %p59, %p60
      %p62 = scmp.ne.s32.totalorder %s50, %s51
      %p63 = scmp.eq.s32.totalorder %s20, 1
      %p64 = por %p62, %p63
      %p66 = scmp.ne.s32.totalorder %s51, %s65
      %p67 = scmp.eq.s32.totalorder %s20, 0
      %p68 = por %p66, %p67
      %s70 = sadd.s32 %s69, 1
      %p73 = scmp.eq.s32.totalorder %s14, 1
      %p74 = scmp.ne.s32.totalorder %s69, %s71
      %p75 = scmp.eq.s32.totalorder %s14, 0
      %p76 = por %p74, %p75
      %p77 = scmp.ne.s32.totalorder %s69, %s71
      %p78 = scmp.eq.s32.totalorder %s19, 1
      %p79 = por %p77, %p78
      %p80 = scmp.ne.s32.totalorder %s71, %s72
      %p81 = scmp.eq.s32.totalorder %s19, 0
      %p82 = por %p80, %p81
      %p83 = scmp.ne.s32.totalorder %s71, %s72
      %p84 = scmp.eq.s32.totalorder %s20, 1
      %p85 = por %p83, %p84
      %p87 = scmp.ne.s32.totalorder %s72, %s86
      %p88 = scmp.eq.s32.totalorder %s20, 0
      %p89 = por %p87, %p88
      %s91 = sadd.s32 %s90, 1
      %p94 = scmp.eq.s32.totalorder %s14, 1
      %p95 = scmp.ne.s32.totalorder %s90, %s92
      %p96 = scmp.eq.s32.totalorder %s14, 0
      %p97 = por %p95, %p96
      %p98 = scmp.ne.s32.totalorder %s90, %s92
      %p99 = scmp.eq.s32.totalorder %s19, 1
      %p100 = por %p98, %p99
      %p101 = scmp.ne.s32.totalorder %s92, %s93
      %p102 = scmp.eq.s32.totalorder %s19, 0
      %p103 = por %p101, %p102
      %p104 = scmp.ne.s32.totalorder %s92, %s93
      %p105 = scmp.eq.s32.totalorder %s20, 1
      %p106 = por %p104, %p105
      %p108 = scmp.ne.s32.totalorder %s93, %s107
      %p109 = scmp.eq.s32.totalorder %s20, 0
      %p110 = por %p108, %p109
      %s112 = sadd.s32 %s111, 1
      %p115 = scmp.eq.s32.totalorder %s14, 1
      %p116 = scmp.ne.s32.totalorder %s111, %s113
      %p117 = scmp.eq.s32.totalorder %s14, 0
      %p118 = por %p116, %p117
      %p119 = scmp.ne.s32.totalorder %s111, %s113
      %p120 = scmp.eq.s32.totalorder %s19, 1
      %p121 = por %p119, %p120
      %p122 = scmp.ne.s32.totalorder %s113, %s114
      %p123 = scmp.eq.s32.totalorder %s19, 0
      %p124 = por %p122, %p123
      %p125 = scmp.ne.s32.totalorder %s113, %s114
      %p126 = scmp.eq.s32.totalorder %s20, 1
      %p127 = por %p125, %p126
      %p129 = scmp.ne.s32.totalorder %s114, %s128
      %p130 = scmp.eq.s32.totalorder %s20, 0
      %p131 = por %p129, %p130
      %s132 = ssub.s32 %s14, %s21
      %p133 = scmp.eq.s32.totalorder %s132, 0
      %s135 = sadd.s32 %s134, 1
      %s136 = scalar_select %p133, %s134, %s135
      %p139 = pneg %p133
      %p140 = scmp.eq.s32.totalorder %s14, 1
      %p141 = por %p139, %p140
      %p142 = scmp.ne.s32.totalorder %s134, %s137
      %p143 = scmp.eq.s32.totalorder %s14, 0
      %p144 = por %p142, %p143
      %p145 = scmp.ne.s32.totalorder %s134, %s137
      %p146 = scmp.eq.s32.totalorder %s19, 1
      %p147 = por %p145, %p146
      %p148 = scmp.ne.s32.totalorder %s137, %s138
      %p149 = scmp.eq.s32.totalorder %s19, 0
      %p150 = por %p148, %p149
      %p151 = scmp.ne.s32.totalorder %s137, %s138
      %p152 = scmp.eq.s32.totalorder %s20, 1
      %p153 = por %p151, %p152
      %p155 = scmp.ne.s32.totalorder %s138, %s154
      %p156 = scmp.eq.s32.totalorder %s20, 0
      %p157 = por %p155, %p156
      %p158 = scmp.le.s32.totalorder 1, %s14
      %p159 = scmp.lt.s32.totalorder %s14, 3
      %p160 = pnand %p158, %p159
      %p161 = pneg %p160
      // Predicated region
      $region9: #{resnlh_forward.2} parent=5 // pred_check
        _
      $region10: #{resnlh_forward.2} parent=5 // pred_check_branch
        %163 = sbr.rel (%p160) target = $region12
      $region11: #{resnlh_forward.2} parent=5 // pred_region
        %s164 = ssub.s32 %s14, 1
        // Predicated region
        $region13: #{resnlh_forward.2} parent=11 // pred_check
          %p165 = pneg %p61
        $region14: #{resnlh_forward.2} parent=11 // pred_check_branch
          %167 = sbr.rel (%p165) target = $region16
        $region15: #{resnlh_forward.2} parent=11 // pred_region
          %s169 = ssub.s32 1024, 1024
          %170 = vsyncadd [#allocation4], %s169
          %s171 = sshll.u32 [#allocation3], 4
          %s172 = int_to_ptr.vmem [resolvable:$true] %s171
          %177 = dma.hbm_to_vmem [thread:$0]  %s1, 1024, %s172, [#allocation4], 64, 64, 4
        $region16: #{resnlh_forward.2} parent=11 // pred_fallthru
          _
        // Predicated region
        $region17: #{resnlh_forward.2} parent=11 // pred_check
          %p178 = pneg %p82
        $region18: #{resnlh_forward.2} parent=11 // pred_check_branch
          %180 = sbr.rel (%p178) target = $region20
        $region19: #{resnlh_forward.2} parent=11 // pred_region
          %s182 = ssub.s32 32, 32
          %183 = vsyncadd [#allocation6], %s182
          %s185 = sshll.u32 [#allocation5], 4
          %s186 = int_to_ptr.vmem [resolvable:$true] %s185
          %188 = dma.hbm_to_vmem [thread:$0]  %s2, 32, %s186, [#allocation6]
        $region20: #{resnlh_forward.2} parent=11 // pred_fallthru
          _
        // Predicated region
        $region21: #{resnlh_forward.2} parent=11 // pred_check
          %p189 = pneg %p103
        $region22: #{resnlh_forward.2} parent=11 // pred_check_branch
          %191 = sbr.rel (%p189) target = $region24
        $region23: #{resnlh_forward.2} parent=11 // pred_region
          %s193 = ssub.s32 36864, 36864
          %194 = vsyncadd [#allocation6], %s193
          %s195 = sshll.u32 [#allocation7], 4
          %s196 = int_to_ptr.vmem [resolvable:$true] %s195
          %201 = dma.hbm_to_vmem [thread:$0]  %s3, 36864, %s196, [#allocation6], 64, 64, 4
        $region24: #{resnlh_forward.2} parent=11 // pred_fallthru
          _
        // Predicated region
        $region25: #{resnlh_forward.2} parent=11 // pred_check
          %p202 = pneg %p124
        $region26: #{resnlh_forward.2} parent=11 // pred_check_branch
          %204 = sbr.rel (%p202) target = $region28
        $region27: #{resnlh_forward.2} parent=11 // pred_region
          %s206 = ssub.s32 128, 128
          %207 = vsyncadd [#allocation9], %s206
          %s208 = sshll.u32 [#allocation8], 4
          %s209 = int_to_ptr.vmem [resolvable:$true] %s208
          %214 = dma.hbm_to_vmem [thread:$0]  %s4, 128, %s209, [#allocation9], 32, 32, 2
        $region28: #{resnlh_forward.2} parent=11 // pred_fallthru
          _
      $region12: #{resnlh_forward.2} parent=5 // pred_fallthru
        _
      %p215 = scmp.lt.s32.totalorder %s14, 2
      // Predicated region
      $region29: #{resnlh_forward.2} parent=5 // pred_check
        %p216 = pneg %p215
      $region30: #{resnlh_forward.2} parent=5 // pred_check_branch
        %218 = sbr.rel (%p216) target = $region32
      $region31: #{resnlh_forward.2} parent=5 // pred_region
        // Predicated region
        $region33: #{resnlh_forward.2} parent=31 // pred_check
          %p219 = pneg %p34
        $region34: #{resnlh_forward.2} parent=31 // pred_check_branch
          %221 = sbr.rel (%p219) target = $region36
        $region35: #{resnlh_forward.2} parent=31 // pred_region
          %p222 = scmp.lt.s32.totalorder %s14, 1
          %s223 = scalar_select %p222, %s14, 1
          %s224 = smul.addr %s223, 8
          %s225 = smul.addr %s224, 4
          %s226 = scalar_lea.vmem %s0, %s225
        $region36: #{resnlh_forward.2} parent=31 // pred_fallthru
          _
      $region32: #{resnlh_forward.2} parent=5 // pred_fallthru
        _
      %p227 = scmp.le.s32.totalorder 1, %s14
      %p228 = scmp.lt.s32.totalorder %s14, 3
      %p229 = pnand %p227, %p228
      %p230 = pneg %p229
      // Predicated region
      $region37: #{resnlh_forward.2} parent=5 // pred_check
        _
      $region38: #{resnlh_forward.2} parent=5 // pred_check_branch
        %232 = sbr.rel (%p229) target = $region40
      $region39: #{resnlh_forward.2} parent=5 // pred_region
        %s233 = ssub.s32 %s14, 1
        // Predicated region
        $region41: #{resnlh_forward.2} parent=39 // pred_check
          %p234 = pneg %p61
        $region42: #{resnlh_forward.2} parent=39 // pred_check_branch
          %236 = sbr.rel (%p234) target = $region44
        $region43: #{resnlh_forward.2} parent=39 // pred_region
          %237 = dma.done [#allocation4], 1024
        $region44: #{resnlh_forward.2} parent=39 // pred_fallthru
          _
        // Predicated region
        $region45: #{resnlh_forward.2} parent=39 // pred_check
          %p238 = pneg %p82
        $region46: #{resnlh_forward.2} parent=39 // pred_check_branch
          %240 = sbr.rel (%p238) target = $region48
        $region47: #{resnlh_forward.2} parent=39 // pred_region
          %241 = dma.done [#allocation6], 32
        $region48: #{resnlh_forward.2} parent=39 // pred_fallthru
          _
        // Predicated region
        $region49: #{resnlh_forward.2} parent=39 // pred_check
          %p242 = pneg %p103
        $region50: #{resnlh_forward.2} parent=39 // pred_check_branch
          %244 = sbr.rel (%p242) target = $region52
        $region51: #{resnlh_forward.2} parent=39 // pred_region
          %245 = dma.done [#allocation6], 36864
        $region52: #{resnlh_forward.2} parent=39 // pred_fallthru
          _
        // Predicated region
        $region53: #{resnlh_forward.2} parent=39 // pred_check
          %p246 = pneg %p124
        $region54: #{resnlh_forward.2} parent=39 // pred_check_branch
          %248 = sbr.rel (%p246) target = $region56
        $region55: #{resnlh_forward.2} parent=39 // pred_region
          %249 = dma.done [#allocation9], 128
        $region56: #{resnlh_forward.2} parent=39 // pred_fallthru
          _
        %p250 = scmp.lt.s32.totalorder %s19, 1
        %s251 = scalar_select %p250, %s19, 1
        %s252 = smul.addr %s251, 8
        %s253 = smul.addr %s252, 4
        %s254 = scalar_lea.vmem %s0, %s253
        %p255 = pneg %p40
        %p256 = pneg %p37
        %p257 = pneg %p61
        %p258 = pneg %p58
        %p259 = pneg %p82
        %p260 = pneg %p79
        %p261 = pneg %p103
        %p262 = pneg %p100
        %p263 = pneg %p124
        %p264 = pneg %p121
        %p265 = pneg %p150
        %p266 = pneg %p147
        %p267 = scmp.lt.s32.totalorder %s19, 1
        %s268 = scalar_select %p267, %s19, 1
        %s269 = smul.addr %s268, 8
        %s270 = smul.addr %s269, 4
        %s271 = scalar_lea.vmem %s5, %s270
        %p272 = scmp.lt.s32.totalorder %s19, 1
        %s273 = scalar_select %p272, %s19, 1
        %s274 = smul.addr %s273, 8
        %s275 = smul.addr %s274, 4
        %s276 = scalar_lea.vmem %s0, %s275
        %p277 = scmp.lt.s32.totalorder %s19, 1
        %s278 = scalar_select %p277, %s19, 1
        %s279 = smul.addr %s278, 8
        %s280 = smul.addr %s279, 4
        %s281 = scalar_lea.vmem %s5, %s280
        %v285 = vld [vmem:[#allocation5] sm:$0x3]
        %v286 = vld [vmem:[%s276] sm:$0xf]
        %v287 = vld [vmem:[%s276 + $0x4] sm:$0xf]
        %v288 = vld [vmem:[%s276 + $0x8] sm:$0xf]
        %v289 = vld [vmem:[%s276 + $0xc] sm:$0xf]
        %v290 = vld [vmem:[%s276 + $0x10] sm:$0xf]
        %v291 = vld [vmem:[%s276 + $0x14] sm:$0xf]
        %v292 = vld [vmem:[%s276 + $0x18] sm:$0xf]
        %v293 = vld [vmem:[%s276 + $0x1c] sm:$0xf]
        %v294 = vld [vmem:[#allocation3] sm:$0xf]
        %v295 = vld [vmem:[#allocation3 + $0x4] sm:$0xf]
        %v296 = vld [vmem:[#allocation3 + $0x8] sm:$0xf]
        %v297 = vld [vmem:[#allocation3 + $0xc] sm:$0xf]
        %v298 = vld [vmem:[#allocation3 + $0x10] sm:$0xf]
        %v299 = vld [vmem:[#allocation3 + $0x14] sm:$0xf]
        %v300 = vld [vmem:[#allocation3 + $0x18] sm:$0xf]
        %v301 = vld [vmem:[#allocation3 + $0x1c] sm:$0xf]
        %v302 = vld [vmem:[#allocation3 + $0x20] sm:$0xf]
        %v303 = vld [vmem:[#allocation3 + $0x24] sm:$0xf]
        %v304 = vld [vmem:[#allocation3 + $0x28] sm:$0xf]
        %v305 = vld [vmem:[#allocation3 + $0x2c] sm:$0xf]
        %v306 = vld [vmem:[#allocation3 + $0x30] sm:$0xf]
        %v307 = vld [vmem:[#allocation3 + $0x34] sm:$0xf]
        %v308 = vld [vmem:[#allocation3 + $0x38] sm:$0xf]
        %v309 = vld [vmem:[#allocation3 + $0x3c] sm:$0xf]
        %v318 = vunpack.c.l.b16 %v286
        %v319 = vunpack.c.l.b16 %v287
        %v320 = vunpack.c.l.b16 %v288
        %v321 = vunpack.c.l.b16 %v289
        %v322 = vunpack.c.l.b16 %v290
        %v323 = vunpack.c.l.b16 %v291
        %v324 = vunpack.c.l.b16 %v292
        %v325 = vunpack.c.l.b16 %v293
        %v326 = vpack.c.b16 %v319, %v318
        %v327 = vpack.c.b16 %v321, %v320
        %v328 = vpack.c.b16 %v323, %v322
        %v329 = vpack.c.b16 %v325, %v324
        %v350 = vunpack.c.l.b16 %v294
        %v351 = vunpack.c.l.b16 %v295
        %v352 = vunpack.c.l.b16 %v296
        %v353 = vunpack.c.l.b16 %v297
        %v354 = vunpack.c.l.b16 %v298
        %v355 = vunpack.c.l.b16 %v299
        %v356 = vunpack.c.l.b16 %v300
        %v357 = vunpack.c.l.b16 %v301
        %v358 = vunpack.c.l.b16 %v302
        %v359 = vunpack.c.l.b16 %v303
        %v360 = vunpack.c.l.b16 %v304
        %v361 = vunpack.c.l.b16 %v305
        %v362 = vunpack.c.l.b16 %v306
        %v363 = vunpack.c.l.b16 %v307
        %v364 = vunpack.c.l.b16 %v308
        %v365 = vunpack.c.l.b16 %v309
        %v366 = vpack.c.b16 %v351, %v350
        %v367 = vpack.c.b16 %v353, %v352
        %v368 = vpack.c.b16 %v355, %v354
        %v369 = vpack.c.b16 %v357, %v356
        %v370 = vpack.c.b16 %v359, %v358
        %v371 = vpack.c.b16 %v361, %v360
        %v372 = vpack.c.b16 %v363, %v362
        %v373 = vpack.c.b16 %v365, %v364
        %382 = vmatprep.subr.bf16.mxu0 0
        %383 = vmatpush1.bf16.msra.mxu0 %v366
        %384 = vmatprep.subr.bf16.mxu0 0
        %385 = vmatpush1.bf16.msra.mxu0 %v367
        %386 = vmatprep.subr.bf16.mxu0 0
        %387 = vmatpush1.bf16.msra.mxu0 %v368
        %388 = vmatprep.subr.bf16.mxu0 0
        %389 = vmatpush1.bf16.msra.mxu0 %v369
        %390 = vmatprep.subr.bf16.mxu0 0
        %391 = vmatpush1.bf16.msra.mxu0 %v370
        %392 = vmatprep.subr.bf16.mxu0 0
        %393 = vmatpush1.bf16.msra.mxu0 %v371
        %394 = vmatprep.subr.bf16.mxu0 0
        %395 = vmatpush1.bf16.msra.mxu0 %v372
        %396 = vmatprep.subr.bf16.mxu0 0
        %397 = vmatpush1.bf16.msra.mxu0 %v373
        %398 = vmatprep.subr.bf16.mxu0 0
        %399 = vmatpush1.bf16.msra.mxu0 0
        %400 = vmatprep.subr.bf16.mxu0 0
        %401 = vmatpush1.bf16.msra.mxu0 0
        %402 = vmatprep.subr.bf16.mxu0 0
        %403 = vmatpush1.bf16.msra.mxu0 0
        %404 = vmatprep.subr.bf16.mxu0 0
        %405 = vmatpush1.bf16.msra.mxu0 0
        %406 = vmatprep.subr.bf16.mxu0 0
        %407 = vmatpush1.bf16.msra.mxu0 0
        %408 = vmatprep.subr.bf16.mxu0 0
        %409 = vmatpush1.bf16.msra.mxu0 0
        %410 = vmatprep.subr.bf16.mxu0 0
        %411 = vmatpush1.bf16.msra.mxu0 0
        %412 = vmatprep.subr.bf16.mxu0 0
        %413 = vmatpush1.bf16.msra.mxu0 0
        %414 = vmatprep.mubr.bf16.mxu0 0
        %415 = vmatmul.mubr.bf16.gmra.mrb[0].mxu0 %v326
        %v416 = vpop.f32.mrb[0].mxu0
        %v417 = vadd.f32 0.0, %v416
        %v418 = vpop.f32.mrb[0].mxu0
        %v419 = vpop.f32.mrb[0].mxu0
        %v420 = vadd.f32 0.0, %v419
        %v421 = vpop.f32.mrb[0].mxu0
        %422 = vmatprep.mubr.bf16.mxu0 0
        %423 = vmatmul.mubr.bf16.gmra.mrb[0].mxu0 %v327
        %v424 = vpop.f32.mrb[0].mxu0
        %v425 = vadd.f32 0.0, %v424
        %v426 = vpop.f32.mrb[0].mxu0
        %v427 = vpop.f32.mrb[0].mxu0
        %v428 = vadd.f32 0.0, %v427
        %v429 = vpop.f32.mrb[0].mxu0
        %430 = vmatprep.mubr.bf16.mxu0 0
        %431 = vmatmul.mubr.bf16.gmra.mrb[0].mxu0 %v328
        %v432 = vpop.f32.mrb[0].mxu0
        %v433 = vadd.f32 0.0, %v432
        %v434 = vpop.f32.mrb[0].mxu0
        %v435 = vpop.f32.mrb[0].mxu0
        %v436 = vadd.f32 0.0, %v435
        %v437 = vpop.f32.mrb[0].mxu0
        %438 = vmatprep.mubr.bf16.mxu0 0
        %439 = vmatmul.mubr.bf16.gmra.mrb[0].mxu0 %v329
        %v440 = vpop.f32.mrb[0].mxu0
        %v441 = vadd.f32 0.0, %v440
        %v442 = vpop.f32.mrb[0].mxu0
        %v443 = vpop.f32.mrb[0].mxu0
        %v444 = vadd.f32 0.0, %v443
        %v445 = vpop.f32.mrb[0].mxu0
        %446 = vdwg.mxu0
        %v447 = vlaneseq
        %v448 = vshrl.u32 %v447, 7
        %v449 = vsub.s32 0, %v448
        %v450 = vrot.slane %v285, %v449
        %v451 = vmul.f32 %v417, %v450
        %v452 = vmul.f32 %v420, %v450
        %v453 = vmul.f32 %v425, %v450
        %v454 = vmul.f32 %v428, %v450
        %v455 = vmul.f32 %v433, %v450
        %v456 = vmul.f32 %v436, %v450
        %v457 = vmul.f32 %v441, %v450
        %v458 = vmul.f32 %v444, %v450
        %v459 = vlaneseq
        %v460 = vshrl.u32 %v459, 7
        %v461 = vsub.s32 1, %v460
        %v462 = vrot.slane %v285, %v461
        %v463 = vadd.f32 %v451, %v462
        %v464 = vadd.f32 %v452, %v462
        %v465 = vadd.f32 %v453, %v462
        %v466 = vadd.f32 %v454, %v462
        %v467 = vadd.f32 %v455, %v462
        %v468 = vadd.f32 %v456, %v462
        %v469 = vadd.f32 %v457, %v462
        %v470 = vadd.f32 %v458, %v462
        %v471 = vmax.f32 %v463, 0.0
        %v472 = vmax.f32 %v464, 0.0
        %v473 = vmax.f32 %v465, 0.0
        %v474 = vmax.f32 %v466, 0.0
        %v475 = vmax.f32 %v467, 0.0
        %v476 = vmax.f32 %v468, 0.0
        %v477 = vmax.f32 %v469, 0.0
        %v478 = vmax.f32 %v470, 0.0
        %v479 = vlaneseq
        %v480 = vshrl.u32 %v479, 7
        %v481 = vadd.s32 %v480, 8
        %v482 = vadd.s32 %v480, 16
        %v483 = vadd.s32 %v480, 24
        %v484 = vadd.s32 %v480, 32
        %v485 = vadd.s32 %v480, 40
        %v486 = vadd.s32 %v480, 48
        %v487 = vadd.s32 %v480, 56
        %vm488 = vcmp.lt.s32.totalorder %v480, 0
        %v489 = vsub.s32 0, %v480
        %v490 = vsel %vm488, %v489, %v480
        %v491 = vshrl.u32 %v490, 3
        %v492 = vand.u32 %v490, 7
        %v493 = vsub.s32 0, %v492
        %v494 = vsel %vm488, %v493, %v492
        %vm495 = vcmp.lt.s32.totalorder %v481, 0
        %v496 = vsub.s32 0, %v481
        %v497 = vsel %vm495, %v496, %v481
        %v498 = vshrl.u32 %v497, 3
        %v499 = vand.u32 %v497, 7
        %v500 = vsub.s32 0, %v499
        %v501 = vsel %vm495, %v500, %v499
        %vm502 = vcmp.lt.s32.totalorder %v482, 0
        %v503 = vsub.s32 0, %v482
        %v504 = vsel %vm502, %v503, %v482
        %v505 = vshrl.u32 %v504, 3
        %v506 = vand.u32 %v504, 7
        %v507 = vsub.s32 0, %v506
        %v508 = vsel %vm502, %v507, %v506
        %vm509 = vcmp.lt.s32.totalorder %v483, 0
        %v510 = vsub.s32 0, %v483
        %v511 = vsel %vm509, %v510, %v483
        %v512 = vshrl.u32 %v511, 3
        %v513 = vand.u32 %v511, 7
        %v514 = vsub.s32 0, %v513
        %v515 = vsel %vm509, %v514, %v513
        %vm516 = vcmp.lt.s32.totalorder %v484, 0
        %v517 = vsub.s32 0, %v484
        %v518 = vsel %vm516, %v517, %v484
        %v519 = vshrl.u32 %v518, 3
        %v520 = vand.u32 %v518, 7
        %v521 = vsub.s32 0, %v520
        %v522 = vsel %vm516, %v521, %v520
        %vm523 = vcmp.lt.s32.totalorder %v485, 0
        %v524 = vsub.s32 0, %v485
        %v525 = vsel %vm523, %v524, %v485
        %v526 = vshrl.u32 %v525, 3
        %v527 = vand.u32 %v525, 7
        %v528 = vsub.s32 0, %v527
        %v529 = vsel %vm523, %v528, %v527
        %vm530 = vcmp.lt.s32.totalorder %v486, 0
        %v531 = vsub.s32 0, %v486
        %v532 = vsel %vm530, %v531, %v486
        %v533 = vshrl.u32 %v532, 3
        %v534 = vand.u32 %v532, 7
        %v535 = vsub.s32 0, %v534
        %v536 = vsel %vm530, %v535, %v534
        %vm537 = vcmp.lt.s32.totalorder %v487, 0
        %v538 = vsub.s32 0, %v487
        %v539 = vsel %vm537, %v538, %v487
        %v540 = vshrl.u32 %v539, 3
        %v541 = vand.u32 %v539, 7
        %v542 = vsub.s32 0, %v541
        %v543 = vsel %vm537, %v542, %v541
        %vm544 = vcmp.ne.s32.totalorder %v494, 0
        %vm545 = vcmp.ne.s32.totalorder %v501, 0
        %vm546 = vcmp.ne.s32.totalorder %v508, 0
        %vm547 = vcmp.ne.s32.totalorder %v515, 0
        %vm548 = vcmp.ne.s32.totalorder %v522, 0
        %vm549 = vcmp.ne.s32.totalorder %v529, 0
        %vm550 = vcmp.ne.s32.totalorder %v536, 0
        %vm551 = vcmp.ne.s32.totalorder %v543, 0
        %vm552 = vcmp.lt.s32.totalorder %v494, 0
        %vm553 = vcmp.lt.s32.totalorder %v501, 0
        %vm554 = vcmp.lt.s32.totalorder %v508, 0
        %vm555 = vcmp.lt.s32.totalorder %v515, 0
        %vm556 = vcmp.lt.s32.totalorder %v522, 0
        %vm557 = vcmp.lt.s32.totalorder %v529, 0
        %vm558 = vcmp.lt.s32.totalorder %v536, 0
        %vm559 = vcmp.lt.s32.totalorder %v543, 0
        %vm560 = vmand %vm552, %vm544
        %vm561 = vmand %vm553, %vm545
        %vm562 = vmand %vm554, %vm546
        %vm563 = vmand %vm555, %vm547
        %vm564 = vmand %vm556, %vm548
        %vm565 = vmand %vm557, %vm549
        %vm566 = vmand %vm558, %vm550
        %vm567 = vmand %vm559, %vm551
        %v568 = vadd.s32 %v494, 8
        %v569 = vadd.s32 %v501, 8
        %v570 = vadd.s32 %v508, 8
        %v571 = vadd.s32 %v515, 8
        %v572 = vadd.s32 %v522, 8
        %v573 = vadd.s32 %v529, 8
        %v574 = vadd.s32 %v536, 8
        %v575 = vadd.s32 %v543, 8
        %v576 = vsel %vm560, %v568, %v494
        %v577 = vsel %vm561, %v569, %v501
        %v578 = vsel %vm562, %v570, %v508
        %v579 = vsel %vm563, %v571, %v515
        %v580 = vsel %vm564, %v572, %v522
        %v581 = vsel %vm565, %v573, %v529
        %v582 = vsel %vm566, %v574, %v536
        %v583 = vsel %vm567, %v575, %v543
        %vm584 = vcmp.ge.s32.totalorder %v576, 1
        %vm585 = vcmp.ge.s32.totalorder %v577, 1
        %vm586 = vcmp.ge.s32.totalorder %v578, 1
        %vm587 = vcmp.ge.s32.totalorder %v579, 1
        %vm588 = vcmp.ge.s32.totalorder %v580, 1
        %vm589 = vcmp.ge.s32.totalorder %v581, 1
        %vm590 = vcmp.ge.s32.totalorder %v582, 1
        %vm591 = vcmp.ge.s32.totalorder %v583, 1
        %vm592 = vcmp.le.s32.totalorder %v576, 6
        %vm593 = vcmp.le.s32.totalorder %v577, 6
        %vm594 = vcmp.le.s32.totalorder %v578, 6
        %vm595 = vcmp.le.s32.totalorder %v579, 6
        %vm596 = vcmp.le.s32.totalorder %v580, 6
        %vm597 = vcmp.le.s32.totalorder %v581, 6
        %vm598 = vcmp.le.s32.totalorder %v582, 6
        %vm599 = vcmp.le.s32.totalorder %v583, 6
        %v600 = vld [vmem:[#allocation8] sm:$0x3]
        %v601 = vld [vmem:[#allocation8 + $0x2] sm:$0x3]
        %v602 = vld [vmem:[#allocation8 + $0x4] sm:$0x3]
        %v603 = vld [vmem:[#allocation8 + $0x6] sm:$0x3]
        %v604 = vld [vmem:[#allocation7] sm:$0xf]
        %v605 = vld [vmem:[#allocation7 + $0x4] sm:$0xf]
        %v606 = vld [vmem:[#allocation7 + $0x8] sm:$0xf]
        %v607 = vld [vmem:[#allocation7 + $0xc] sm:$0xf]
        %v608 = vld [vmem:[#allocation7 + $0x10] sm:$0xf]
        %v609 = vld [vmem:[#allocation7 + $0x14] sm:$0xf]
        %v610 = vld [vmem:[#allocation7 + $0x18] sm:$0xf]
        %v611 = vld [vmem:[#allocation7 + $0x1c] sm:$0xf]
        %v612 = vld [vmem:[#allocation7 + $0x20] sm:$0xf]
        %v613 = vld [vmem:[#allocation7 + $0x24] sm:$0xf]
        %v614 = vld [vmem:[#allocation7 + $0x28] sm:$0xf]
        %v615 = vld [vmem:[#allocation7 + $0x2c] sm:$0xf]
        %v616 = vld [vmem:[#allocation7 + $0x30] sm:$0xf]
        %v617 = vld [vmem:[#allocation7 + $0x34] sm:$0xf]
        %v618 = vld [vmem:[#allocation7 + $0x38] sm:$0xf]
        %v619 = vld [vmem:[#allocation7 + $0x3c] sm:$0xf]
        %v620 = vld [vmem:[#allocation7 + $0x40] sm:$0xf]
        %v621 = vld [vmem:[#allocation7 + $0x44] sm:$0xf]
        %v622 = vld [vmem:[#allocation7 + $0x48] sm:$0xf]
        %v623 = vld [vmem:[#allocation7 + $0x4c] sm:$0xf]
        %v624 = vld [vmem:[#allocation7 + $0x50] sm:$0xf]
        %v625 = vld [vmem:[#allocation7 + $0x54] sm:$0xf]
        %v626 = vld [vmem:[#allocation7 + $0x58] sm:$0xf]
        %v627 = vld [vmem:[#allocation7 + $0x5c] sm:$0xf]
        %v628 = vld [vmem:[#allocation7 + $0x60] sm:$0xf]
        %v629 = vld [vmem:[#allocation7 + $0x64] sm:$0xf]
        %v630 = vld [vmem:[#allocation7 + $0x68] sm:$0xf]
        %v631 = vld [vmem:[#allocation7 + $0x6c] sm:$0xf]
        %v632 = vld [vmem:[#allocation7 + $0x70] sm:$0xf]
        %v633 = vld [vmem:[#allocation7 + $0x74] sm:$0xf]
        %v634 = vld [vmem:[#allocation7 + $0x78] sm:$0xf]
        %v635 = vld [vmem:[#allocation7 + $0x7c] sm:$0xf]
        %v636 = vld [vmem:[#allocation7 + $0x80] sm:$0xf]
        %v637 = vld [vmem:[#allocation7 + $0x84] sm:$0xf]
        %v638 = vld [vmem:[#allocation7 + $0x88] sm:$0xf]
        %v639 = vld [vmem:[#allocation7 + $0x8c] sm:$0xf]
        %v640 = vld [vmem:[#allocation7 + $0x90] sm:$0xf]
        %v641 = vld [vmem:[#allocation7 + $0x94] sm:$0xf]
        %v642 = vld [vmem:[#allocation7 + $0x98] sm:$0xf]
        %v643 = vld [vmem:[#allocation7 + $0x9c] sm:$0xf]
        %v644 = vld [vmem:[#allocation7 + $0xa0] sm:$0xf]
        %v645 = vld [vmem:[#allocation7 + $0xa4] sm:$0xf]
        %v646 = vld [vmem:[#allocation7 + $0xa8] sm:$0xf]
        %v647 = vld [vmem:[#allocation7 + $0xac] sm:$0xf]
        %v648 = vld [vmem:[#allocation7 + $0xb0] sm:$0xf]
        %v649 = vld [vmem:[#allocation7 + $0xb4] sm:$0xf]
        %v650 = vld [vmem:[#allocation7 + $0xb8] sm:$0xf]
        %v651 = vld [vmem:[#allocation7 + $0xbc] sm:$0xf]
        %v652 = vld [vmem:[#allocation7 + $0xc0] sm:$0xf]
        %v653 = vld [vmem:[#allocation7 + $0xc4] sm:$0xf]
        %v654 = vld [vmem:[#allocation7 + $0xc8] sm:$0xf]
        %v655 = vld [vmem:[#allocation7 + $0xcc] sm:$0xf]
        %v656 = vld [vmem:[#allocation7 + $0xd0] sm:$0xf]
        %v657 = vld [vmem:[#allocation7 + $0xd4] sm:$0xf]
        %v658 = vld [vmem:[#allocation7 + $0xd8] sm:$0xf]
        %v659 = vld [vmem:[#allocation7 + $0xdc] sm:$0xf]
        %v660 = vld [vmem:[#allocation7 + $0xe0] sm:$0xf]
        %v661 = vld [vmem:[#allocation7 + $0xe4] sm:$0xf]
        %v662 = vld [vmem:[#allocation7 + $0xe8] sm:$0xf]
        %v663 = vld [vmem:[#allocation7 + $0xec] sm:$0xf]
        %v664 = vld [vmem:[#allocation7 + $0xf0] sm:$0xf]
        %v665 = vld [vmem:[#allocation7 + $0xf4] sm:$0xf]
        %v666 = vld [vmem:[#allocation7 + $0xf8] sm:$0xf]
        %v667 = vld [vmem:[#allocation7 + $0xfc] sm:$0xf]
        %v668 = vld [vmem:[#allocation7 + $0x100] sm:$0xf]
        %v669 = vld [vmem:[#allocation7 + $0x104] sm:$0xf]
        %v670 = vld [vmem:[#allocation7 + $0x108] sm:$0xf]
        %v671 = vld [vmem:[#allocation7 + $0x10c] sm:$0xf]
        %v672 = vld [vmem:[#allocation7 + $0x110] sm:$0xf]
        %v673 = vld [vmem:[#allocation7 + $0x114] sm:$0xf]
        %v674 = vld [vmem:[#allocation7 + $0x118] sm:$0xf]
        %v675 = vld [vmem:[#allocation7 + $0x11c] sm:$0xf]
        %v676 = vld [vmem:[#allocation7 + $0x120] sm:$0xf]
        %v677 = vld [vmem:[#allocation7 + $0x124] sm:$0xf]
        %v678 = vld [vmem:[#allocation7 + $0x128] sm:$0xf]
        %v679 = vld [vmem:[#allocation7 + $0x12c] sm:$0xf]
        %v680 = vld [vmem:[#allocation7 + $0x130] sm:$0xf]
        %v681 = vld [vmem:[#allocation7 + $0x134] sm:$0xf]
        %v682 = vld [vmem:[#allocation7 + $0x138] sm:$0xf]
        %v683 = vld [vmem:[#allocation7 + $0x13c] sm:$0xf]
        %v684 = vld [vmem:[#allocation7 + $0x140] sm:$0xf]
        %v685 = vld [vmem:[#allocation7 + $0x144] sm:$0xf]
        %v686 = vld [vmem:[#allocation7 + $0x148] sm:$0xf]
        %v687 = vld [vmem:[#allocation7 + $0x14c] sm:$0xf]
        %v688 = vld [vmem:[#allocation7 + $0x150] sm:$0xf]
        %v689 = vld [vmem:[#allocation7 + $0x154] sm:$0xf]
        %v690 = vld [vmem:[#allocation7 + $0x158] sm:$0xf]
        %v691 = vld [vmem:[#allocation7 + $0x15c] sm:$0xf]
        %v692 = vld [vmem:[#allocation7 + $0x160] sm:$0xf]
        %v693 = vld [vmem:[#allocation7 + $0x164] sm:$0xf]
        %v694 = vld [vmem:[#allocation7 + $0x168] sm:$0xf]
        %v695 = vld [vmem:[#allocation7 + $0x16c] sm:$0xf]
        %v696 = vld [vmem:[#allocation7 + $0x170] sm:$0xf]
        %v697 = vld [vmem:[#allocation7 + $0x174] sm:$0xf]
        %v698 = vld [vmem:[#allocation7 + $0x178] sm:$0xf]
        %v699 = vld [vmem:[#allocation7 + $0x17c] sm:$0xf]
        %v700 = vld [vmem:[#allocation7 + $0x180] sm:$0xf]
        %v701 = vld [vmem:[#allocation7 + $0x184] sm:$0xf]
        %v702 = vld [vmem:[#allocation7 + $0x188] sm:$0xf]
        %v703 = vld [vmem:[#allocation7 + $0x18c] sm:$0xf]
        %v704 = vld [vmem:[#allocation7 + $0x190] sm:$0xf]
        %v705 = vld [vmem:[#allocation7 + $0x194] sm:$0xf]
        %v706 = vld [vmem:[#allocation7 + $0x198] sm:$0xf]
        %v707 = vld [vmem:[#allocation7 + $0x19c] sm:$0xf]
        %v708 = vld [vmem:[#allocation7 + $0x1a0] sm:$0xf]
        %v709 = vld [vmem:[#allocation7 + $0x1a4] sm:$0xf]
        %v710 = vld [vmem:[#allocation7 + $0x1a8] sm:$0xf]
        %v711 = vld [vmem:[#allocation7 + $0x1ac] sm:$0xf]
        %v712 = vld [vmem:[#allocation7 + $0x1b0] sm:$0xf]
        %v713 = vld [vmem:[#allocation7 + $0x1b4] sm:$0xf]
        %v714 = vld [vmem:[#allocation7 + $0x1b8] sm:$0xf]
        %v715 = vld [vmem:[#allocation7 + $0x1bc] sm:$0xf]
        %v716 = vld [vmem:[#allocation7 + $0x1c0] sm:$0xf]
        %v717 = vld [vmem:[#allocation7 + $0x1c4] sm:$0xf]
        %v718 = vld [vmem:[#allocation7 + $0x1c8] sm:$0xf]
        %v719 = vld [vmem:[#allocation7 + $0x1cc] sm:$0xf]
        %v720 = vld [vmem:[#allocation7 + $0x1d0] sm:$0xf]
        %v721 = vld [vmem:[#allocation7 + $0x1d4] sm:$0xf]
        %v722 = vld [vmem:[#allocation7 + $0x1d8] sm:$0xf]
        %v723 = vld [vmem:[#allocation7 + $0x1dc] sm:$0xf]
        %v724 = vld [vmem:[#allocation7 + $0x1e0] sm:$0xf]
        %v725 = vld [vmem:[#allocation7 + $0x1e4] sm:$0xf]
        %v726 = vld [vmem:[#allocation7 + $0x1e8] sm:$0xf]
        %v727 = vld [vmem:[#allocation7 + $0x1ec] sm:$0xf]
        %v728 = vld [vmem:[#allocation7 + $0x1f0] sm:$0xf]
        %v729 = vld [vmem:[#allocation7 + $0x1f4] sm:$0xf]
        %v730 = vld [vmem:[#allocation7 + $0x1f8] sm:$0xf]
        %v731 = vld [vmem:[#allocation7 + $0x1fc] sm:$0xf]
        %v732 = vld [vmem:[#allocation7 + $0x200] sm:$0xf]
        %v733 = vld [vmem:[#allocation7 + $0x204] sm:$0xf]
        %v734 = vld [vmem:[#allocation7 + $0x208] sm:$0xf]
        %v735 = vld [vmem:[#allocation7 + $0x20c] sm:$0xf]
        %v736 = vld [vmem:[#allocation7 + $0x210] sm:$0xf]
        %v737 = vld [vmem:[#allocation7 + $0x214] sm:$0xf]
        %v738 = vld [vmem:[#allocation7 + $0x218] sm:$0xf]
        %v739 = vld [vmem:[#allocation7 + $0x21c] sm:$0xf]
        %v740 = vld [vmem:[#allocation7 + $0x220] sm:$0xf]
        %v741 = vld [vmem:[#allocation7 + $0x224] sm:$0xf]
        %v742 = vld [vmem:[#allocation7 + $0x228] sm:$0xf]
        %v743 = vld [vmem:[#allocation7 + $0x22c] sm:$0xf]
        %v744 = vld [vmem:[#allocation7 + $0x230] sm:$0xf]
        %v745 = vld [vmem:[#allocation7 + $0x234] sm:$0xf]
        %v746 = vld [vmem:[#allocation7 + $0x238] sm:$0xf]
        %v747 = vld [vmem:[#allocation7 + $0x23c] sm:$0xf]
        %v748 = vpack.c.bf16 %v472, %v471
        %v749 = vpack.c.bf16 %v474, %v473
        %v750 = vpack.c.bf16 %v476, %v475
        %v751 = vpack.c.bf16 %v478, %v477
        %vm752 = vsmask.f32 256
        %v754 = vshrl.u32 %v748, 16
        %v756 = vrot.slane %v754, 7
        %v757 = vshll.u32 %v748, 16
        %v759 = vor.u32 %v756, %v757
        %v761 = vshrl.u32 %v749, 16
        %v763 = vrot.slane %v761, 7
        %v764 = vshll.u32 %v749, 16
        %v766 = vor.u32 %v763, %v764
        %v767 = vsel %vm752, %v756, %v766
        %v769 = vshrl.u32 %v750, 16
        %v771 = vrot.slane %v769, 7
        %v772 = vshll.u32 %v750, 16
        %v774 = vor.u32 %v771, %v772
        %v775 = vsel %vm752, %v763, %v774
        %v777 = vshrl.u32 %v751, 16
        %v779 = vrot.slane %v777, 7
        %v780 = vshll.u32 %v751, 16
        %v782 = vor.u32 %v779, %v780
        %v783 = vsel %vm752, %v771, %v782
        %vm788 = vcmask 1040384
        %vm789 = vmand %vm788, %vm752
        %v790 = vsel %vm789, 0, %v759
        %v791 = vsel %vm584, 1, 0
        %v792 = vsel %vm585, 1, 0
        %v793 = vsel %vm586, 1, 0
        %v794 = vsel %vm587, 1, 0
        %v795 = vsel %vm588, 1, 0
        %v796 = vsel %vm589, 1, 0
        %v797 = vsel %vm590, 1, 0
        %v798 = vsel %vm591, 1, 0
        %vm799 = vcmp.eq.s32.totalorder %v791, 1
        %vm800 = vcmp.eq.s32.totalorder %v792, 1
        %vm801 = vcmp.eq.s32.totalorder %v793, 1
        %vm802 = vcmp.eq.s32.totalorder %v794, 1
        %vm803 = vcmp.eq.s32.totalorder %v795, 1
        %vm804 = vcmp.eq.s32.totalorder %v796, 1
        %vm805 = vcmp.eq.s32.totalorder %v797, 1
        %vm806 = vcmp.eq.s32.totalorder %v798, 1
        %vm807 = vmpackc.low %vm799, %vm799
        %vm808 = vmpackc.low %vm800, %vm800
        %vm809 = vmpackc.low %vm801, %vm801
        %vm810 = vmpackc.low %vm802, %vm802
        %vm811 = vmpackc.low %vm803, %vm803
        %vm812 = vmpackc.low %vm804, %vm804
        %vm813 = vmpackc.low %vm805, %vm805
        %vm814 = vmpackc.low %vm806, %vm806
        %v815 = vsel %vm807, 65537, 0
        %v816 = vsel %vm808, 65537, 0
        %v817 = vsel %vm809, 65537, 0
        %v818 = vsel %vm810, 65537, 0
        %v819 = vsel %vm811, 65537, 0
        %v820 = vsel %vm812, 65537, 0
        %v821 = vsel %vm813, 65537, 0
        %v822 = vsel %vm814, 65537, 0
        %v823 = vunpack.c.l.b16 %v815
        %v824 = vunpack.c.l.b16 %v816
        %v825 = vunpack.c.l.b16 %v817
        %v826 = vunpack.c.l.b16 %v818
        %v827 = vunpack.c.l.b16 %v819
        %v828 = vunpack.c.l.b16 %v820
        %v829 = vunpack.c.l.b16 %v821
        %v830 = vunpack.c.l.b16 %v822
        %v831 = vpack.c.b16 %v824, %v823
        %v832 = vpack.c.b16 %v826, %v825
        %v833 = vpack.c.b16 %v828, %v827
        %v834 = vpack.c.b16 %v830, %v829
        %vm835 = vcmp.ne.s16.totalorder %v831, 0
        %vm836 = vcmp.ne.s16.totalorder %v832, 0
        %vm837 = vcmp.ne.s16.totalorder %v833, 0
        %vm838 = vcmp.ne.s16.totalorder %v834, 0
        %v839 = vsel %vm835, %v790, 0
        %v840 = vsel %vm836, %v767, 0
        %v841 = vsel %vm837, %v775, 0
        %v842 = vsel %vm838, %v783, 0
        %vm843 = vsmask.f32 7424
        %v844 = vrot.slane %v757, 1
        %v845 = vor.u32 %v754, %v844
        %v846 = vrot.slane %v764, 1
        %v847 = vsel %vm843, %v845, %v846
        %v848 = vor.u32 %v761, %v846
        %v849 = vrot.slane %v772, 1
        %v850 = vsel %vm843, %v848, %v849
        %v851 = vor.u32 %v769, %v849
        %v852 = vrot.slane %v780, 1
        %v853 = vsel %vm843, %v851, %v852
        %v854 = vor.u32 %v777, %v852
        %vm859 = vcmask 1047552
        %vm860 = vmand %vm859, %vm843
        %v861 = vsel %vm860, %v854, 0
        %v862 = vsel %vm592, 1, 0
        %v863 = vsel %vm593, 1, 0
        %v864 = vsel %vm594, 1, 0
        %v865 = vsel %vm595, 1, 0
        %v866 = vsel %vm596, 1, 0
        %v867 = vsel %vm597, 1, 0
        %v868 = vsel %vm598, 1, 0
        %v869 = vsel %vm599, 1, 0
        %vm870 = vcmp.eq.s32.totalorder %v862, 1
        %vm871 = vcmp.eq.s32.totalorder %v863, 1
        %vm872 = vcmp.eq.s32.totalorder %v864, 1
        %vm873 = vcmp.eq.s32.totalorder %v865, 1
        %vm874 = vcmp.eq.s32.totalorder %v866, 1
        %vm875 = vcmp.eq.s32.totalorder %v867, 1
        %vm876 = vcmp.eq.s32.totalorder %v868, 1
        %vm877 = vcmp.eq.s32.totalorder %v869, 1
        %vm878 = vmpackc.low %vm870, %vm870
        %vm879 = vmpackc.low %vm871, %vm871
        %vm880 = vmpackc.low %vm872, %vm872
        %vm881 = vmpackc.low %vm873, %vm873
        %vm882 = vmpackc.low %vm874, %vm874
        %vm883 = vmpackc.low %vm875, %vm875
        %vm884 = vmpackc.low %vm876, %vm876
        %vm885 = vmpackc.low %vm877, %vm877
        %v886 = vsel %vm878, 65537, 0
        %v887 = vsel %vm879, 65537, 0
        %v888 = vsel %vm880, 65537, 0
        %v889 = vsel %vm881, 65537, 0
        %v890 = vsel %vm882, 65537, 0
        %v891 = vsel %vm883, 65537, 0
        %v892 = vsel %vm884, 65537, 0
        %v893 = vsel %vm885, 65537, 0
        %v894 = vunpack.c.l.b16 %v886
        %v895 = vunpack.c.l.b16 %v887
        %v896 = vunpack.c.l.b16 %v888
        %v897 = vunpack.c.l.b16 %v889
        %v898 = vunpack.c.l.b16 %v890
        %v899 = vunpack.c.l.b16 %v891
        %v900 = vunpack.c.l.b16 %v892
        %v901 = vunpack.c.l.b16 %v893
        %v902 = vpack.c.b16 %v895, %v894
        %v903 = vpack.c.b16 %v897, %v896
        %v904 = vpack.c.b16 %v899, %v898
        %v905 = vpack.c.b16 %v901, %v900
        %vm906 = vcmp.ne.s16.totalorder %v902, 0
        %vm907 = vcmp.ne.s16.totalorder %v903, 0
        %vm908 = vcmp.ne.s16.totalorder %v904, 0
        %vm909 = vcmp.ne.s16.totalorder %v905, 0
        %v910 = vsel %vm906, %v847, 0
        %v911 = vsel %vm907, %v850, 0
        %v912 = vsel %vm908, %v853, 0
        %v913 = vsel %vm909, %v861, 0
        %vm918 = vcmask 1043456
        %v919 = vrot.slane %v839, 4
        %v920 = vrot.slane %v840, 4
        %v921 = vsel %vm918, %v919, %v920
        %v922 = vrot.slane %v841, 4
        %v923 = vsel %vm918, %v920, %v922
        %v924 = vrot.slane %v842, 4
        %v925 = vsel %vm918, %v922, %v924
        %vm929 = vcmask 1043456
        %v932 = vsel %vm929, 0, %v919
        %934 = vst [vmem:[#allocation2] sm:$0xff] %v932
        %935 = vst [vmem:[#allocation2 + $0x48] sm:$0xff] %v921
        %936 = vst [vmem:[#allocation2 + $0x90] sm:$0xff] %v923
        %937 = vst [vmem:[#allocation2 + $0xd8] sm:$0xff] %v925
        %v942 = vrot.slane %v748, 4
        %v943 = vrot.slane %v749, 4
        %v944 = vsel %vm918, %v942, %v943
        %v945 = vrot.slane %v750, 4
        %v946 = vsel %vm918, %v943, %v945
        %v947 = vrot.slane %v751, 4
        %v948 = vsel %vm918, %v945, %v947
        %v953 = vsel %vm929, 0, %v942
        %955 = vst [vmem:[#allocation2 + $0x8] sm:$0xff] %v953
        %956 = vst [vmem:[#allocation2 + $0x50] sm:$0xff] %v944
        %957 = vst [vmem:[#allocation2 + $0x98] sm:$0xff] %v946
        %958 = vst [vmem:[#allocation2 + $0xe0] sm:$0xff] %v948
        %v963 = vrot.slane %v910, 4
        %v964 = vrot.slane %v911, 4
        %v965 = vsel %vm918, %v963, %v964
        %v966 = vrot.slane %v912, 4
        %v967 = vsel %vm918, %v964, %v966
        %v968 = vrot.slane %v913, 4
        %v969 = vsel %vm918, %v966, %v968
        %v974 = vsel %vm929, 0, %v963
        %976 = vst [vmem:[#allocation2 + $0x10] sm:$0xff] %v974
        %977 = vst [vmem:[#allocation2 + $0x58] sm:$0xff] %v965
        %978 = vst [vmem:[#allocation2 + $0xa0] sm:$0xff] %v967
        %979 = vst [vmem:[#allocation2 + $0xe8] sm:$0xff] %v969
        %980 = vst [vmem:[#allocation2 + $0x18] sm:$0xff] %v839
        %981 = vst [vmem:[#allocation2 + $0x60] sm:$0xff] %v840
        %982 = vst [vmem:[#allocation2 + $0xa8] sm:$0xff] %v841
        %983 = vst [vmem:[#allocation2 + $0xf0] sm:$0xff] %v842
        %984 = vst [vmem:[#allocation2 + $0x20] sm:$0xff] %v748
        %985 = vst [vmem:[#allocation2 + $0x68] sm:$0xff] %v749
        %986 = vst [vmem:[#allocation2 + $0xb0] sm:$0xff] %v750
        %987 = vst [vmem:[#allocation2 + $0xf8] sm:$0xff] %v751
        %988 = vst [vmem:[#allocation2 + $0x28] sm:$0xff] %v910
        %989 = vst [vmem:[#allocation2 + $0x70] sm:$0xff] %v911
        %990 = vst [vmem:[#allocation2 + $0xb8] sm:$0xff] %v912
        %991 = vst [vmem:[#allocation2 + $0x100] sm:$0xff] %v913
        %v993 = vsel %vm929, %v924, 0
        %995 = vst [vmem:[#allocation2 + $0x30] sm:$0xff] %v921
        %996 = vst [vmem:[#allocation2 + $0x78] sm:$0xff] %v923
        %997 = vst [vmem:[#allocation2 + $0xc0] sm:$0xff] %v925
        %998 = vst [vmem:[#allocation2 + $0x108] sm:$0xff] %v993
        %v1000 = vsel %vm929, %v947, 0
        %1002 = vst [vmem:[#allocation2 + $0x38] sm:$0xff] %v944
        %1003 = vst [vmem:[#allocation2 + $0x80] sm:$0xff] %v946
        %1004 = vst [vmem:[#allocation2 + $0xc8] sm:$0xff] %v948
        %1005 = vst [vmem:[#allocation2 + $0x110] sm:$0xff] %v1000
        %v1007 = vsel %vm929, %v968, 0
        %1009 = vst [vmem:[#allocation2 + $0x40] sm:$0xff] %v965
        %1010 = vst [vmem:[#allocation2 + $0x88] sm:$0xff] %v967
        %1011 = vst [vmem:[#allocation2 + $0xd0] sm:$0xff] %v969
        %1012 = vst [vmem:[#allocation2 + $0x118] sm:$0xff] %v1007
        %v1013 = vld [vmem:[#allocation2] sm:$0xff]
        %v1014 = vld [vmem:[#allocation2 + $0x8] sm:$0xff]
        %v1015 = vld [vmem:[#allocation2 + $0x10] sm:$0xff]
        %v1016 = vld [vmem:[#allocation2 + $0x18] sm:$0xff]
        %v1017 = vld [vmem:[#allocation2 + $0x20] sm:$0xff]
        %v1018 = vld [vmem:[#allocation2 + $0x28] sm:$0xff]
        %v1019 = vld [vmem:[#allocation2 + $0x30] sm:$0xff]
        %v1020 = vld [vmem:[#allocation2 + $0x38] sm:$0xff]
        %v1021 = vld [vmem:[#allocation2 + $0x40] sm:$0xff]
        %v1022 = vld [vmem:[#allocation2 + $0x48] sm:$0xff]
        %v1023 = vld [vmem:[#allocation2 + $0x50] sm:$0xff]
        %v1024 = vld [vmem:[#allocation2 + $0x58] sm:$0xff]
        %v1025 = vld [vmem:[#allocation2 + $0x60] sm:$0xff]
        %v1026 = vld [vmem:[#allocation2 + $0x68] sm:$0xff]
        %v1027 = vld [vmem:[#allocation2 + $0x70] sm:$0xff]
        %v1028 = vld [vmem:[#allocation2 + $0x78] sm:$0xff]
        %v1029 = vld [vmem:[#allocation2 + $0x80] sm:$0xff]
        %v1030 = vld [vmem:[#allocation2 + $0x88] sm:$0xff]
        %v1031 = vld [vmem:[#allocation2 + $0x90] sm:$0xff]
        %v1032 = vld [vmem:[#allocation2 + $0x98] sm:$0xff]
        %v1033 = vld [vmem:[#allocation2 + $0xa0] sm:$0xff]
        %v1034 = vld [vmem:[#allocation2 + $0xa8] sm:$0xff]
        %v1035 = vld [vmem:[#allocation2 + $0xb0] sm:$0xff]
        %v1036 = vld [vmem:[#allocation2 + $0xb8] sm:$0xff]
        %v1037 = vld [vmem:[#allocation2 + $0xc0] sm:$0xff]
        %v1038 = vld [vmem:[#allocation2 + $0xc8] sm:$0xff]
        %v1039 = vld [vmem:[#allocation2 + $0xd0] sm:$0xff]
        %v1040 = vld [vmem:[#allocation2 + $0xd8] sm:$0xff]
        %v1041 = vld [vmem:[#allocation2 + $0xe0] sm:$0xff]
        %v1042 = vld [vmem:[#allocation2 + $0xe8] sm:$0xff]
        %v1043 = vld [vmem:[#allocation2 + $0xf0] sm:$0xff]
        %v1044 = vld [vmem:[#allocation2 + $0xf8] sm:$0xff]
        %v1045 = vld [vmem:[#allocation2 + $0x100] sm:$0xff]
        %v1046 = vld [vmem:[#allocation2 + $0x108] sm:$0xff]
        %v1047 = vld [vmem:[#allocation2 + $0x110] sm:$0xff]
        %v1048 = vld [vmem:[#allocation2 + $0x118] sm:$0xff]
        %v1193 = vunpack.c.l.b16 %v604
        %v1194 = vunpack.c.l.b16 %v605
        %v1195 = vunpack.c.l.b16 %v606
        %v1196 = vunpack.c.l.b16 %v607
        %v1197 = vunpack.c.l.b16 %v608
        %v1198 = vunpack.c.l.b16 %v609
        %v1199 = vunpack.c.l.b16 %v610
        %v1200 = vunpack.c.l.b16 %v611
        %v1201 = vunpack.c.l.b16 %v612
        %v1202 = vunpack.c.l.b16 %v613
        %v1203 = vunpack.c.l.b16 %v614
        %v1204 = vunpack.c.l.b16 %v615
        %v1205 = vunpack.c.l.b16 %v616
        %v1206 = vunpack.c.l.b16 %v617
        %v1207 = vunpack.c.l.b16 %v618
        %v1208 = vunpack.c.l.b16 %v619
        %v1209 = vunpack.c.l.b16 %v620
        %v1210 = vunpack.c.l.b16 %v621
        %v1211 = vunpack.c.l.b16 %v622
        %v1212 = vunpack.c.l.b16 %v623
        %v1213 = vunpack.c.l.b16 %v624
        %v1214 = vunpack.c.l.b16 %v625
        %v1215 = vunpack.c.l.b16 %v626
        %v1216 = vunpack.c.l.b16 %v627
        %v1217 = vunpack.c.l.b16 %v628
        %v1218 = vunpack.c.l.b16 %v629
        %v1219 = vunpack.c.l.b16 %v630
        %v1220 = vunpack.c.l.b16 %v631
        %v1221 = vunpack.c.l.b16 %v632
        %v1222 = vunpack.c.l.b16 %v633
        %v1223 = vunpack.c.l.b16 %v634
        %v1224 = vunpack.c.l.b16 %v635
        %v1225 = vunpack.c.l.b16 %v636
        %v1226 = vunpack.c.l.b16 %v637
        %v1227 = vunpack.c.l.b16 %v638
        %v1228 = vunpack.c.l.b16 %v639
        %v1229 = vunpack.c.l.b16 %v640
        %v1230 = vunpack.c.l.b16 %v641
        %v1231 = vunpack.c.l.b16 %v642
        %v1232 = vunpack.c.l.b16 %v643
        %v1233 = vunpack.c.l.b16 %v644
        %v1234 = vunpack.c.l.b16 %v645
        %v1235 = vunpack.c.l.b16 %v646
        %v1236 = vunpack.c.l.b16 %v647
        %v1237 = vunpack.c.l.b16 %v648
        %v1238 = vunpack.c.l.b16 %v649
        %v1239 = vunpack.c.l.b16 %v650
        %v1240 = vunpack.c.l.b16 %v651
        %v1241 = vunpack.c.l.b16 %v652
        %v1242 = vunpack.c.l.b16 %v653
        %v1243 = vunpack.c.l.b16 %v654
        %v1244 = vunpack.c.l.b16 %v655
        %v1245 = vunpack.c.l.b16 %v656
        %v1246 = vunpack.c.l.b16 %v657
        %v1247 = vunpack.c.l.b16 %v658
        %v1248 = vunpack.c.l.b16 %v659
        %v1249 = vunpack.c.l.b16 %v660
        %v1250 = vunpack.c.l.b16 %v661
        %v1251 = vunpack.c.l.b16 %v662
        %v1252 = vunpack.c.l.b16 %v663
        %v1253 = vunpack.c.l.b16 %v664
        %v1254 = vunpack.c.l.b16 %v665
        %v1255 = vunpack.c.l.b16 %v666
        %v1256 = vunpack.c.l.b16 %v667
        %v1257 = vunpack.c.l.b16 %v668
        %v1258 = vunpack.c.l.b16 %v669
        %v1259 = vunpack.c.l.b16 %v670
        %v1260 = vunpack.c.l.b16 %v671
        %v1261 = vunpack.c.l.b16 %v672
        %v1262 = vunpack.c.l.b16 %v673
        %v1263 = vunpack.c.l.b16 %v674
        %v1264 = vunpack.c.l.b16 %v675
        %v1265 = vunpack.c.l.b16 %v676
        %v1266 = vunpack.c.l.b16 %v677
        %v1267 = vunpack.c.l.b16 %v678
        %v1268 = vunpack.c.l.b16 %v679
        %v1269 = vunpack.c.l.b16 %v680
        %v1270 = vunpack.c.l.b16 %v681
        %v1271 = vunpack.c.l.b16 %v682
        %v1272 = vunpack.c.l.b16 %v683
        %v1273 = vunpack.c.l.b16 %v684
        %v1274 = vunpack.c.l.b16 %v685
        %v1275 = vunpack.c.l.b16 %v686
        %v1276 = vunpack.c.l.b16 %v687
        %v1277 = vunpack.c.l.b16 %v688
        %v1278 = vunpack.c.l.b16 %v689
        %v1279 = vunpack.c.l.b16 %v690
        %v1280 = vunpack.c.l.b16 %v691
        %v1281 = vunpack.c.l.b16 %v692
        %v1282 = vunpack.c.l.b16 %v693
        %v1283 = vunpack.c.l.b16 %v694
        %v1284 = vunpack.c.l.b16 %v695
        %v1285 = vunpack.c.l.b16 %v696
        %v1286 = vunpack.c.l.b16 %v697
        %v1287 = vunpack.c.l.b16 %v698
        %v1288 = vunpack.c.l.b16 %v699
        %v1289 = vunpack.c.l.b16 %v700
        %v1290 = vunpack.c.l.b16 %v701
        %v1291 = vunpack.c.l.b16 %v702
        %v1292 = vunpack.c.l.b16 %v703
        %v1293 = vunpack.c.l.b16 %v704
        %v1294 = vunpack.c.l.b16 %v705
        %v1295 = vunpack.c.l.b16 %v706
        %v1296 = vunpack.c.l.b16 %v707
        %v1297 = vunpack.c.l.b16 %v708
        %v1298 = vunpack.c.l.b16 %v709
        %v1299 = vunpack.c.l.b16 %v710
        %v1300 = vunpack.c.l.b16 %v711
        %v1301 = vunpack.c.l.b16 %v712
        %v1302 = vunpack.c.l.b16 %v713
        %v1303 = vunpack.c.l.b16 %v714
        %v1304 = vunpack.c.l.b16 %v715
        %v1305 = vunpack.c.l.b16 %v716
        %v1306 = vunpack.c.l.b16 %v717
        %v1307 = vunpack.c.l.b16 %v718
        %v1308 = vunpack.c.l.b16 %v719
        %v1309 = vunpack.c.l.b16 %v720
        %v1310 = vunpack.c.l.b16 %v721
        %v1311 = vunpack.c.l.b16 %v722
        %v1312 = vunpack.c.l.b16 %v723
        %v1313 = vunpack.c.l.b16 %v724
        %v1314 = vunpack.c.l.b16 %v725
        %v1315 = vunpack.c.l.b16 %v726
        %v1316 = vunpack.c.l.b16 %v727
        %v1317 = vunpack.c.l.b16 %v728
        %v1318 = vunpack.c.l.b16 %v729
        %v1319 = vunpack.c.l.b16 %v730
        %v1320 = vunpack.c.l.b16 %v731
        %v1321 = vunpack.c.l.b16 %v732
        %v1322 = vunpack.c.l.b16 %v733
        %v1323 = vunpack.c.l.b16 %v734
        %v1324 = vunpack.c.l.b16 %v735
        %v1325 = vunpack.c.l.b16 %v736
        %v1326 = vunpack.c.l.b16 %v737
        %v1327 = vunpack.c.l.b16 %v738
        %v1328 = vunpack.c.l.b16 %v739
        %v1329 = vunpack.c.l.b16 %v740
        %v1330 = vunpack.c.l.b16 %v741
        %v1331 = vunpack.c.l.b16 %v742
        %v1332 = vunpack.c.l.b16 %v743
        %v1333 = vunpack.c.l.b16 %v744
        %v1334 = vunpack.c.l.b16 %v745
        %v1335 = vunpack.c.l.b16 %v746
        %v1336 = vunpack.c.l.b16 %v747
        %v1337 = vpack.c.b16 %v1194, %v1193
        %v1338 = vpack.c.b16 %v1196, %v1195
        %v1339 = vpack.c.b16 %v1198, %v1197
        %v1340 = vpack.c.b16 %v1200, %v1199
        %v1341 = vpack.c.b16 %v1202, %v1201
        %v1342 = vpack.c.b16 %v1204, %v1203
        %v1343 = vpack.c.b16 %v1206, %v1205
        %v1344 = vpack.c.b16 %v1208, %v1207
        %v1345 = vpack.c.b16 %v1210, %v1209
        %v1346 = vpack.c.b16 %v1212, %v1211
        %v1347 = vpack.c.b16 %v1214, %v1213
        %v1348 = vpack.c.b16 %v1216, %v1215
        %v1349 = vpack.c.b16 %v1218, %v1217
        %v1350 = vpack.c.b16 %v1220, %v1219
        %v1351 = vpack.c.b16 %v1222, %v1221
        %v1352 = vpack.c.b16 %v1224, %v1223
        %v1353 = vpack.c.b16 %v1226, %v1225
        %v1354 = vpack.c.b16 %v1228, %v1227
        %v1355 = vpack.c.b16 %v1230, %v1229
        %v1356 = vpack.c.b16 %v1232, %v1231
        %v1357 = vpack.c.b16 %v1234, %v1233
        %v1358 = vpack.c.b16 %v1236, %v1235
        %v1359 = vpack.c.b16 %v1238, %v1237
        %v1360 = vpack.c.b16 %v1240, %v1239
        %v1361 = vpack.c.b16 %v1242, %v1241
        %v1362 = vpack.c.b16 %v1244, %v1243
        %v1363 = vpack.c.b16 %v1246, %v1245
        %v1364 = vpack.c.b16 %v1248, %v1247
        %v1365 = vpack.c.b16 %v1250, %v1249
        %v1366 = vpack.c.b16 %v1252, %v1251
        %v1367 = vpack.c.b16 %v1254, %v1253
        %v1368 = vpack.c.b16 %v1256, %v1255
        %v1369 = vpack.c.b16 %v1258, %v1257
        %v1370 = vpack.c.b16 %v1260, %v1259
        %v1371 = vpack.c.b16 %v1262, %v1261
        %v1372 = vpack.c.b16 %v1264, %v1263
        %v1373 = vpack.c.b16 %v1266, %v1265
        %v1374 = vpack.c.b16 %v1268, %v1267
        %v1375 = vpack.c.b16 %v1270, %v1269
        %v1376 = vpack.c.b16 %v1272, %v1271
        %v1377 = vpack.c.b16 %v1274, %v1273
        %v1378 = vpack.c.b16 %v1276, %v1275
        %v1379 = vpack.c.b16 %v1278, %v1277
        %v1380 = vpack.c.b16 %v1280, %v1279
        %v1381 = vpack.c.b16 %v1282, %v1281
        %v1382 = vpack.c.b16 %v1284, %v1283
        %v1383 = vpack.c.b16 %v1286, %v1285
        %v1384 = vpack.c.b16 %v1288, %v1287
        %v1385 = vpack.c.b16 %v1290, %v1289
        %v1386 = vpack.c.b16 %v1292, %v1291
        %v1387 = vpack.c.b16 %v1294, %v1293
        %v1388 = vpack.c.b16 %v1296, %v1295
        %v1389 = vpack.c.b16 %v1298, %v1297
        %v1390 = vpack.c.b16 %v1300, %v1299
        %v1391 = vpack.c.b16 %v1302, %v1301
        %v1392 = vpack.c.b16 %v1304, %v1303
        %v1393 = vpack.c.b16 %v1306, %v1305
        %v1394 = vpack.c.b16 %v1308, %v1307
        %v1395 = vpack.c.b16 %v1310, %v1309
        %v1396 = vpack.c.b16 %v1312, %v1311
        %v1397 = vpack.c.b16 %v1314, %v1313
        %v1398 = vpack.c.b16 %v1316, %v1315
        %v1399 = vpack.c.b16 %v1318, %v1317
        %v1400 = vpack.c.b16 %v1320, %v1319
        %v1401 = vpack.c.b16 %v1322, %v1321
        %v1402 = vpack.c.b16 %v1324, %v1323
        %v1403 = vpack.c.b16 %v1326, %v1325
        %v1404 = vpack.c.b16 %v1328, %v1327
        %v1405 = vpack.c.b16 %v1330, %v1329
        %v1406 = vpack.c.b16 %v1332, %v1331
        %v1407 = vpack.c.b16 %v1334, %v1333
        %v1408 = vpack.c.b16 %v1336, %v1335
        %1481 = vmatprep.subr.bf16.mxu0 0
        %1482 = vmatpush1.bf16.msra.mxu0 %v1337
        %1483 = vmatprep.subr.bf16.mxu0 0
        %1484 = vmatpush1.bf16.msra.mxu0 %v1338
        %1485 = vmatprep.subr.bf16.mxu0 0
        %1486 = vmatpush1.bf16.msra.mxu0 %v1339
        %1487 = vmatprep.subr.bf16.mxu0 0
        %1488 = vmatpush1.bf16.msra.mxu0 %v1340
        %1489 = vmatprep.subr.bf16.mxu0 0
        %1490 = vmatpush1.bf16.msra.mxu0 %v1341
        %1491 = vmatprep.subr.bf16.mxu0 0
        %1492 = vmatpush1.bf16.msra.mxu0 %v1342
        %1493 = vmatprep.subr.bf16.mxu0 0
        %1494 = vmatpush1.bf16.msra.mxu0 %v1343
        %1495 = vmatprep.subr.bf16.mxu0 0
        %1496 = vmatpush1.bf16.msra.mxu0 %v1344
        %1497 = vmatprep.subr.bf16.mxu0 0
        %1498 = vmatpush1.bf16.msra.mxu0 %v1345
        %1499 = vmatprep.subr.bf16.mxu0 0
        %1500 = vmatpush1.bf16.msra.mxu0 %v1346
        %1501 = vmatprep.subr.bf16.mxu0 0
        %1502 = vmatpush1.bf16.msra.mxu0 %v1347
        %1503 = vmatprep.subr.bf16.mxu0 0
        %1504 = vmatpush1.bf16.msra.mxu0 %v1348
        %1505 = vmatprep.subr.bf16.mxu0 0
        %1506 = vmatpush1.bf16.msra.mxu0 %v1349
        %1507 = vmatprep.subr.bf16.mxu0 0
        %1508 = vmatpush1.bf16.msra.mxu0 %v1350
        %1509 = vmatprep.subr.bf16.mxu0 0
        %1510 = vmatpush1.bf16.msra.mxu0 %v1351
        %1511 = vmatprep.subr.bf16.mxu0 0
        %1512 = vmatpush1.bf16.msra.mxu0 %v1352
        %1513 = vmatprep.mubr.bf16.mxu0 %v1014
        %1514 = vmatmul.mubr.bf16.gmra.mrb[0].mxu0 %v1013
        %v1515 = vpop.f32.mrb[0].mxu0
        %v1516 = vadd.f32 0.0, %v1515
        %v1517 = vpop.f32.mrb[0].mxu0
        %v1518 = vpop.f32.mrb[0].mxu0
        %v1519 = vadd.f32 0.0, %v1518
        %v1520 = vpop.f32.mrb[0].mxu0
        %1521 = vmatprep.mubr.bf16.mxu0 %v1023
        %1522 = vmatmul.mubr.bf16.gmra.mrb[0].mxu0 %v1022
        %v1523 = vpop.f32.mrb[0].mxu0
        %v1524 = vadd.f32 0.0, %v1523
        %v1525 = vpop.f32.mrb[0].mxu0
        %v1526 = vpop.f32.mrb[0].mxu0
        %v1527 = vadd.f32 0.0, %v1526
        %v1528 = vpop.f32.mrb[0].mxu0
        %1529 = vmatprep.mubr.bf16.mxu0 %v1032
        %1530 = vmatmul.mubr.bf16.gmra.mrb[0].mxu0 %v1031
        %v1531 = vpop.f32.mrb[0].mxu0
        %v1532 = vadd.f32 0.0, %v1531
        %v1533 = vpop.f32.mrb[0].mxu0
        %v1534 = vpop.f32.mrb[0].mxu0
        %v1535 = vadd.f32 0.0, %v1534
        %v1536 = vpop.f32.mrb[0].mxu0
        %1537 = vmatprep.mubr.bf16.mxu0 %v1041
        %1538 = vmatmul.mubr.bf16.gmra.mrb[0].mxu0 %v1040
        %v1539 = vpop.f32.mrb[0].mxu0
        %v1540 = vadd.f32 0.0, %v1539
        %v1541 = vpop.f32.mrb[0].mxu0
        %v1542 = vpop.f32.mrb[0].mxu0
        %v1543 = vadd.f32 0.0, %v1542
        %v1544 = vpop.f32.mrb[0].mxu0
        %1545 = vdwg.mxu0
        %1546 = vmatprep.subr.bf16.mxu0 0
        %1547 = vmatpush1.bf16.msra.mxu0 %v1353
        %1548 = vmatprep.subr.bf16.mxu0 0
        %1549 = vmatpush1.bf16.msra.mxu0 %v1354
        %1550 = vmatprep.subr.bf16.mxu0 0
        %1551 = vmatpush1.bf16.msra.mxu0 %v1355
        %1552 = vmatprep.subr.bf16.mxu0 0
        %1553 = vmatpush1.bf16.msra.mxu0 %v1356
        %1554 = vmatprep.subr.bf16.mxu0 0
        %1555 = vmatpush1.bf16.msra.mxu0 %v1357
        %1556 = vmatprep.subr.bf16.mxu0 0
        %1557 = vmatpush1.bf16.msra.mxu0 %v1358
        %1558 = vmatprep.subr.bf16.mxu0 0
        %1559 = vmatpush1.bf16.msra.mxu0 %v1359
        %1560 = vmatprep.subr.bf16.mxu0 0
        %1561 = vmatpush1.bf16.msra.mxu0 %v1360
        %1562 = vmatprep.subr.bf16.mxu0 0
        %1563 = vmatpush1.bf16.msra.mxu0 %v1361
        %1564 = vmatprep.subr.bf16.mxu0 0
        %1565 = vmatpush1.bf16.msra.mxu0 %v1362
        %1566 = vmatprep.subr.bf16.mxu0 0
        %1567 = vmatpush1.bf16.msra.mxu0 %v1363
        %1568 = vmatprep.subr.bf16.mxu0 0
        %1569 = vmatpush1.bf16.msra.mxu0 %v1364
        %1570 = vmatprep.subr.bf16.mxu0 0
        %1571 = vmatpush1.bf16.msra.mxu0 %v1365
        %1572 = vmatprep.subr.bf16.mxu0 0
        %1573 = vmatpush1.bf16.msra.mxu0 %v1366
        %1574 = vmatprep.subr.bf16.mxu0 0
        %1575 = vmatpush1.bf16.msra.mxu0 %v1367
        %1576 = vmatprep.subr.bf16.mxu0 0
        %1577 = vmatpush1.bf16.msra.mxu0 %v1368
        %1578 = vmatprep.mubr.bf16.mxu0 %v1016
        %1579 = vmatmul.mubr.bf16.gmra.mrb[0].mxu0 %v1015
        %v1580 = vpop.f32.mrb[0].mxu0
        %v1581 = vadd.f32 %v1516, %v1580
        %v1582 = vpop.f32.mrb[0].mxu0
        %v1583 = vpop.f32.mrb[0].mxu0
        %v1584 = vadd.f32 %v1519, %v1583
        %v1585 = vpop.f32.mrb[0].mxu0
        %1586 = vmatprep.mubr.bf16.mxu0 %v1025
        %1587 = vmatmul.mubr.bf16.gmra.mrb[0].mxu0 %v1024
        %v1588 = vpop.f32.mrb[0].mxu0
        %v1589 = vadd.f32 %v1524, %v1588
        %v1590 = vpop.f32.mrb[0].mxu0
        %v1591 = vpop.f32.mrb[0].mxu0
        %v1592 = vadd.f32 %v1527, %v1591
        %v1593 = vpop.f32.mrb[0].mxu0
        %1594 = vmatprep.mubr.bf16.mxu0 %v1034
        %1595 = vmatmul.mubr.bf16.gmra.mrb[0].mxu0 %v1033
        %v1596 = vpop.f32.mrb[0].mxu0
        %v1597 = vadd.f32 %v1532, %v1596
        %v1598 = vpop.f32.mrb[0].mxu0
        %v1599 = vpop.f32.mrb[0].mxu0
        %v1600 = vadd.f32 %v1535, %v1599
        %v1601 = vpop.f32.mrb[0].mxu0
        %1602 = vmatprep.mubr.bf16.mxu0 %v1043
        %1603 = vmatmul.mubr.bf16.gmra.mrb[0].mxu0 %v1042
        %v1604 = vpop.f32.mrb[0].mxu0
        %v1605 = vadd.f32 %v1540, %v1604
        %v1606 = vpop.f32.mrb[0].mxu0
        %v1607 = vpop.f32.mrb[0].mxu0
        %v1608 = vadd.f32 %v1543, %v1607
        %v1609 = vpop.f32.mrb[0].mxu0
        %1610 = vdwg.mxu0
        %1611 = vmatprep.subr.bf16.mxu0 0
        %1612 = vmatpush1.bf16.msra.mxu0 %v1369
        %1613 = vmatprep.subr.bf16.mxu0 0
        %1614 = vmatpush1.bf16.msra.mxu0 %v1370
        %1615 = vmatprep.subr.bf16.mxu0 0
        %1616 = vmatpush1.bf16.msra.mxu0 %v1371
        %1617 = vmatprep.subr.bf16.mxu0 0
        %1618 = vmatpush1.bf16.msra.mxu0 %v1372
        %1619 = vmatprep.subr.bf16.mxu0 0
        %1620 = vmatpush1.bf16.msra.mxu0 %v1373
        %1621 = vmatprep.subr.bf16.mxu0 0
        %1622 = vmatpush1.bf16.msra.mxu0 %v1374
        %1623 = vmatprep.subr.bf16.mxu0 0
        %1624 = vmatpush1.bf16.msra.mxu0 %v1375
        %1625 = vmatprep.subr.bf16.mxu0 0
        %1626 = vmatpush1.bf16.msra.mxu0 %v1376
        %1627 = vmatprep.subr.bf16.mxu0 0
        %1628 = vmatpush1.bf16.msra.mxu0 %v1377
        %1629 = vmatprep.subr.bf16.mxu0 0
        %1630 = vmatpush1.bf16.msra.mxu0 %v1378
        %1631 = vmatprep.subr.bf16.mxu0 0
        %1632 = vmatpush1.bf16.msra.mxu0 %v1379
        %1633 = vmatprep.subr.bf16.mxu0 0
        %1634 = vmatpush1.bf16.msra.mxu0 %v1380
        %1635 = vmatprep.subr.bf16.mxu0 0
        %1636 = vmatpush1.bf16.msra.mxu0 %v1381
        %1637 = vmatprep.subr.bf16.mxu0 0
        %1638 = vmatpush1.bf16.msra.mxu0 %v1382
        %1639 = vmatprep.subr.bf16.mxu0 0
        %1640 = vmatpush1.bf16.msra.mxu0 %v1383
        %1641 = vmatprep.subr.bf16.mxu0 0
        %1642 = vmatpush1.bf16.msra.mxu0 %v1384
        %1643 = vmatprep.mubr.bf16.mxu0 %v1018
        %1644 = vmatmul.mubr.bf16.gmra.mrb[0].mxu0 %v1017
        %v1645 = vpop.f32.mrb[0].mxu0
        %v1646 = vadd.f32 %v1581, %v1645
        %v1647 = vpop.f32.mrb[0].mxu0
        %v1648 = vpop.f32.mrb[0].mxu0
        %v1649 = vadd.f32 %v1584, %v1648
        %v1650 = vpop.f32.mrb[0].mxu0
        %1651 = vmatprep.mubr.bf16.mxu0 %v1027
        %1652 = vmatmul.mubr.bf16.gmra.mrb[0].mxu0 %v1026
        %v1653 = vpop.f32.mrb[0].mxu0
        %v1654 = vadd.f32 %v1589, %v1653
        %v1655 = vpop.f32.mrb[0].mxu0
        %v1656 = vpop.f32.mrb[0].mxu0
        %v1657 = vadd.f32 %v1592, %v1656
        %v1658 = vpop.f32.mrb[0].mxu0
        %1659 = vmatprep.mubr.bf16.mxu0 %v1036
        %1660 = vmatmul.mubr.bf16.gmra.mrb[0].mxu0 %v1035
        %v1661 = vpop.f32.mrb[0].mxu0
        %v1662 = vadd.f32 %v1597, %v1661
        %v1663 = vpop.f32.mrb[0].mxu0
        %v1664 = vpop.f32.mrb[0].mxu0
        %v1665 = vadd.f32 %v1600, %v1664
        %v1666 = vpop.f32.mrb[0].mxu0
        %1667 = vmatprep.mubr.bf16.mxu0 %v1045
        %1668 = vmatmul.mubr.bf16.gmra.mrb[0].mxu0 %v1044
        %v1669 = vpop.f32.mrb[0].mxu0
        %v1670 = vadd.f32 %v1605, %v1669
        %v1671 = vpop.f32.mrb[0].mxu0
        %v1672 = vpop.f32.mrb[0].mxu0
        %v1673 = vadd.f32 %v1608, %v1672
        %v1674 = vpop.f32.mrb[0].mxu0
        %1675 = vdwg.mxu0
        %1676 = vmatprep.subr.bf16.mxu0 0
        %1677 = vmatpush1.bf16.msra.mxu0 %v1385
        %1678 = vmatprep.subr.bf16.mxu0 0
        %1679 = vmatpush1.bf16.msra.mxu0 %v1386
        %1680 = vmatprep.subr.bf16.mxu0 0
        %1681 = vmatpush1.bf16.msra.mxu0 %v1387
        %1682 = vmatprep.subr.bf16.mxu0 0
        %1683 = vmatpush1.bf16.msra.mxu0 %v1388
        %1684 = vmatprep.subr.bf16.mxu0 0
        %1685 = vmatpush1.bf16.msra.mxu0 %v1389
        %1686 = vmatprep.subr.bf16.mxu0 0
        %1687 = vmatpush1.bf16.msra.mxu0 %v1390
        %1688 = vmatprep.subr.bf16.mxu0 0
        %1689 = vmatpush1.bf16.msra.mxu0 %v1391
        %1690 = vmatprep.subr.bf16.mxu0 0
        %1691 = vmatpush1.bf16.msra.mxu0 %v1392
        %1692 = vmatprep.subr.bf16.mxu0 0
        %1693 = vmatpush1.bf16.msra.mxu0 %v1393
        %1694 = vmatprep.subr.bf16.mxu0 0
        %1695 = vmatpush1.bf16.msra.mxu0 %v1394
        %1696 = vmatprep.subr.bf16.mxu0 0
        %1697 = vmatpush1.bf16.msra.mxu0 %v1395
        %1698 = vmatprep.subr.bf16.mxu0 0
        %1699 = vmatpush1.bf16.msra.mxu0 %v1396
        %1700 = vmatprep.subr.bf16.mxu0 0
        %1701 = vmatpush1.bf16.msra.mxu0 %v1397
        %1702 = vmatprep.subr.bf16.mxu0 0
        %1703 = vmatpush1.bf16.msra.mxu0 %v1398
        %1704 = vmatprep.subr.bf16.mxu0 0
        %1705 = vmatpush1.bf16.msra.mxu0 %v1399
        %1706 = vmatprep.subr.bf16.mxu0 0
        %1707 = vmatpush1.bf16.msra.mxu0 %v1400
        %1708 = vmatprep.mubr.bf16.mxu0 %v1020
        %1709 = vmatmul.mubr.bf16.gmra.mrb[0].mxu0 %v1019
        %v1710 = vpop.f32.mrb[0].mxu0
        %v1711 = vadd.f32 %v1646, %v1710
        %v1712 = vpop.f32.mrb[0].mxu0
        %v1713 = vpop.f32.mrb[0].mxu0
        %v1714 = vadd.f32 %v1649, %v1713
        %v1715 = vpop.f32.mrb[0].mxu0
        %1716 = vmatprep.mubr.bf16.mxu0 %v1029
        %1717 = vmatmul.mubr.bf16.gmra.mrb[0].mxu0 %v1028
        %v1718 = vpop.f32.mrb[0].mxu0
        %v1719 = vadd.f32 %v1654, %v1718
        %v1720 = vpop.f32.mrb[0].mxu0
        %v1721 = vpop.f32.mrb[0].mxu0
        %v1722 = vadd.f32 %v1657, %v1721
        %v1723 = vpop.f32.mrb[0].mxu0
        %1724 = vmatprep.mubr.bf16.mxu0 %v1038
        %1725 = vmatmul.mubr.bf16.gmra.mrb[0].mxu0 %v1037
        %v1726 = vpop.f32.mrb[0].mxu0
        %v1727 = vadd.f32 %v1662, %v1726
        %v1728 = vpop.f32.mrb[0].mxu0
        %v1729 = vpop.f32.mrb[0].mxu0
        %v1730 = vadd.f32 %v1665, %v1729
        %v1731 = vpop.f32.mrb[0].mxu0
        %1732 = vmatprep.mubr.bf16.mxu0 %v1047
        %1733 = vmatmul.mubr.bf16.gmra.mrb[0].mxu0 %v1046
        %v1734 = vpop.f32.mrb[0].mxu0
        %v1735 = vadd.f32 %v1670, %v1734
        %v1736 = vpop.f32.mrb[0].mxu0
        %v1737 = vpop.f32.mrb[0].mxu0
        %v1738 = vadd.f32 %v1673, %v1737
        %v1739 = vpop.f32.mrb[0].mxu0
        %1740 = vdwg.mxu0
        %1741 = vmatprep.subr.bf16.mxu0 0
        %1742 = vmatpush1.bf16.msra.mxu0 %v1401
        %1743 = vmatprep.subr.bf16.mxu0 0
        %1744 = vmatpush1.bf16.msra.mxu0 %v1402
        %1745 = vmatprep.subr.bf16.mxu0 0
        %1746 = vmatpush1.bf16.msra.mxu0 %v1403
        %1747 = vmatprep.subr.bf16.mxu0 0
        %1748 = vmatpush1.bf16.msra.mxu0 %v1404
        %1749 = vmatprep.subr.bf16.mxu0 0
        %1750 = vmatpush1.bf16.msra.mxu0 %v1405
        %1751 = vmatprep.subr.bf16.mxu0 0
        %1752 = vmatpush1.bf16.msra.mxu0 %v1406
        %1753 = vmatprep.subr.bf16.mxu0 0
        %1754 = vmatpush1.bf16.msra.mxu0 %v1407
        %1755 = vmatprep.subr.bf16.mxu0 0
        %1756 = vmatpush1.bf16.msra.mxu0 %v1408
        %1757 = vmatprep.subr.bf16.mxu0 0
        %1758 = vmatpush1.bf16.msra.mxu0 0
        %1759 = vmatprep.subr.bf16.mxu0 0
        %1760 = vmatpush1.bf16.msra.mxu0 0
        %1761 = vmatprep.subr.bf16.mxu0 0
        %1762 = vmatpush1.bf16.msra.mxu0 0
        %1763 = vmatprep.subr.bf16.mxu0 0
        %1764 = vmatpush1.bf16.msra.mxu0 0
        %1765 = vmatprep.subr.bf16.mxu0 0
        %1766 = vmatpush1.bf16.msra.mxu0 0
        %1767 = vmatprep.subr.bf16.mxu0 0
        %1768 = vmatpush1.bf16.msra.mxu0 0
        %1769 = vmatprep.subr.bf16.mxu0 0
        %1770 = vmatpush1.bf16.msra.mxu0 0
        %1771 = vmatprep.subr.bf16.mxu0 0
        %1772 = vmatpush1.bf16.msra.mxu0 0
        %1773 = vmatprep.mubr.bf16.mxu0 0
        %1774 = vmatmul.mubr.bf16.gmra.mrb[0].mxu0 %v1021
        %v1775 = vpop.f32.mrb[0].mxu0
        %v1776 = vadd.f32 %v1711, %v1775
        %v1777 = vpop.f32.mrb[0].mxu0
        %v1778 = vpop.f32.mrb[0].mxu0
        %v1779 = vadd.f32 %v1714, %v1778
        %v1780 = vpop.f32.mrb[0].mxu0
        %1781 = vmatprep.mubr.bf16.mxu0 0
        %1782 = vmatmul.mubr.bf16.gmra.mrb[0].mxu0 %v1030
        %v1783 = vpop.f32.mrb[0].mxu0
        %v1784 = vadd.f32 %v1719, %v1783
        %v1785 = vpop.f32.mrb[0].mxu0
        %v1786 = vpop.f32.mrb[0].mxu0
        %v1787 = vadd.f32 %v1722, %v1786
        %v1788 = vpop.f32.mrb[0].mxu0
        %1789 = vmatprep.mubr.bf16.mxu0 0
        %1790 = vmatmul.mubr.bf16.gmra.mrb[0].mxu0 %v1039
        %v1791 = vpop.f32.mrb[0].mxu0
        %v1792 = vadd.f32 %v1727, %v1791
        %v1793 = vpop.f32.mrb[0].mxu0
        %v1794 = vpop.f32.mrb[0].mxu0
        %v1795 = vadd.f32 %v1730, %v1794
        %v1796 = vpop.f32.mrb[0].mxu0
        %1797 = vmatprep.mubr.bf16.mxu0 0
        %1798 = vmatmul.mubr.bf16.gmra.mrb[0].mxu0 %v1048
        %v1799 = vpop.f32.mrb[0].mxu0
        %v1800 = vadd.f32 %v1735, %v1799
        %v1801 = vpop.f32.mrb[0].mxu0
        %v1802 = vpop.f32.mrb[0].mxu0
        %v1803 = vadd.f32 %v1738, %v1802
        %v1804 = vpop.f32.mrb[0].mxu0
        %1805 = vdwg.mxu0
        %v1806 = vlaneseq
        %v1807 = vshrl.u32 %v1806, 7
        %v1808 = vsub.s32 0, %v1807
        %v1809 = vrot.slane %v600, %v1808
        %v1810 = vmul.f32 %v1776, %v1809
        %v1811 = vmul.f32 %v1779, %v1809
        %v1812 = vmul.f32 %v1784, %v1809
        %v1813 = vmul.f32 %v1787, %v1809
        %v1814 = vmul.f32 %v1792, %v1809
        %v1815 = vmul.f32 %v1795, %v1809
        %v1816 = vmul.f32 %v1800, %v1809
        %v1817 = vmul.f32 %v1803, %v1809
        %v1818 = vlaneseq
        %v1819 = vshrl.u32 %v1818, 7
        %v1820 = vsub.s32 1, %v1819
        %v1821 = vrot.slane %v600, %v1820
        %v1822 = vadd.f32 %v1810, %v1821
        %v1823 = vadd.f32 %v1811, %v1821
        %v1824 = vadd.f32 %v1812, %v1821
        %v1825 = vadd.f32 %v1813, %v1821
        %v1826 = vadd.f32 %v1814, %v1821
        %v1827 = vadd.f32 %v1815, %v1821
        %v1828 = vadd.f32 %v1816, %v1821
        %v1829 = vadd.f32 %v1817, %v1821
        %v1830 = vmax.f32 %v1822, 0.0
        %v1831 = vmax.f32 %v1823, 0.0
        %v1832 = vmax.f32 %v1824, 0.0
        %v1833 = vmax.f32 %v1825, 0.0
        %v1834 = vmax.f32 %v1826, 0.0
        %v1835 = vmax.f32 %v1827, 0.0
        %v1836 = vmax.f32 %v1828, 0.0
        %v1837 = vmax.f32 %v1829, 0.0
        %s1838 = scalar_lea.vmem [#allocation7], 576
        %v1839 = vld [vmem:[%s1838] sm:$0xf]
        %v1840 = vld [vmem:[%s1838 + $0x4] sm:$0xf]
        %v1841 = vld [vmem:[%s1838 + $0x8] sm:$0xf]
        %v1842 = vld [vmem:[%s1838 + $0xc] sm:$0xf]
        %v1843 = vld [vmem:[%s1838 + $0x10] sm:$0xf]
        %v1844 = vld [vmem:[%s1838 + $0x14] sm:$0xf]
        %v1845 = vld [vmem:[%s1838 + $0x18] sm:$0xf]
        %v1846 = vld [vmem:[%s1838 + $0x1c] sm:$0xf]
        %v1847 = vld [vmem:[%s1838 + $0x20] sm:$0xf]
        %v1848 = vld [vmem:[%s1838 + $0x24] sm:$0xf]
        %v1849 = vld [vmem:[%s1838 + $0x28] sm:$0xf]
        %v1850 = vld [vmem:[%s1838 + $0x2c] sm:$0xf]
        %v1851 = vld [vmem:[%s1838 + $0x30] sm:$0xf]
        %v1852 = vld [vmem:[%s1838 + $0x34] sm:$0xf]
        %v1853 = vld [vmem:[%s1838 + $0x38] sm:$0xf]
        %v1854 = vld [vmem:[%s1838 + $0x3c] sm:$0xf]
        %v1855 = vld [vmem:[%s1838 + $0x40] sm:$0xf]
        %v1856 = vld [vmem:[%s1838 + $0x44] sm:$0xf]
        %v1857 = vld [vmem:[%s1838 + $0x48] sm:$0xf]
        %v1858 = vld [vmem:[%s1838 + $0x4c] sm:$0xf]
        %v1859 = vld [vmem:[%s1838 + $0x50] sm:$0xf]
        %v1860 = vld [vmem:[%s1838 + $0x54] sm:$0xf]
        %v1861 = vld [vmem:[%s1838 + $0x58] sm:$0xf]
        %v1862 = vld [vmem:[%s1838 + $0x5c] sm:$0xf]
        %v1863 = vld [vmem:[%s1838 + $0x60] sm:$0xf]
        %v1864 = vld [vmem:[%s1838 + $0x64] sm:$0xf]
        %v1865 = vld [vmem:[%s1838 + $0x68] sm:$0xf]
        %v1866 = vld [vmem:[%s1838 + $0x6c] sm:$0xf]
        %v1867 = vld [vmem:[%s1838 + $0x70] sm:$0xf]
        %v1868 = vld [vmem:[%s1838 + $0x74] sm:$0xf]
        %v1869 = vld [vmem:[%s1838 + $0x78] sm:$0xf]
        %v1870 = vld [vmem:[%s1838 + $0x7c] sm:$0xf]
        %v1871 = vld [vmem:[%s1838 + $0x80] sm:$0xf]
        %v1872 = vld [vmem:[%s1838 + $0x84] sm:$0xf]
        %v1873 = vld [vmem:[%s1838 + $0x88] sm:$0xf]
        %v1874 = vld [vmem:[%s1838 + $0x8c] sm:$0xf]
        %v1875 = vld [vmem:[%s1838 + $0x90] sm:$0xf]
        %v1876 = vld [vmem:[%s1838 + $0x94] sm:$0xf]
        %v1877 = vld [vmem:[%s1838 + $0x98] sm:$0xf]
        %v1878 = vld [vmem:[%s1838 + $0x9c] sm:$0xf]
        %v1879 = vld [vmem:[%s1838 + $0xa0] sm:$0xf]
        %v1880 = vld [vmem:[%s1838 + $0xa4] sm:$0xf]
        %v1881 = vld [vmem:[%s1838 + $0xa8] sm:$0xf]
        %v1882 = vld [vmem:[%s1838 + $0xac] sm:$0xf]
        %v1883 = vld [vmem:[%s1838 + $0xb0] sm:$0xf]
        %v1884 = vld [vmem:[%s1838 + $0xb4] sm:$0xf]
        %v1885 = vld [vmem:[%s1838 + $0xb8] sm:$0xf]
        %v1886 = vld [vmem:[%s1838 + $0xbc] sm:$0xf]
        %v1887 = vld [vmem:[%s1838 + $0xc0] sm:$0xf]
        %v1888 = vld [vmem:[%s1838 + $0xc4] sm:$0xf]
        %v1889 = vld [vmem:[%s1838 + $0xc8] sm:$0xf]
        %v1890 = vld [vmem:[%s1838 + $0xcc] sm:$0xf]
        %v1891 = vld [vmem:[%s1838 + $0xd0] sm:$0xf]
        %v1892 = vld [vmem:[%s1838 + $0xd4] sm:$0xf]
        %v1893 = vld [vmem:[%s1838 + $0xd8] sm:$0xf]
        %v1894 = vld [vmem:[%s1838 + $0xdc] sm:$0xf]
        %v1895 = vld [vmem:[%s1838 + $0xe0] sm:$0xf]
        %v1896 = vld [vmem:[%s1838 + $0xe4] sm:$0xf]
        %v1897 = vld [vmem:[%s1838 + $0xe8] sm:$0xf]
        %v1898 = vld [vmem:[%s1838 + $0xec] sm:$0xf]
        %v1899 = vld [vmem:[%s1838 + $0xf0] sm:$0xf]
        %v1900 = vld [vmem:[%s1838 + $0xf4] sm:$0xf]
        %v1901 = vld [vmem:[%s1838 + $0xf8] sm:$0xf]
        %v1902 = vld [vmem:[%s1838 + $0xfc] sm:$0xf]
        %v1903 = vld [vmem:[%s1838 + $0x100] sm:$0xf]
        %v1904 = vld [vmem:[%s1838 + $0x104] sm:$0xf]
        %v1905 = vld [vmem:[%s1838 + $0x108] sm:$0xf]
        %v1906 = vld [vmem:[%s1838 + $0x10c] sm:$0xf]
        %v1907 = vld [vmem:[%s1838 + $0x110] sm:$0xf]
        %v1908 = vld [vmem:[%s1838 + $0x114] sm:$0xf]
        %v1909 = vld [vmem:[%s1838 + $0x118] sm:$0xf]
        %v1910 = vld [vmem:[%s1838 + $0x11c] sm:$0xf]
        %v1911 = vld [vmem:[%s1838 + $0x120] sm:$0xf]
        %v1912 = vld [vmem:[%s1838 + $0x124] sm:$0xf]
        %v1913 = vld [vmem:[%s1838 + $0x128] sm:$0xf]
        %v1914 = vld [vmem:[%s1838 + $0x12c] sm:$0xf]
        %v1915 = vld [vmem:[%s1838 + $0x130] sm:$0xf]
        %v1916 = vld [vmem:[%s1838 + $0x134] sm:$0xf]
        %v1917 = vld [vmem:[%s1838 + $0x138] sm:$0xf]
        %v1918 = vld [vmem:[%s1838 + $0x13c] sm:$0xf]
        %v1919 = vld [vmem:[%s1838 + $0x140] sm:$0xf]
        %v1920 = vld [vmem:[%s1838 + $0x144] sm:$0xf]
        %v1921 = vld [vmem:[%s1838 + $0x148] sm:$0xf]
        %v1922 = vld [vmem:[%s1838 + $0x14c] sm:$0xf]
        %v1923 = vld [vmem:[%s1838 + $0x150] sm:$0xf]
        %v1924 = vld [vmem:[%s1838 + $0x154] sm:$0xf]
        %v1925 = vld [vmem:[%s1838 + $0x158] sm:$0xf]
        %v1926 = vld [vmem:[%s1838 + $0x15c] sm:$0xf]
        %v1927 = vld [vmem:[%s1838 + $0x160] sm:$0xf]
        %v1928 = vld [vmem:[%s1838 + $0x164] sm:$0xf]
        %v1929 = vld [vmem:[%s1838 + $0x168] sm:$0xf]
        %v1930 = vld [vmem:[%s1838 + $0x16c] sm:$0xf]
        %v1931 = vld [vmem:[%s1838 + $0x170] sm:$0xf]
        %v1932 = vld [vmem:[%s1838 + $0x174] sm:$0xf]
        %v1933 = vld [vmem:[%s1838 + $0x178] sm:$0xf]
        %v1934 = vld [vmem:[%s1838 + $0x17c] sm:$0xf]
        %v1935 = vld [vmem:[%s1838 + $0x180] sm:$0xf]
        %v1936 = vld [vmem:[%s1838 + $0x184] sm:$0xf]
        %v1937 = vld [vmem:[%s1838 + $0x188] sm:$0xf]
        %v1938 = vld [vmem:[%s1838 + $0x18c] sm:$0xf]
        %v1939 = vld [vmem:[%s1838 + $0x190] sm:$0xf]
        %v1940 = vld [vmem:[%s1838 + $0x194] sm:$0xf]
        %v1941 = vld [vmem:[%s1838 + $0x198] sm:$0xf]
        %v1942 = vld [vmem:[%s1838 + $0x19c] sm:$0xf]
        %v1943 = vld [vmem:[%s1838 + $0x1a0] sm:$0xf]
        %v1944 = vld [vmem:[%s1838 + $0x1a4] sm:$0xf]
        %v1945 = vld [vmem:[%s1838 + $0x1a8] sm:$0xf]
        %v1946 = vld [vmem:[%s1838 + $0x1ac] sm:$0xf]
        %v1947 = vld [vmem:[%s1838 + $0x1b0] sm:$0xf]
        %v1948 = vld [vmem:[%s1838 + $0x1b4] sm:$0xf]
        %v1949 = vld [vmem:[%s1838 + $0x1b8] sm:$0xf]
        %v1950 = vld [vmem:[%s1838 + $0x1bc] sm:$0xf]
        %v1951 = vld [vmem:[%s1838 + $0x1c0] sm:$0xf]
        %v1952 = vld [vmem:[%s1838 + $0x1c4] sm:$0xf]
        %v1953 = vld [vmem:[%s1838 + $0x1c8] sm:$0xf]
        %v1954 = vld [vmem:[%s1838 + $0x1cc] sm:$0xf]
        %v1955 = vld [vmem:[%s1838 + $0x1d0] sm:$0xf]
        %v1956 = vld [vmem:[%s1838 + $0x1d4] sm:$0xf]
        %v1957 = vld [vmem:[%s1838 + $0x1d8] sm:$0xf]
        %v1958 = vld [vmem:[%s1838 + $0x1dc] sm:$0xf]
        %v1959 = vld [vmem:[%s1838 + $0x1e0] sm:$0xf]
        %v1960 = vld [vmem:[%s1838 + $0x1e4] sm:$0xf]
        %v1961 = vld [vmem:[%s1838 + $0x1e8] sm:$0xf]
        %v1962 = vld [vmem:[%s1838 + $0x1ec] sm:$0xf]
        %v1963 = vld [vmem:[%s1838 + $0x1f0] sm:$0xf]
        %v1964 = vld [vmem:[%s1838 + $0x1f4] sm:$0xf]
        %v1965 = vld [vmem:[%s1838 + $0x1f8] sm:$0xf]
        %v1966 = vld [vmem:[%s1838 + $0x1fc] sm:$0xf]
        %v1967 = vld [vmem:[%s1838 + $0x200] sm:$0xf]
        %v1968 = vld [vmem:[%s1838 + $0x204] sm:$0xf]
        %v1969 = vld [vmem:[%s1838 + $0x208] sm:$0xf]
        %v1970 = vld [vmem:[%s1838 + $0x20c] sm:$0xf]
        %v1971 = vld [vmem:[%s1838 + $0x210] sm:$0xf]
        %v1972 = vld [vmem:[%s1838 + $0x214] sm:$0xf]
        %v1973 = vld [vmem:[%s1838 + $0x218] sm:$0xf]
        %v1974 = vld [vmem:[%s1838 + $0x21c] sm:$0xf]
        %v1975 = vld [vmem:[%s1838 + $0x220] sm:$0xf]
        %v1976 = vld [vmem:[%s1838 + $0x224] sm:$0xf]
        %v1977 = vld [vmem:[%s1838 + $0x228] sm:$0xf]
        %v1978 = vld [vmem:[%s1838 + $0x22c] sm:$0xf]
        %v1979 = vld [vmem:[%s1838 + $0x230] sm:$0xf]
        %v1980 = vld [vmem:[%s1838 + $0x234] sm:$0xf]
        %v1981 = vld [vmem:[%s1838 + $0x238] sm:$0xf]
        %v1982 = vld [vmem:[%s1838 + $0x23c] sm:$0xf]
        %v1983 = vpack.c.bf16 %v1831, %v1830
        %v1984 = vpack.c.bf16 %v1833, %v1832
        %v1985 = vpack.c.bf16 %v1835, %v1834
        %v1986 = vpack.c.bf16 %v1837, %v1836
        %v1988 = vshrl.u32 %v1983, 16
        %v1990 = vrot.slane %v1988, 7
        %v1991 = vshll.u32 %v1983, 16
        %v1993 = vor.u32 %v1990, %v1991
        %v1995 = vshrl.u32 %v1984, 16
        %v1997 = vrot.slane %v1995, 7
        %v1998 = vshll.u32 %v1984, 16
        %v2000 = vor.u32 %v1997, %v1998
        %v2001 = vsel %vm752, %v1990, %v2000
        %v2003 = vshrl.u32 %v1985, 16
        %v2005 = vrot.slane %v2003, 7
        %v2006 = vshll.u32 %v1985, 16
        %v2008 = vor.u32 %v2005, %v2006
        %v2009 = vsel %vm752, %v1997, %v2008
        %v2011 = vshrl.u32 %v1986, 16
        %v2013 = vrot.slane %v2011, 7
        %v2014 = vshll.u32 %v1986, 16
        %v2016 = vor.u32 %v2013, %v2014
        %v2017 = vsel %vm752, %v2005, %v2016
        %v2022 = vsel %vm789, 0, %v1993
        %v2023 = vsel %vm835, %v2022, 0
        %v2024 = vsel %vm836, %v2001, 0
        %v2025 = vsel %vm837, %v2009, 0
        %v2026 = vsel %vm838, %v2017, 0
        %v2027 = vrot.slane %v1991, 1
        %v2028 = vor.u32 %v1988, %v2027
        %v2029 = vrot.slane %v1998, 1
        %v2030 = vsel %vm843, %v2028, %v2029
        %v2031 = vor.u32 %v1995, %v2029
        %v2032 = vrot.slane %v2006, 1
        %v2033 = vsel %vm843, %v2031, %v2032
        %v2034 = vor.u32 %v2003, %v2032
        %v2035 = vrot.slane %v2014, 1
        %v2036 = vsel %vm843, %v2034, %v2035
        %v2037 = vor.u32 %v2011, %v2035
        %v2042 = vsel %vm860, %v2037, 0
        %v2043 = vsel %vm906, %v2030, 0
        %v2044 = vsel %vm907, %v2033, 0
        %v2045 = vsel %vm908, %v2036, 0
        %v2046 = vsel %vm909, %v2042, 0
        %v2051 = vrot.slane %v2023, 4
        %v2052 = vrot.slane %v2024, 4
        %v2053 = vsel %vm918, %v2051, %v2052
        %v2054 = vrot.slane %v2025, 4
        %v2055 = vsel %vm918, %v2052, %v2054
        %v2056 = vrot.slane %v2026, 4
        %v2057 = vsel %vm918, %v2054, %v2056
        %v2062 = vsel %vm929, 0, %v2051
        %2064 = vst [vmem:[#allocation2] sm:$0xff] %v2062
        %2065 = vst [vmem:[#allocation2 + $0x48] sm:$0xff] %v2053
        %2066 = vst [vmem:[#allocation2 + $0x90] sm:$0xff] %v2055
        %2067 = vst [vmem:[#allocation2 + $0xd8] sm:$0xff] %v2057
        %v2072 = vrot.slane %v1983, 4
        %v2073 = vrot.slane %v1984, 4
        %v2074 = vsel %vm918, %v2072, %v2073
        %v2075 = vrot.slane %v1985, 4
        %v2076 = vsel %vm918, %v2073, %v2075
        %v2077 = vrot.slane %v1986, 4
        %v2078 = vsel %vm918, %v2075, %v2077
        %v2083 = vsel %vm929, 0, %v2072
        %2085 = vst [vmem:[#allocation2 + $0x8] sm:$0xff] %v2083
        %2086 = vst [vmem:[#allocation2 + $0x50] sm:$0xff] %v2074
        %2087 = vst [vmem:[#allocation2 + $0x98] sm:$0xff] %v2076
        %2088 = vst [vmem:[#allocation2 + $0xe0] sm:$0xff] %v2078
        %v2093 = vrot.slane %v2043, 4
        %v2094 = vrot.slane %v2044, 4
        %v2095 = vsel %vm918, %v2093, %v2094
        %v2096 = vrot.slane %v2045, 4
        %v2097 = vsel %vm918, %v2094, %v2096
        %v2098 = vrot.slane %v2046, 4
        %v2099 = vsel %vm918, %v2096, %v2098
        %v2104 = vsel %vm929, 0, %v2093
        %2106 = vst [vmem:[#allocation2 + $0x10] sm:$0xff] %v2104
        %2107 = vst [vmem:[#allocation2 + $0x58] sm:$0xff] %v2095
        %2108 = vst [vmem:[#allocation2 + $0xa0] sm:$0xff] %v2097
        %2109 = vst [vmem:[#allocation2 + $0xe8] sm:$0xff] %v2099
        %2110 = vst [vmem:[#allocation2 + $0x18] sm:$0xff] %v2023
        %2111 = vst [vmem:[#allocation2 + $0x60] sm:$0xff] %v2024
        %2112 = vst [vmem:[#allocation2 + $0xa8] sm:$0xff] %v2025
        %2113 = vst [vmem:[#allocation2 + $0xf0] sm:$0xff] %v2026
        %2114 = vst [vmem:[#allocation2 + $0x20] sm:$0xff] %v1983
        %2115 = vst [vmem:[#allocation2 + $0x68] sm:$0xff] %v1984
        %2116 = vst [vmem:[#allocation2 + $0xb0] sm:$0xff] %v1985
        %2117 = vst [vmem:[#allocation2 + $0xf8] sm:$0xff] %v1986
        %2118 = vst [vmem:[#allocation2 + $0x28] sm:$0xff] %v2043
        %2119 = vst [vmem:[#allocation2 + $0x70] sm:$0xff] %v2044
        %2120 = vst [vmem:[#allocation2 + $0xb8] sm:$0xff] %v2045
        %2121 = vst [vmem:[#allocation2 + $0x100] sm:$0xff] %v2046
        %v2123 = vsel %vm929, %v2056, 0
        %2125 = vst [vmem:[#allocation2 + $0x30] sm:$0xff] %v2053
        %2126 = vst [vmem:[#allocation2 + $0x78] sm:$0xff] %v2055
        %2127 = vst [vmem:[#allocation2 + $0xc0] sm:$0xff] %v2057
        %2128 = vst [vmem:[#allocation2 + $0x108] sm:$0xff] %v2123
        %v2130 = vsel %vm929, %v2077, 0
        %2132 = vst [vmem:[#allocation2 + $0x38] sm:$0xff] %v2074
        %2133 = vst [vmem:[#allocation2 + $0x80] sm:$0xff] %v2076
        %2134 = vst [vmem:[#allocation2 + $0xc8] sm:$0xff] %v2078
        %2135 = vst [vmem:[#allocation2 + $0x110] sm:$0xff] %v2130
        %v2137 = vsel %vm929, %v2098, 0
        %2139 = vst [vmem:[#allocation2 + $0x40] sm:$0xff] %v2095
        %2140 = vst [vmem:[#allocation2 + $0x88] sm:$0xff] %v2097
        %2141 = vst [vmem:[#allocation2 + $0xd0] sm:$0xff] %v2099
        %2142 = vst [vmem:[#allocation2 + $0x118] sm:$0xff] %v2137
        %v2143 = vld [vmem:[#allocation2] sm:$0xff]
        %v2144 = vld [vmem:[#allocation2 + $0x8] sm:$0xff]
        %v2145 = vld [vmem:[#allocation2 + $0x10] sm:$0xff]
        %v2146 = vld [vmem:[#allocation2 + $0x18] sm:$0xff]
        %v2147 = vld [vmem:[#allocation2 + $0x20] sm:$0xff]
        %v2148 = vld [vmem:[#allocation2 + $0x28] sm:$0xff]
        %v2149 = vld [vmem:[#allocation2 + $0x30] sm:$0xff]
        %v2150 = vld [vmem:[#allocation2 + $0x38] sm:$0xff]
        %v2151 = vld [vmem:[#allocation2 + $0x40] sm:$0xff]
        %v2152 = vld [vmem:[#allocation2 + $0x48] sm:$0xff]
        %v2153 = vld [vmem:[#allocation2 + $0x50] sm:$0xff]
        %v2154 = vld [vmem:[#allocation2 + $0x58] sm:$0xff]
        %v2155 = vld [vmem:[#allocation2 + $0x60] sm:$0xff]
        %v2156 = vld [vmem:[#allocation2 + $0x68] sm:$0xff]
        %v2157 = vld [vmem:[#allocation2 + $0x70] sm:$0xff]
        %v2158 = vld [vmem:[#allocation2 + $0x78] sm:$0xff]
        %v2159 = vld [vmem:[#allocation2 + $0x80] sm:$0xff]
        %v2160 = vld [vmem:[#allocation2 + $0x88] sm:$0xff]
        %v2161 = vld [vmem:[#allocation2 + $0x90] sm:$0xff]
        %v2162 = vld [vmem:[#allocation2 + $0x98] sm:$0xff]
        %v2163 = vld [vmem:[#allocation2 + $0xa0] sm:$0xff]
        %v2164 = vld [vmem:[#allocation2 + $0xa8] sm:$0xff]
        %v2165 = vld [vmem:[#allocation2 + $0xb0] sm:$0xff]
        %v2166 = vld [vmem:[#allocation2 + $0xb8] sm:$0xff]
        %v2167 = vld [vmem:[#allocation2 + $0xc0] sm:$0xff]
        %v2168 = vld [vmem:[#allocation2 + $0xc8] sm:$0xff]
        %v2169 = vld [vmem:[#allocation2 + $0xd0] sm:$0xff]
        %v2170 = vld [vmem:[#allocation2 + $0xd8] sm:$0xff]
        %v2171 = vld [vmem:[#allocation2 + $0xe0] sm:$0xff]
        %v2172 = vld [vmem:[#allocation2 + $0xe8] sm:$0xff]
        %v2173 = vld [vmem:[#allocation2 + $0xf0] sm:$0xff]
        %v2174 = vld [vmem:[#allocation2 + $0xf8] sm:$0xff]
        %v2175 = vld [vmem:[#allocation2 + $0x100] sm:$0xff]
        %v2176 = vld [vmem:[#allocation2 + $0x108] sm:$0xff]
        %v2177 = vld [vmem:[#allocation2 + $0x110] sm:$0xff]
        %v2178 = vld [vmem:[#allocation2 + $0x118] sm:$0xff]
        %v2323 = vunpack.c.l.b16 %v1839
        %v2324 = vunpack.c.l.b16 %v1840
        %v2325 = vunpack.c.l.b16 %v1841
        %v2326 = vunpack.c.l.b16 %v1842
        %v2327 = vunpack.c.l.b16 %v1843
        %v2328 = vunpack.c.l.b16 %v1844
        %v2329 = vunpack.c.l.b16 %v1845
        %v2330 = vunpack.c.l.b16 %v1846
        %v2331 = vunpack.c.l.b16 %v1847
        %v2332 = vunpack.c.l.b16 %v1848
        %v2333 = vunpack.c.l.b16 %v1849
        %v2334 = vunpack.c.l.b16 %v1850
        %v2335 = vunpack.c.l.b16 %v1851
        %v2336 = vunpack.c.l.b16 %v1852
        %v2337 = vunpack.c.l.b16 %v1853
        %v2338 = vunpack.c.l.b16 %v1854
        %v2339 = vunpack.c.l.b16 %v1855
        %v2340 = vunpack.c.l.b16 %v1856
        %v2341 = vunpack.c.l.b16 %v1857
        %v2342 = vunpack.c.l.b16 %v1858
        %v2343 = vunpack.c.l.b16 %v1859
        %v2344 = vunpack.c.l.b16 %v1860
        %v2345 = vunpack.c.l.b16 %v1861
        %v2346 = vunpack.c.l.b16 %v1862
        %v2347 = vunpack.c.l.b16 %v1863
        %v2348 = vunpack.c.l.b16 %v1864
        %v2349 = vunpack.c.l.b16 %v1865
        %v2350 = vunpack.c.l.b16 %v1866
        %v2351 = vunpack.c.l.b16 %v1867
        %v2352 = vunpack.c.l.b16 %v1868
        %v2353 = vunpack.c.l.b16 %v1869
        %v2354 = vunpack.c.l.b16 %v1870
        %v2355 = vunpack.c.l.b16 %v1871
        %v2356 = vunpack.c.l.b16 %v1872
        %v2357 = vunpack.c.l.b16 %v1873
        %v2358 = vunpack.c.l.b16 %v1874
        %v2359 = vunpack.c.l.b16 %v1875
        %v2360 = vunpack.c.l.b16 %v1876
        %v2361 = vunpack.c.l.b16 %v1877
        %v2362 = vunpack.c.l.b16 %v1878
        %v2363 = vunpack.c.l.b16 %v1879
        %v2364 = vunpack.c.l.b16 %v1880
        %v2365 = vunpack.c.l.b16 %v1881
        %v2366 = vunpack.c.l.b16 %v1882
        %v2367 = vunpack.c.l.b16 %v1883
        %v2368 = vunpack.c.l.b16 %v1884
        %v2369 = vunpack.c.l.b16 %v1885
        %v2370 = vunpack.c.l.b16 %v1886
        %v2371 = vunpack.c.l.b16 %v1887
        %v2372 = vunpack.c.l.b16 %v1888
        %v2373 = vunpack.c.l.b16 %v1889
        %v2374 = vunpack.c.l.b16 %v1890
        %v2375 = vunpack.c.l.b16 %v1891
        %v2376 = vunpack.c.l.b16 %v1892
        %v2377 = vunpack.c.l.b16 %v1893
        %v2378 = vunpack.c.l.b16 %v1894
        %v2379 = vunpack.c.l.b16 %v1895
        %v2380 = vunpack.c.l.b16 %v1896
        %v2381 = vunpack.c.l.b16 %v1897
        %v2382 = vunpack.c.l.b16 %v1898
        %v2383 = vunpack.c.l.b16 %v1899
        %v2384 = vunpack.c.l.b16 %v1900
        %v2385 = vunpack.c.l.b16 %v1901
        %v2386 = vunpack.c.l.b16 %v1902
        %v2387 = vunpack.c.l.b16 %v1903
        %v2388 = vunpack.c.l.b16 %v1904
        %v2389 = vunpack.c.l.b16 %v1905
        %v2390 = vunpack.c.l.b16 %v1906
        %v2391 = vunpack.c.l.b16 %v1907
        %v2392 = vunpack.c.l.b16 %v1908
        %v2393 = vunpack.c.l.b16 %v1909
        %v2394 = vunpack.c.l.b16 %v1910
        %v2395 = vunpack.c.l.b16 %v1911
        %v2396 = vunpack.c.l.b16 %v1912
        %v2397 = vunpack.c.l.b16 %v1913
        %v2398 = vunpack.c.l.b16 %v1914
        %v2399 = vunpack.c.l.b16 %v1915
        %v2400 = vunpack.c.l.b16 %v1916
        %v2401 = vunpack.c.l.b16 %v1917
        %v2402 = vunpack.c.l.b16 %v1918
        %v2403 = vunpack.c.l.b16 %v1919
        %v2404 = vunpack.c.l.b16 %v1920
        %v2405 = vunpack.c.l.b16 %v1921
        %v2406 = vunpack.c.l.b16 %v1922
        %v2407 = vunpack.c.l.b16 %v1923
        %v2408 = vunpack.c.l.b16 %v1924
        %v2409 = vunpack.c.l.b16 %v1925
        %v2410 = vunpack.c.l.b16 %v1926
        %v2411 = vunpack.c.l.b16 %v1927
        %v2412 = vunpack.c.l.b16 %v1928
        %v2413 = vunpack.c.l.b16 %v1929
        %v2414 = vunpack.c.l.b16 %v1930
        %v2415 = vunpack.c.l.b16 %v1931
        %v2416 = vunpack.c.l.b16 %v1932
        %v2417 = vunpack.c.l.b16 %v1933
        %v2418 = vunpack.c.l.b16 %v1934
        %v2419 = vunpack.c.l.b16 %v1935
        %v2420 = vunpack.c.l.b16 %v1936
        %v2421 = vunpack.c.l.b16 %v1937
        %v2422 = vunpack.c.l.b16 %v1938
        %v2423 = vunpack.c.l.b16 %v1939
        %v2424 = vunpack.c.l.b16 %v1940
        %v2425 = vunpack.c.l.b16 %v1941
        %v2426 = vunpack.c.l.b16 %v1942
        %v2427 = vunpack.c.l.b16 %v1943
        %v2428 = vunpack.c.l.b16 %v1944
        %v2429 = vunpack.c.l.b16 %v1945
        %v2430 = vunpack.c.l.b16 %v1946
        %v2431 = vunpack.c.l.b16 %v1947
        %v2432 = vunpack.c.l.b16 %v1948
        %v2433 = vunpack.c.l.b16 %v1949
        %v2434 = vunpack.c.l.b16 %v1950
        %v2435 = vunpack.c.l.b16 %v1951
        %v2436 = vunpack.c.l.b16 %v1952
        %v2437 = vunpack.c.l.b16 %v1953
        %v2438 = vunpack.c.l.b16 %v1954
        %v2439 = vunpack.c.l.b16 %v1955
        %v2440 = vunpack.c.l.b16 %v1956
        %v2441 = vunpack.c.l.b16 %v1957
        %v2442 = vunpack.c.l.b16 %v1958
        %v2443 = vunpack.c.l.b16 %v1959
        %v2444 = vunpack.c.l.b16 %v1960
        %v2445 = vunpack.c.l.b16 %v1961
        %v2446 = vunpack.c.l.b16 %v1962
        %v2447 = vunpack.c.l.b16 %v1963
        %v2448 = vunpack.c.l.b16 %v1964
        %v2449 = vunpack.c.l.b16 %v1965
        %v2450 = vunpack.c.l.b16 %v1966
        %v2451 = vunpack.c.l.b16 %v1967
        %v2452 = vunpack.c.l.b16 %v1968
        %v2453 = vunpack.c.l.b16 %v1969
        %v2454 = vunpack.c.l.b16 %v1970
        %v2455 = vunpack.c.l.b16 %v1971
        %v2456 = vunpack.c.l.b16 %v1972
        %v2457 = vunpack.c.l.b16 %v1973
        %v2458 = vunpack.c.l.b16 %v1974
        %v2459 = vunpack.c.l.b16 %v1975
        %v2460 = vunpack.c.l.b16 %v1976
        %v2461 = vunpack.c.l.b16 %v1977
        %v2462 = vunpack.c.l.b16 %v1978
        %v2463 = vunpack.c.l.b16 %v1979
        %v2464 = vunpack.c.l.b16 %v1980
        %v2465 = vunpack.c.l.b16 %v1981
        %v2466 = vunpack.c.l.b16 %v1982
        %v2467 = vpack.c.b16 %v2324, %v2323
        %v2468 = vpack.c.b16 %v2326, %v2325
        %v2469 = vpack.c.b16 %v2328, %v2327
        %v2470 = vpack.c.b16 %v2330, %v2329
        %v2471 = vpack.c.b16 %v2332, %v2331
        %v2472 = vpack.c.b16 %v2334, %v2333
        %v2473 = vpack.c.b16 %v2336, %v2335
        %v2474 = vpack.c.b16 %v2338, %v2337
        %v2475 = vpack.c.b16 %v2340, %v2339
        %v2476 = vpack.c.b16 %v2342, %v2341
        %v2477 = vpack.c.b16 %v2344, %v2343
        %v2478 = vpack.c.b16 %v2346, %v2345
        %v2479 = vpack.c.b16 %v2348, %v2347
        %v2480 = vpack.c.b16 %v2350, %v2349
        %v2481 = vpack.c.b16 %v2352, %v2351
        %v2482 = vpack.c.b16 %v2354, %v2353
        %v2483 = vpack.c.b16 %v2356, %v2355
        %v2484 = vpack.c.b16 %v2358, %v2357
        %v2485 = vpack.c.b16 %v2360, %v2359
        %v2486 = vpack.c.b16 %v2362, %v2361
        %v2487 = vpack.c.b16 %v2364, %v2363
        %v2488 = vpack.c.b16 %v2366, %v2365
        %v2489 = vpack.c.b16 %v2368, %v2367
        %v2490 = vpack.c.b16 %v2370, %v2369
        %v2491 = vpack.c.b16 %v2372, %v2371
        %v2492 = vpack.c.b16 %v2374, %v2373
        %v2493 = vpack.c.b16 %v2376, %v2375
        %v2494 = vpack.c.b16 %v2378, %v2377
        %v2495 = vpack.c.b16 %v2380, %v2379
        %v2496 = vpack.c.b16 %v2382, %v2381
        %v2497 = vpack.c.b16 %v2384, %v2383
        %v2498 = vpack.c.b16 %v2386, %v2385
        %v2499 = vpack.c.b16 %v2388, %v2387
        %v2500 = vpack.c.b16 %v2390, %v2389
        %v2501 = vpack.c.b16 %v2392, %v2391
        %v2502 = vpack.c.b16 %v2394, %v2393
        %v2503 = vpack.c.b16 %v2396, %v2395
        %v2504 = vpack.c.b16 %v2398, %v2397
        %v2505 = vpack.c.b16 %v2400, %v2399
        %v2506 = vpack.c.b16 %v2402, %v2401
        %v2507 = vpack.c.b16 %v2404, %v2403
        %v2508 = vpack.c.b16 %v2406, %v2405
        %v2509 = vpack.c.b16 %v2408, %v2407
        %v2510 = vpack.c.b16 %v2410, %v2409
        %v2511 = vpack.c.b16 %v2412, %v2411
        %v2512 = vpack.c.b16 %v2414, %v2413
        %v2513 = vpack.c.b16 %v2416, %v2415
        %v2514 = vpack.c.b16 %v2418, %v2417
        %v2515 = vpack.c.b16 %v2420, %v2419
        %v2516 = vpack.c.b16 %v2422, %v2421
        %v2517 = vpack.c.b16 %v2424, %v2423
        %v2518 = vpack.c.b16 %v2426, %v2425
        %v2519 = vpack.c.b16 %v2428, %v2427
        %v2520 = vpack.c.b16 %v2430, %v2429
        %v2521 = vpack.c.b16 %v2432, %v2431
        %v2522 = vpack.c.b16 %v2434, %v2433
        %v2523 = vpack.c.b16 %v2436, %v2435
        %v2524 = vpack.c.b16 %v2438, %v2437
        %v2525 = vpack.c.b16 %v2440, %v2439
        %v2526 = vpack.c.b16 %v2442, %v2441
        %v2527 = vpack.c.b16 %v2444, %v2443
        %v2528 = vpack.c.b16 %v2446, %v2445
        %v2529 = vpack.c.b16 %v2448, %v2447
        %v2530 = vpack.c.b16 %v2450, %v2449
        %v2531 = vpack.c.b16 %v2452, %v2451
        %v2532 = vpack.c.b16 %v2454, %v2453
        %v2533 = vpack.c.b16 %v2456, %v2455
        %v2534 = vpack.c.b16 %v2458, %v2457
        %v2535 = vpack.c.b16 %v2460, %v2459
        %v2536 = vpack.c.b16 %v2462, %v2461
        %v2537 = vpack.c.b16 %v2464, %v2463
        %v2538 = vpack.c.b16 %v2466, %v2465
        %2611 = vmatprep.subr.bf16.mxu0 0
        %2612 = vmatpush1.bf16.msra.mxu0 %v2467
        %2613 = vmatprep.subr.bf16.mxu0 0
        %2614 = vmatpush1.bf16.msra.mxu0 %v2468
        %2615 = vmatprep.subr.bf16.mxu0 0
        %2616 = vmatpush1.bf16.msra.mxu0 %v2469
        %2617 = vmatprep.subr.bf16.mxu0 0
        %2618 = vmatpush1.bf16.msra.mxu0 %v2470
        %2619 = vmatprep.subr.bf16.mxu0 0
        %2620 = vmatpush1.bf16.msra.mxu0 %v2471
        %2621 = vmatprep.subr.bf16.mxu0 0
        %2622 = vmatpush1.bf16.msra.mxu0 %v2472
        %2623 = vmatprep.subr.bf16.mxu0 0
        %2624 = vmatpush1.bf16.msra.mxu0 %v2473
        %2625 = vmatprep.subr.bf16.mxu0 0
        %2626 = vmatpush1.bf16.msra.mxu0 %v2474
        %2627 = vmatprep.subr.bf16.mxu0 0
        %2628 = vmatpush1.bf16.msra.mxu0 %v2475
        %2629 = vmatprep.subr.bf16.mxu0 0
        %2630 = vmatpush1.bf16.msra.mxu0 %v2476
        %2631 = vmatprep.subr.bf16.mxu0 0
        %2632 = vmatpush1.bf16.msra.mxu0 %v2477
        %2633 = vmatprep.subr.bf16.mxu0 0
        %2634 = vmatpush1.bf16.msra.mxu0 %v2478
        %2635 = vmatprep.subr.bf16.mxu0 0
        %2636 = vmatpush1.bf16.msra.mxu0 %v2479
        %2637 = vmatprep.subr.bf16.mxu0 0
        %2638 = vmatpush1.bf16.msra.mxu0 %v2480
        %2639 = vmatprep.subr.bf16.mxu0 0
        %2640 = vmatpush1.bf16.msra.mxu0 %v2481
        %2641 = vmatprep.subr.bf16.mxu0 0
        %2642 = vmatpush1.bf16.msra.mxu0 %v2482
        %2643 = vmatprep.mubr.bf16.mxu0 %v2144
        %2644 = vmatmul.mubr.bf16.gmra.mrb[0].mxu0 %v2143
        %v2645 = vpop.f32.mrb[0].mxu0
        %v2646 = vadd.f32 0.0, %v2645
        %v2647 = vpop.f32.mrb[0].mxu0
        %v2648 = vpop.f32.mrb[0].mxu0
        %v2649 = vadd.f32 0.0, %v2648
        %v2650 = vpop.f32.mrb[0].mxu0
        %2651 = vmatprep.mubr.bf16.mxu0 %v2153
        %2652 = vmatmul.mubr.bf16.gmra.mrb[0].mxu0 %v2152
        %v2653 = vpop.f32.mrb[0].mxu0
        %v2654 = vadd.f32 0.0, %v2653
        %v2655 = vpop.f32.mrb[0].mxu0
        %v2656 = vpop.f32.mrb[0].mxu0
        %v2657 = vadd.f32 0.0, %v2656
        %v2658 = vpop.f32.mrb[0].mxu0
        %2659 = vmatprep.mubr.bf16.mxu0 %v2162
        %2660 = vmatmul.mubr.bf16.gmra.mrb[0].mxu0 %v2161
        %v2661 = vpop.f32.mrb[0].mxu0
        %v2662 = vadd.f32 0.0, %v2661
        %v2663 = vpop.f32.mrb[0].mxu0
        %v2664 = vpop.f32.mrb[0].mxu0
        %v2665 = vadd.f32 0.0, %v2664
        %v2666 = vpop.f32.mrb[0].mxu0
        %2667 = vmatprep.mubr.bf16.mxu0 %v2171
        %2668 = vmatmul.mubr.bf16.gmra.mrb[0].mxu0 %v2170
        %v2669 = vpop.f32.mrb[0].mxu0
        %v2670 = vadd.f32 0.0, %v2669
        %v2671 = vpop.f32.mrb[0].mxu0
        %v2672 = vpop.f32.mrb[0].mxu0
        %v2673 = vadd.f32 0.0, %v2672
        %v2674 = vpop.f32.mrb[0].mxu0
        %2675 = vdwg.mxu0
        %2676 = vmatprep.subr.bf16.mxu0 0
        %2677 = vmatpush1.bf16.msra.mxu0 %v2483
        %2678 = vmatprep.subr.bf16.mxu0 0
        %2679 = vmatpush1.bf16.msra.mxu0 %v2484
        %2680 = vmatprep.subr.bf16.mxu0 0
        %2681 = vmatpush1.bf16.msra.mxu0 %v2485
        %2682 = vmatprep.subr.bf16.mxu0 0
        %2683 = vmatpush1.bf16.msra.mxu0 %v2486
        %2684 = vmatprep.subr.bf16.mxu0 0
        %2685 = vmatpush1.bf16.msra.mxu0 %v2487
        %2686 = vmatprep.subr.bf16.mxu0 0
        %2687 = vmatpush1.bf16.msra.mxu0 %v2488
        %2688 = vmatprep.subr.bf16.mxu0 0
        %2689 = vmatpush1.bf16.msra.mxu0 %v2489
        %2690 = vmatprep.subr.bf16.mxu0 0
        %2691 = vmatpush1.bf16.msra.mxu0 %v2490
        %2692 = vmatprep.subr.bf16.mxu0 0
        %2693 = vmatpush1.bf16.msra.mxu0 %v2491
        %2694 = vmatprep.subr.bf16.mxu0 0
        %2695 = vmatpush1.bf16.msra.mxu0 %v2492
        %2696 = vmatprep.subr.bf16.mxu0 0
        %2697 = vmatpush1.bf16.msra.mxu0 %v2493
        %2698 = vmatprep.subr.bf16.mxu0 0
        %2699 = vmatpush1.bf16.msra.mxu0 %v2494
        %2700 = vmatprep.subr.bf16.mxu0 0
        %2701 = vmatpush1.bf16.msra.mxu0 %v2495
        %2702 = vmatprep.subr.bf16.mxu0 0
        %2703 = vmatpush1.bf16.msra.mxu0 %v2496
        %2704 = vmatprep.subr.bf16.mxu0 0
        %2705 = vmatpush1.bf16.msra.mxu0 %v2497
        %2706 = vmatprep.subr.bf16.mxu0 0
        %2707 = vmatpush1.bf16.msra.mxu0 %v2498
        %2708 = vmatprep.mubr.bf16.mxu0 %v2146
        %2709 = vmatmul.mubr.bf16.gmra.mrb[0].mxu0 %v2145
        %v2710 = vpop.f32.mrb[0].mxu0
        %v2711 = vadd.f32 %v2646, %v2710
        %v2712 = vpop.f32.mrb[0].mxu0
        %v2713 = vpop.f32.mrb[0].mxu0
        %v2714 = vadd.f32 %v2649, %v2713
        %v2715 = vpop.f32.mrb[0].mxu0
        %2716 = vmatprep.mubr.bf16.mxu0 %v2155
        %2717 = vmatmul.mubr.bf16.gmra.mrb[0].mxu0 %v2154
        %v2718 = vpop.f32.mrb[0].mxu0
        %v2719 = vadd.f32 %v2654, %v2718
        %v2720 = vpop.f32.mrb[0].mxu0
        %v2721 = vpop.f32.mrb[0].mxu0
        %v2722 = vadd.f32 %v2657, %v2721
        %v2723 = vpop.f32.mrb[0].mxu0
        %2724 = vmatprep.mubr.bf16.mxu0 %v2164
        %2725 = vmatmul.mubr.bf16.gmra.mrb[0].mxu0 %v2163
        %v2726 = vpop.f32.mrb[0].mxu0
        %v2727 = vadd.f32 %v2662, %v2726
        %v2728 = vpop.f32.mrb[0].mxu0
        %v2729 = vpop.f32.mrb[0].mxu0
        %v2730 = vadd.f32 %v2665, %v2729
        %v2731 = vpop.f32.mrb[0].mxu0
        %2732 = vmatprep.mubr.bf16.mxu0 %v2173
        %2733 = vmatmul.mubr.bf16.gmra.mrb[0].mxu0 %v2172
        %v2734 = vpop.f32.mrb[0].mxu0
        %v2735 = vadd.f32 %v2670, %v2734
        %v2736 = vpop.f32.mrb[0].mxu0
        %v2737 = vpop.f32.mrb[0].mxu0
        %v2738 = vadd.f32 %v2673, %v2737
        %v2739 = vpop.f32.mrb[0].mxu0
        %2740 = vdwg.mxu0
        %2741 = vmatprep.subr.bf16.mxu0 0
        %2742 = vmatpush1.bf16.msra.mxu0 %v2499
        %2743 = vmatprep.subr.bf16.mxu0 0
        %2744 = vmatpush1.bf16.msra.mxu0 %v2500
        %2745 = vmatprep.subr.bf16.mxu0 0
        %2746 = vmatpush1.bf16.msra.mxu0 %v2501
        %2747 = vmatprep.subr.bf16.mxu0 0
        %2748 = vmatpush1.bf16.msra.mxu0 %v2502
        %2749 = vmatprep.subr.bf16.mxu0 0
        %2750 = vmatpush1.bf16.msra.mxu0 %v2503
        %2751 = vmatprep.subr.bf16.mxu0 0
        %2752 = vmatpush1.bf16.msra.mxu0 %v2504
        %2753 = vmatprep.subr.bf16.mxu0 0
        %2754 = vmatpush1.bf16.msra.mxu0 %v2505
        %2755 = vmatprep.subr.bf16.mxu0 0
        %2756 = vmatpush1.bf16.msra.mxu0 %v2506
        %2757 = vmatprep.subr.bf16.mxu0 0
        %2758 = vmatpush1.bf16.msra.mxu0 %v2507
        %2759 = vmatprep.subr.bf16.mxu0 0
        %2760 = vmatpush1.bf16.msra.mxu0 %v2508
        %2761 = vmatprep.subr.bf16.mxu0 0
        %2762 = vmatpush1.bf16.msra.mxu0 %v2509
        %2763 = vmatprep.subr.bf16.mxu0 0
        %2764 = vmatpush1.bf16.msra.mxu0 %v2510
        %2765 = vmatprep.subr.bf16.mxu0 0
        %2766 = vmatpush1.bf16.msra.mxu0 %v2511
        %2767 = vmatprep.subr.bf16.mxu0 0
        %2768 = vmatpush1.bf16.msra.mxu0 %v2512
        %2769 = vmatprep.subr.bf16.mxu0 0
        %2770 = vmatpush1.bf16.msra.mxu0 %v2513
        %2771 = vmatprep.subr.bf16.mxu0 0
        %2772 = vmatpush1.bf16.msra.mxu0 %v2514
        %2773 = vmatprep.mubr.bf16.mxu0 %v2148
        %2774 = vmatmul.mubr.bf16.gmra.mrb[0].mxu0 %v2147
        %v2775 = vpop.f32.mrb[0].mxu0
        %v2776 = vadd.f32 %v2711, %v2775
        %v2777 = vpop.f32.mrb[0].mxu0
        %v2778 = vpop.f32.mrb[0].mxu0
        %v2779 = vadd.f32 %v2714, %v2778
        %v2780 = vpop.f32.mrb[0].mxu0
        %2781 = vmatprep.mubr.bf16.mxu0 %v2157
        %2782 = vmatmul.mubr.bf16.gmra.mrb[0].mxu0 %v2156
        %v2783 = vpop.f32.mrb[0].mxu0
        %v2784 = vadd.f32 %v2719, %v2783
        %v2785 = vpop.f32.mrb[0].mxu0
        %v2786 = vpop.f32.mrb[0].mxu0
        %v2787 = vadd.f32 %v2722, %v2786
        %v2788 = vpop.f32.mrb[0].mxu0
        %2789 = vmatprep.mubr.bf16.mxu0 %v2166
        %2790 = vmatmul.mubr.bf16.gmra.mrb[0].mxu0 %v2165
        %v2791 = vpop.f32.mrb[0].mxu0
        %v2792 = vadd.f32 %v2727, %v2791
        %v2793 = vpop.f32.mrb[0].mxu0
        %v2794 = vpop.f32.mrb[0].mxu0
        %v2795 = vadd.f32 %v2730, %v2794
        %v2796 = vpop.f32.mrb[0].mxu0
        %2797 = vmatprep.mubr.bf16.mxu0 %v2175
        %2798 = vmatmul.mubr.bf16.gmra.mrb[0].mxu0 %v2174
        %v2799 = vpop.f32.mrb[0].mxu0
        %v2800 = vadd.f32 %v2735, %v2799
        %v2801 = vpop.f32.mrb[0].mxu0
        %v2802 = vpop.f32.mrb[0].mxu0
        %v2803 = vadd.f32 %v2738, %v2802
        %v2804 = vpop.f32.mrb[0].mxu0
        %2805 = vdwg.mxu0
        %2806 = vmatprep.subr.bf16.mxu0 0
        %2807 = vmatpush1.bf16.msra.mxu0 %v2515
        %2808 = vmatprep.subr.bf16.mxu0 0
        %2809 = vmatpush1.bf16.msra.mxu0 %v2516
        %2810 = vmatprep.subr.bf16.mxu0 0
        %2811 = vmatpush1.bf16.msra.mxu0 %v2517
        %2812 = vmatprep.subr.bf16.mxu0 0
        %2813 = vmatpush1.bf16.msra.mxu0 %v2518
        %2814 = vmatprep.subr.bf16.mxu0 0
        %2815 = vmatpush1.bf16.msra.mxu0 %v2519
        %2816 = vmatprep.subr.bf16.mxu0 0
        %2817 = vmatpush1.bf16.msra.mxu0 %v2520
        %2818 = vmatprep.subr.bf16.mxu0 0
        %2819 = vmatpush1.bf16.msra.mxu0 %v2521
        %2820 = vmatprep.subr.bf16.mxu0 0
        %2821 = vmatpush1.bf16.msra.mxu0 %v2522
        %2822 = vmatprep.subr.bf16.mxu0 0
        %2823 = vmatpush1.bf16.msra.mxu0 %v2523
        %2824 = vmatprep.subr.bf16.mxu0 0
        %2825 = vmatpush1.bf16.msra.mxu0 %v2524
        %2826 = vmatprep.subr.bf16.mxu0 0
        %2827 = vmatpush1.bf16.msra.mxu0 %v2525
        %2828 = vmatprep.subr.bf16.mxu0 0
        %2829 = vmatpush1.bf16.msra.mxu0 %v2526
        %2830 = vmatprep.subr.bf16.mxu0 0
        %2831 = vmatpush1.bf16.msra.mxu0 %v2527
        %2832 = vmatprep.subr.bf16.mxu0 0
        %2833 = vmatpush1.bf16.msra.mxu0 %v2528
        %2834 = vmatprep.subr.bf16.mxu0 0
        %2835 = vmatpush1.bf16.msra.mxu0 %v2529
        %2836 = vmatprep.subr.bf16.mxu0 0
        %2837 = vmatpush1.bf16.msra.mxu0 %v2530
        %2838 = vmatprep.mubr.bf16.mxu0 %v2150
        %2839 = vmatmul.mubr.bf16.gmra.mrb[0].mxu0 %v2149
        %v2840 = vpop.f32.mrb[0].mxu0
        %v2841 = vadd.f32 %v2776, %v2840
        %v2842 = vpop.f32.mrb[0].mxu0
        %v2843 = vpop.f32.mrb[0].mxu0
        %v2844 = vadd.f32 %v2779, %v2843
        %v2845 = vpop.f32.mrb[0].mxu0
        %2846 = vmatprep.mubr.bf16.mxu0 %v2159
        %2847 = vmatmul.mubr.bf16.gmra.mrb[0].mxu0 %v2158
        %v2848 = vpop.f32.mrb[0].mxu0
        %v2849 = vadd.f32 %v2784, %v2848
        %v2850 = vpop.f32.mrb[0].mxu0
        %v2851 = vpop.f32.mrb[0].mxu0
        %v2852 = vadd.f32 %v2787, %v2851
        %v2853 = vpop.f32.mrb[0].mxu0
        %2854 = vmatprep.mubr.bf16.mxu0 %v2168
        %2855 = vmatmul.mubr.bf16.gmra.mrb[0].mxu0 %v2167
        %v2856 = vpop.f32.mrb[0].mxu0
        %v2857 = vadd.f32 %v2792, %v2856
        %v2858 = vpop.f32.mrb[0].mxu0
        %v2859 = vpop.f32.mrb[0].mxu0
        %v2860 = vadd.f32 %v2795, %v2859
        %v2861 = vpop.f32.mrb[0].mxu0
        %2862 = vmatprep.mubr.bf16.mxu0 %v2177
        %2863 = vmatmul.mubr.bf16.gmra.mrb[0].mxu0 %v2176
        %v2864 = vpop.f32.mrb[0].mxu0
        %v2865 = vadd.f32 %v2800, %v2864
        %v2866 = vpop.f32.mrb[0].mxu0
        %v2867 = vpop.f32.mrb[0].mxu0
        %v2868 = vadd.f32 %v2803, %v2867
        %v2869 = vpop.f32.mrb[0].mxu0
        %2870 = vdwg.mxu0
        %2871 = vmatprep.subr.bf16.mxu0 0
        %2872 = vmatpush1.bf16.msra.mxu0 %v2531
        %2873 = vmatprep.subr.bf16.mxu0 0
        %2874 = vmatpush1.bf16.msra.mxu0 %v2532
        %2875 = vmatprep.subr.bf16.mxu0 0
        %2876 = vmatpush1.bf16.msra.mxu0 %v2533
        %2877 = vmatprep.subr.bf16.mxu0 0
        %2878 = vmatpush1.bf16.msra.mxu0 %v2534
        %2879 = vmatprep.subr.bf16.mxu0 0
        %2880 = vmatpush1.bf16.msra.mxu0 %v2535
        %2881 = vmatprep.subr.bf16.mxu0 0
        %2882 = vmatpush1.bf16.msra.mxu0 %v2536
        %2883 = vmatprep.subr.bf16.mxu0 0
        %2884 = vmatpush1.bf16.msra.mxu0 %v2537
        %2885 = vmatprep.subr.bf16.mxu0 0
        %2886 = vmatpush1.bf16.msra.mxu0 %v2538
        %2887 = vmatprep.subr.bf16.mxu0 0
        %2888 = vmatpush1.bf16.msra.mxu0 0
        %2889 = vmatprep.subr.bf16.mxu0 0
        %2890 = vmatpush1.bf16.msra.mxu0 0
        %2891 = vmatprep.subr.bf16.mxu0 0
        %2892 = vmatpush1.bf16.msra.mxu0 0
        %2893 = vmatprep.subr.bf16.mxu0 0
        %2894 = vmatpush1.bf16.msra.mxu0 0
        %2895 = vmatprep.subr.bf16.mxu0 0
        %2896 = vmatpush1.bf16.msra.mxu0 0
        %2897 = vmatprep.subr.bf16.mxu0 0
        %2898 = vmatpush1.bf16.msra.mxu0 0
        %2899 = vmatprep.subr.bf16.mxu0 0
        %2900 = vmatpush1.bf16.msra.mxu0 0
        %2901 = vmatprep.subr.bf16.mxu0 0
        %2902 = vmatpush1.bf16.msra.mxu0 0
        %2903 = vmatprep.mubr.bf16.mxu0 0
        %2904 = vmatmul.mubr.bf16.gmra.mrb[0].mxu0 %v2151
        %v2905 = vpop.f32.mrb[0].mxu0
        %v2906 = vadd.f32 %v2841, %v2905
        %v2907 = vpop.f32.mrb[0].mxu0
        %v2908 = vpop.f32.mrb[0].mxu0
        %v2909 = vadd.f32 %v2844, %v2908
        %v2910 = vpop.f32.mrb[0].mxu0
        %2911 = vmatprep.mubr.bf16.mxu0 0
        %2912 = vmatmul.mubr.bf16.gmra.mrb[0].mxu0 %v2160
        %v2913 = vpop.f32.mrb[0].mxu0
        %v2914 = vadd.f32 %v2849, %v2913
        %v2915 = vpop.f32.mrb[0].mxu0
        %v2916 = vpop.f32.mrb[0].mxu0
        %v2917 = vadd.f32 %v2852, %v2916
        %v2918 = vpop.f32.mrb[0].mxu0
        %2919 = vmatprep.mubr.bf16.mxu0 0
        %2920 = vmatmul.mubr.bf16.gmra.mrb[0].mxu0 %v2169
        %v2921 = vpop.f32.mrb[0].mxu0
        %v2922 = vadd.f32 %v2857, %v2921
        %v2923 = vpop.f32.mrb[0].mxu0
        %v2924 = vpop.f32.mrb[0].mxu0
        %v2925 = vadd.f32 %v2860, %v2924
        %v2926 = vpop.f32.mrb[0].mxu0
        %2927 = vmatprep.mubr.bf16.mxu0 0
        %2928 = vmatmul.mubr.bf16.gmra.mrb[0].mxu0 %v2178
        %v2929 = vpop.f32.mrb[0].mxu0
        %v2930 = vadd.f32 %v2865, %v2929
        %v2931 = vpop.f32.mrb[0].mxu0
        %v2932 = vpop.f32.mrb[0].mxu0
        %v2933 = vadd.f32 %v2868, %v2932
        %v2934 = vpop.f32.mrb[0].mxu0
        %2935 = vdwg.mxu0
        %v2936 = vlaneseq
        %v2937 = vshrl.u32 %v2936, 7
        %v2938 = vsub.s32 0, %v2937
        %v2939 = vrot.slane %v601, %v2938
        %v2940 = vmul.f32 %v2906, %v2939
        %v2941 = vmul.f32 %v2909, %v2939
        %v2942 = vmul.f32 %v2914, %v2939
        %v2943 = vmul.f32 %v2917, %v2939
        %v2944 = vmul.f32 %v2922, %v2939
        %v2945 = vmul.f32 %v2925, %v2939
        %v2946 = vmul.f32 %v2930, %v2939
        %v2947 = vmul.f32 %v2933, %v2939
        %v2948 = vlaneseq
        %v2949 = vshrl.u32 %v2948, 7
        %v2950 = vsub.s32 1, %v2949
        %v2951 = vrot.slane %v601, %v2950
        %v2952 = vadd.f32 %v2940, %v2951
        %v2953 = vadd.f32 %v2941, %v2951
        %v2954 = vadd.f32 %v2942, %v2951
        %v2955 = vadd.f32 %v2943, %v2951
        %v2956 = vadd.f32 %v2944, %v2951
        %v2957 = vadd.f32 %v2945, %v2951
        %v2958 = vadd.f32 %v2946, %v2951
        %v2959 = vadd.f32 %v2947, %v2951
        %v2960 = vadd.f32 %v2952, %v471
        %v2961 = vadd.f32 %v2953, %v472
        %v2962 = vadd.f32 %v2954, %v473
        %v2963 = vadd.f32 %v2955, %v474
        %v2964 = vadd.f32 %v2956, %v475
        %v2965 = vadd.f32 %v2957, %v476
        %v2966 = vadd.f32 %v2958, %v477
        %v2967 = vadd.f32 %v2959, %v478
        %v2968 = vmax.f32 %v2960, 0.0
        %v2969 = vmax.f32 %v2961, 0.0
        %v2970 = vmax.f32 %v2962, 0.0
        %v2971 = vmax.f32 %v2963, 0.0
        %v2972 = vmax.f32 %v2964, 0.0
        %v2973 = vmax.f32 %v2965, 0.0
        %v2974 = vmax.f32 %v2966, 0.0
        %v2975 = vmax.f32 %v2967, 0.0
        %s2976 = scalar_lea.vmem [#allocation7], 1152
        %v2977 = vld [vmem:[%s2976] sm:$0xf]
        %v2978 = vld [vmem:[%s2976 + $0x4] sm:$0xf]
        %v2979 = vld [vmem:[%s2976 + $0x8] sm:$0xf]
        %v2980 = vld [vmem:[%s2976 + $0xc] sm:$0xf]
        %v2981 = vld [vmem:[%s2976 + $0x10] sm:$0xf]
        %v2982 = vld [vmem:[%s2976 + $0x14] sm:$0xf]
        %v2983 = vld [vmem:[%s2976 + $0x18] sm:$0xf]
        %v2984 = vld [vmem:[%s2976 + $0x1c] sm:$0xf]
        %v2985 = vld [vmem:[%s2976 + $0x20] sm:$0xf]
        %v2986 = vld [vmem:[%s2976 + $0x24] sm:$0xf]
        %v2987 = vld [vmem:[%s2976 + $0x28] sm:$0xf]
        %v2988 = vld [vmem:[%s2976 + $0x2c] sm:$0xf]
        %v2989 = vld [vmem:[%s2976 + $0x30] sm:$0xf]
        %v2990 = vld [vmem:[%s2976 + $0x34] sm:$0xf]
        %v2991 = vld [vmem:[%s2976 + $0x38] sm:$0xf]
        %v2992 = vld [vmem:[%s2976 + $0x3c] sm:$0xf]
        %v2993 = vld [vmem:[%s2976 + $0x40] sm:$0xf]
        %v2994 = vld [vmem:[%s2976 + $0x44] sm:$0xf]
        %v2995 = vld [vmem:[%s2976 + $0x48] sm:$0xf]
        %v2996 = vld [vmem:[%s2976 + $0x4c] sm:$0xf]
        %v2997 = vld [vmem:[%s2976 + $0x50] sm:$0xf]
        %v2998 = vld [vmem:[%s2976 + $0x54] sm:$0xf]
        %v2999 = vld [vmem:[%s2976 + $0x58] sm:$0xf]
        %v3000 = vld [vmem:[%s2976 + $0x5c] sm:$0xf]
        %v3001 = vld [vmem:[%s2976 + $0x60] sm:$0xf]
        %v3002 = vld [vmem:[%s2976 + $0x64] sm:$0xf]
        %v3003 = vld [vmem:[%s2976 + $0x68] sm:$0xf]
        %v3004 = vld [vmem:[%s2976 + $0x6c] sm:$0xf]
        %v3005 = vld [vmem:[%s2976 + $0x70] sm:$0xf]
        %v3006 = vld [vmem:[%s2976 + $0x74] sm:$0xf]
        %v3007 = vld [vmem:[%s2976 + $0x78] sm:$0xf]
        %v3008 = vld [vmem:[%s2976 + $0x7c] sm:$0xf]
        %v3009 = vld [vmem:[%s2976 + $0x80] sm:$0xf]
        %v3010 = vld [vmem:[%s2976 + $0x84] sm:$0xf]
        %v3011 = vld [vmem:[%s2976 + $0x88] sm:$0xf]
        %v3012 = vld [vmem:[%s2976 + $0x8c] sm:$0xf]
        %v3013 = vld [vmem:[%s2976 + $0x90] sm:$0xf]
        %v3014 = vld [vmem:[%s2976 + $0x94] sm:$0xf]
        %v3015 = vld [vmem:[%s2976 + $0x98] sm:$0xf]
        %v3016 = vld [vmem:[%s2976 + $0x9c] sm:$0xf]
        %v3017 = vld [vmem:[%s2976 + $0xa0] sm:$0xf]
        %v3018 = vld [vmem:[%s2976 + $0xa4] sm:$0xf]
        %v3019 = vld [vmem:[%s2976 + $0xa8] sm:$0xf]
        %v3020 = vld [vmem:[%s2976 + $0xac] sm:$0xf]
        %v3021 = vld [vmem:[%s2976 + $0xb0] sm:$0xf]
        %v3022 = vld [vmem:[%s2976 + $0xb4] sm:$0xf]
        %v3023 = vld [vmem:[%s2976 + $0xb8] sm:$0xf]
        %v3024 = vld [vmem:[%s2976 + $0xbc] sm:$0xf]
        %v3025 = vld [vmem:[%s2976 + $0xc0] sm:$0xf]
        %v3026 = vld [vmem:[%s2976 + $0xc4] sm:$0xf]
        %v3027 = vld [vmem:[%s2976 + $0xc8] sm:$0xf]
        %v3028 = vld [vmem:[%s2976 + $0xcc] sm:$0xf]
        %v3029 = vld [vmem:[%s2976 + $0xd0] sm:$0xf]
        %v3030 = vld [vmem:[%s2976 + $0xd4] sm:$0xf]
        %v3031 = vld [vmem:[%s2976 + $0xd8] sm:$0xf]
        %v3032 = vld [vmem:[%s2976 + $0xdc] sm:$0xf]
        %v3033 = vld [vmem:[%s2976 + $0xe0] sm:$0xf]
        %v3034 = vld [vmem:[%s2976 + $0xe4] sm:$0xf]
        %v3035 = vld [vmem:[%s2976 + $0xe8] sm:$0xf]
        %v3036 = vld [vmem:[%s2976 + $0xec] sm:$0xf]
        %v3037 = vld [vmem:[%s2976 + $0xf0] sm:$0xf]
        %v3038 = vld [vmem:[%s2976 + $0xf4] sm:$0xf]
        %v3039 = vld [vmem:[%s2976 + $0xf8] sm:$0xf]
        %v3040 = vld [vmem:[%s2976 + $0xfc] sm:$0xf]
        %v3041 = vld [vmem:[%s2976 + $0x100] sm:$0xf]
        %v3042 = vld [vmem:[%s2976 + $0x104] sm:$0xf]
        %v3043 = vld [vmem:[%s2976 + $0x108] sm:$0xf]
        %v3044 = vld [vmem:[%s2976 + $0x10c] sm:$0xf]
        %v3045 = vld [vmem:[%s2976 + $0x110] sm:$0xf]
        %v3046 = vld [vmem:[%s2976 + $0x114] sm:$0xf]
        %v3047 = vld [vmem:[%s2976 + $0x118] sm:$0xf]
        %v3048 = vld [vmem:[%s2976 + $0x11c] sm:$0xf]
        %v3049 = vld [vmem:[%s2976 + $0x120] sm:$0xf]
        %v3050 = vld [vmem:[%s2976 + $0x124] sm:$0xf]
        %v3051 = vld [vmem:[%s2976 + $0x128] sm:$0xf]
        %v3052 = vld [vmem:[%s2976 + $0x12c] sm:$0xf]
        %v3053 = vld [vmem:[%s2976 + $0x130] sm:$0xf]
        %v3054 = vld [vmem:[%s2976 + $0x134] sm:$0xf]
        %v3055 = vld [vmem:[%s2976 + $0x138] sm:$0xf]
        %v3056 = vld [vmem:[%s2976 + $0x13c] sm:$0xf]
        %v3057 = vld [vmem:[%s2976 + $0x140] sm:$0xf]
        %v3058 = vld [vmem:[%s2976 + $0x144] sm:$0xf]
        %v3059 = vld [vmem:[%s2976 + $0x148] sm:$0xf]
        %v3060 = vld [vmem:[%s2976 + $0x14c] sm:$0xf]
        %v3061 = vld [vmem:[%s2976 + $0x150] sm:$0xf]
        %v3062 = vld [vmem:[%s2976 + $0x154] sm:$0xf]
        %v3063 = vld [vmem:[%s2976 + $0x158] sm:$0xf]
        %v3064 = vld [vmem:[%s2976 + $0x15c] sm:$0xf]
        %v3065 = vld [vmem:[%s2976 + $0x160] sm:$0xf]
        %v3066 = vld [vmem:[%s2976 + $0x164] sm:$0xf]
        %v3067 = vld [vmem:[%s2976 + $0x168] sm:$0xf]
        %v3068 = vld [vmem:[%s2976 + $0x16c] sm:$0xf]
        %v3069 = vld [vmem:[%s2976 + $0x170] sm:$0xf]
        %v3070 = vld [vmem:[%s2976 + $0x174] sm:$0xf]
        %v3071 = vld [vmem:[%s2976 + $0x178] sm:$0xf]
        %v3072 = vld [vmem:[%s2976 + $0x17c] sm:$0xf]
        %v3073 = vld [vmem:[%s2976 + $0x180] sm:$0xf]
        %v3074 = vld [vmem:[%s2976 + $0x184] sm:$0xf]
        %v3075 = vld [vmem:[%s2976 + $0x188] sm:$0xf]
        %v3076 = vld [vmem:[%s2976 + $0x18c] sm:$0xf]
        %v3077 = vld [vmem:[%s2976 + $0x190] sm:$0xf]
        %v3078 = vld [vmem:[%s2976 + $0x194] sm:$0xf]
        %v3079 = vld [vmem:[%s2976 + $0x198] sm:$0xf]
        %v3080 = vld [vmem:[%s2976 + $0x19c] sm:$0xf]
        %v3081 = vld [vmem:[%s2976 + $0x1a0] sm:$0xf]
        %v3082 = vld [vmem:[%s2976 + $0x1a4] sm:$0xf]
        %v3083 = vld [vmem:[%s2976 + $0x1a8] sm:$0xf]
        %v3084 = vld [vmem:[%s2976 + $0x1ac] sm:$0xf]
        %v3085 = vld [vmem:[%s2976 + $0x1b0] sm:$0xf]
        %v3086 = vld [vmem:[%s2976 + $0x1b4] sm:$0xf]
        %v3087 = vld [vmem:[%s2976 + $0x1b8] sm:$0xf]
        %v3088 = vld [vmem:[%s2976 + $0x1bc] sm:$0xf]
        %v3089 = vld [vmem:[%s2976 + $0x1c0] sm:$0xf]
        %v3090 = vld [vmem:[%s2976 + $0x1c4] sm:$0xf]
        %v3091 = vld [vmem:[%s2976 + $0x1c8] sm:$0xf]
        %v3092 = vld [vmem:[%s2976 + $0x1cc] sm:$0xf]
        %v3093 = vld [vmem:[%s2976 + $0x1d0] sm:$0xf]
        %v3094 = vld [vmem:[%s2976 + $0x1d4] sm:$0xf]
        %v3095 = vld [vmem:[%s2976 + $0x1d8] sm:$0xf]
        %v3096 = vld [vmem:[%s2976 + $0x1dc] sm:$0xf]
        %v3097 = vld [vmem:[%s2976 + $0x1e0] sm:$0xf]
        %v3098 = vld [vmem:[%s2976 + $0x1e4] sm:$0xf]
        %v3099 = vld [vmem:[%s2976 + $0x1e8] sm:$0xf]
        %v3100 = vld [vmem:[%s2976 + $0x1ec] sm:$0xf]
        %v3101 = vld [vmem:[%s2976 + $0x1f0] sm:$0xf]
        %v3102 = vld [vmem:[%s2976 + $0x1f4] sm:$0xf]
        %v3103 = vld [vmem:[%s2976 + $0x1f8] sm:$0xf]
        %v3104 = vld [vmem:[%s2976 + $0x1fc] sm:$0xf]
        %v3105 = vld [vmem:[%s2976 + $0x200] sm:$0xf]
        %v3106 = vld [vmem:[%s2976 + $0x204] sm:$0xf]
        %v3107 = vld [vmem:[%s2976 + $0x208] sm:$0xf]
        %v3108 = vld [vmem:[%s2976 + $0x20c] sm:$0xf]
        %v3109 = vld [vmem:[%s2976 + $0x210] sm:$0xf]
        %v3110 = vld [vmem:[%s2976 + $0x214] sm:$0xf]
        %v3111 = vld [vmem:[%s2976 + $0x218] sm:$0xf]
        %v3112 = vld [vmem:[%s2976 + $0x21c] sm:$0xf]
        %v3113 = vld [vmem:[%s2976 + $0x220] sm:$0xf]
        %v3114 = vld [vmem:[%s2976 + $0x224] sm:$0xf]
        %v3115 = vld [vmem:[%s2976 + $0x228] sm:$0xf]
        %v3116 = vld [vmem:[%s2976 + $0x22c] sm:$0xf]
        %v3117 = vld [vmem:[%s2976 + $0x230] sm:$0xf]
        %v3118 = vld [vmem:[%s2976 + $0x234] sm:$0xf]
        %v3119 = vld [vmem:[%s2976 + $0x238] sm:$0xf]
        %v3120 = vld [vmem:[%s2976 + $0x23c] sm:$0xf]
        %v3121 = vpack.c.bf16 %v2969, %v2968
        %v3122 = vpack.c.bf16 %v2971, %v2970
        %v3123 = vpack.c.bf16 %v2973, %v2972
        %v3124 = vpack.c.bf16 %v2975, %v2974
        %v3126 = vshrl.u32 %v3121, 16
        %v3128 = vrot.slane %v3126, 7
        %v3129 = vshll.u32 %v3121, 16
        %v3131 = vor.u32 %v3128, %v3129
        %v3133 = vshrl.u32 %v3122, 16
        %v3135 = vrot.slane %v3133, 7
        %v3136 = vshll.u32 %v3122, 16
        %v3138 = vor.u32 %v3135, %v3136
        %v3139 = vsel %vm752, %v3128, %v3138
        %v3141 = vshrl.u32 %v3123, 16
        %v3143 = vrot.slane %v3141, 7
        %v3144 = vshll.u32 %v3123, 16
        %v3146 = vor.u32 %v3143, %v3144
        %v3147 = vsel %vm752, %v3135, %v3146
        %v3149 = vshrl.u32 %v3124, 16
        %v3151 = vrot.slane %v3149, 7
        %v3152 = vshll.u32 %v3124, 16
        %v3154 = vor.u32 %v3151, %v3152
        %v3155 = vsel %vm752, %v3143, %v3154
        %v3160 = vsel %vm789, 0, %v3131
        %v3161 = vsel %vm835, %v3160, 0
        %v3162 = vsel %vm836, %v3139, 0
        %v3163 = vsel %vm837, %v3147, 0
        %v3164 = vsel %vm838, %v3155, 0
        %v3165 = vrot.slane %v3129, 1
        %v3166 = vor.u32 %v3126, %v3165
        %v3167 = vrot.slane %v3136, 1
        %v3168 = vsel %vm843, %v3166, %v3167
        %v3169 = vor.u32 %v3133, %v3167
        %v3170 = vrot.slane %v3144, 1
        %v3171 = vsel %vm843, %v3169, %v3170
        %v3172 = vor.u32 %v3141, %v3170
        %v3173 = vrot.slane %v3152, 1
        %v3174 = vsel %vm843, %v3172, %v3173
        %v3175 = vor.u32 %v3149, %v3173
        %v3180 = vsel %vm860, %v3175, 0
        %v3181 = vsel %vm906, %v3168, 0
        %v3182 = vsel %vm907, %v3171, 0
        %v3183 = vsel %vm908, %v3174, 0
        %v3184 = vsel %vm909, %v3180, 0
        %v3189 = vrot.slane %v3161, 4
        %v3190 = vrot.slane %v3162, 4
        %v3191 = vsel %vm918, %v3189, %v3190
        %v3192 = vrot.slane %v3163, 4
        %v3193 = vsel %vm918, %v3190, %v3192
        %v3194 = vrot.slane %v3164, 4
        %v3195 = vsel %vm918, %v3192, %v3194
        %v3200 = vsel %vm929, 0, %v3189
        %3202 = vst [vmem:[#allocation2] sm:$0xff] %v3200
        %3203 = vst [vmem:[#allocation2 + $0x48] sm:$0xff] %v3191
        %3204 = vst [vmem:[#allocation2 + $0x90] sm:$0xff] %v3193
        %3205 = vst [vmem:[#allocation2 + $0xd8] sm:$0xff] %v3195
        %v3210 = vrot.slane %v3121, 4
        %v3211 = vrot.slane %v3122, 4
        %v3212 = vsel %vm918, %v3210, %v3211
        %v3213 = vrot.slane %v3123, 4
        %v3214 = vsel %vm918, %v3211, %v3213
        %v3215 = vrot.slane %v3124, 4
        %v3216 = vsel %vm918, %v3213, %v3215
        %v3221 = vsel %vm929, 0, %v3210
        %3223 = vst [vmem:[#allocation2 + $0x8] sm:$0xff] %v3221
        %3224 = vst [vmem:[#allocation2 + $0x50] sm:$0xff] %v3212
        %3225 = vst [vmem:[#allocation2 + $0x98] sm:$0xff] %v3214
        %3226 = vst [vmem:[#allocation2 + $0xe0] sm:$0xff] %v3216
        %v3231 = vrot.slane %v3181, 4
        %v3232 = vrot.slane %v3182, 4
        %v3233 = vsel %vm918, %v3231, %v3232
        %v3234 = vrot.slane %v3183, 4
        %v3235 = vsel %vm918, %v3232, %v3234
        %v3236 = vrot.slane %v3184, 4
        %v3237 = vsel %vm918, %v3234, %v3236
        %v3242 = vsel %vm929, 0, %v3231
        %3244 = vst [vmem:[#allocation2 + $0x10] sm:$0xff] %v3242
        %3245 = vst [vmem:[#allocation2 + $0x58] sm:$0xff] %v3233
        %3246 = vst [vmem:[#allocation2 + $0xa0] sm:$0xff] %v3235
        %3247 = vst [vmem:[#allocation2 + $0xe8] sm:$0xff] %v3237
        %3248 = vst [vmem:[#allocation2 + $0x18] sm:$0xff] %v3161
        %3249 = vst [vmem:[#allocation2 + $0x60] sm:$0xff] %v3162
        %3250 = vst [vmem:[#allocation2 + $0xa8] sm:$0xff] %v3163
        %3251 = vst [vmem:[#allocation2 + $0xf0] sm:$0xff] %v3164
        %3252 = vst [vmem:[#allocation2 + $0x20] sm:$0xff] %v3121
        %3253 = vst [vmem:[#allocation2 + $0x68] sm:$0xff] %v3122
        %3254 = vst [vmem:[#allocation2 + $0xb0] sm:$0xff] %v3123
        %3255 = vst [vmem:[#allocation2 + $0xf8] sm:$0xff] %v3124
        %3256 = vst [vmem:[#allocation2 + $0x28] sm:$0xff] %v3181
        %3257 = vst [vmem:[#allocation2 + $0x70] sm:$0xff] %v3182
        %3258 = vst [vmem:[#allocation2 + $0xb8] sm:$0xff] %v3183
        %3259 = vst [vmem:[#allocation2 + $0x100] sm:$0xff] %v3184
        %v3261 = vsel %vm929, %v3194, 0
        %3263 = vst [vmem:[#allocation2 + $0x30] sm:$0xff] %v3191
        %3264 = vst [vmem:[#allocation2 + $0x78] sm:$0xff] %v3193
        %3265 = vst [vmem:[#allocation2 + $0xc0] sm:$0xff] %v3195
        %3266 = vst [vmem:[#allocation2 + $0x108] sm:$0xff] %v3261
        %v3268 = vsel %vm929, %v3215, 0
        %3270 = vst [vmem:[#allocation2 + $0x38] sm:$0xff] %v3212
        %3271 = vst [vmem:[#allocation2 + $0x80] sm:$0xff] %v3214
        %3272 = vst [vmem:[#allocation2 + $0xc8] sm:$0xff] %v3216
        %3273 = vst [vmem:[#allocation2 + $0x110] sm:$0xff] %v3268
        %v3275 = vsel %vm929, %v3236, 0
        %3277 = vst [vmem:[#allocation2 + $0x40] sm:$0xff] %v3233
        %3278 = vst [vmem:[#allocation2 + $0x88] sm:$0xff] %v3235
        %3279 = vst [vmem:[#allocation2 + $0xd0] sm:$0xff] %v3237
        %3280 = vst [vmem:[#allocation2 + $0x118] sm:$0xff] %v3275
        %v3281 = vld [vmem:[#allocation2] sm:$0xff]
        %v3282 = vld [vmem:[#allocation2 + $0x8] sm:$0xff]
        %v3283 = vld [vmem:[#allocation2 + $0x10] sm:$0xff]
        %v3284 = vld [vmem:[#allocation2 + $0x18] sm:$0xff]
        %v3285 = vld [vmem:[#allocation2 + $0x20] sm:$0xff]
        %v3286 = vld [vmem:[#allocation2 + $0x28] sm:$0xff]
        %v3287 = vld [vmem:[#allocation2 + $0x30] sm:$0xff]
        %v3288 = vld [vmem:[#allocation2 + $0x38] sm:$0xff]
        %v3289 = vld [vmem:[#allocation2 + $0x40] sm:$0xff]
        %v3290 = vld [vmem:[#allocation2 + $0x48] sm:$0xff]
        %v3291 = vld [vmem:[#allocation2 + $0x50] sm:$0xff]
        %v3292 = vld [vmem:[#allocation2 + $0x58] sm:$0xff]
        %v3293 = vld [vmem:[#allocation2 + $0x60] sm:$0xff]
        %v3294 = vld [vmem:[#allocation2 + $0x68] sm:$0xff]
        %v3295 = vld [vmem:[#allocation2 + $0x70] sm:$0xff]
        %v3296 = vld [vmem:[#allocation2 + $0x78] sm:$0xff]
        %v3297 = vld [vmem:[#allocation2 + $0x80] sm:$0xff]
        %v3298 = vld [vmem:[#allocation2 + $0x88] sm:$0xff]
        %v3299 = vld [vmem:[#allocation2 + $0x90] sm:$0xff]
        %v3300 = vld [vmem:[#allocation2 + $0x98] sm:$0xff]
        %v3301 = vld [vmem:[#allocation2 + $0xa0] sm:$0xff]
        %v3302 = vld [vmem:[#allocation2 + $0xa8] sm:$0xff]
        %v3303 = vld [vmem:[#allocation2 + $0xb0] sm:$0xff]
        %v3304 = vld [vmem:[#allocation2 + $0xb8] sm:$0xff]
        %v3305 = vld [vmem:[#allocation2 + $0xc0] sm:$0xff]
        %v3306 = vld [vmem:[#allocation2 + $0xc8] sm:$0xff]
        %v3307 = vld [vmem:[#allocation2 + $0xd0] sm:$0xff]
        %v3308 = vld [vmem:[#allocation2 + $0xd8] sm:$0xff]
        %v3309 = vld [vmem:[#allocation2 + $0xe0] sm:$0xff]
        %v3310 = vld [vmem:[#allocation2 + $0xe8] sm:$0xff]
        %v3311 = vld [vmem:[#allocation2 + $0xf0] sm:$0xff]
        %v3312 = vld [vmem:[#allocation2 + $0xf8] sm:$0xff]
        %v3313 = vld [vmem:[#allocation2 + $0x100] sm:$0xff]
        %v3314 = vld [vmem:[#allocation2 + $0x108] sm:$0xff]
        %v3315 = vld [vmem:[#allocation2 + $0x110] sm:$0xff]
        %v3316 = vld [vmem:[#allocation2 + $0x118] sm:$0xff]
        %v3461 = vunpack.c.l.b16 %v2977
        %v3462 = vunpack.c.l.b16 %v2978
        %v3463 = vunpack.c.l.b16 %v2979
        %v3464 = vunpack.c.l.b16 %v2980
        %v3465 = vunpack.c.l.b16 %v2981
        %v3466 = vunpack.c.l.b16 %v2982
        %v3467 = vunpack.c.l.b16 %v2983
        %v3468 = vunpack.c.l.b16 %v2984
        %v3469 = vunpack.c.l.b16 %v2985
        %v3470 = vunpack.c.l.b16 %v2986
        %v3471 = vunpack.c.l.b16 %v2987
        %v3472 = vunpack.c.l.b16 %v2988
        %v3473 = vunpack.c.l.b16 %v2989
        %v3474 = vunpack.c.l.b16 %v2990
        %v3475 = vunpack.c.l.b16 %v2991
        %v3476 = vunpack.c.l.b16 %v2992
        %v3477 = vunpack.c.l.b16 %v2993
        %v3478 = vunpack.c.l.b16 %v2994
        %v3479 = vunpack.c.l.b16 %v2995
        %v3480 = vunpack.c.l.b16 %v2996
        %v3481 = vunpack.c.l.b16 %v2997
        %v3482 = vunpack.c.l.b16 %v2998
        %v3483 = vunpack.c.l.b16 %v2999
        %v3484 = vunpack.c.l.b16 %v3000
        %v3485 = vunpack.c.l.b16 %v3001
        %v3486 = vunpack.c.l.b16 %v3002
        %v3487 = vunpack.c.l.b16 %v3003
        %v3488 = vunpack.c.l.b16 %v3004
        %v3489 = vunpack.c.l.b16 %v3005
        %v3490 = vunpack.c.l.b16 %v3006
        %v3491 = vunpack.c.l.b16 %v3007
        %v3492 = vunpack.c.l.b16 %v3008
        %v3493 = vunpack.c.l.b16 %v3009
        %v3494 = vunpack.c.l.b16 %v3010
        %v3495 = vunpack.c.l.b16 %v3011
        %v3496 = vunpack.c.l.b16 %v3012
        %v3497 = vunpack.c.l.b16 %v3013
        %v3498 = vunpack.c.l.b16 %v3014
        %v3499 = vunpack.c.l.b16 %v3015
        %v3500 = vunpack.c.l.b16 %v3016
        %v3501 = vunpack.c.l.b16 %v3017
        %v3502 = vunpack.c.l.b16 %v3018
        %v3503 = vunpack.c.l.b16 %v3019
        %v3504 = vunpack.c.l.b16 %v3020
        %v3505 = vunpack.c.l.b16 %v3021
        %v3506 = vunpack.c.l.b16 %v3022
        %v3507 = vunpack.c.l.b16 %v3023
        %v3508 = vunpack.c.l.b16 %v3024
        %v3509 = vunpack.c.l.b16 %v3025
        %v3510 = vunpack.c.l.b16 %v3026
        %v3511 = vunpack.c.l.b16 %v3027
        %v3512 = vunpack.c.l.b16 %v3028
        %v3513 = vunpack.c.l.b16 %v3029
        %v3514 = vunpack.c.l.b16 %v3030
        %v3515 = vunpack.c.l.b16 %v3031
        %v3516 = vunpack.c.l.b16 %v3032
        %v3517 = vunpack.c.l.b16 %v3033
        %v3518 = vunpack.c.l.b16 %v3034
        %v3519 = vunpack.c.l.b16 %v3035
        %v3520 = vunpack.c.l.b16 %v3036
        %v3521 = vunpack.c.l.b16 %v3037
        %v3522 = vunpack.c.l.b16 %v3038
        %v3523 = vunpack.c.l.b16 %v3039
        %v3524 = vunpack.c.l.b16 %v3040
        %v3525 = vunpack.c.l.b16 %v3041
        %v3526 = vunpack.c.l.b16 %v3042
        %v3527 = vunpack.c.l.b16 %v3043
        %v3528 = vunpack.c.l.b16 %v3044
        %v3529 = vunpack.c.l.b16 %v3045
        %v3530 = vunpack.c.l.b16 %v3046
        %v3531 = vunpack.c.l.b16 %v3047
        %v3532 = vunpack.c.l.b16 %v3048
        %v3533 = vunpack.c.l.b16 %v3049
        %v3534 = vunpack.c.l.b16 %v3050
        %v3535 = vunpack.c.l.b16 %v3051
        %v3536 = vunpack.c.l.b16 %v3052
        %v3537 = vunpack.c.l.b16 %v3053
        %v3538 = vunpack.c.l.b16 %v3054
        %v3539 = vunpack.c.l.b16 %v3055
        %v3540 = vunpack.c.l.b16 %v3056
        %v3541 = vunpack.c.l.b16 %v3057
        %v3542 = vunpack.c.l.b16 %v3058
        %v3543 = vunpack.c.l.b16 %v3059
        %v3544 = vunpack.c.l.b16 %v3060
        %v3545 = vunpack.c.l.b16 %v3061
        %v3546 = vunpack.c.l.b16 %v3062
        %v3547 = vunpack.c.l.b16 %v3063
        %v3548 = vunpack.c.l.b16 %v3064
        %v3549 = vunpack.c.l.b16 %v3065
        %v3550 = vunpack.c.l.b16 %v3066
        %v3551 = vunpack.c.l.b16 %v3067
        %v3552 = vunpack.c.l.b16 %v3068
        %v3553 = vunpack.c.l.b16 %v3069
        %v3554 = vunpack.c.l.b16 %v3070
        %v3555 = vunpack.c.l.b16 %v3071
        %v3556 = vunpack.c.l.b16 %v3072
        %v3557 = vunpack.c.l.b16 %v3073
        %v3558 = vunpack.c.l.b16 %v3074
        %v3559 = vunpack.c.l.b16 %v3075
        %v3560 = vunpack.c.l.b16 %v3076
        %v3561 = vunpack.c.l.b16 %v3077
        %v3562 = vunpack.c.l.b16 %v3078
        %v3563 = vunpack.c.l.b16 %v3079
        %v3564 = vunpack.c.l.b16 %v3080
        %v3565 = vunpack.c.l.b16 %v3081
        %v3566 = vunpack.c.l.b16 %v3082
        %v3567 = vunpack.c.l.b16 %v3083
        %v3568 = vunpack.c.l.b16 %v3084
        %v3569 = vunpack.c.l.b16 %v3085
        %v3570 = vunpack.c.l.b16 %v3086
        %v3571 = vunpack.c.l.b16 %v3087
        %v3572 = vunpack.c.l.b16 %v3088
        %v3573 = vunpack.c.l.b16 %v3089
        %v3574 = vunpack.c.l.b16 %v3090
        %v3575 = vunpack.c.l.b16 %v3091
        %v3576 = vunpack.c.l.b16 %v3092
        %v3577 = vunpack.c.l.b16 %v3093
        %v3578 = vunpack.c.l.b16 %v3094
        %v3579 = vunpack.c.l.b16 %v3095
        %v3580 = vunpack.c.l.b16 %v3096
        %v3581 = vunpack.c.l.b16 %v3097
        %v3582 = vunpack.c.l.b16 %v3098
        %v3583 = vunpack.c.l.b16 %v3099
        %v3584 = vunpack.c.l.b16 %v3100
        %v3585 = vunpack.c.l.b16 %v3101
        %v3586 = vunpack.c.l.b16 %v3102
        %v3587 = vunpack.c.l.b16 %v3103
        %v3588 = vunpack.c.l.b16 %v3104
        %v3589 = vunpack.c.l.b16 %v3105
        %v3590 = vunpack.c.l.b16 %v3106
        %v3591 = vunpack.c.l.b16 %v3107
        %v3592 = vunpack.c.l.b16 %v3108
        %v3593 = vunpack.c.l.b16 %v3109
        %v3594 = vunpack.c.l.b16 %v3110
        %v3595 = vunpack.c.l.b16 %v3111
        %v3596 = vunpack.c.l.b16 %v3112
        %v3597 = vunpack.c.l.b16 %v3113
        %v3598 = vunpack.c.l.b16 %v3114
        %v3599 = vunpack.c.l.b16 %v3115
        %v3600 = vunpack.c.l.b16 %v3116
        %v3601 = vunpack.c.l.b16 %v3117
        %v3602 = vunpack.c.l.b16 %v3118
        %v3603 = vunpack.c.l.b16 %v3119
        %v3604 = vunpack.c.l.b16 %v3120
        %v3605 = vpack.c.b16 %v3462, %v3461
        %v3606 = vpack.c.b16 %v3464, %v3463
        %v3607 = vpack.c.b16 %v3466, %v3465
        %v3608 = vpack.c.b16 %v3468, %v3467
        %v3609 = vpack.c.b16 %v3470, %v3469
        %v3610 = vpack.c.b16 %v3472, %v3471
        %v3611 = vpack.c.b16 %v3474, %v3473
        %v3612 = vpack.c.b16 %v3476, %v3475
        %v3613 = vpack.c.b16 %v3478, %v3477
        %v3614 = vpack.c.b16 %v3480, %v3479
        %v3615 = vpack.c.b16 %v3482, %v3481
        %v3616 = vpack.c.b16 %v3484, %v3483
        %v3617 = vpack.c.b16 %v3486, %v3485
        %v3618 = vpack.c.b16 %v3488, %v3487
        %v3619 = vpack.c.b16 %v3490, %v3489
        %v3620 = vpack.c.b16 %v3492, %v3491
        %v3621 = vpack.c.b16 %v3494, %v3493
        %v3622 = vpack.c.b16 %v3496, %v3495
        %v3623 = vpack.c.b16 %v3498, %v3497
        %v3624 = vpack.c.b16 %v3500, %v3499
        %v3625 = vpack.c.b16 %v3502, %v3501
        %v3626 = vpack.c.b16 %v3504, %v3503
        %v3627 = vpack.c.b16 %v3506, %v3505
        %v3628 = vpack.c.b16 %v3508, %v3507
        %v3629 = vpack.c.b16 %v3510, %v3509
        %v3630 = vpack.c.b16 %v3512, %v3511
        %v3631 = vpack.c.b16 %v3514, %v3513
        %v3632 = vpack.c.b16 %v3516, %v3515
        %v3633 = vpack.c.b16 %v3518, %v3517
        %v3634 = vpack.c.b16 %v3520, %v3519
        %v3635 = vpack.c.b16 %v3522, %v3521
        %v3636 = vpack.c.b16 %v3524, %v3523
        %v3637 = vpack.c.b16 %v3526, %v3525
        %v3638 = vpack.c.b16 %v3528, %v3527
        %v3639 = vpack.c.b16 %v3530, %v3529
        %v3640 = vpack.c.b16 %v3532, %v3531
        %v3641 = vpack.c.b16 %v3534, %v3533
        %v3642 = vpack.c.b16 %v3536, %v3535
        %v3643 = vpack.c.b16 %v3538, %v3537
        %v3644 = vpack.c.b16 %v3540, %v3539
        %v3645 = vpack.c.b16 %v3542, %v3541
        %v3646 = vpack.c.b16 %v3544, %v3543
        %v3647 = vpack.c.b16 %v3546, %v3545
        %v3648 = vpack.c.b16 %v3548, %v3547
        %v3649 = vpack.c.b16 %v3550, %v3549
        %v3650 = vpack.c.b16 %v3552, %v3551
        %v3651 = vpack.c.b16 %v3554, %v3553
        %v3652 = vpack.c.b16 %v3556, %v3555
        %v3653 = vpack.c.b16 %v3558, %v3557
        %v3654 = vpack.c.b16 %v3560, %v3559
        %v3655 = vpack.c.b16 %v3562, %v3561
        %v3656 = vpack.c.b16 %v3564, %v3563
        %v3657 = vpack.c.b16 %v3566, %v3565
        %v3658 = vpack.c.b16 %v3568, %v3567
        %v3659 = vpack.c.b16 %v3570, %v3569
        %v3660 = vpack.c.b16 %v3572, %v3571
        %v3661 = vpack.c.b16 %v3574, %v3573
        %v3662 = vpack.c.b16 %v3576, %v3575
        %v3663 = vpack.c.b16 %v3578, %v3577
        %v3664 = vpack.c.b16 %v3580, %v3579
        %v3665 = vpack.c.b16 %v3582, %v3581
        %v3666 = vpack.c.b16 %v3584, %v3583
        %v3667 = vpack.c.b16 %v3586, %v3585
        %v3668 = vpack.c.b16 %v3588, %v3587
        %v3669 = vpack.c.b16 %v3590, %v3589
        %v3670 = vpack.c.b16 %v3592, %v3591
        %v3671 = vpack.c.b16 %v3594, %v3593
        %v3672 = vpack.c.b16 %v3596, %v3595
        %v3673 = vpack.c.b16 %v3598, %v3597
        %v3674 = vpack.c.b16 %v3600, %v3599
        %v3675 = vpack.c.b16 %v3602, %v3601
        %v3676 = vpack.c.b16 %v3604, %v3603
        %3749 = vmatprep.subr.bf16.mxu0 0
        %3750 = vmatpush1.bf16.msra.mxu0 %v3605
        %3751 = vmatprep.subr.bf16.mxu0 0
        %3752 = vmatpush1.bf16.msra.mxu0 %v3606
        %3753 = vmatprep.subr.bf16.mxu0 0
        %3754 = vmatpush1.bf16.msra.mxu0 %v3607
        %3755 = vmatprep.subr.bf16.mxu0 0
        %3756 = vmatpush1.bf16.msra.mxu0 %v3608
        %3757 = vmatprep.subr.bf16.mxu0 0
        %3758 = vmatpush1.bf16.msra.mxu0 %v3609
        %3759 = vmatprep.subr.bf16.mxu0 0
        %3760 = vmatpush1.bf16.msra.mxu0 %v3610
        %3761 = vmatprep.subr.bf16.mxu0 0
        %3762 = vmatpush1.bf16.msra.mxu0 %v3611
        %3763 = vmatprep.subr.bf16.mxu0 0
        %3764 = vmatpush1.bf16.msra.mxu0 %v3612
        %3765 = vmatprep.subr.bf16.mxu0 0
        %3766 = vmatpush1.bf16.msra.mxu0 %v3613
        %3767 = vmatprep.subr.bf16.mxu0 0
        %3768 = vmatpush1.bf16.msra.mxu0 %v3614
        %3769 = vmatprep.subr.bf16.mxu0 0
        %3770 = vmatpush1.bf16.msra.mxu0 %v3615
        %3771 = vmatprep.subr.bf16.mxu0 0
        %3772 = vmatpush1.bf16.msra.mxu0 %v3616
        %3773 = vmatprep.subr.bf16.mxu0 0
        %3774 = vmatpush1.bf16.msra.mxu0 %v3617
        %3775 = vmatprep.subr.bf16.mxu0 0
        %3776 = vmatpush1.bf16.msra.mxu0 %v3618
        %3777 = vmatprep.subr.bf16.mxu0 0
        %3778 = vmatpush1.bf16.msra.mxu0 %v3619
        %3779 = vmatprep.subr.bf16.mxu0 0
        %3780 = vmatpush1.bf16.msra.mxu0 %v3620
        %3781 = vmatprep.mubr.bf16.mxu0 %v3282
        %3782 = vmatmul.mubr.bf16.gmra.mrb[0].mxu0 %v3281
        %v3783 = vpop.f32.mrb[0].mxu0
        %v3784 = vadd.f32 0.0, %v3783
        %v3785 = vpop.f32.mrb[0].mxu0
        %v3786 = vpop.f32.mrb[0].mxu0
        %v3787 = vadd.f32 0.0, %v3786
        %v3788 = vpop.f32.mrb[0].mxu0
        %3789 = vmatprep.mubr.bf16.mxu0 %v3291
        %3790 = vmatmul.mubr.bf16.gmra.mrb[0].mxu0 %v3290
        %v3791 = vpop.f32.mrb[0].mxu0
        %v3792 = vadd.f32 0.0, %v3791
        %v3793 = vpop.f32.mrb[0].mxu0
        %v3794 = vpop.f32.mrb[0].mxu0
        %v3795 = vadd.f32 0.0, %v3794
        %v3796 = vpop.f32.mrb[0].mxu0
        %3797 = vmatprep.mubr.bf16.mxu0 %v3300
        %3798 = vmatmul.mubr.bf16.gmra.mrb[0].mxu0 %v3299
        %v3799 = vpop.f32.mrb[0].mxu0
        %v3800 = vadd.f32 0.0, %v3799
        %v3801 = vpop.f32.mrb[0].mxu0
        %v3802 = vpop.f32.mrb[0].mxu0
        %v3803 = vadd.f32 0.0, %v3802
        %v3804 = vpop.f32.mrb[0].mxu0
        %3805 = vmatprep.mubr.bf16.mxu0 %v3309
        %3806 = vmatmul.mubr.bf16.gmra.mrb[0].mxu0 %v3308
        %v3807 = vpop.f32.mrb[0].mxu0
        %v3808 = vadd.f32 0.0, %v3807
        %v3809 = vpop.f32.mrb[0].mxu0
        %v3810 = vpop.f32.mrb[0].mxu0
        %v3811 = vadd.f32 0.0, %v3810
        %v3812 = vpop.f32.mrb[0].mxu0
        %3813 = vdwg.mxu0
        %3814 = vmatprep.subr.bf16.mxu0 0
        %3815 = vmatpush1.bf16.msra.mxu0 %v3621
        %3816 = vmatprep.subr.bf16.mxu0 0
        %3817 = vmatpush1.bf16.msra.mxu0 %v3622
        %3818 = vmatprep.subr.bf16.mxu0 0
        %3819 = vmatpush1.bf16.msra.mxu0 %v3623
        %3820 = vmatprep.subr.bf16.mxu0 0
        %3821 = vmatpush1.bf16.msra.mxu0 %v3624
        %3822 = vmatprep.subr.bf16.mxu0 0
        %3823 = vmatpush1.bf16.msra.mxu0 %v3625
        %3824 = vmatprep.subr.bf16.mxu0 0
        %3825 = vmatpush1.bf16.msra.mxu0 %v3626
        %3826 = vmatprep.subr.bf16.mxu0 0
        %3827 = vmatpush1.bf16.msra.mxu0 %v3627
        %3828 = vmatprep.subr.bf16.mxu0 0
        %3829 = vmatpush1.bf16.msra.mxu0 %v3628
        %3830 = vmatprep.subr.bf16.mxu0 0
        %3831 = vmatpush1.bf16.msra.mxu0 %v3629
        %3832 = vmatprep.subr.bf16.mxu0 0
        %3833 = vmatpush1.bf16.msra.mxu0 %v3630
        %3834 = vmatprep.subr.bf16.mxu0 0
        %3835 = vmatpush1.bf16.msra.mxu0 %v3631
        %3836 = vmatprep.subr.bf16.mxu0 0
        %3837 = vmatpush1.bf16.msra.mxu0 %v3632
        %3838 = vmatprep.subr.bf16.mxu0 0
        %3839 = vmatpush1.bf16.msra.mxu0 %v3633
        %3840 = vmatprep.subr.bf16.mxu0 0
        %3841 = vmatpush1.bf16.msra.mxu0 %v3634
        %3842 = vmatprep.subr.bf16.mxu0 0
        %3843 = vmatpush1.bf16.msra.mxu0 %v3635
        %3844 = vmatprep.subr.bf16.mxu0 0
        %3845 = vmatpush1.bf16.msra.mxu0 %v3636
        %3846 = vmatprep.mubr.bf16.mxu0 %v3284
        %3847 = vmatmul.mubr.bf16.gmra.mrb[0].mxu0 %v3283
        %v3848 = vpop.f32.mrb[0].mxu0
        %v3849 = vadd.f32 %v3784, %v3848
        %v3850 = vpop.f32.mrb[0].mxu0
        %v3851 = vpop.f32.mrb[0].mxu0
        %v3852 = vadd.f32 %v3787, %v3851
        %v3853 = vpop.f32.mrb[0].mxu0
        %3854 = vmatprep.mubr.bf16.mxu0 %v3293
        %3855 = vmatmul.mubr.bf16.gmra.mrb[0].mxu0 %v3292
        %v3856 = vpop.f32.mrb[0].mxu0
        %v3857 = vadd.f32 %v3792, %v3856
        %v3858 = vpop.f32.mrb[0].mxu0
        %v3859 = vpop.f32.mrb[0].mxu0
        %v3860 = vadd.f32 %v3795, %v3859
        %v3861 = vpop.f32.mrb[0].mxu0
        %3862 = vmatprep.mubr.bf16.mxu0 %v3302
        %3863 = vmatmul.mubr.bf16.gmra.mrb[0].mxu0 %v3301
        %v3864 = vpop.f32.mrb[0].mxu0
        %v3865 = vadd.f32 %v3800, %v3864
        %v3866 = vpop.f32.mrb[0].mxu0
        %v3867 = vpop.f32.mrb[0].mxu0
        %v3868 = vadd.f32 %v3803, %v3867
        %v3869 = vpop.f32.mrb[0].mxu0
        %3870 = vmatprep.mubr.bf16.mxu0 %v3311
        %3871 = vmatmul.mubr.bf16.gmra.mrb[0].mxu0 %v3310
        %v3872 = vpop.f32.mrb[0].mxu0
        %v3873 = vadd.f32 %v3808, %v3872
        %v3874 = vpop.f32.mrb[0].mxu0
        %v3875 = vpop.f32.mrb[0].mxu0
        %v3876 = vadd.f32 %v3811, %v3875
        %v3877 = vpop.f32.mrb[0].mxu0
        %3878 = vdwg.mxu0
        %3879 = vmatprep.subr.bf16.mxu0 0
        %3880 = vmatpush1.bf16.msra.mxu0 %v3637
        %3881 = vmatprep.subr.bf16.mxu0 0
        %3882 = vmatpush1.bf16.msra.mxu0 %v3638
        %3883 = vmatprep.subr.bf16.mxu0 0
        %3884 = vmatpush1.bf16.msra.mxu0 %v3639
        %3885 = vmatprep.subr.bf16.mxu0 0
        %3886 = vmatpush1.bf16.msra.mxu0 %v3640
        %3887 = vmatprep.subr.bf16.mxu0 0
        %3888 = vmatpush1.bf16.msra.mxu0 %v3641
        %3889 = vmatprep.subr.bf16.mxu0 0
        %3890 = vmatpush1.bf16.msra.mxu0 %v3642
        %3891 = vmatprep.subr.bf16.mxu0 0
        %3892 = vmatpush1.bf16.msra.mxu0 %v3643
        %3893 = vmatprep.subr.bf16.mxu0 0
        %3894 = vmatpush1.bf16.msra.mxu0 %v3644
        %3895 = vmatprep.subr.bf16.mxu0 0
        %3896 = vmatpush1.bf16.msra.mxu0 %v3645
        %3897 = vmatprep.subr.bf16.mxu0 0
        %3898 = vmatpush1.bf16.msra.mxu0 %v3646
        %3899 = vmatprep.subr.bf16.mxu0 0
        %3900 = vmatpush1.bf16.msra.mxu0 %v3647
        %3901 = vmatprep.subr.bf16.mxu0 0
        %3902 = vmatpush1.bf16.msra.mxu0 %v3648
        %3903 = vmatprep.subr.bf16.mxu0 0
        %3904 = vmatpush1.bf16.msra.mxu0 %v3649
        %3905 = vmatprep.subr.bf16.mxu0 0
        %3906 = vmatpush1.bf16.msra.mxu0 %v3650
        %3907 = vmatprep.subr.bf16.mxu0 0
        %3908 = vmatpush1.bf16.msra.mxu0 %v3651
        %3909 = vmatprep.subr.bf16.mxu0 0
        %3910 = vmatpush1.bf16.msra.mxu0 %v3652
        %3911 = vmatprep.mubr.bf16.mxu0 %v3286
        %3912 = vmatmul.mubr.bf16.gmra.mrb[0].mxu0 %v3285
        %v3913 = vpop.f32.mrb[0].mxu0
        %v3914 = vadd.f32 %v3849, %v3913
        %v3915 = vpop.f32.mrb[0].mxu0
        %v3916 = vpop.f32.mrb[0].mxu0
        %v3917 = vadd.f32 %v3852, %v3916
        %v3918 = vpop.f32.mrb[0].mxu0
        %3919 = vmatprep.mubr.bf16.mxu0 %v3295
        %3920 = vmatmul.mubr.bf16.gmra.mrb[0].mxu0 %v3294
        %v3921 = vpop.f32.mrb[0].mxu0
        %v3922 = vadd.f32 %v3857, %v3921
        %v3923 = vpop.f32.mrb[0].mxu0
        %v3924 = vpop.f32.mrb[0].mxu0
        %v3925 = vadd.f32 %v3860, %v3924
        %v3926 = vpop.f32.mrb[0].mxu0
        %3927 = vmatprep.mubr.bf16.mxu0 %v3304
        %3928 = vmatmul.mubr.bf16.gmra.mrb[0].mxu0 %v3303
        %v3929 = vpop.f32.mrb[0].mxu0
        %v3930 = vadd.f32 %v3865, %v3929
        %v3931 = vpop.f32.mrb[0].mxu0
        %v3932 = vpop.f32.mrb[0].mxu0
        %v3933 = vadd.f32 %v3868, %v3932
        %v3934 = vpop.f32.mrb[0].mxu0
        %3935 = vmatprep.mubr.bf16.mxu0 %v3313
        %3936 = vmatmul.mubr.bf16.gmra.mrb[0].mxu0 %v3312
        %v3937 = vpop.f32.mrb[0].mxu0
        %v3938 = vadd.f32 %v3873, %v3937
        %v3939 = vpop.f32.mrb[0].mxu0
        %v3940 = vpop.f32.mrb[0].mxu0
        %v3941 = vadd.f32 %v3876, %v3940
        %v3942 = vpop.f32.mrb[0].mxu0
        %3943 = vdwg.mxu0
        %3944 = vmatprep.subr.bf16.mxu0 0
        %3945 = vmatpush1.bf16.msra.mxu0 %v3653
        %3946 = vmatprep.subr.bf16.mxu0 0
        %3947 = vmatpush1.bf16.msra.mxu0 %v3654
        %3948 = vmatprep.subr.bf16.mxu0 0
        %3949 = vmatpush1.bf16.msra.mxu0 %v3655
        %3950 = vmatprep.subr.bf16.mxu0 0
        %3951 = vmatpush1.bf16.msra.mxu0 %v3656
        %3952 = vmatprep.subr.bf16.mxu0 0
        %3953 = vmatpush1.bf16.msra.mxu0 %v3657
        %3954 = vmatprep.subr.bf16.mxu0 0
        %3955 = vmatpush1.bf16.msra.mxu0 %v3658
        %3956 = vmatprep.subr.bf16.mxu0 0
        %3957 = vmatpush1.bf16.msra.mxu0 %v3659
        %3958 = vmatprep.subr.bf16.mxu0 0
        %3959 = vmatpush1.bf16.msra.mxu0 %v3660
        %3960 = vmatprep.subr.bf16.mxu0 0
        %3961 = vmatpush1.bf16.msra.mxu0 %v3661
        %3962 = vmatprep.subr.bf16.mxu0 0
        %3963 = vmatpush1.bf16.msra.mxu0 %v3662
        %3964 = vmatprep.subr.bf16.mxu0 0
        %3965 = vmatpush1.bf16.msra.mxu0 %v3663
        %3966 = vmatprep.subr.bf16.mxu0 0
        %3967 = vmatpush1.bf16.msra.mxu0 %v3664
        %3968 = vmatprep.subr.bf16.mxu0 0
        %3969 = vmatpush1.bf16.msra.mxu0 %v3665
        %3970 = vmatprep.subr.bf16.mxu0 0
        %3971 = vmatpush1.bf16.msra.mxu0 %v3666
        %3972 = vmatprep.subr.bf16.mxu0 0
        %3973 = vmatpush1.bf16.msra.mxu0 %v3667
        %3974 = vmatprep.subr.bf16.mxu0 0
        %3975 = vmatpush1.bf16.msra.mxu0 %v3668
        %3976 = vmatprep.mubr.bf16.mxu0 %v3288
        %3977 = vmatmul.mubr.bf16.gmra.mrb[0].mxu0 %v3287
        %v3978 = vpop.f32.mrb[0].mxu0
        %v3979 = vadd.f32 %v3914, %v3978
        %v3980 = vpop.f32.mrb[0].mxu0
        %v3981 = vpop.f32.mrb[0].mxu0
        %v3982 = vadd.f32 %v3917, %v3981
        %v3983 = vpop.f32.mrb[0].mxu0
        %3984 = vmatprep.mubr.bf16.mxu0 %v3297
        %3985 = vmatmul.mubr.bf16.gmra.mrb[0].mxu0 %v3296
        %v3986 = vpop.f32.mrb[0].mxu0
        %v3987 = vadd.f32 %v3922, %v3986
        %v3988 = vpop.f32.mrb[0].mxu0
        %v3989 = vpop.f32.mrb[0].mxu0
        %v3990 = vadd.f32 %v3925, %v3989
        %v3991 = vpop.f32.mrb[0].mxu0
        %3992 = vmatprep.mubr.bf16.mxu0 %v3306
        %3993 = vmatmul.mubr.bf16.gmra.mrb[0].mxu0 %v3305
        %v3994 = vpop.f32.mrb[0].mxu0
        %v3995 = vadd.f32 %v3930, %v3994
        %v3996 = vpop.f32.mrb[0].mxu0
        %v3997 = vpop.f32.mrb[0].mxu0
        %v3998 = vadd.f32 %v3933, %v3997
        %v3999 = vpop.f32.mrb[0].mxu0
        %4000 = vmatprep.mubr.bf16.mxu0 %v3315
        %4001 = vmatmul.mubr.bf16.gmra.mrb[0].mxu0 %v3314
        %v4002 = vpop.f32.mrb[0].mxu0
        %v4003 = vadd.f32 %v3938, %v4002
        %v4004 = vpop.f32.mrb[0].mxu0
        %v4005 = vpop.f32.mrb[0].mxu0
        %v4006 = vadd.f32 %v3941, %v4005
        %v4007 = vpop.f32.mrb[0].mxu0
        %4008 = vdwg.mxu0
        %4009 = vmatprep.subr.bf16.mxu0 0
        %4010 = vmatpush1.bf16.msra.mxu0 %v3669
        %4011 = vmatprep.subr.bf16.mxu0 0
        %4012 = vmatpush1.bf16.msra.mxu0 %v3670
        %4013 = vmatprep.subr.bf16.mxu0 0
        %4014 = vmatpush1.bf16.msra.mxu0 %v3671
        %4015 = vmatprep.subr.bf16.mxu0 0
        %4016 = vmatpush1.bf16.msra.mxu0 %v3672
        %4017 = vmatprep.subr.bf16.mxu0 0
        %4018 = vmatpush1.bf16.msra.mxu0 %v3673
        %4019 = vmatprep.subr.bf16.mxu0 0
        %4020 = vmatpush1.bf16.msra.mxu0 %v3674
        %4021 = vmatprep.subr.bf16.mxu0 0
        %4022 = vmatpush1.bf16.msra.mxu0 %v3675
        %4023 = vmatprep.subr.bf16.mxu0 0
        %4024 = vmatpush1.bf16.msra.mxu0 %v3676
        %4025 = vmatprep.subr.bf16.mxu0 0
        %4026 = vmatpush1.bf16.msra.mxu0 0
        %4027 = vmatprep.subr.bf16.mxu0 0
        %4028 = vmatpush1.bf16.msra.mxu0 0
        %4029 = vmatprep.subr.bf16.mxu0 0
        %4030 = vmatpush1.bf16.msra.mxu0 0
        %4031 = vmatprep.subr.bf16.mxu0 0
        %4032 = vmatpush1.bf16.msra.mxu0 0
        %4033 = vmatprep.subr.bf16.mxu0 0
        %4034 = vmatpush1.bf16.msra.mxu0 0
        %4035 = vmatprep.subr.bf16.mxu0 0
        %4036 = vmatpush1.bf16.msra.mxu0 0
        %4037 = vmatprep.subr.bf16.mxu0 0
        %4038 = vmatpush1.bf16.msra.mxu0 0
        %4039 = vmatprep.subr.bf16.mxu0 0
        %4040 = vmatpush1.bf16.msra.mxu0 0
        %4041 = vmatprep.mubr.bf16.mxu0 0
        %4042 = vmatmul.mubr.bf16.gmra.mrb[0].mxu0 %v3289
        %v4043 = vpop.f32.mrb[0].mxu0
        %v4044 = vadd.f32 %v3979, %v4043
        %v4045 = vpop.f32.mrb[0].mxu0
        %v4046 = vpop.f32.mrb[0].mxu0
        %v4047 = vadd.f32 %v3982, %v4046
        %v4048 = vpop.f32.mrb[0].mxu0
        %4049 = vmatprep.mubr.bf16.mxu0 0
        %4050 = vmatmul.mubr.bf16.gmra.mrb[0].mxu0 %v3298
        %v4051 = vpop.f32.mrb[0].mxu0
        %v4052 = vadd.f32 %v3987, %v4051
        %v4053 = vpop.f32.mrb[0].mxu0
        %v4054 = vpop.f32.mrb[0].mxu0
        %v4055 = vadd.f32 %v3990, %v4054
        %v4056 = vpop.f32.mrb[0].mxu0
        %4057 = vmatprep.mubr.bf16.mxu0 0
        %4058 = vmatmul.mubr.bf16.gmra.mrb[0].mxu0 %v3307
        %v4059 = vpop.f32.mrb[0].mxu0
        %v4060 = vadd.f32 %v3995, %v4059
        %v4061 = vpop.f32.mrb[0].mxu0
        %v4062 = vpop.f32.mrb[0].mxu0
        %v4063 = vadd.f32 %v3998, %v4062
        %v4064 = vpop.f32.mrb[0].mxu0
        %4065 = vmatprep.mubr.bf16.mxu0 0
        %4066 = vmatmul.mubr.bf16.gmra.mrb[0].mxu0 %v3316
        %v4067 = vpop.f32.mrb[0].mxu0
        %v4068 = vadd.f32 %v4003, %v4067
        %v4069 = vpop.f32.mrb[0].mxu0
        %v4070 = vpop.f32.mrb[0].mxu0
        %v4071 = vadd.f32 %v4006, %v4070
        %v4072 = vpop.f32.mrb[0].mxu0
        %4073 = vdwg.mxu0
        %v4074 = vlaneseq
        %v4075 = vshrl.u32 %v4074, 7
        %v4076 = vsub.s32 0, %v4075
        %v4077 = vrot.slane %v602, %v4076
        %v4078 = vmul.f32 %v4044, %v4077
        %v4079 = vmul.f32 %v4047, %v4077
        %v4080 = vmul.f32 %v4052, %v4077
        %v4081 = vmul.f32 %v4055, %v4077
        %v4082 = vmul.f32 %v4060, %v4077
        %v4083 = vmul.f32 %v4063, %v4077
        %v4084 = vmul.f32 %v4068, %v4077
        %v4085 = vmul.f32 %v4071, %v4077
        %v4086 = vlaneseq
        %v4087 = vshrl.u32 %v4086, 7
        %v4088 = vsub.s32 1, %v4087
        %v4089 = vrot.slane %v602, %v4088
        %v4090 = vadd.f32 %v4078, %v4089
        %v4091 = vadd.f32 %v4079, %v4089
        %v4092 = vadd.f32 %v4080, %v4089
        %v4093 = vadd.f32 %v4081, %v4089
        %v4094 = vadd.f32 %v4082, %v4089
        %v4095 = vadd.f32 %v4083, %v4089
        %v4096 = vadd.f32 %v4084, %v4089
        %v4097 = vadd.f32 %v4085, %v4089
        %v4098 = vmax.f32 %v4090, 0.0
        %v4099 = vmax.f32 %v4091, 0.0
        %v4100 = vmax.f32 %v4092, 0.0
        %v4101 = vmax.f32 %v4093, 0.0
        %v4102 = vmax.f32 %v4094, 0.0
        %v4103 = vmax.f32 %v4095, 0.0
        %v4104 = vmax.f32 %v4096, 0.0
        %v4105 = vmax.f32 %v4097, 0.0
        %s4106 = scalar_lea.vmem [#allocation7], 1728
        %v4107 = vld [vmem:[%s4106] sm:$0xf]
        %v4108 = vld [vmem:[%s4106 + $0x4] sm:$0xf]
        %v4109 = vld [vmem:[%s4106 + $0x8] sm:$0xf]
        %v4110 = vld [vmem:[%s4106 + $0xc] sm:$0xf]
        %v4111 = vld [vmem:[%s4106 + $0x10] sm:$0xf]
        %v4112 = vld [vmem:[%s4106 + $0x14] sm:$0xf]
        %v4113 = vld [vmem:[%s4106 + $0x18] sm:$0xf]
        %v4114 = vld [vmem:[%s4106 + $0x1c] sm:$0xf]
        %v4115 = vld [vmem:[%s4106 + $0x20] sm:$0xf]
        %v4116 = vld [vmem:[%s4106 + $0x24] sm:$0xf]
        %v4117 = vld [vmem:[%s4106 + $0x28] sm:$0xf]
        %v4118 = vld [vmem:[%s4106 + $0x2c] sm:$0xf]
        %v4119 = vld [vmem:[%s4106 + $0x30] sm:$0xf]
        %v4120 = vld [vmem:[%s4106 + $0x34] sm:$0xf]
        %v4121 = vld [vmem:[%s4106 + $0x38] sm:$0xf]
        %v4122 = vld [vmem:[%s4106 + $0x3c] sm:$0xf]
        %v4123 = vld [vmem:[%s4106 + $0x40] sm:$0xf]
        %v4124 = vld [vmem:[%s4106 + $0x44] sm:$0xf]
        %v4125 = vld [vmem:[%s4106 + $0x48] sm:$0xf]
        %v4126 = vld [vmem:[%s4106 + $0x4c] sm:$0xf]
        %v4127 = vld [vmem:[%s4106 + $0x50] sm:$0xf]
        %v4128 = vld [vmem:[%s4106 + $0x54] sm:$0xf]
        %v4129 = vld [vmem:[%s4106 + $0x58] sm:$0xf]
        %v4130 = vld [vmem:[%s4106 + $0x5c] sm:$0xf]
        %v4131 = vld [vmem:[%s4106 + $0x60] sm:$0xf]
        %v4132 = vld [vmem:[%s4106 + $0x64] sm:$0xf]
        %v4133 = vld [vmem:[%s4106 + $0x68] sm:$0xf]
        %v4134 = vld [vmem:[%s4106 + $0x6c] sm:$0xf]
        %v4135 = vld [vmem:[%s4106 + $0x70] sm:$0xf]
        %v4136 = vld [vmem:[%s4106 + $0x74] sm:$0xf]
        %v4137 = vld [vmem:[%s4106 + $0x78] sm:$0xf]
        %v4138 = vld [vmem:[%s4106 + $0x7c] sm:$0xf]
        %v4139 = vld [vmem:[%s4106 + $0x80] sm:$0xf]
        %v4140 = vld [vmem:[%s4106 + $0x84] sm:$0xf]
        %v4141 = vld [vmem:[%s4106 + $0x88] sm:$0xf]
        %v4142 = vld [vmem:[%s4106 + $0x8c] sm:$0xf]
        %v4143 = vld [vmem:[%s4106 + $0x90] sm:$0xf]
        %v4144 = vld [vmem:[%s4106 + $0x94] sm:$0xf]
        %v4145 = vld [vmem:[%s4106 + $0x98] sm:$0xf]
        %v4146 = vld [vmem:[%s4106 + $0x9c] sm:$0xf]
        %v4147 = vld [vmem:[%s4106 + $0xa0] sm:$0xf]
        %v4148 = vld [vmem:[%s4106 + $0xa4] sm:$0xf]
        %v4149 = vld [vmem:[%s4106 + $0xa8] sm:$0xf]
        %v4150 = vld [vmem:[%s4106 + $0xac] sm:$0xf]
        %v4151 = vld [vmem:[%s4106 + $0xb0] sm:$0xf]
        %v4152 = vld [vmem:[%s4106 + $0xb4] sm:$0xf]
        %v4153 = vld [vmem:[%s4106 + $0xb8] sm:$0xf]
        %v4154 = vld [vmem:[%s4106 + $0xbc] sm:$0xf]
        %v4155 = vld [vmem:[%s4106 + $0xc0] sm:$0xf]
        %v4156 = vld [vmem:[%s4106 + $0xc4] sm:$0xf]
        %v4157 = vld [vmem:[%s4106 + $0xc8] sm:$0xf]
        %v4158 = vld [vmem:[%s4106 + $0xcc] sm:$0xf]
        %v4159 = vld [vmem:[%s4106 + $0xd0] sm:$0xf]
        %v4160 = vld [vmem:[%s4106 + $0xd4] sm:$0xf]
        %v4161 = vld [vmem:[%s4106 + $0xd8] sm:$0xf]
        %v4162 = vld [vmem:[%s4106 + $0xdc] sm:$0xf]
        %v4163 = vld [vmem:[%s4106 + $0xe0] sm:$0xf]
        %v4164 = vld [vmem:[%s4106 + $0xe4] sm:$0xf]
        %v4165 = vld [vmem:[%s4106 + $0xe8] sm:$0xf]
        %v4166 = vld [vmem:[%s4106 + $0xec] sm:$0xf]
        %v4167 = vld [vmem:[%s4106 + $0xf0] sm:$0xf]
        %v4168 = vld [vmem:[%s4106 + $0xf4] sm:$0xf]
        %v4169 = vld [vmem:[%s4106 + $0xf8] sm:$0xf]
        %v4170 = vld [vmem:[%s4106 + $0xfc] sm:$0xf]
        %v4171 = vld [vmem:[%s4106 + $0x100] sm:$0xf]
        %v4172 = vld [vmem:[%s4106 + $0x104] sm:$0xf]
        %v4173 = vld [vmem:[%s4106 + $0x108] sm:$0xf]
        %v4174 = vld [vmem:[%s4106 + $0x10c] sm:$0xf]
        %v4175 = vld [vmem:[%s4106 + $0x110] sm:$0xf]
        %v4176 = vld [vmem:[%s4106 + $0x114] sm:$0xf]
        %v4177 = vld [vmem:[%s4106 + $0x118] sm:$0xf]
        %v4178 = vld [vmem:[%s4106 + $0x11c] sm:$0xf]
        %v4179 = vld [vmem:[%s4106 + $0x120] sm:$0xf]
        %v4180 = vld [vmem:[%s4106 + $0x124] sm:$0xf]
        %v4181 = vld [vmem:[%s4106 + $0x128] sm:$0xf]
        %v4182 = vld [vmem:[%s4106 + $0x12c] sm:$0xf]
        %v4183 = vld [vmem:[%s4106 + $0x130] sm:$0xf]
        %v4184 = vld [vmem:[%s4106 + $0x134] sm:$0xf]
        %v4185 = vld [vmem:[%s4106 + $0x138] sm:$0xf]
        %v4186 = vld [vmem:[%s4106 + $0x13c] sm:$0xf]
        %v4187 = vld [vmem:[%s4106 + $0x140] sm:$0xf]
        %v4188 = vld [vmem:[%s4106 + $0x144] sm:$0xf]
        %v4189 = vld [vmem:[%s4106 + $0x148] sm:$0xf]
        %v4190 = vld [vmem:[%s4106 + $0x14c] sm:$0xf]
        %v4191 = vld [vmem:[%s4106 + $0x150] sm:$0xf]
        %v4192 = vld [vmem:[%s4106 + $0x154] sm:$0xf]
        %v4193 = vld [vmem:[%s4106 + $0x158] sm:$0xf]
        %v4194 = vld [vmem:[%s4106 + $0x15c] sm:$0xf]
        %v4195 = vld [vmem:[%s4106 + $0x160] sm:$0xf]
        %v4196 = vld [vmem:[%s4106 + $0x164] sm:$0xf]
        %v4197 = vld [vmem:[%s4106 + $0x168] sm:$0xf]
        %v4198 = vld [vmem:[%s4106 + $0x16c] sm:$0xf]
        %v4199 = vld [vmem:[%s4106 + $0x170] sm:$0xf]
        %v4200 = vld [vmem:[%s4106 + $0x174] sm:$0xf]
        %v4201 = vld [vmem:[%s4106 + $0x178] sm:$0xf]
        %v4202 = vld [vmem:[%s4106 + $0x17c] sm:$0xf]
        %v4203 = vld [vmem:[%s4106 + $0x180] sm:$0xf]
        %v4204 = vld [vmem:[%s4106 + $0x184] sm:$0xf]
        %v4205 = vld [vmem:[%s4106 + $0x188] sm:$0xf]
        %v4206 = vld [vmem:[%s4106 + $0x18c] sm:$0xf]
        %v4207 = vld [vmem:[%s4106 + $0x190] sm:$0xf]
        %v4208 = vld [vmem:[%s4106 + $0x194] sm:$0xf]
        %v4209 = vld [vmem:[%s4106 + $0x198] sm:$0xf]
        %v4210 = vld [vmem:[%s4106 + $0x19c] sm:$0xf]
        %v4211 = vld [vmem:[%s4106 + $0x1a0] sm:$0xf]
        %v4212 = vld [vmem:[%s4106 + $0x1a4] sm:$0xf]
        %v4213 = vld [vmem:[%s4106 + $0x1a8] sm:$0xf]
        %v4214 = vld [vmem:[%s4106 + $0x1ac] sm:$0xf]
        %v4215 = vld [vmem:[%s4106 + $0x1b0] sm:$0xf]
        %v4216 = vld [vmem:[%s4106 + $0x1b4] sm:$0xf]
        %v4217 = vld [vmem:[%s4106 + $0x1b8] sm:$0xf]
        %v4218 = vld [vmem:[%s4106 + $0x1bc] sm:$0xf]
        %v4219 = vld [vmem:[%s4106 + $0x1c0] sm:$0xf]
        %v4220 = vld [vmem:[%s4106 + $0x1c4] sm:$0xf]
        %v4221 = vld [vmem:[%s4106 + $0x1c8] sm:$0xf]
        %v4222 = vld [vmem:[%s4106 + $0x1cc] sm:$0xf]
        %v4223 = vld [vmem:[%s4106 + $0x1d0] sm:$0xf]
        %v4224 = vld [vmem:[%s4106 + $0x1d4] sm:$0xf]
        %v4225 = vld [vmem:[%s4106 + $0x1d8] sm:$0xf]
        %v4226 = vld [vmem:[%s4106 + $0x1dc] sm:$0xf]
        %v4227 = vld [vmem:[%s4106 + $0x1e0] sm:$0xf]
        %v4228 = vld [vmem:[%s4106 + $0x1e4] sm:$0xf]
        %v4229 = vld [vmem:[%s4106 + $0x1e8] sm:$0xf]
        %v4230 = vld [vmem:[%s4106 + $0x1ec] sm:$0xf]
        %v4231 = vld [vmem:[%s4106 + $0x1f0] sm:$0xf]
        %v4232 = vld [vmem:[%s4106 + $0x1f4] sm:$0xf]
        %v4233 = vld [vmem:[%s4106 + $0x1f8] sm:$0xf]
        %v4234 = vld [vmem:[%s4106 + $0x1fc] sm:$0xf]
        %v4235 = vld [vmem:[%s4106 + $0x200] sm:$0xf]
        %v4236 = vld [vmem:[%s4106 + $0x204] sm:$0xf]
        %v4237 = vld [vmem:[%s4106 + $0x208] sm:$0xf]
        %v4238 = vld [vmem:[%s4106 + $0x20c] sm:$0xf]
        %v4239 = vld [vmem:[%s4106 + $0x210] sm:$0xf]
        %v4240 = vld [vmem:[%s4106 + $0x214] sm:$0xf]
        %v4241 = vld [vmem:[%s4106 + $0x218] sm:$0xf]
        %v4242 = vld [vmem:[%s4106 + $0x21c] sm:$0xf]
        %v4243 = vld [vmem:[%s4106 + $0x220] sm:$0xf]
        %v4244 = vld [vmem:[%s4106 + $0x224] sm:$0xf]
        %v4245 = vld [vmem:[%s4106 + $0x228] sm:$0xf]
        %v4246 = vld [vmem:[%s4106 + $0x22c] sm:$0xf]
        %v4247 = vld [vmem:[%s4106 + $0x230] sm:$0xf]
        %v4248 = vld [vmem:[%s4106 + $0x234] sm:$0xf]
        %v4249 = vld [vmem:[%s4106 + $0x238] sm:$0xf]
        %v4250 = vld [vmem:[%s4106 + $0x23c] sm:$0xf]
        %v4251 = vpack.c.bf16 %v4099, %v4098
        %v4252 = vpack.c.bf16 %v4101, %v4100
        %v4253 = vpack.c.bf16 %v4103, %v4102
        %v4254 = vpack.c.bf16 %v4105, %v4104
        %v4256 = vshrl.u32 %v4251, 16
        %v4258 = vrot.slane %v4256, 7
        %v4259 = vshll.u32 %v4251, 16
        %v4261 = vor.u32 %v4258, %v4259
        %v4263 = vshrl.u32 %v4252, 16
        %v4265 = vrot.slane %v4263, 7
        %v4266 = vshll.u32 %v4252, 16
        %v4268 = vor.u32 %v4265, %v4266
        %v4269 = vsel %vm752, %v4258, %v4268
        %v4271 = vshrl.u32 %v4253, 16
        %v4273 = vrot.slane %v4271, 7
        %v4274 = vshll.u32 %v4253, 16
        %v4276 = vor.u32 %v4273, %v4274
        %v4277 = vsel %vm752, %v4265, %v4276
        %v4279 = vshrl.u32 %v4254, 16
        %v4281 = vrot.slane %v4279, 7
        %v4282 = vshll.u32 %v4254, 16
        %v4284 = vor.u32 %v4281, %v4282
        %v4285 = vsel %vm752, %v4273, %v4284
        %v4290 = vsel %vm789, 0, %v4261
        %v4291 = vsel %vm835, %v4290, 0
        %v4292 = vsel %vm836, %v4269, 0
        %v4293 = vsel %vm837, %v4277, 0
        %v4294 = vsel %vm838, %v4285, 0
        %v4295 = vrot.slane %v4259, 1
        %v4296 = vor.u32 %v4256, %v4295
        %v4297 = vrot.slane %v4266, 1
        %v4298 = vsel %vm843, %v4296, %v4297
        %v4299 = vor.u32 %v4263, %v4297
        %v4300 = vrot.slane %v4274, 1
        %v4301 = vsel %vm843, %v4299, %v4300
        %v4302 = vor.u32 %v4271, %v4300
        %v4303 = vrot.slane %v4282, 1
        %v4304 = vsel %vm843, %v4302, %v4303
        %v4305 = vor.u32 %v4279, %v4303
        %v4310 = vsel %vm860, %v4305, 0
        %v4311 = vsel %vm906, %v4298, 0
        %v4312 = vsel %vm907, %v4301, 0
        %v4313 = vsel %vm908, %v4304, 0
        %v4314 = vsel %vm909, %v4310, 0
        %v4319 = vrot.slane %v4291, 4
        %v4320 = vrot.slane %v4292, 4
        %v4321 = vsel %vm918, %v4319, %v4320
        %v4322 = vrot.slane %v4293, 4
        %v4323 = vsel %vm918, %v4320, %v4322
        %v4324 = vrot.slane %v4294, 4
        %v4325 = vsel %vm918, %v4322, %v4324
        %v4330 = vsel %vm929, 0, %v4319
        %4332 = vst [vmem:[#allocation2] sm:$0xff] %v4330
        %4333 = vst [vmem:[#allocation2 + $0x48] sm:$0xff] %v4321
        %4334 = vst [vmem:[#allocation2 + $0x90] sm:$0xff] %v4323
        %4335 = vst [vmem:[#allocation2 + $0xd8] sm:$0xff] %v4325
        %v4340 = vrot.slane %v4251, 4
        %v4341 = vrot.slane %v4252, 4
        %v4342 = vsel %vm918, %v4340, %v4341
        %v4343 = vrot.slane %v4253, 4
        %v4344 = vsel %vm918, %v4341, %v4343
        %v4345 = vrot.slane %v4254, 4
        %v4346 = vsel %vm918, %v4343, %v4345
        %v4351 = vsel %vm929, 0, %v4340
        %4353 = vst [vmem:[#allocation2 + $0x8] sm:$0xff] %v4351
        %4354 = vst [vmem:[#allocation2 + $0x50] sm:$0xff] %v4342
        %4355 = vst [vmem:[#allocation2 + $0x98] sm:$0xff] %v4344
        %4356 = vst [vmem:[#allocation2 + $0xe0] sm:$0xff] %v4346
        %v4361 = vrot.slane %v4311, 4
        %v4362 = vrot.slane %v4312, 4
        %v4363 = vsel %vm918, %v4361, %v4362
        %v4364 = vrot.slane %v4313, 4
        %v4365 = vsel %vm918, %v4362, %v4364
        %v4366 = vrot.slane %v4314, 4
        %v4367 = vsel %vm918, %v4364, %v4366
        %v4372 = vsel %vm929, 0, %v4361
        %4374 = vst [vmem:[#allocation2 + $0x10] sm:$0xff] %v4372
        %4375 = vst [vmem:[#allocation2 + $0x58] sm:$0xff] %v4363
        %4376 = vst [vmem:[#allocation2 + $0xa0] sm:$0xff] %v4365
        %4377 = vst [vmem:[#allocation2 + $0xe8] sm:$0xff] %v4367
        %4378 = vst [vmem:[#allocation2 + $0x18] sm:$0xff] %v4291
        %4379 = vst [vmem:[#allocation2 + $0x60] sm:$0xff] %v4292
        %4380 = vst [vmem:[#allocation2 + $0xa8] sm:$0xff] %v4293
        %4381 = vst [vmem:[#allocation2 + $0xf0] sm:$0xff] %v4294
        %4382 = vst [vmem:[#allocation2 + $0x20] sm:$0xff] %v4251
        %4383 = vst [vmem:[#allocation2 + $0x68] sm:$0xff] %v4252
        %4384 = vst [vmem:[#allocation2 + $0xb0] sm:$0xff] %v4253
        %4385 = vst [vmem:[#allocation2 + $0xf8] sm:$0xff] %v4254
        %4386 = vst [vmem:[#allocation2 + $0x28] sm:$0xff] %v4311
        %4387 = vst [vmem:[#allocation2 + $0x70] sm:$0xff] %v4312
        %4388 = vst [vmem:[#allocation2 + $0xb8] sm:$0xff] %v4313
        %4389 = vst [vmem:[#allocation2 + $0x100] sm:$0xff] %v4314
        %v4391 = vsel %vm929, %v4324, 0
        %4393 = vst [vmem:[#allocation2 + $0x30] sm:$0xff] %v4321
        %4394 = vst [vmem:[#allocation2 + $0x78] sm:$0xff] %v4323
        %4395 = vst [vmem:[#allocation2 + $0xc0] sm:$0xff] %v4325
        %4396 = vst [vmem:[#allocation2 + $0x108] sm:$0xff] %v4391
        %v4398 = vsel %vm929, %v4345, 0
        %4400 = vst [vmem:[#allocation2 + $0x38] sm:$0xff] %v4342
        %4401 = vst [vmem:[#allocation2 + $0x80] sm:$0xff] %v4344
        %4402 = vst [vmem:[#allocation2 + $0xc8] sm:$0xff] %v4346
        %4403 = vst [vmem:[#allocation2 + $0x110] sm:$0xff] %v4398
        %v4405 = vsel %vm929, %v4366, 0
        %4407 = vst [vmem:[#allocation2 + $0x40] sm:$0xff] %v4363
        %4408 = vst [vmem:[#allocation2 + $0x88] sm:$0xff] %v4365
        %4409 = vst [vmem:[#allocation2 + $0xd0] sm:$0xff] %v4367
        %4410 = vst [vmem:[#allocation2 + $0x118] sm:$0xff] %v4405
        %v4411 = vld [vmem:[#allocation2] sm:$0xff]
        %v4412 = vld [vmem:[#allocation2 + $0x8] sm:$0xff]
        %v4413 = vld [vmem:[#allocation2 + $0x10] sm:$0xff]
        %v4414 = vld [vmem:[#allocation2 + $0x18] sm:$0xff]
        %v4415 = vld [vmem:[#allocation2 + $0x20] sm:$0xff]
        %v4416 = vld [vmem:[#allocation2 + $0x28] sm:$0xff]
        %v4417 = vld [vmem:[#allocation2 + $0x30] sm:$0xff]
        %v4418 = vld [vmem:[#allocation2 + $0x38] sm:$0xff]
        %v4419 = vld [vmem:[#allocation2 + $0x40] sm:$0xff]
        %v4420 = vld [vmem:[#allocation2 + $0x48] sm:$0xff]
        %v4421 = vld [vmem:[#allocation2 + $0x50] sm:$0xff]
        %v4422 = vld [vmem:[#allocation2 + $0x58] sm:$0xff]
        %v4423 = vld [vmem:[#allocation2 + $0x60] sm:$0xff]
        %v4424 = vld [vmem:[#allocation2 + $0x68] sm:$0xff]
        %v4425 = vld [vmem:[#allocation2 + $0x70] sm:$0xff]
        %v4426 = vld [vmem:[#allocation2 + $0x78] sm:$0xff]
        %v4427 = vld [vmem:[#allocation2 + $0x80] sm:$0xff]
        %v4428 = vld [vmem:[#allocation2 + $0x88] sm:$0xff]
        %v4429 = vld [vmem:[#allocation2 + $0x90] sm:$0xff]
        %v4430 = vld [vmem:[#allocation2 + $0x98] sm:$0xff]
        %v4431 = vld [vmem:[#allocation2 + $0xa0] sm:$0xff]
        %v4432 = vld [vmem:[#allocation2 + $0xa8] sm:$0xff]
        %v4433 = vld [vmem:[#allocation2 + $0xb0] sm:$0xff]
        %v4434 = vld [vmem:[#allocation2 + $0xb8] sm:$0xff]
        %v4435 = vld [vmem:[#allocation2 + $0xc0] sm:$0xff]
        %v4436 = vld [vmem:[#allocation2 + $0xc8] sm:$0xff]
        %v4437 = vld [vmem:[#allocation2 + $0xd0] sm:$0xff]
        %v4438 = vld [vmem:[#allocation2 + $0xd8] sm:$0xff]
        %v4439 = vld [vmem:[#allocation2 + $0xe0] sm:$0xff]
        %v4440 = vld [vmem:[#allocation2 + $0xe8] sm:$0xff]
        %v4441 = vld [vmem:[#allocation2 + $0xf0] sm:$0xff]
        %v4442 = vld [vmem:[#allocation2 + $0xf8] sm:$0xff]
        %v4443 = vld [vmem:[#allocation2 + $0x100] sm:$0xff]
        %v4444 = vld [vmem:[#allocation2 + $0x108] sm:$0xff]
        %v4445 = vld [vmem:[#allocation2 + $0x110] sm:$0xff]
        %v4446 = vld [vmem:[#allocation2 + $0x118] sm:$0xff]
        %v4591 = vunpack.c.l.b16 %v4107
        %v4592 = vunpack.c.l.b16 %v4108
        %v4593 = vunpack.c.l.b16 %v4109
        %v4594 = vunpack.c.l.b16 %v4110
        %v4595 = vunpack.c.l.b16 %v4111
        %v4596 = vunpack.c.l.b16 %v4112
        %v4597 = vunpack.c.l.b16 %v4113
        %v4598 = vunpack.c.l.b16 %v4114
        %v4599 = vunpack.c.l.b16 %v4115
        %v4600 = vunpack.c.l.b16 %v4116
        %v4601 = vunpack.c.l.b16 %v4117
        %v4602 = vunpack.c.l.b16 %v4118
        %v4603 = vunpack.c.l.b16 %v4119
        %v4604 = vunpack.c.l.b16 %v4120
        %v4605 = vunpack.c.l.b16 %v4121
        %v4606 = vunpack.c.l.b16 %v4122
        %v4607 = vunpack.c.l.b16 %v4123
        %v4608 = vunpack.c.l.b16 %v4124
        %v4609 = vunpack.c.l.b16 %v4125
        %v4610 = vunpack.c.l.b16 %v4126
        %v4611 = vunpack.c.l.b16 %v4127
        %v4612 = vunpack.c.l.b16 %v4128
        %v4613 = vunpack.c.l.b16 %v4129
        %v4614 = vunpack.c.l.b16 %v4130
        %v4615 = vunpack.c.l.b16 %v4131
        %v4616 = vunpack.c.l.b16 %v4132
        %v4617 = vunpack.c.l.b16 %v4133
        %v4618 = vunpack.c.l.b16 %v4134
        %v4619 = vunpack.c.l.b16 %v4135
        %v4620 = vunpack.c.l.b16 %v4136
        %v4621 = vunpack.c.l.b16 %v4137
        %v4622 = vunpack.c.l.b16 %v4138
        %v4623 = vunpack.c.l.b16 %v4139
        %v4624 = vunpack.c.l.b16 %v4140
        %v4625 = vunpack.c.l.b16 %v4141
        %v4626 = vunpack.c.l.b16 %v4142
        %v4627 = vunpack.c.l.b16 %v4143
        %v4628 = vunpack.c.l.b16 %v4144
        %v4629 = vunpack.c.l.b16 %v4145
        %v4630 = vunpack.c.l.b16 %v4146
        %v4631 = vunpack.c.l.b16 %v4147
        %v4632 = vunpack.c.l.b16 %v4148
        %v4633 = vunpack.c.l.b16 %v4149
        %v4634 = vunpack.c.l.b16 %v4150
        %v4635 = vunpack.c.l.b16 %v4151
        %v4636 = vunpack.c.l.b16 %v4152
        %v4637 = vunpack.c.l.b16 %v4153
        %v4638 = vunpack.c.l.b16 %v4154
        %v4639 = vunpack.c.l.b16 %v4155
        %v4640 = vunpack.c.l.b16 %v4156
        %v4641 = vunpack.c.l.b16 %v4157
        %v4642 = vunpack.c.l.b16 %v4158
        %v4643 = vunpack.c.l.b16 %v4159
        %v4644 = vunpack.c.l.b16 %v4160
        %v4645 = vunpack.c.l.b16 %v4161
        %v4646 = vunpack.c.l.b16 %v4162
        %v4647 = vunpack.c.l.b16 %v4163
        %v4648 = vunpack.c.l.b16 %v4164
        %v4649 = vunpack.c.l.b16 %v4165
        %v4650 = vunpack.c.l.b16 %v4166
        %v4651 = vunpack.c.l.b16 %v4167
        %v4652 = vunpack.c.l.b16 %v4168
        %v4653 = vunpack.c.l.b16 %v4169
        %v4654 = vunpack.c.l.b16 %v4170
        %v4655 = vunpack.c.l.b16 %v4171
        %v4656 = vunpack.c.l.b16 %v4172
        %v4657 = vunpack.c.l.b16 %v4173
        %v4658 = vunpack.c.l.b16 %v4174
        %v4659 = vunpack.c.l.b16 %v4175
        %v4660 = vunpack.c.l.b16 %v4176
        %v4661 = vunpack.c.l.b16 %v4177
        %v4662 = vunpack.c.l.b16 %v4178
        %v4663 = vunpack.c.l.b16 %v4179
        %v4664 = vunpack.c.l.b16 %v4180
        %v4665 = vunpack.c.l.b16 %v4181
        %v4666 = vunpack.c.l.b16 %v4182
        %v4667 = vunpack.c.l.b16 %v4183
        %v4668 = vunpack.c.l.b16 %v4184
        %v4669 = vunpack.c.l.b16 %v4185
        %v4670 = vunpack.c.l.b16 %v4186
        %v4671 = vunpack.c.l.b16 %v4187
        %v4672 = vunpack.c.l.b16 %v4188
        %v4673 = vunpack.c.l.b16 %v4189
        %v4674 = vunpack.c.l.b16 %v4190
        %v4675 = vunpack.c.l.b16 %v4191
        %v4676 = vunpack.c.l.b16 %v4192
        %v4677 = vunpack.c.l.b16 %v4193
        %v4678 = vunpack.c.l.b16 %v4194
        %v4679 = vunpack.c.l.b16 %v4195
        %v4680 = vunpack.c.l.b16 %v4196
        %v4681 = vunpack.c.l.b16 %v4197
        %v4682 = vunpack.c.l.b16 %v4198
        %v4683 = vunpack.c.l.b16 %v4199
        %v4684 = vunpack.c.l.b16 %v4200
        %v4685 = vunpack.c.l.b16 %v4201
        %v4686 = vunpack.c.l.b16 %v4202
        %v4687 = vunpack.c.l.b16 %v4203
        %v4688 = vunpack.c.l.b16 %v4204
        %v4689 = vunpack.c.l.b16 %v4205
        %v4690 = vunpack.c.l.b16 %v4206
        %v4691 = vunpack.c.l.b16 %v4207
        %v4692 = vunpack.c.l.b16 %v4208
        %v4693 = vunpack.c.l.b16 %v4209
        %v4694 = vunpack.c.l.b16 %v4210
        %v4695 = vunpack.c.l.b16 %v4211
        %v4696 = vunpack.c.l.b16 %v4212
        %v4697 = vunpack.c.l.b16 %v4213
        %v4698 = vunpack.c.l.b16 %v4214
        %v4699 = vunpack.c.l.b16 %v4215
        %v4700 = vunpack.c.l.b16 %v4216
        %v4701 = vunpack.c.l.b16 %v4217
        %v4702 = vunpack.c.l.b16 %v4218
        %v4703 = vunpack.c.l.b16 %v4219
        %v4704 = vunpack.c.l.b16 %v4220
        %v4705 = vunpack.c.l.b16 %v4221
        %v4706 = vunpack.c.l.b16 %v4222
        %v4707 = vunpack.c.l.b16 %v4223
        %v4708 = vunpack.c.l.b16 %v4224
        %v4709 = vunpack.c.l.b16 %v4225
        %v4710 = vunpack.c.l.b16 %v4226
        %v4711 = vunpack.c.l.b16 %v4227
        %v4712 = vunpack.c.l.b16 %v4228
        %v4713 = vunpack.c.l.b16 %v4229
        %v4714 = vunpack.c.l.b16 %v4230
        %v4715 = vunpack.c.l.b16 %v4231
        %v4716 = vunpack.c.l.b16 %v4232
        %v4717 = vunpack.c.l.b16 %v4233
        %v4718 = vunpack.c.l.b16 %v4234
        %v4719 = vunpack.c.l.b16 %v4235
        %v4720 = vunpack.c.l.b16 %v4236
        %v4721 = vunpack.c.l.b16 %v4237
        %v4722 = vunpack.c.l.b16 %v4238
        %v4723 = vunpack.c.l.b16 %v4239
        %v4724 = vunpack.c.l.b16 %v4240
        %v4725 = vunpack.c.l.b16 %v4241
        %v4726 = vunpack.c.l.b16 %v4242
        %v4727 = vunpack.c.l.b16 %v4243
        %v4728 = vunpack.c.l.b16 %v4244
        %v4729 = vunpack.c.l.b16 %v4245
        %v4730 = vunpack.c.l.b16 %v4246
        %v4731 = vunpack.c.l.b16 %v4247
        %v4732 = vunpack.c.l.b16 %v4248
        %v4733 = vunpack.c.l.b16 %v4249
        %v4734 = vunpack.c.l.b16 %v4250
        %v4735 = vpack.c.b16 %v4592, %v4591
        %v4736 = vpack.c.b16 %v4594, %v4593
        %v4737 = vpack.c.b16 %v4596, %v4595
        %v4738 = vpack.c.b16 %v4598, %v4597
        %v4739 = vpack.c.b16 %v4600, %v4599
        %v4740 = vpack.c.b16 %v4602, %v4601
        %v4741 = vpack.c.b16 %v4604, %v4603
        %v4742 = vpack.c.b16 %v4606, %v4605
        %v4743 = vpack.c.b16 %v4608, %v4607
        %v4744 = vpack.c.b16 %v4610, %v4609
        %v4745 = vpack.c.b16 %v4612, %v4611
        %v4746 = vpack.c.b16 %v4614, %v4613
        %v4747 = vpack.c.b16 %v4616, %v4615
        %v4748 = vpack.c.b16 %v4618, %v4617
        %v4749 = vpack.c.b16 %v4620, %v4619
        %v4750 = vpack.c.b16 %v4622, %v4621
        %v4751 = vpack.c.b16 %v4624, %v4623
        %v4752 = vpack.c.b16 %v4626, %v4625
        %v4753 = vpack.c.b16 %v4628, %v4627
        %v4754 = vpack.c.b16 %v4630, %v4629
        %v4755 = vpack.c.b16 %v4632, %v4631
        %v4756 = vpack.c.b16 %v4634, %v4633
        %v4757 = vpack.c.b16 %v4636, %v4635
        %v4758 = vpack.c.b16 %v4638, %v4637
        %v4759 = vpack.c.b16 %v4640, %v4639
        %v4760 = vpack.c.b16 %v4642, %v4641
        %v4761 = vpack.c.b16 %v4644, %v4643
        %v4762 = vpack.c.b16 %v4646, %v4645
        %v4763 = vpack.c.b16 %v4648, %v4647
        %v4764 = vpack.c.b16 %v4650, %v4649
        %v4765 = vpack.c.b16 %v4652, %v4651
        %v4766 = vpack.c.b16 %v4654, %v4653
        %v4767 = vpack.c.b16 %v4656, %v4655
        %v4768 = vpack.c.b16 %v4658, %v4657
        %v4769 = vpack.c.b16 %v4660, %v4659
        %v4770 = vpack.c.b16 %v4662, %v4661
        %v4771 = vpack.c.b16 %v4664, %v4663
        %v4772 = vpack.c.b16 %v4666, %v4665
        %v4773 = vpack.c.b16 %v4668, %v4667
        %v4774 = vpack.c.b16 %v4670, %v4669
        %v4775 = vpack.c.b16 %v4672, %v4671
        %v4776 = vpack.c.b16 %v4674, %v4673
        %v4777 = vpack.c.b16 %v4676, %v4675
        %v4778 = vpack.c.b16 %v4678, %v4677
        %v4779 = vpack.c.b16 %v4680, %v4679
        %v4780 = vpack.c.b16 %v4682, %v4681
        %v4781 = vpack.c.b16 %v4684, %v4683
        %v4782 = vpack.c.b16 %v4686, %v4685
        %v4783 = vpack.c.b16 %v4688, %v4687
        %v4784 = vpack.c.b16 %v4690, %v4689
        %v4785 = vpack.c.b16 %v4692, %v4691
        %v4786 = vpack.c.b16 %v4694, %v4693
        %v4787 = vpack.c.b16 %v4696, %v4695
        %v4788 = vpack.c.b16 %v4698, %v4697
        %v4789 = vpack.c.b16 %v4700, %v4699
        %v4790 = vpack.c.b16 %v4702, %v4701
        %v4791 = vpack.c.b16 %v4704, %v4703
        %v4792 = vpack.c.b16 %v4706, %v4705
        %v4793 = vpack.c.b16 %v4708, %v4707
        %v4794 = vpack.c.b16 %v4710, %v4709
        %v4795 = vpack.c.b16 %v4712, %v4711
        %v4796 = vpack.c.b16 %v4714, %v4713
        %v4797 = vpack.c.b16 %v4716, %v4715
        %v4798 = vpack.c.b16 %v4718, %v4717
        %v4799 = vpack.c.b16 %v4720, %v4719
        %v4800 = vpack.c.b16 %v4722, %v4721
        %v4801 = vpack.c.b16 %v4724, %v4723
        %v4802 = vpack.c.b16 %v4726, %v4725
        %v4803 = vpack.c.b16 %v4728, %v4727
        %v4804 = vpack.c.b16 %v4730, %v4729
        %v4805 = vpack.c.b16 %v4732, %v4731
        %v4806 = vpack.c.b16 %v4734, %v4733
        %4879 = vmatprep.subr.bf16.mxu0 0
        %4880 = vmatpush1.bf16.msra.mxu0 %v4735
        %4881 = vmatprep.subr.bf16.mxu0 0
        %4882 = vmatpush1.bf16.msra.mxu0 %v4736
        %4883 = vmatprep.subr.bf16.mxu0 0
        %4884 = vmatpush1.bf16.msra.mxu0 %v4737
        %4885 = vmatprep.subr.bf16.mxu0 0
        %4886 = vmatpush1.bf16.msra.mxu0 %v4738
        %4887 = vmatprep.subr.bf16.mxu0 0
        %4888 = vmatpush1.bf16.msra.mxu0 %v4739
        %4889 = vmatprep.subr.bf16.mxu0 0
        %4890 = vmatpush1.bf16.msra.mxu0 %v4740
        %4891 = vmatprep.subr.bf16.mxu0 0
        %4892 = vmatpush1.bf16.msra.mxu0 %v4741
        %4893 = vmatprep.subr.bf16.mxu0 0
        %4894 = vmatpush1.bf16.msra.mxu0 %v4742
        %4895 = vmatprep.subr.bf16.mxu0 0
        %4896 = vmatpush1.bf16.msra.mxu0 %v4743
        %4897 = vmatprep.subr.bf16.mxu0 0
        %4898 = vmatpush1.bf16.msra.mxu0 %v4744
        %4899 = vmatprep.subr.bf16.mxu0 0
        %4900 = vmatpush1.bf16.msra.mxu0 %v4745
        %4901 = vmatprep.subr.bf16.mxu0 0
        %4902 = vmatpush1.bf16.msra.mxu0 %v4746
        %4903 = vmatprep.subr.bf16.mxu0 0
        %4904 = vmatpush1.bf16.msra.mxu0 %v4747
        %4905 = vmatprep.subr.bf16.mxu0 0
        %4906 = vmatpush1.bf16.msra.mxu0 %v4748
        %4907 = vmatprep.subr.bf16.mxu0 0
        %4908 = vmatpush1.bf16.msra.mxu0 %v4749
        %4909 = vmatprep.subr.bf16.mxu0 0
        %4910 = vmatpush1.bf16.msra.mxu0 %v4750
        %4911 = vmatprep.mubr.bf16.mxu0 %v4412
        %4912 = vmatmul.mubr.bf16.gmra.mrb[0].mxu0 %v4411
        %v4913 = vpop.f32.mrb[0].mxu0
        %v4914 = vadd.f32 0.0, %v4913
        %v4915 = vpop.f32.mrb[0].mxu0
        %v4916 = vpop.f32.mrb[0].mxu0
        %v4917 = vadd.f32 0.0, %v4916
        %v4918 = vpop.f32.mrb[0].mxu0
        %4919 = vmatprep.mubr.bf16.mxu0 %v4421
        %4920 = vmatmul.mubr.bf16.gmra.mrb[0].mxu0 %v4420
        %v4921 = vpop.f32.mrb[0].mxu0
        %v4922 = vadd.f32 0.0, %v4921
        %v4923 = vpop.f32.mrb[0].mxu0
        %v4924 = vpop.f32.mrb[0].mxu0
        %v4925 = vadd.f32 0.0, %v4924
        %v4926 = vpop.f32.mrb[0].mxu0
        %4927 = vmatprep.mubr.bf16.mxu0 %v4430
        %4928 = vmatmul.mubr.bf16.gmra.mrb[0].mxu0 %v4429
        %v4929 = vpop.f32.mrb[0].mxu0
        %v4930 = vadd.f32 0.0, %v4929
        %v4931 = vpop.f32.mrb[0].mxu0
        %v4932 = vpop.f32.mrb[0].mxu0
        %v4933 = vadd.f32 0.0, %v4932
        %v4934 = vpop.f32.mrb[0].mxu0
        %4935 = vmatprep.mubr.bf16.mxu0 %v4439
        %4936 = vmatmul.mubr.bf16.gmra.mrb[0].mxu0 %v4438
        %v4937 = vpop.f32.mrb[0].mxu0
        %v4938 = vadd.f32 0.0, %v4937
        %v4939 = vpop.f32.mrb[0].mxu0
        %v4940 = vpop.f32.mrb[0].mxu0
        %v4941 = vadd.f32 0.0, %v4940
        %v4942 = vpop.f32.mrb[0].mxu0
        %4943 = vdwg.mxu0
        %4944 = vmatprep.subr.bf16.mxu0 0
        %4945 = vmatpush1.bf16.msra.mxu0 %v4751
        %4946 = vmatprep.subr.bf16.mxu0 0
        %4947 = vmatpush1.bf16.msra.mxu0 %v4752
        %4948 = vmatprep.subr.bf16.mxu0 0
        %4949 = vmatpush1.bf16.msra.mxu0 %v4753
        %4950 = vmatprep.subr.bf16.mxu0 0
        %4951 = vmatpush1.bf16.msra.mxu0 %v4754
        %4952 = vmatprep.subr.bf16.mxu0 0
        %4953 = vmatpush1.bf16.msra.mxu0 %v4755
        %4954 = vmatprep.subr.bf16.mxu0 0
        %4955 = vmatpush1.bf16.msra.mxu0 %v4756
        %4956 = vmatprep.subr.bf16.mxu0 0
        %4957 = vmatpush1.bf16.msra.mxu0 %v4757
        %4958 = vmatprep.subr.bf16.mxu0 0
        %4959 = vmatpush1.bf16.msra.mxu0 %v4758
        %4960 = vmatprep.subr.bf16.mxu0 0
        %4961 = vmatpush1.bf16.msra.mxu0 %v4759
        %4962 = vmatprep.subr.bf16.mxu0 0
        %4963 = vmatpush1.bf16.msra.mxu0 %v4760
        %4964 = vmatprep.subr.bf16.mxu0 0
        %4965 = vmatpush1.bf16.msra.mxu0 %v4761
        %4966 = vmatprep.subr.bf16.mxu0 0
        %4967 = vmatpush1.bf16.msra.mxu0 %v4762
        %4968 = vmatprep.subr.bf16.mxu0 0
        %4969 = vmatpush1.bf16.msra.mxu0 %v4763
        %4970 = vmatprep.subr.bf16.mxu0 0
        %4971 = vmatpush1.bf16.msra.mxu0 %v4764
        %4972 = vmatprep.subr.bf16.mxu0 0
        %4973 = vmatpush1.bf16.msra.mxu0 %v4765
        %4974 = vmatprep.subr.bf16.mxu0 0
        %4975 = vmatpush1.bf16.msra.mxu0 %v4766
        %4976 = vmatprep.mubr.bf16.mxu0 %v4414
        %4977 = vmatmul.mubr.bf16.gmra.mrb[0].mxu0 %v4413
        %v4978 = vpop.f32.mrb[0].mxu0
        %v4979 = vadd.f32 %v4914, %v4978
        %v4980 = vpop.f32.mrb[0].mxu0
        %v4981 = vpop.f32.mrb[0].mxu0
        %v4982 = vadd.f32 %v4917, %v4981
        %v4983 = vpop.f32.mrb[0].mxu0
        %4984 = vmatprep.mubr.bf16.mxu0 %v4423
        %4985 = vmatmul.mubr.bf16.gmra.mrb[0].mxu0 %v4422
        %v4986 = vpop.f32.mrb[0].mxu0
        %v4987 = vadd.f32 %v4922, %v4986
        %v4988 = vpop.f32.mrb[0].mxu0
        %v4989 = vpop.f32.mrb[0].mxu0
        %v4990 = vadd.f32 %v4925, %v4989
        %v4991 = vpop.f32.mrb[0].mxu0
        %4992 = vmatprep.mubr.bf16.mxu0 %v4432
        %4993 = vmatmul.mubr.bf16.gmra.mrb[0].mxu0 %v4431
        %v4994 = vpop.f32.mrb[0].mxu0
        %v4995 = vadd.f32 %v4930, %v4994
        %v4996 = vpop.f32.mrb[0].mxu0
        %v4997 = vpop.f32.mrb[0].mxu0
        %v4998 = vadd.f32 %v4933, %v4997
        %v4999 = vpop.f32.mrb[0].mxu0
        %5000 = vmatprep.mubr.bf16.mxu0 %v4441
        %5001 = vmatmul.mubr.bf16.gmra.mrb[0].mxu0 %v4440
        %v5002 = vpop.f32.mrb[0].mxu0
        %v5003 = vadd.f32 %v4938, %v5002
        %v5004 = vpop.f32.mrb[0].mxu0
        %v5005 = vpop.f32.mrb[0].mxu0
        %v5006 = vadd.f32 %v4941, %v5005
        %v5007 = vpop.f32.mrb[0].mxu0
        %5008 = vdwg.mxu0
        %5009 = vmatprep.subr.bf16.mxu0 0
        %5010 = vmatpush1.bf16.msra.mxu0 %v4767
        %5011 = vmatprep.subr.bf16.mxu0 0
        %5012 = vmatpush1.bf16.msra.mxu0 %v4768
        %5013 = vmatprep.subr.bf16.mxu0 0
        %5014 = vmatpush1.bf16.msra.mxu0 %v4769
        %5015 = vmatprep.subr.bf16.mxu0 0
        %5016 = vmatpush1.bf16.msra.mxu0 %v4770
        %5017 = vmatprep.subr.bf16.mxu0 0
        %5018 = vmatpush1.bf16.msra.mxu0 %v4771
        %5019 = vmatprep.subr.bf16.mxu0 0
        %5020 = vmatpush1.bf16.msra.mxu0 %v4772
        %5021 = vmatprep.subr.bf16.mxu0 0
        %5022 = vmatpush1.bf16.msra.mxu0 %v4773
        %5023 = vmatprep.subr.bf16.mxu0 0
        %5024 = vmatpush1.bf16.msra.mxu0 %v4774
        %5025 = vmatprep.subr.bf16.mxu0 0
        %5026 = vmatpush1.bf16.msra.mxu0 %v4775
        %5027 = vmatprep.subr.bf16.mxu0 0
        %5028 = vmatpush1.bf16.msra.mxu0 %v4776
        %5029 = vmatprep.subr.bf16.mxu0 0
        %5030 = vmatpush1.bf16.msra.mxu0 %v4777
        %5031 = vmatprep.subr.bf16.mxu0 0
        %5032 = vmatpush1.bf16.msra.mxu0 %v4778
        %5033 = vmatprep.subr.bf16.mxu0 0
        %5034 = vmatpush1.bf16.msra.mxu0 %v4779
        %5035 = vmatprep.subr.bf16.mxu0 0
        %5036 = vmatpush1.bf16.msra.mxu0 %v4780
        %5037 = vmatprep.subr.bf16.mxu0 0
        %5038 = vmatpush1.bf16.msra.mxu0 %v4781
        %5039 = vmatprep.subr.bf16.mxu0 0
        %5040 = vmatpush1.bf16.msra.mxu0 %v4782
        %5041 = vmatprep.mubr.bf16.mxu0 %v4416
        %5042 = vmatmul.mubr.bf16.gmra.mrb[0].mxu0 %v4415
        %v5043 = vpop.f32.mrb[0].mxu0
        %v5044 = vadd.f32 %v4979, %v5043
        %v5045 = vpop.f32.mrb[0].mxu0
        %v5046 = vpop.f32.mrb[0].mxu0
        %v5047 = vadd.f32 %v4982, %v5046
        %v5048 = vpop.f32.mrb[0].mxu0
        %5049 = vmatprep.mubr.bf16.mxu0 %v4425
        %5050 = vmatmul.mubr.bf16.gmra.mrb[0].mxu0 %v4424
        %v5051 = vpop.f32.mrb[0].mxu0
        %v5052 = vadd.f32 %v4987, %v5051
        %v5053 = vpop.f32.mrb[0].mxu0
        %v5054 = vpop.f32.mrb[0].mxu0
        %v5055 = vadd.f32 %v4990, %v5054
        %v5056 = vpop.f32.mrb[0].mxu0
        %5057 = vmatprep.mubr.bf16.mxu0 %v4434
        %5058 = vmatmul.mubr.bf16.gmra.mrb[0].mxu0 %v4433
        %v5059 = vpop.f32.mrb[0].mxu0
        %v5060 = vadd.f32 %v4995, %v5059
        %v5061 = vpop.f32.mrb[0].mxu0
        %v5062 = vpop.f32.mrb[0].mxu0
        %v5063 = vadd.f32 %v4998, %v5062
        %v5064 = vpop.f32.mrb[0].mxu0
        %5065 = vmatprep.mubr.bf16.mxu0 %v4443
        %5066 = vmatmul.mubr.bf16.gmra.mrb[0].mxu0 %v4442
        %v5067 = vpop.f32.mrb[0].mxu0
        %v5068 = vadd.f32 %v5003, %v5067
        %v5069 = vpop.f32.mrb[0].mxu0
        %v5070 = vpop.f32.mrb[0].mxu0
        %v5071 = vadd.f32 %v5006, %v5070
        %v5072 = vpop.f32.mrb[0].mxu0
        %5073 = vdwg.mxu0
        %5074 = vmatprep.subr.bf16.mxu0 0
        %5075 = vmatpush1.bf16.msra.mxu0 %v4783
        %5076 = vmatprep.subr.bf16.mxu0 0
        %5077 = vmatpush1.bf16.msra.mxu0 %v4784
        %5078 = vmatprep.subr.bf16.mxu0 0
        %5079 = vmatpush1.bf16.msra.mxu0 %v4785
        %5080 = vmatprep.subr.bf16.mxu0 0
        %5081 = vmatpush1.bf16.msra.mxu0 %v4786
        %5082 = vmatprep.subr.bf16.mxu0 0
        %5083 = vmatpush1.bf16.msra.mxu0 %v4787
        %5084 = vmatprep.subr.bf16.mxu0 0
        %5085 = vmatpush1.bf16.msra.mxu0 %v4788
        %5086 = vmatprep.subr.bf16.mxu0 0
        %5087 = vmatpush1.bf16.msra.mxu0 %v4789
        %5088 = vmatprep.subr.bf16.mxu0 0
        %5089 = vmatpush1.bf16.msra.mxu0 %v4790
        %5090 = vmatprep.subr.bf16.mxu0 0
        %5091 = vmatpush1.bf16.msra.mxu0 %v4791
        %5092 = vmatprep.subr.bf16.mxu0 0
        %5093 = vmatpush1.bf16.msra.mxu0 %v4792
        %5094 = vmatprep.subr.bf16.mxu0 0
        %5095 = vmatpush1.bf16.msra.mxu0 %v4793
        %5096 = vmatprep.subr.bf16.mxu0 0
        %5097 = vmatpush1.bf16.msra.mxu0 %v4794
        %5098 = vmatprep.subr.bf16.mxu0 0
        %5099 = vmatpush1.bf16.msra.mxu0 %v4795
        %5100 = vmatprep.subr.bf16.mxu0 0
        %5101 = vmatpush1.bf16.msra.mxu0 %v4796
        %5102 = vmatprep.subr.bf16.mxu0 0
        %5103 = vmatpush1.bf16.msra.mxu0 %v4797
        %5104 = vmatprep.subr.bf16.mxu0 0
        %5105 = vmatpush1.bf16.msra.mxu0 %v4798
        %5106 = vmatprep.mubr.bf16.mxu0 %v4418
        %5107 = vmatmul.mubr.bf16.gmra.mrb[0].mxu0 %v4417
        %v5108 = vpop.f32.mrb[0].mxu0
        %v5109 = vadd.f32 %v5044, %v5108
        %v5110 = vpop.f32.mrb[0].mxu0
        %v5111 = vpop.f32.mrb[0].mxu0
        %v5112 = vadd.f32 %v5047, %v5111
        %v5113 = vpop.f32.mrb[0].mxu0
        %5114 = vmatprep.mubr.bf16.mxu0 %v4427
        %5115 = vmatmul.mubr.bf16.gmra.mrb[0].mxu0 %v4426
        %v5116 = vpop.f32.mrb[0].mxu0
        %v5117 = vadd.f32 %v5052, %v5116
        %v5118 = vpop.f32.mrb[0].mxu0
        %v5119 = vpop.f32.mrb[0].mxu0
        %v5120 = vadd.f32 %v5055, %v5119
        %v5121 = vpop.f32.mrb[0].mxu0
        %5122 = vmatprep.mubr.bf16.mxu0 %v4436
        %5123 = vmatmul.mubr.bf16.gmra.mrb[0].mxu0 %v4435
        %v5124 = vpop.f32.mrb[0].mxu0
        %v5125 = vadd.f32 %v5060, %v5124
        %v5126 = vpop.f32.mrb[0].mxu0
        %v5127 = vpop.f32.mrb[0].mxu0
        %v5128 = vadd.f32 %v5063, %v5127
        %v5129 = vpop.f32.mrb[0].mxu0
        %5130 = vmatprep.mubr.bf16.mxu0 %v4445
        %5131 = vmatmul.mubr.bf16.gmra.mrb[0].mxu0 %v4444
        %v5132 = vpop.f32.mrb[0].mxu0
        %v5133 = vadd.f32 %v5068, %v5132
        %v5134 = vpop.f32.mrb[0].mxu0
        %v5135 = vpop.f32.mrb[0].mxu0
        %v5136 = vadd.f32 %v5071, %v5135
        %v5137 = vpop.f32.mrb[0].mxu0
        %5138 = vdwg.mxu0
        %5139 = vmatprep.subr.bf16.mxu0 0
        %5140 = vmatpush1.bf16.msra.mxu0 %v4799
        %5141 = vmatprep.subr.bf16.mxu0 0
        %5142 = vmatpush1.bf16.msra.mxu0 %v4800
        %5143 = vmatprep.subr.bf16.mxu0 0
        %5144 = vmatpush1.bf16.msra.mxu0 %v4801
        %5145 = vmatprep.subr.bf16.mxu0 0
        %5146 = vmatpush1.bf16.msra.mxu0 %v4802
        %5147 = vmatprep.subr.bf16.mxu0 0
        %5148 = vmatpush1.bf16.msra.mxu0 %v4803
        %5149 = vmatprep.subr.bf16.mxu0 0
        %5150 = vmatpush1.bf16.msra.mxu0 %v4804
        %5151 = vmatprep.subr.bf16.mxu0 0
        %5152 = vmatpush1.bf16.msra.mxu0 %v4805
        %5153 = vmatprep.subr.bf16.mxu0 0
        %5154 = vmatpush1.bf16.msra.mxu0 %v4806
        %5155 = vmatprep.subr.bf16.mxu0 0
        %5156 = vmatpush1.bf16.msra.mxu0 0
        %5157 = vmatprep.subr.bf16.mxu0 0
        %5158 = vmatpush1.bf16.msra.mxu0 0
        %5159 = vmatprep.subr.bf16.mxu0 0
        %5160 = vmatpush1.bf16.msra.mxu0 0
        %5161 = vmatprep.subr.bf16.mxu0 0
        %5162 = vmatpush1.bf16.msra.mxu0 0
        %5163 = vmatprep.subr.bf16.mxu0 0
        %5164 = vmatpush1.bf16.msra.mxu0 0
        %5165 = vmatprep.subr.bf16.mxu0 0
        %5166 = vmatpush1.bf16.msra.mxu0 0
        %5167 = vmatprep.subr.bf16.mxu0 0
        %5168 = vmatpush1.bf16.msra.mxu0 0
        %5169 = vmatprep.subr.bf16.mxu0 0
        %5170 = vmatpush1.bf16.msra.mxu0 0
        %5171 = vmatprep.mubr.bf16.mxu0 0
        %5172 = vmatmul.mubr.bf16.gmra.mrb[0].mxu0 %v4419
        %v5173 = vpop.f32.mrb[0].mxu0
        %v5174 = vadd.f32 %v5109, %v5173
        %v5175 = vpop.f32.mrb[0].mxu0
        %v5176 = vpop.f32.mrb[0].mxu0
        %v5177 = vadd.f32 %v5112, %v5176
        %v5178 = vpop.f32.mrb[0].mxu0
        %5179 = vmatprep.mubr.bf16.mxu0 0
        %5180 = vmatmul.mubr.bf16.gmra.mrb[0].mxu0 %v4428
        %v5181 = vpop.f32.mrb[0].mxu0
        %v5182 = vadd.f32 %v5117, %v5181
        %v5183 = vpop.f32.mrb[0].mxu0
        %v5184 = vpop.f32.mrb[0].mxu0
        %v5185 = vadd.f32 %v5120, %v5184
        %v5186 = vpop.f32.mrb[0].mxu0
        %5187 = vmatprep.mubr.bf16.mxu0 0
        %5188 = vmatmul.mubr.bf16.gmra.mrb[0].mxu0 %v4437
        %v5189 = vpop.f32.mrb[0].mxu0
        %v5190 = vadd.f32 %v5125, %v5189
        %v5191 = vpop.f32.mrb[0].mxu0
        %v5192 = vpop.f32.mrb[0].mxu0
        %v5193 = vadd.f32 %v5128, %v5192
        %v5194 = vpop.f32.mrb[0].mxu0
        %5195 = vmatprep.mubr.bf16.mxu0 0
        %5196 = vmatmul.mubr.bf16.gmra.mrb[0].mxu0 %v4446
        %v5197 = vpop.f32.mrb[0].mxu0
        %v5198 = vadd.f32 %v5133, %v5197
        %v5199 = vpop.f32.mrb[0].mxu0
        %v5200 = vpop.f32.mrb[0].mxu0
        %v5201 = vadd.f32 %v5136, %v5200
        %v5202 = vpop.f32.mrb[0].mxu0
        %5203 = vdwg.mxu0
        %v5204 = vlaneseq
        %v5205 = vshrl.u32 %v5204, 7
        %v5206 = vsub.s32 0, %v5205
        %v5207 = vrot.slane %v603, %v5206
        %v5208 = vmul.f32 %v5174, %v5207
        %v5209 = vmul.f32 %v5177, %v5207
        %v5210 = vmul.f32 %v5182, %v5207
        %v5211 = vmul.f32 %v5185, %v5207
        %v5212 = vmul.f32 %v5190, %v5207
        %v5213 = vmul.f32 %v5193, %v5207
        %v5214 = vmul.f32 %v5198, %v5207
        %v5215 = vmul.f32 %v5201, %v5207
        %v5216 = vlaneseq
        %v5217 = vshrl.u32 %v5216, 7
        %v5218 = vsub.s32 1, %v5217
        %v5219 = vrot.slane %v603, %v5218
        %v5220 = vadd.f32 %v5208, %v5219
        %v5221 = vadd.f32 %v5209, %v5219
        %v5222 = vadd.f32 %v5210, %v5219
        %v5223 = vadd.f32 %v5211, %v5219
        %v5224 = vadd.f32 %v5212, %v5219
        %v5225 = vadd.f32 %v5213, %v5219
        %v5226 = vadd.f32 %v5214, %v5219
        %v5227 = vadd.f32 %v5215, %v5219
        %v5228 = vadd.f32 %v5220, %v2968
        %v5229 = vadd.f32 %v5221, %v2969
        %v5230 = vadd.f32 %v5222, %v2970
        %v5231 = vadd.f32 %v5223, %v2971
        %v5232 = vadd.f32 %v5224, %v2972
        %v5233 = vadd.f32 %v5225, %v2973
        %v5234 = vadd.f32 %v5226, %v2974
        %v5235 = vadd.f32 %v5227, %v2975
        %v5236 = vmax.f32 %v5228, 0.0
        %v5237 = vmax.f32 %v5229, 0.0
        %v5238 = vmax.f32 %v5230, 0.0
        %v5239 = vmax.f32 %v5231, 0.0
        %v5240 = vmax.f32 %v5232, 0.0
        %v5241 = vmax.f32 %v5233, 0.0
        %v5242 = vmax.f32 %v5234, 0.0
        %v5243 = vmax.f32 %v5235, 0.0
        %v5244 = vpack.c.bf16 %v5237, %v5236
        %v5245 = vpack.c.bf16 %v5239, %v5238
        %v5246 = vpack.c.bf16 %v5241, %v5240
        %v5247 = vpack.c.bf16 %v5243, %v5242
        %v5252 = vunpack.c.l.b16 %v5244
        %v5253 = vunpack.c.h.b16 %v5244
        %v5254 = vunpack.c.l.b16 %v5245
        %v5255 = vunpack.c.h.b16 %v5245
        %v5256 = vunpack.c.l.b16 %v5246
        %v5257 = vunpack.c.h.b16 %v5246
        %v5258 = vunpack.c.l.b16 %v5247
        %v5259 = vunpack.c.h.b16 %v5247
        %v5260 = vpack.c.b16 %v5252, %v5252
        %v5261 = vpack.c.b16 %v5253, %v5253
        %v5262 = vpack.c.b16 %v5254, %v5254
        %v5263 = vpack.c.b16 %v5255, %v5255
        %v5264 = vpack.c.b16 %v5256, %v5256
        %v5265 = vpack.c.b16 %v5257, %v5257
        %v5266 = vpack.c.b16 %v5258, %v5258
        %v5267 = vpack.c.b16 %v5259, %v5259
        %5276 = vst [vmem:[%s281] sm:$0xf] %v5260
        %5277 = vst [vmem:[%s281 + $0x4] sm:$0xf] %v5261
        %5278 = vst [vmem:[%s281 + $0x8] sm:$0xf] %v5262
        %5279 = vst [vmem:[%s281 + $0xc] sm:$0xf] %v5263
        %5280 = vst [vmem:[%s281 + $0x10] sm:$0xf] %v5264
        %5281 = vst [vmem:[%s281 + $0x14] sm:$0xf] %v5265
        %5282 = vst [vmem:[%s281 + $0x18] sm:$0xf] %v5266
        %5283 = vst [vmem:[%s281 + $0x1c] sm:$0xf] %v5267
        %p5284 = scmp.lt.s32.totalorder %s19, 1
        %s5285 = scalar_select %p5284, %s19, 1
        %s5286 = smul.addr %s5285, 8
        %s5287 = smul.addr %s5286, 4
        %s5288 = scalar_lea.vmem %s5, %s5287
        // Predicated region
        $region57: #{resnlh_forward.2} parent=39 // pred_check
          %p5289 = pneg %p147
        $region58: #{resnlh_forward.2} parent=39 // pred_check_branch
          %5291 = sbr.rel (%p5289) target = $region60
        $region59: #{resnlh_forward.2} parent=39 // pred_region
          _
        $region60: #{resnlh_forward.2} parent=39 // pred_fallthru
          _
      $region40: #{resnlh_forward.2} parent=5 // pred_fallthru
        _
      %p5292 = scmp.le.s32.totalorder 2, %s14
      // Predicated region
      $region61: #{resnlh_forward.2} parent=5 // pred_check
        %p5293 = pneg %p5292
      $region62: #{resnlh_forward.2} parent=5 // pred_check_branch
        %5295 = sbr.rel (%p5293) target = $region64
      $region63: #{resnlh_forward.2} parent=5 // pred_region
        %s5296 = ssub.s32 %s14, 2
        // Predicated region
        $region65: #{resnlh_forward.2} parent=63 // pred_check
          %p5297 = pneg %p153
        $region66: #{resnlh_forward.2} parent=63 // pred_check_branch
          %5299 = sbr.rel (%p5297) target = $region68
        $region67: #{resnlh_forward.2} parent=63 // pred_region
          %p5300 = scmp.lt.s32.totalorder %s20, 1
          %s5301 = scalar_select %p5300, %s20, 1
          %s5302 = smul.addr %s5301, 8
          %s5303 = smul.addr %s5302, 4
          %s5304 = scalar_lea.vmem %s5, %s5303
        $region68: #{resnlh_forward.2} parent=63 // pred_fallthru
          _
      $region64: #{resnlh_forward.2} parent=5 // pred_fallthru
        _
    $region6: #{resnlh_forward.2} parent=1 // loop_footer
      %s18 = sadd.s32 1, %s14
    $region7: #{resnlh_forward.2} parent=1 // loop_footer_branch
      %13 = sbr.rel target = $region3
    $region8: #{resnlh_forward.2} parent=1 // loop_exit
      _
    %5305 = vsyncpa [#allocation4], 1
    %s5306 = scalar_lea.sflag [#allocation4], 1
    %5307 = vsyncpa %s5306, 1
    %5308 = vsyncpa [#allocation6], 1
    %5309 = vsyncpa [#allocation9], 1

// kernel: resnlh_forward.3
$region0: #{resnlh_forward.3}
  #allocation0 [shape = 'u32[]', space=smem, size = 0x4, offset = 0x4, fixed_abs, tag = 'smem constant byte address 0x4 - core index']
  #allocation1 [shape = 'u32[144,128]{1,0:T(1,128)}', space=vmem, size = 0x12000, scoped, tag = 'internal scratch']
  %s0 = inlined_call_operand.vmem [shape: bf16[8,8192], index: 0, kind: input, shape index: {}]
  %s1 = inlined_call_operand.vmem [shape: bf16[8192,128], index: 1, kind: input, shape index: {}]
  %s2 = inlined_call_operand.vmem [shape: f32[1,128], index: 2, kind: input, shape index: {}]
  %s3 = inlined_call_operand.vmem [shape: f32[8,128], index: 3, kind: output, shape index: {}]
  %s4 = sld [smem:[#allocation0]]
  $region22: #{resnlh_forward.3} parent=0
    _
  %s6 = ssub.s32 1, %s4
  %s7 = scalar_select 0, %s6, %s4
  // Predicated region
  $region2: #{resnlh_forward.3} parent=0 // pred_check
    _
  $region3: #{resnlh_forward.3} parent=0 // pred_check_branch
    %9 = sbr.rel (0) target = $region5
  $region4: #{resnlh_forward.3} parent=0 // pred_region
    _
  $region5: #{resnlh_forward.3} parent=0 // pred_fallthru
    _
  // Predicated region
  $region6: #{resnlh_forward.3} parent=0 // pred_check
    _
  $region7: #{resnlh_forward.3} parent=0 // pred_check_branch
    %11 = sbr.rel (0) target = $region9
  $region8: #{resnlh_forward.3} parent=0 // pred_region
    _
  $region9: #{resnlh_forward.3} parent=0 // pred_fallthru
    _
  // Predicated region
  $region10: #{resnlh_forward.3} parent=0 // pred_check
    _
  $region11: #{resnlh_forward.3} parent=0 // pred_check_branch
    %13 = sbr.rel (0) target = $region13
  $region12: #{resnlh_forward.3} parent=0 // pred_region
    _
  $region13: #{resnlh_forward.3} parent=0 // pred_fallthru
    _
  %v15 = vld [vmem:[%s0] sm:$0xff]
  %v16 = vld [vmem:[%s0 + $0x8] sm:$0xff]
  %v17 = vld [vmem:[%s0 + $0x10] sm:$0xff]
  %v18 = vld [vmem:[%s0 + $0x18] sm:$0xff]
  %v19 = vld [vmem:[%s0 + $0x20] sm:$0xff]
  %v20 = vld [vmem:[%s0 + $0x28] sm:$0xff]
  %v21 = vld [vmem:[%s0 + $0x30] sm:$0xff]
  %v22 = vld [vmem:[%s0 + $0x38] sm:$0xff]
  %v23 = vld [vmem:[%s0 + $0x40] sm:$0xff]
  %v24 = vld [vmem:[%s0 + $0x48] sm:$0xff]
  %v25 = vld [vmem:[%s0 + $0x50] sm:$0xff]
  %v26 = vld [vmem:[%s0 + $0x58] sm:$0xff]
  %v27 = vld [vmem:[%s0 + $0x60] sm:$0xff]
  %v28 = vld [vmem:[%s0 + $0x68] sm:$0xff]
  %v29 = vld [vmem:[%s0 + $0x70] sm:$0xff]
  %v30 = vld [vmem:[%s0 + $0x78] sm:$0xff]
  %v31 = vld [vmem:[%s0 + $0x80] sm:$0xff]
  %v32 = vld [vmem:[%s0 + $0x88] sm:$0xff]
  %v33 = vld [vmem:[%s0 + $0x90] sm:$0xff]
  %v34 = vld [vmem:[%s0 + $0x98] sm:$0xff]
  %v35 = vld [vmem:[%s0 + $0xa0] sm:$0xff]
  %v36 = vld [vmem:[%s0 + $0xa8] sm:$0xff]
  %v37 = vld [vmem:[%s0 + $0xb0] sm:$0xff]
  %v38 = vld [vmem:[%s0 + $0xb8] sm:$0xff]
  %v39 = vld [vmem:[%s0 + $0xc0] sm:$0xff]
  %v40 = vld [vmem:[%s0 + $0xc8] sm:$0xff]
  %v41 = vld [vmem:[%s0 + $0xd0] sm:$0xff]
  %v42 = vld [vmem:[%s0 + $0xd8] sm:$0xff]
  %v43 = vld [vmem:[%s0 + $0xe0] sm:$0xff]
  %v44 = vld [vmem:[%s0 + $0xe8] sm:$0xff]
  %v45 = vld [vmem:[%s0 + $0xf0] sm:$0xff]
  %v46 = vld [vmem:[%s0 + $0xf8] sm:$0xff]
  %v47 = vld [vmem:[%s1] sm:$0xf]
  %v48 = vld [vmem:[%s1 + $0x4] sm:$0xf]
  %v49 = vld [vmem:[%s1 + $0x8] sm:$0xf]
  %v50 = vld [vmem:[%s1 + $0xc] sm:$0xf]
  %v51 = vld [vmem:[%s1 + $0x10] sm:$0xf]
  %v52 = vld [vmem:[%s1 + $0x14] sm:$0xf]
  %v53 = vld [vmem:[%s1 + $0x18] sm:$0xf]
  %v54 = vld [vmem:[%s1 + $0x1c] sm:$0xf]
  %v55 = vld [vmem:[%s1 + $0x20] sm:$0xf]
  %v56 = vld [vmem:[%s1 + $0x24] sm:$0xf]
  %v57 = vld [vmem:[%s1 + $0x28] sm:$0xf]
  %v58 = vld [vmem:[%s1 + $0x2c] sm:$0xf]
  %v59 = vld [vmem:[%s1 + $0x30] sm:$0xf]
  %v60 = vld [vmem:[%s1 + $0x34] sm:$0xf]
  %v61 = vld [vmem:[%s1 + $0x38] sm:$0xf]
  %v62 = vld [vmem:[%s1 + $0x3c] sm:$0xf]
  %v63 = vld [vmem:[%s1 + $0x40] sm:$0xf]
  %v64 = vld [vmem:[%s1 + $0x44] sm:$0xf]
  %v65 = vld [vmem:[%s1 + $0x48] sm:$0xf]
  %v66 = vld [vmem:[%s1 + $0x4c] sm:$0xf]
  %v67 = vld [vmem:[%s1 + $0x50] sm:$0xf]
  %v68 = vld [vmem:[%s1 + $0x54] sm:$0xf]
  %v69 = vld [vmem:[%s1 + $0x58] sm:$0xf]
  %v70 = vld [vmem:[%s1 + $0x5c] sm:$0xf]
  %v71 = vld [vmem:[%s1 + $0x60] sm:$0xf]
  %v72 = vld [vmem:[%s1 + $0x64] sm:$0xf]
  %v73 = vld [vmem:[%s1 + $0x68] sm:$0xf]
  %v74 = vld [vmem:[%s1 + $0x6c] sm:$0xf]
  %v75 = vld [vmem:[%s1 + $0x70] sm:$0xf]
  %v76 = vld [vmem:[%s1 + $0x74] sm:$0xf]
  %v77 = vld [vmem:[%s1 + $0x78] sm:$0xf]
  %v78 = vld [vmem:[%s1 + $0x7c] sm:$0xf]
  %v79 = vld [vmem:[%s1 + $0x80] sm:$0xf]
  %v80 = vld [vmem:[%s1 + $0x84] sm:$0xf]
  %v81 = vld [vmem:[%s1 + $0x88] sm:$0xf]
  %v82 = vld [vmem:[%s1 + $0x8c] sm:$0xf]
  %v83 = vld [vmem:[%s1 + $0x90] sm:$0xf]
  %v84 = vld [vmem:[%s1 + $0x94] sm:$0xf]
  %v85 = vld [vmem:[%s1 + $0x98] sm:$0xf]
  %v86 = vld [vmem:[%s1 + $0x9c] sm:$0xf]
  %v87 = vld [vmem:[%s1 + $0xa0] sm:$0xf]
  %v88 = vld [vmem:[%s1 + $0xa4] sm:$0xf]
  %v89 = vld [vmem:[%s1 + $0xa8] sm:$0xf]
  %v90 = vld [vmem:[%s1 + $0xac] sm:$0xf]
  %v91 = vld [vmem:[%s1 + $0xb0] sm:$0xf]
  %v92 = vld [vmem:[%s1 + $0xb4] sm:$0xf]
  %v93 = vld [vmem:[%s1 + $0xb8] sm:$0xf]
  %v94 = vld [vmem:[%s1 + $0xbc] sm:$0xf]
  %v95 = vld [vmem:[%s1 + $0xc0] sm:$0xf]
  %v96 = vld [vmem:[%s1 + $0xc4] sm:$0xf]
  %v97 = vld [vmem:[%s1 + $0xc8] sm:$0xf]
  %v98 = vld [vmem:[%s1 + $0xcc] sm:$0xf]
  %v99 = vld [vmem:[%s1 + $0xd0] sm:$0xf]
  %v100 = vld [vmem:[%s1 + $0xd4] sm:$0xf]
  %v101 = vld [vmem:[%s1 + $0xd8] sm:$0xf]
  %v102 = vld [vmem:[%s1 + $0xdc] sm:$0xf]
  %v103 = vld [vmem:[%s1 + $0xe0] sm:$0xf]
  %v104 = vld [vmem:[%s1 + $0xe4] sm:$0xf]
  %v105 = vld [vmem:[%s1 + $0xe8] sm:$0xf]
  %v106 = vld [vmem:[%s1 + $0xec] sm:$0xf]
  %v107 = vld [vmem:[%s1 + $0xf0] sm:$0xf]
  %v108 = vld [vmem:[%s1 + $0xf4] sm:$0xf]
  %v109 = vld [vmem:[%s1 + $0xf8] sm:$0xf]
  %v110 = vld [vmem:[%s1 + $0xfc] sm:$0xf]
  %v111 = vld [vmem:[%s1 + $0x100] sm:$0xf]
  %v112 = vld [vmem:[%s1 + $0x104] sm:$0xf]
  %v113 = vld [vmem:[%s1 + $0x108] sm:$0xf]
  %v114 = vld [vmem:[%s1 + $0x10c] sm:$0xf]
  %v115 = vld [vmem:[%s1 + $0x110] sm:$0xf]
  %v116 = vld [vmem:[%s1 + $0x114] sm:$0xf]
  %v117 = vld [vmem:[%s1 + $0x118] sm:$0xf]
  %v118 = vld [vmem:[%s1 + $0x11c] sm:$0xf]
  %v119 = vld [vmem:[%s1 + $0x120] sm:$0xf]
  %v120 = vld [vmem:[%s1 + $0x124] sm:$0xf]
  %v121 = vld [vmem:[%s1 + $0x128] sm:$0xf]
  %v122 = vld [vmem:[%s1 + $0x12c] sm:$0xf]
  %v123 = vld [vmem:[%s1 + $0x130] sm:$0xf]
  %v124 = vld [vmem:[%s1 + $0x134] sm:$0xf]
  %v125 = vld [vmem:[%s1 + $0x138] sm:$0xf]
  %v126 = vld [vmem:[%s1 + $0x13c] sm:$0xf]
  %v127 = vld [vmem:[%s1 + $0x140] sm:$0xf]
  %v128 = vld [vmem:[%s1 + $0x144] sm:$0xf]
  %v129 = vld [vmem:[%s1 + $0x148] sm:$0xf]
  %v130 = vld [vmem:[%s1 + $0x14c] sm:$0xf]
  %v131 = vld [vmem:[%s1 + $0x150] sm:$0xf]
  %v132 = vld [vmem:[%s1 + $0x154] sm:$0xf]
  %v133 = vld [vmem:[%s1 + $0x158] sm:$0xf]
  %v134 = vld [vmem:[%s1 + $0x15c] sm:$0xf]
  %v135 = vld [vmem:[%s1 + $0x160] sm:$0xf]
  %v136 = vld [vmem:[%s1 + $0x164] sm:$0xf]
  %v137 = vld [vmem:[%s1 + $0x168] sm:$0xf]
  %v138 = vld [vmem:[%s1 + $0x16c] sm:$0xf]
  %v139 = vld [vmem:[%s1 + $0x170] sm:$0xf]
  %v140 = vld [vmem:[%s1 + $0x174] sm:$0xf]
  %v141 = vld [vmem:[%s1 + $0x178] sm:$0xf]
  %v142 = vld [vmem:[%s1 + $0x17c] sm:$0xf]
  %v143 = vld [vmem:[%s1 + $0x180] sm:$0xf]
  %v144 = vld [vmem:[%s1 + $0x184] sm:$0xf]
  %v145 = vld [vmem:[%s1 + $0x188] sm:$0xf]
  %v146 = vld [vmem:[%s1 + $0x18c] sm:$0xf]
  %v147 = vld [vmem:[%s1 + $0x190] sm:$0xf]
  %v148 = vld [vmem:[%s1 + $0x194] sm:$0xf]
  %v149 = vld [vmem:[%s1 + $0x198] sm:$0xf]
  %v150 = vld [vmem:[%s1 + $0x19c] sm:$0xf]
  %v151 = vld [vmem:[%s1 + $0x1a0] sm:$0xf]
  %v152 = vld [vmem:[%s1 + $0x1a4] sm:$0xf]
  %v153 = vld [vmem:[%s1 + $0x1a8] sm:$0xf]
  %v154 = vld [vmem:[%s1 + $0x1ac] sm:$0xf]
  %v155 = vld [vmem:[%s1 + $0x1b0] sm:$0xf]
  %v156 = vld [vmem:[%s1 + $0x1b4] sm:$0xf]
  %v157 = vld [vmem:[%s1 + $0x1b8] sm:$0xf]
  %v158 = vld [vmem:[%s1 + $0x1bc] sm:$0xf]
  %v159 = vld [vmem:[%s1 + $0x1c0] sm:$0xf]
  %v160 = vld [vmem:[%s1 + $0x1c4] sm:$0xf]
  %v161 = vld [vmem:[%s1 + $0x1c8] sm:$0xf]
  %v162 = vld [vmem:[%s1 + $0x1cc] sm:$0xf]
  %v163 = vld [vmem:[%s1 + $0x1d0] sm:$0xf]
  %v164 = vld [vmem:[%s1 + $0x1d4] sm:$0xf]
  %v165 = vld [vmem:[%s1 + $0x1d8] sm:$0xf]
  %v166 = vld [vmem:[%s1 + $0x1dc] sm:$0xf]
  %v167 = vld [vmem:[%s1 + $0x1e0] sm:$0xf]
  %v168 = vld [vmem:[%s1 + $0x1e4] sm:$0xf]
  %v169 = vld [vmem:[%s1 + $0x1e8] sm:$0xf]
  %v170 = vld [vmem:[%s1 + $0x1ec] sm:$0xf]
  %v171 = vld [vmem:[%s1 + $0x1f0] sm:$0xf]
  %v172 = vld [vmem:[%s1 + $0x1f4] sm:$0xf]
  %v173 = vld [vmem:[%s1 + $0x1f8] sm:$0xf]
  %v174 = vld [vmem:[%s1 + $0x1fc] sm:$0xf]
  %v175 = vld [vmem:[%s1 + $0x200] sm:$0xf]
  %v176 = vld [vmem:[%s1 + $0x204] sm:$0xf]
  %v177 = vld [vmem:[%s1 + $0x208] sm:$0xf]
  %v178 = vld [vmem:[%s1 + $0x20c] sm:$0xf]
  %v179 = vld [vmem:[%s1 + $0x210] sm:$0xf]
  %v180 = vld [vmem:[%s1 + $0x214] sm:$0xf]
  %v181 = vld [vmem:[%s1 + $0x218] sm:$0xf]
  %v182 = vld [vmem:[%s1 + $0x21c] sm:$0xf]
  %v183 = vld [vmem:[%s1 + $0x220] sm:$0xf]
  %v184 = vld [vmem:[%s1 + $0x224] sm:$0xf]
  %v185 = vld [vmem:[%s1 + $0x228] sm:$0xf]
  %v186 = vld [vmem:[%s1 + $0x22c] sm:$0xf]
  %v187 = vld [vmem:[%s1 + $0x230] sm:$0xf]
  %v188 = vld [vmem:[%s1 + $0x234] sm:$0xf]
  %v189 = vld [vmem:[%s1 + $0x238] sm:$0xf]
  %v190 = vld [vmem:[%s1 + $0x23c] sm:$0xf]
  %v191 = vld [vmem:[%s1 + $0x240] sm:$0xf]
  %v192 = vld [vmem:[%s1 + $0x244] sm:$0xf]
  %v193 = vld [vmem:[%s1 + $0x248] sm:$0xf]
  %v194 = vld [vmem:[%s1 + $0x24c] sm:$0xf]
  %v195 = vld [vmem:[%s1 + $0x250] sm:$0xf]
  %v196 = vld [vmem:[%s1 + $0x254] sm:$0xf]
  %v197 = vld [vmem:[%s1 + $0x258] sm:$0xf]
  %v198 = vld [vmem:[%s1 + $0x25c] sm:$0xf]
  %v199 = vld [vmem:[%s1 + $0x260] sm:$0xf]
  %v200 = vld [vmem:[%s1 + $0x264] sm:$0xf]
  %v201 = vld [vmem:[%s1 + $0x268] sm:$0xf]
  %v202 = vld [vmem:[%s1 + $0x26c] sm:$0xf]
  %v203 = vld [vmem:[%s1 + $0x270] sm:$0xf]
  %v204 = vld [vmem:[%s1 + $0x274] sm:$0xf]
  %v205 = vld [vmem:[%s1 + $0x278] sm:$0xf]
  %v206 = vld [vmem:[%s1 + $0x27c] sm:$0xf]
  %v207 = vld [vmem:[%s1 + $0x280] sm:$0xf]
  %v208 = vld [vmem:[%s1 + $0x284] sm:$0xf]
  %v209 = vld [vmem:[%s1 + $0x288] sm:$0xf]
  %v210 = vld [vmem:[%s1 + $0x28c] sm:$0xf]
  %v211 = vld [vmem:[%s1 + $0x290] sm:$0xf]
  %v212 = vld [vmem:[%s1 + $0x294] sm:$0xf]
  %v213 = vld [vmem:[%s1 + $0x298] sm:$0xf]
  %v214 = vld [vmem:[%s1 + $0x29c] sm:$0xf]
  %v215 = vld [vmem:[%s1 + $0x2a0] sm:$0xf]
  %v216 = vld [vmem:[%s1 + $0x2a4] sm:$0xf]
  %v217 = vld [vmem:[%s1 + $0x2a8] sm:$0xf]
  %v218 = vld [vmem:[%s1 + $0x2ac] sm:$0xf]
  %v219 = vld [vmem:[%s1 + $0x2b0] sm:$0xf]
  %v220 = vld [vmem:[%s1 + $0x2b4] sm:$0xf]
  %v221 = vld [vmem:[%s1 + $0x2b8] sm:$0xf]
  %v222 = vld [vmem:[%s1 + $0x2bc] sm:$0xf]
  %v223 = vld [vmem:[%s1 + $0x2c0] sm:$0xf]
  %v224 = vld [vmem:[%s1 + $0x2c4] sm:$0xf]
  %v225 = vld [vmem:[%s1 + $0x2c8] sm:$0xf]
  %v226 = vld [vmem:[%s1 + $0x2cc] sm:$0xf]
  %v227 = vld [vmem:[%s1 + $0x2d0] sm:$0xf]
  %v228 = vld [vmem:[%s1 + $0x2d4] sm:$0xf]
  %v229 = vld [vmem:[%s1 + $0x2d8] sm:$0xf]
  %v230 = vld [vmem:[%s1 + $0x2dc] sm:$0xf]
  %v231 = vld [vmem:[%s1 + $0x2e0] sm:$0xf]
  %v232 = vld [vmem:[%s1 + $0x2e4] sm:$0xf]
  %v233 = vld [vmem:[%s1 + $0x2e8] sm:$0xf]
  %v234 = vld [vmem:[%s1 + $0x2ec] sm:$0xf]
  %v235 = vld [vmem:[%s1 + $0x2f0] sm:$0xf]
  %v236 = vld [vmem:[%s1 + $0x2f4] sm:$0xf]
  %v237 = vld [vmem:[%s1 + $0x2f8] sm:$0xf]
  %v238 = vld [vmem:[%s1 + $0x2fc] sm:$0xf]
  %v239 = vld [vmem:[%s1 + $0x300] sm:$0xf]
  %v240 = vld [vmem:[%s1 + $0x304] sm:$0xf]
  %v241 = vld [vmem:[%s1 + $0x308] sm:$0xf]
  %v242 = vld [vmem:[%s1 + $0x30c] sm:$0xf]
  %v243 = vld [vmem:[%s1 + $0x310] sm:$0xf]
  %v244 = vld [vmem:[%s1 + $0x314] sm:$0xf]
  %v245 = vld [vmem:[%s1 + $0x318] sm:$0xf]
  %v246 = vld [vmem:[%s1 + $0x31c] sm:$0xf]
  %v247 = vld [vmem:[%s1 + $0x320] sm:$0xf]
  %v248 = vld [vmem:[%s1 + $0x324] sm:$0xf]
  %v249 = vld [vmem:[%s1 + $0x328] sm:$0xf]
  %v250 = vld [vmem:[%s1 + $0x32c] sm:$0xf]
  %v251 = vld [vmem:[%s1 + $0x330] sm:$0xf]
  %v252 = vld [vmem:[%s1 + $0x334] sm:$0xf]
  %v253 = vld [vmem:[%s1 + $0x338] sm:$0xf]
  %v254 = vld [vmem:[%s1 + $0x33c] sm:$0xf]
  %v255 = vld [vmem:[%s1 + $0x340] sm:$0xf]
  %v256 = vld [vmem:[%s1 + $0x344] sm:$0xf]
  %v257 = vld [vmem:[%s1 + $0x348] sm:$0xf]
  %v258 = vld [vmem:[%s1 + $0x34c] sm:$0xf]
  %v259 = vld [vmem:[%s1 + $0x350] sm:$0xf]
  %v260 = vld [vmem:[%s1 + $0x354] sm:$0xf]
  %v261 = vld [vmem:[%s1 + $0x358] sm:$0xf]
  %v262 = vld [vmem:[%s1 + $0x35c] sm:$0xf]
  %v263 = vld [vmem:[%s1 + $0x360] sm:$0xf]
  %v264 = vld [vmem:[%s1 + $0x364] sm:$0xf]
  %v265 = vld [vmem:[%s1 + $0x368] sm:$0xf]
  %v266 = vld [vmem:[%s1 + $0x36c] sm:$0xf]
  %v267 = vld [vmem:[%s1 + $0x370] sm:$0xf]
  %v268 = vld [vmem:[%s1 + $0x374] sm:$0xf]
  %v269 = vld [vmem:[%s1 + $0x378] sm:$0xf]
  %v270 = vld [vmem:[%s1 + $0x37c] sm:$0xf]
  %v271 = vld [vmem:[%s1 + $0x380] sm:$0xf]
  %v272 = vld [vmem:[%s1 + $0x384] sm:$0xf]
  %v273 = vld [vmem:[%s1 + $0x388] sm:$0xf]
  %v274 = vld [vmem:[%s1 + $0x38c] sm:$0xf]
  %v275 = vld [vmem:[%s1 + $0x390] sm:$0xf]
  %v276 = vld [vmem:[%s1 + $0x394] sm:$0xf]
  %v277 = vld [vmem:[%s1 + $0x398] sm:$0xf]
  %v278 = vld [vmem:[%s1 + $0x39c] sm:$0xf]
  %v279 = vld [vmem:[%s1 + $0x3a0] sm:$0xf]
  %v280 = vld [vmem:[%s1 + $0x3a4] sm:$0xf]
  %v281 = vld [vmem:[%s1 + $0x3a8] sm:$0xf]
  %v282 = vld [vmem:[%s1 + $0x3ac] sm:$0xf]
  %v283 = vld [vmem:[%s1 + $0x3b0] sm:$0xf]
  %v284 = vld [vmem:[%s1 + $0x3b4] sm:$0xf]
  %v285 = vld [vmem:[%s1 + $0x3b8] sm:$0xf]
  %v286 = vld [vmem:[%s1 + $0x3bc] sm:$0xf]
  %v287 = vld [vmem:[%s1 + $0x3c0] sm:$0xf]
  %v288 = vld [vmem:[%s1 + $0x3c4] sm:$0xf]
  %v289 = vld [vmem:[%s1 + $0x3c8] sm:$0xf]
  %v290 = vld [vmem:[%s1 + $0x3cc] sm:$0xf]
  %v291 = vld [vmem:[%s1 + $0x3d0] sm:$0xf]
  %v292 = vld [vmem:[%s1 + $0x3d4] sm:$0xf]
  %v293 = vld [vmem:[%s1 + $0x3d8] sm:$0xf]
  %v294 = vld [vmem:[%s1 + $0x3dc] sm:$0xf]
  %v295 = vld [vmem:[%s1 + $0x3e0] sm:$0xf]
  %v296 = vld [vmem:[%s1 + $0x3e4] sm:$0xf]
  %v297 = vld [vmem:[%s1 + $0x3e8] sm:$0xf]
  %v298 = vld [vmem:[%s1 + $0x3ec] sm:$0xf]
  %v299 = vld [vmem:[%s1 + $0x3f0] sm:$0xf]
  %v300 = vld [vmem:[%s1 + $0x3f4] sm:$0xf]
  %v301 = vld [vmem:[%s1 + $0x3f8] sm:$0xf]
  %v302 = vld [vmem:[%s1 + $0x3fc] sm:$0xf]
  %v303 = vld [vmem:[%s1 + $0x400] sm:$0xf]
  %v304 = vld [vmem:[%s1 + $0x404] sm:$0xf]
  %v305 = vld [vmem:[%s1 + $0x408] sm:$0xf]
  %v306 = vld [vmem:[%s1 + $0x40c] sm:$0xf]
  %v307 = vld [vmem:[%s1 + $0x410] sm:$0xf]
  %v308 = vld [vmem:[%s1 + $0x414] sm:$0xf]
  %v309 = vld [vmem:[%s1 + $0x418] sm:$0xf]
  %v310 = vld [vmem:[%s1 + $0x41c] sm:$0xf]
  %v311 = vld [vmem:[%s1 + $0x420] sm:$0xf]
  %v312 = vld [vmem:[%s1 + $0x424] sm:$0xf]
  %v313 = vld [vmem:[%s1 + $0x428] sm:$0xf]
  %v314 = vld [vmem:[%s1 + $0x42c] sm:$0xf]
  %v315 = vld [vmem:[%s1 + $0x430] sm:$0xf]
  %v316 = vld [vmem:[%s1 + $0x434] sm:$0xf]
  %v317 = vld [vmem:[%s1 + $0x438] sm:$0xf]
  %v318 = vld [vmem:[%s1 + $0x43c] sm:$0xf]
  %v319 = vld [vmem:[%s1 + $0x440] sm:$0xf]
  %v320 = vld [vmem:[%s1 + $0x444] sm:$0xf]
  %v321 = vld [vmem:[%s1 + $0x448] sm:$0xf]
  %v322 = vld [vmem:[%s1 + $0x44c] sm:$0xf]
  %v323 = vld [vmem:[%s1 + $0x450] sm:$0xf]
  %v324 = vld [vmem:[%s1 + $0x454] sm:$0xf]
  %v325 = vld [vmem:[%s1 + $0x458] sm:$0xf]
  %v326 = vld [vmem:[%s1 + $0x45c] sm:$0xf]
  %v327 = vld [vmem:[%s1 + $0x460] sm:$0xf]
  %v328 = vld [vmem:[%s1 + $0x464] sm:$0xf]
  %v329 = vld [vmem:[%s1 + $0x468] sm:$0xf]
  %v330 = vld [vmem:[%s1 + $0x46c] sm:$0xf]
  %v331 = vld [vmem:[%s1 + $0x470] sm:$0xf]
  %v332 = vld [vmem:[%s1 + $0x474] sm:$0xf]
  %v333 = vld [vmem:[%s1 + $0x478] sm:$0xf]
  %v334 = vld [vmem:[%s1 + $0x47c] sm:$0xf]
  %v335 = vld [vmem:[%s1 + $0x480] sm:$0xf]
  %v336 = vld [vmem:[%s1 + $0x484] sm:$0xf]
  %v337 = vld [vmem:[%s1 + $0x488] sm:$0xf]
  %v338 = vld [vmem:[%s1 + $0x48c] sm:$0xf]
  %v339 = vld [vmem:[%s1 + $0x490] sm:$0xf]
  %v340 = vld [vmem:[%s1 + $0x494] sm:$0xf]
  %v341 = vld [vmem:[%s1 + $0x498] sm:$0xf]
  %v342 = vld [vmem:[%s1 + $0x49c] sm:$0xf]
  %v343 = vld [vmem:[%s1 + $0x4a0] sm:$0xf]
  %v344 = vld [vmem:[%s1 + $0x4a4] sm:$0xf]
  %v345 = vld [vmem:[%s1 + $0x4a8] sm:$0xf]
  %v346 = vld [vmem:[%s1 + $0x4ac] sm:$0xf]
  %v347 = vld [vmem:[%s1 + $0x4b0] sm:$0xf]
  %v348 = vld [vmem:[%s1 + $0x4b4] sm:$0xf]
  %v349 = vld [vmem:[%s1 + $0x4b8] sm:$0xf]
  %v350 = vld [vmem:[%s1 + $0x4bc] sm:$0xf]
  %v351 = vld [vmem:[%s1 + $0x4c0] sm:$0xf]
  %v352 = vld [vmem:[%s1 + $0x4c4] sm:$0xf]
  %v353 = vld [vmem:[%s1 + $0x4c8] sm:$0xf]
  %v354 = vld [vmem:[%s1 + $0x4cc] sm:$0xf]
  %v355 = vld [vmem:[%s1 + $0x4d0] sm:$0xf]
  %v356 = vld [vmem:[%s1 + $0x4d4] sm:$0xf]
  %v357 = vld [vmem:[%s1 + $0x4d8] sm:$0xf]
  %v358 = vld [vmem:[%s1 + $0x4dc] sm:$0xf]
  %v359 = vld [vmem:[%s1 + $0x4e0] sm:$0xf]
  %v360 = vld [vmem:[%s1 + $0x4e4] sm:$0xf]
  %v361 = vld [vmem:[%s1 + $0x4e8] sm:$0xf]
  %v362 = vld [vmem:[%s1 + $0x4ec] sm:$0xf]
  %v363 = vld [vmem:[%s1 + $0x4f0] sm:$0xf]
  %v364 = vld [vmem:[%s1 + $0x4f4] sm:$0xf]
  %v365 = vld [vmem:[%s1 + $0x4f8] sm:$0xf]
  %v366 = vld [vmem:[%s1 + $0x4fc] sm:$0xf]
  %v367 = vld [vmem:[%s1 + $0x500] sm:$0xf]
  %v368 = vld [vmem:[%s1 + $0x504] sm:$0xf]
  %v369 = vld [vmem:[%s1 + $0x508] sm:$0xf]
  %v370 = vld [vmem:[%s1 + $0x50c] sm:$0xf]
  %v371 = vld [vmem:[%s1 + $0x510] sm:$0xf]
  %v372 = vld [vmem:[%s1 + $0x514] sm:$0xf]
  %v373 = vld [vmem:[%s1 + $0x518] sm:$0xf]
  %v374 = vld [vmem:[%s1 + $0x51c] sm:$0xf]
  %v375 = vld [vmem:[%s1 + $0x520] sm:$0xf]
  %v376 = vld [vmem:[%s1 + $0x524] sm:$0xf]
  %v377 = vld [vmem:[%s1 + $0x528] sm:$0xf]
  %v378 = vld [vmem:[%s1 + $0x52c] sm:$0xf]
  %v379 = vld [vmem:[%s1 + $0x530] sm:$0xf]
  %v380 = vld [vmem:[%s1 + $0x534] sm:$0xf]
  %v381 = vld [vmem:[%s1 + $0x538] sm:$0xf]
  %v382 = vld [vmem:[%s1 + $0x53c] sm:$0xf]
  %v383 = vld [vmem:[%s1 + $0x540] sm:$0xf]
  %v384 = vld [vmem:[%s1 + $0x544] sm:$0xf]
  %v385 = vld [vmem:[%s1 + $0x548] sm:$0xf]
  %v386 = vld [vmem:[%s1 + $0x54c] sm:$0xf]
  %v387 = vld [vmem:[%s1 + $0x550] sm:$0xf]
  %v388 = vld [vmem:[%s1 + $0x554] sm:$0xf]
  %v389 = vld [vmem:[%s1 + $0x558] sm:$0xf]
  %v390 = vld [vmem:[%s1 + $0x55c] sm:$0xf]
  %v391 = vld [vmem:[%s1 + $0x560] sm:$0xf]
  %v392 = vld [vmem:[%s1 + $0x564] sm:$0xf]
  %v393 = vld [vmem:[%s1 + $0x568] sm:$0xf]
  %v394 = vld [vmem:[%s1 + $0x56c] sm:$0xf]
  %v395 = vld [vmem:[%s1 + $0x570] sm:$0xf]
  %v396 = vld [vmem:[%s1 + $0x574] sm:$0xf]
  %v397 = vld [vmem:[%s1 + $0x578] sm:$0xf]
  %v398 = vld [vmem:[%s1 + $0x57c] sm:$0xf]
  %v399 = vld [vmem:[%s1 + $0x580] sm:$0xf]
  %v400 = vld [vmem:[%s1 + $0x584] sm:$0xf]
  %v401 = vld [vmem:[%s1 + $0x588] sm:$0xf]
  %v402 = vld [vmem:[%s1 + $0x58c] sm:$0xf]
  %v403 = vld [vmem:[%s1 + $0x590] sm:$0xf]
  %v404 = vld [vmem:[%s1 + $0x594] sm:$0xf]
  %v405 = vld [vmem:[%s1 + $0x598] sm:$0xf]
  %v406 = vld [vmem:[%s1 + $0x59c] sm:$0xf]
  %v407 = vld [vmem:[%s1 + $0x5a0] sm:$0xf]
  %v408 = vld [vmem:[%s1 + $0x5a4] sm:$0xf]
  %v409 = vld [vmem:[%s1 + $0x5a8] sm:$0xf]
  %v410 = vld [vmem:[%s1 + $0x5ac] sm:$0xf]
  %v411 = vld [vmem:[%s1 + $0x5b0] sm:$0xf]
  %v412 = vld [vmem:[%s1 + $0x5b4] sm:$0xf]
  %v413 = vld [vmem:[%s1 + $0x5b8] sm:$0xf]
  %v414 = vld [vmem:[%s1 + $0x5bc] sm:$0xf]
  %v415 = vld [vmem:[%s1 + $0x5c0] sm:$0xf]
  %v416 = vld [vmem:[%s1 + $0x5c4] sm:$0xf]
  %v417 = vld [vmem:[%s1 + $0x5c8] sm:$0xf]
  %v418 = vld [vmem:[%s1 + $0x5cc] sm:$0xf]
  %v419 = vld [vmem:[%s1 + $0x5d0] sm:$0xf]
  %v420 = vld [vmem:[%s1 + $0x5d4] sm:$0xf]
  %v421 = vld [vmem:[%s1 + $0x5d8] sm:$0xf]
  %v422 = vld [vmem:[%s1 + $0x5dc] sm:$0xf]
  %v423 = vld [vmem:[%s1 + $0x5e0] sm:$0xf]
  %v424 = vld [vmem:[%s1 + $0x5e4] sm:$0xf]
  %v425 = vld [vmem:[%s1 + $0x5e8] sm:$0xf]
  %v426 = vld [vmem:[%s1 + $0x5ec] sm:$0xf]
  %v427 = vld [vmem:[%s1 + $0x5f0] sm:$0xf]
  %v428 = vld [vmem:[%s1 + $0x5f4] sm:$0xf]
  %v429 = vld [vmem:[%s1 + $0x5f8] sm:$0xf]
  %v430 = vld [vmem:[%s1 + $0x5fc] sm:$0xf]
  %v431 = vld [vmem:[%s1 + $0x600] sm:$0xf]
  %v432 = vld [vmem:[%s1 + $0x604] sm:$0xf]
  %v433 = vld [vmem:[%s1 + $0x608] sm:$0xf]
  %v434 = vld [vmem:[%s1 + $0x60c] sm:$0xf]
  %v435 = vld [vmem:[%s1 + $0x610] sm:$0xf]
  %v436 = vld [vmem:[%s1 + $0x614] sm:$0xf]
  %v437 = vld [vmem:[%s1 + $0x618] sm:$0xf]
  %v438 = vld [vmem:[%s1 + $0x61c] sm:$0xf]
  %v439 = vld [vmem:[%s1 + $0x620] sm:$0xf]
  %v440 = vld [vmem:[%s1 + $0x624] sm:$0xf]
  %v441 = vld [vmem:[%s1 + $0x628] sm:$0xf]
  %v442 = vld [vmem:[%s1 + $0x62c] sm:$0xf]
  %v443 = vld [vmem:[%s1 + $0x630] sm:$0xf]
  %v444 = vld [vmem:[%s1 + $0x634] sm:$0xf]
  %v445 = vld [vmem:[%s1 + $0x638] sm:$0xf]
  %v446 = vld [vmem:[%s1 + $0x63c] sm:$0xf]
  %v447 = vld [vmem:[%s1 + $0x640] sm:$0xf]
  %v448 = vld [vmem:[%s1 + $0x644] sm:$0xf]
  %v449 = vld [vmem:[%s1 + $0x648] sm:$0xf]
  %v450 = vld [vmem:[%s1 + $0x64c] sm:$0xf]
  %v451 = vld [vmem:[%s1 + $0x650] sm:$0xf]
  %v452 = vld [vmem:[%s1 + $0x654] sm:$0xf]
  %v453 = vld [vmem:[%s1 + $0x658] sm:$0xf]
  %v454 = vld [vmem:[%s1 + $0x65c] sm:$0xf]
  %v455 = vld [vmem:[%s1 + $0x660] sm:$0xf]
  %v456 = vld [vmem:[%s1 + $0x664] sm:$0xf]
  %v457 = vld [vmem:[%s1 + $0x668] sm:$0xf]
  %v458 = vld [vmem:[%s1 + $0x66c] sm:$0xf]
  %v459 = vld [vmem:[%s1 + $0x670] sm:$0xf]
  %v460 = vld [vmem:[%s1 + $0x674] sm:$0xf]
  %v461 = vld [vmem:[%s1 + $0x678] sm:$0xf]
  %v462 = vld [vmem:[%s1 + $0x67c] sm:$0xf]
  %v463 = vld [vmem:[%s1 + $0x680] sm:$0xf]
  %v464 = vld [vmem:[%s1 + $0x684] sm:$0xf]
  %v465 = vld [vmem:[%s1 + $0x688] sm:$0xf]
  %v466 = vld [vmem:[%s1 + $0x68c] sm:$0xf]
  %v467 = vld [vmem:[%s1 + $0x690] sm:$0xf]
  %v468 = vld [vmem:[%s1 + $0x694] sm:$0xf]
  %v469 = vld [vmem:[%s1 + $0x698] sm:$0xf]
  %v470 = vld [vmem:[%s1 + $0x69c] sm:$0xf]
  %v471 = vld [vmem:[%s1 + $0x6a0] sm:$0xf]
  %v472 = vld [vmem:[%s1 + $0x6a4] sm:$0xf]
  %v473 = vld [vmem:[%s1 + $0x6a8] sm:$0xf]
  %v474 = vld [vmem:[%s1 + $0x6ac] sm:$0xf]
  %v475 = vld [vmem:[%s1 + $0x6b0] sm:$0xf]
  %v476 = vld [vmem:[%s1 + $0x6b4] sm:$0xf]
  %v477 = vld [vmem:[%s1 + $0x6b8] sm:$0xf]
  %v478 = vld [vmem:[%s1 + $0x6bc] sm:$0xf]
  %v479 = vld [vmem:[%s1 + $0x6c0] sm:$0xf]
  %v480 = vld [vmem:[%s1 + $0x6c4] sm:$0xf]
  %v481 = vld [vmem:[%s1 + $0x6c8] sm:$0xf]
  %v482 = vld [vmem:[%s1 + $0x6cc] sm:$0xf]
  %v483 = vld [vmem:[%s1 + $0x6d0] sm:$0xf]
  %v484 = vld [vmem:[%s1 + $0x6d4] sm:$0xf]
  %v485 = vld [vmem:[%s1 + $0x6d8] sm:$0xf]
  %v486 = vld [vmem:[%s1 + $0x6dc] sm:$0xf]
  %v487 = vld [vmem:[%s1 + $0x6e0] sm:$0xf]
  %v488 = vld [vmem:[%s1 + $0x6e4] sm:$0xf]
  %v489 = vld [vmem:[%s1 + $0x6e8] sm:$0xf]
  %v490 = vld [vmem:[%s1 + $0x6ec] sm:$0xf]
  %v491 = vld [vmem:[%s1 + $0x6f0] sm:$0xf]
  %v492 = vld [vmem:[%s1 + $0x6f4] sm:$0xf]
  %v493 = vld [vmem:[%s1 + $0x6f8] sm:$0xf]
  %v494 = vld [vmem:[%s1 + $0x6fc] sm:$0xf]
  %v495 = vld [vmem:[%s1 + $0x700] sm:$0xf]
  %v496 = vld [vmem:[%s1 + $0x704] sm:$0xf]
  %v497 = vld [vmem:[%s1 + $0x708] sm:$0xf]
  %v498 = vld [vmem:[%s1 + $0x70c] sm:$0xf]
  %v499 = vld [vmem:[%s1 + $0x710] sm:$0xf]
  %v500 = vld [vmem:[%s1 + $0x714] sm:$0xf]
  %v501 = vld [vmem:[%s1 + $0x718] sm:$0xf]
  %v502 = vld [vmem:[%s1 + $0x71c] sm:$0xf]
  %v503 = vld [vmem:[%s1 + $0x720] sm:$0xf]
  %v504 = vld [vmem:[%s1 + $0x724] sm:$0xf]
  %v505 = vld [vmem:[%s1 + $0x728] sm:$0xf]
  %v506 = vld [vmem:[%s1 + $0x72c] sm:$0xf]
  %v507 = vld [vmem:[%s1 + $0x730] sm:$0xf]
  %v508 = vld [vmem:[%s1 + $0x734] sm:$0xf]
  %v509 = vld [vmem:[%s1 + $0x738] sm:$0xf]
  %v510 = vld [vmem:[%s1 + $0x73c] sm:$0xf]
  %v511 = vld [vmem:[%s1 + $0x740] sm:$0xf]
  %v512 = vld [vmem:[%s1 + $0x744] sm:$0xf]
  %v513 = vld [vmem:[%s1 + $0x748] sm:$0xf]
  %v514 = vld [vmem:[%s1 + $0x74c] sm:$0xf]
  %v515 = vld [vmem:[%s1 + $0x750] sm:$0xf]
  %v516 = vld [vmem:[%s1 + $0x754] sm:$0xf]
  %v517 = vld [vmem:[%s1 + $0x758] sm:$0xf]
  %v518 = vld [vmem:[%s1 + $0x75c] sm:$0xf]
  %v519 = vld [vmem:[%s1 + $0x760] sm:$0xf]
  %v520 = vld [vmem:[%s1 + $0x764] sm:$0xf]
  %v521 = vld [vmem:[%s1 + $0x768] sm:$0xf]
  %v522 = vld [vmem:[%s1 + $0x76c] sm:$0xf]
  %v523 = vld [vmem:[%s1 + $0x770] sm:$0xf]
  %v524 = vld [vmem:[%s1 + $0x774] sm:$0xf]
  %v525 = vld [vmem:[%s1 + $0x778] sm:$0xf]
  %v526 = vld [vmem:[%s1 + $0x77c] sm:$0xf]
  %v527 = vld [vmem:[%s1 + $0x780] sm:$0xf]
  %v528 = vld [vmem:[%s1 + $0x784] sm:$0xf]
  %v529 = vld [vmem:[%s1 + $0x788] sm:$0xf]
  %v530 = vld [vmem:[%s1 + $0x78c] sm:$0xf]
  %v531 = vld [vmem:[%s1 + $0x790] sm:$0xf]
  %v532 = vld [vmem:[%s1 + $0x794] sm:$0xf]
  %v533 = vld [vmem:[%s1 + $0x798] sm:$0xf]
  %v534 = vld [vmem:[%s1 + $0x79c] sm:$0xf]
  %v535 = vld [vmem:[%s1 + $0x7a0] sm:$0xf]
  %v536 = vld [vmem:[%s1 + $0x7a4] sm:$0xf]
  %v537 = vld [vmem:[%s1 + $0x7a8] sm:$0xf]
  %v538 = vld [vmem:[%s1 + $0x7ac] sm:$0xf]
  %v539 = vld [vmem:[%s1 + $0x7b0] sm:$0xf]
  %v540 = vld [vmem:[%s1 + $0x7b4] sm:$0xf]
  %v541 = vld [vmem:[%s1 + $0x7b8] sm:$0xf]
  %v542 = vld [vmem:[%s1 + $0x7bc] sm:$0xf]
  %v543 = vld [vmem:[%s1 + $0x7c0] sm:$0xf]
  %v544 = vld [vmem:[%s1 + $0x7c4] sm:$0xf]
  %v545 = vld [vmem:[%s1 + $0x7c8] sm:$0xf]
  %v546 = vld [vmem:[%s1 + $0x7cc] sm:$0xf]
  %v547 = vld [vmem:[%s1 + $0x7d0] sm:$0xf]
  %v548 = vld [vmem:[%s1 + $0x7d4] sm:$0xf]
  %v549 = vld [vmem:[%s1 + $0x7d8] sm:$0xf]
  %v550 = vld [vmem:[%s1 + $0x7dc] sm:$0xf]
  %v551 = vld [vmem:[%s1 + $0x7e0] sm:$0xf]
  %v552 = vld [vmem:[%s1 + $0x7e4] sm:$0xf]
  %v553 = vld [vmem:[%s1 + $0x7e8] sm:$0xf]
  %v554 = vld [vmem:[%s1 + $0x7ec] sm:$0xf]
  %v555 = vld [vmem:[%s1 + $0x7f0] sm:$0xf]
  %v556 = vld [vmem:[%s1 + $0x7f4] sm:$0xf]
  %v557 = vld [vmem:[%s1 + $0x7f8] sm:$0xf]
  %v558 = vld [vmem:[%s1 + $0x7fc] sm:$0xf]
  %v559 = vld [vmem:[%s1 + $0x800] sm:$0xf]
  %v560 = vld [vmem:[%s1 + $0x804] sm:$0xf]
  %v561 = vld [vmem:[%s1 + $0x808] sm:$0xf]
  %v562 = vld [vmem:[%s1 + $0x80c] sm:$0xf]
  %v563 = vld [vmem:[%s1 + $0x810] sm:$0xf]
  %v564 = vld [vmem:[%s1 + $0x814] sm:$0xf]
  %v565 = vld [vmem:[%s1 + $0x818] sm:$0xf]
  %v566 = vld [vmem:[%s1 + $0x81c] sm:$0xf]
  %v567 = vld [vmem:[%s1 + $0x820] sm:$0xf]
  %v568 = vld [vmem:[%s1 + $0x824] sm:$0xf]
  %v569 = vld [vmem:[%s1 + $0x828] sm:$0xf]
  %v570 = vld [vmem:[%s1 + $0x82c] sm:$0xf]
  %v571 = vld [vmem:[%s1 + $0x830] sm:$0xf]
  %v572 = vld [vmem:[%s1 + $0x834] sm:$0xf]
  %v573 = vld [vmem:[%s1 + $0x838] sm:$0xf]
  %v574 = vld [vmem:[%s1 + $0x83c] sm:$0xf]
  %v575 = vld [vmem:[%s1 + $0x840] sm:$0xf]
  %v576 = vld [vmem:[%s1 + $0x844] sm:$0xf]
  %v577 = vld [vmem:[%s1 + $0x848] sm:$0xf]
  %v578 = vld [vmem:[%s1 + $0x84c] sm:$0xf]
  %v579 = vld [vmem:[%s1 + $0x850] sm:$0xf]
  %v580 = vld [vmem:[%s1 + $0x854] sm:$0xf]
  %v581 = vld [vmem:[%s1 + $0x858] sm:$0xf]
  %v582 = vld [vmem:[%s1 + $0x85c] sm:$0xf]
  %v583 = vld [vmem:[%s1 + $0x860] sm:$0xf]
  %v584 = vld [vmem:[%s1 + $0x864] sm:$0xf]
  %v585 = vld [vmem:[%s1 + $0x868] sm:$0xf]
  %v586 = vld [vmem:[%s1 + $0x86c] sm:$0xf]
  %v587 = vld [vmem:[%s1 + $0x870] sm:$0xf]
  %v588 = vld [vmem:[%s1 + $0x874] sm:$0xf]
  %v589 = vld [vmem:[%s1 + $0x878] sm:$0xf]
  %v590 = vld [vmem:[%s1 + $0x87c] sm:$0xf]
  %v591 = vld [vmem:[%s1 + $0x880] sm:$0xf]
  %v592 = vld [vmem:[%s1 + $0x884] sm:$0xf]
  %v593 = vld [vmem:[%s1 + $0x888] sm:$0xf]
  %v594 = vld [vmem:[%s1 + $0x88c] sm:$0xf]
  %v595 = vld [vmem:[%s1 + $0x890] sm:$0xf]
  %v596 = vld [vmem:[%s1 + $0x894] sm:$0xf]
  %v597 = vld [vmem:[%s1 + $0x898] sm:$0xf]
  %v598 = vld [vmem:[%s1 + $0x89c] sm:$0xf]
  %v599 = vld [vmem:[%s1 + $0x8a0] sm:$0xf]
  %v600 = vld [vmem:[%s1 + $0x8a4] sm:$0xf]
  %v601 = vld [vmem:[%s1 + $0x8a8] sm:$0xf]
  %v602 = vld [vmem:[%s1 + $0x8ac] sm:$0xf]
  %v603 = vld [vmem:[%s1 + $0x8b0] sm:$0xf]
  %v604 = vld [vmem:[%s1 + $0x8b4] sm:$0xf]
  %v605 = vld [vmem:[%s1 + $0x8b8] sm:$0xf]
  %v606 = vld [vmem:[%s1 + $0x8bc] sm:$0xf]
  %v607 = vld [vmem:[%s1 + $0x8c0] sm:$0xf]
  %v608 = vld [vmem:[%s1 + $0x8c4] sm:$0xf]
  %v609 = vld [vmem:[%s1 + $0x8c8] sm:$0xf]
  %v610 = vld [vmem:[%s1 + $0x8cc] sm:$0xf]
  %v611 = vld [vmem:[%s1 + $0x8d0] sm:$0xf]
  %v612 = vld [vmem:[%s1 + $0x8d4] sm:$0xf]
  %v613 = vld [vmem:[%s1 + $0x8d8] sm:$0xf]
  %v614 = vld [vmem:[%s1 + $0x8dc] sm:$0xf]
  %v615 = vld [vmem:[%s1 + $0x8e0] sm:$0xf]
  %v616 = vld [vmem:[%s1 + $0x8e4] sm:$0xf]
  %v617 = vld [vmem:[%s1 + $0x8e8] sm:$0xf]
  %v618 = vld [vmem:[%s1 + $0x8ec] sm:$0xf]
  %v619 = vld [vmem:[%s1 + $0x8f0] sm:$0xf]
  %v620 = vld [vmem:[%s1 + $0x8f4] sm:$0xf]
  %v621 = vld [vmem:[%s1 + $0x8f8] sm:$0xf]
  %v622 = vld [vmem:[%s1 + $0x8fc] sm:$0xf]
  %v623 = vld [vmem:[%s1 + $0x900] sm:$0xf]
  %v624 = vld [vmem:[%s1 + $0x904] sm:$0xf]
  %v625 = vld [vmem:[%s1 + $0x908] sm:$0xf]
  %v626 = vld [vmem:[%s1 + $0x90c] sm:$0xf]
  %v627 = vld [vmem:[%s1 + $0x910] sm:$0xf]
  %v628 = vld [vmem:[%s1 + $0x914] sm:$0xf]
  %v629 = vld [vmem:[%s1 + $0x918] sm:$0xf]
  %v630 = vld [vmem:[%s1 + $0x91c] sm:$0xf]
  %v631 = vld [vmem:[%s1 + $0x920] sm:$0xf]
  %v632 = vld [vmem:[%s1 + $0x924] sm:$0xf]
  %v633 = vld [vmem:[%s1 + $0x928] sm:$0xf]
  %v634 = vld [vmem:[%s1 + $0x92c] sm:$0xf]
  %v635 = vld [vmem:[%s1 + $0x930] sm:$0xf]
  %v636 = vld [vmem:[%s1 + $0x934] sm:$0xf]
  %v637 = vld [vmem:[%s1 + $0x938] sm:$0xf]
  %v638 = vld [vmem:[%s1 + $0x93c] sm:$0xf]
  %v639 = vld [vmem:[%s1 + $0x940] sm:$0xf]
  %v640 = vld [vmem:[%s1 + $0x944] sm:$0xf]
  %v641 = vld [vmem:[%s1 + $0x948] sm:$0xf]
  %v642 = vld [vmem:[%s1 + $0x94c] sm:$0xf]
  %v643 = vld [vmem:[%s1 + $0x950] sm:$0xf]
  %v644 = vld [vmem:[%s1 + $0x954] sm:$0xf]
  %v645 = vld [vmem:[%s1 + $0x958] sm:$0xf]
  %v646 = vld [vmem:[%s1 + $0x95c] sm:$0xf]
  %v647 = vld [vmem:[%s1 + $0x960] sm:$0xf]
  %v648 = vld [vmem:[%s1 + $0x964] sm:$0xf]
  %v649 = vld [vmem:[%s1 + $0x968] sm:$0xf]
  %v650 = vld [vmem:[%s1 + $0x96c] sm:$0xf]
  %v651 = vld [vmem:[%s1 + $0x970] sm:$0xf]
  %v652 = vld [vmem:[%s1 + $0x974] sm:$0xf]
  %v653 = vld [vmem:[%s1 + $0x978] sm:$0xf]
  %v654 = vld [vmem:[%s1 + $0x97c] sm:$0xf]
  %v655 = vld [vmem:[%s1 + $0x980] sm:$0xf]
  %v656 = vld [vmem:[%s1 + $0x984] sm:$0xf]
  %v657 = vld [vmem:[%s1 + $0x988] sm:$0xf]
  %v658 = vld [vmem:[%s1 + $0x98c] sm:$0xf]
  %v659 = vld [vmem:[%s1 + $0x990] sm:$0xf]
  %v660 = vld [vmem:[%s1 + $0x994] sm:$0xf]
  %v661 = vld [vmem:[%s1 + $0x998] sm:$0xf]
  %v662 = vld [vmem:[%s1 + $0x99c] sm:$0xf]
  %v663 = vld [vmem:[%s1 + $0x9a0] sm:$0xf]
  %v664 = vld [vmem:[%s1 + $0x9a4] sm:$0xf]
  %v665 = vld [vmem:[%s1 + $0x9a8] sm:$0xf]
  %v666 = vld [vmem:[%s1 + $0x9ac] sm:$0xf]
  %v667 = vld [vmem:[%s1 + $0x9b0] sm:$0xf]
  %v668 = vld [vmem:[%s1 + $0x9b4] sm:$0xf]
  %v669 = vld [vmem:[%s1 + $0x9b8] sm:$0xf]
  %v670 = vld [vmem:[%s1 + $0x9bc] sm:$0xf]
  %v671 = vld [vmem:[%s1 + $0x9c0] sm:$0xf]
  %v672 = vld [vmem:[%s1 + $0x9c4] sm:$0xf]
  %v673 = vld [vmem:[%s1 + $0x9c8] sm:$0xf]
  %v674 = vld [vmem:[%s1 + $0x9cc] sm:$0xf]
  %v675 = vld [vmem:[%s1 + $0x9d0] sm:$0xf]
  %v676 = vld [vmem:[%s1 + $0x9d4] sm:$0xf]
  %v677 = vld [vmem:[%s1 + $0x9d8] sm:$0xf]
  %v678 = vld [vmem:[%s1 + $0x9dc] sm:$0xf]
  %v679 = vld [vmem:[%s1 + $0x9e0] sm:$0xf]
  %v680 = vld [vmem:[%s1 + $0x9e4] sm:$0xf]
  %v681 = vld [vmem:[%s1 + $0x9e8] sm:$0xf]
  %v682 = vld [vmem:[%s1 + $0x9ec] sm:$0xf]
  %v683 = vld [vmem:[%s1 + $0x9f0] sm:$0xf]
  %v684 = vld [vmem:[%s1 + $0x9f4] sm:$0xf]
  %v685 = vld [vmem:[%s1 + $0x9f8] sm:$0xf]
  %v686 = vld [vmem:[%s1 + $0x9fc] sm:$0xf]
  %v687 = vld [vmem:[%s1 + $0xa00] sm:$0xf]
  %v688 = vld [vmem:[%s1 + $0xa04] sm:$0xf]
  %v689 = vld [vmem:[%s1 + $0xa08] sm:$0xf]
  %v690 = vld [vmem:[%s1 + $0xa0c] sm:$0xf]
  %v691 = vld [vmem:[%s1 + $0xa10] sm:$0xf]
  %v692 = vld [vmem:[%s1 + $0xa14] sm:$0xf]
  %v693 = vld [vmem:[%s1 + $0xa18] sm:$0xf]
  %v694 = vld [vmem:[%s1 + $0xa1c] sm:$0xf]
  %v695 = vld [vmem:[%s1 + $0xa20] sm:$0xf]
  %v696 = vld [vmem:[%s1 + $0xa24] sm:$0xf]
  %v697 = vld [vmem:[%s1 + $0xa28] sm:$0xf]
  %v698 = vld [vmem:[%s1 + $0xa2c] sm:$0xf]
  %v699 = vld [vmem:[%s1 + $0xa30] sm:$0xf]
  %v700 = vld [vmem:[%s1 + $0xa34] sm:$0xf]
  %v701 = vld [vmem:[%s1 + $0xa38] sm:$0xf]
  %v702 = vld [vmem:[%s1 + $0xa3c] sm:$0xf]
  %v703 = vld [vmem:[%s1 + $0xa40] sm:$0xf]
  %v704 = vld [vmem:[%s1 + $0xa44] sm:$0xf]
  %v705 = vld [vmem:[%s1 + $0xa48] sm:$0xf]
  %v706 = vld [vmem:[%s1 + $0xa4c] sm:$0xf]
  %v707 = vld [vmem:[%s1 + $0xa50] sm:$0xf]
  %v708 = vld [vmem:[%s1 + $0xa54] sm:$0xf]
  %v709 = vld [vmem:[%s1 + $0xa58] sm:$0xf]
  %v710 = vld [vmem:[%s1 + $0xa5c] sm:$0xf]
  %v711 = vld [vmem:[%s1 + $0xa60] sm:$0xf]
  %v712 = vld [vmem:[%s1 + $0xa64] sm:$0xf]
  %v713 = vld [vmem:[%s1 + $0xa68] sm:$0xf]
  %v714 = vld [vmem:[%s1 + $0xa6c] sm:$0xf]
  %v715 = vld [vmem:[%s1 + $0xa70] sm:$0xf]
  %v716 = vld [vmem:[%s1 + $0xa74] sm:$0xf]
  %v717 = vld [vmem:[%s1 + $0xa78] sm:$0xf]
  %v718 = vld [vmem:[%s1 + $0xa7c] sm:$0xf]
  %v719 = vld [vmem:[%s1 + $0xa80] sm:$0xf]
  %v720 = vld [vmem:[%s1 + $0xa84] sm:$0xf]
  %v721 = vld [vmem:[%s1 + $0xa88] sm:$0xf]
  %v722 = vld [vmem:[%s1 + $0xa8c] sm:$0xf]
  %v723 = vld [vmem:[%s1 + $0xa90] sm:$0xf]
  %v724 = vld [vmem:[%s1 + $0xa94] sm:$0xf]
  %v725 = vld [vmem:[%s1 + $0xa98] sm:$0xf]
  %v726 = vld [vmem:[%s1 + $0xa9c] sm:$0xf]
  %v727 = vld [vmem:[%s1 + $0xaa0] sm:$0xf]
  %v728 = vld [vmem:[%s1 + $0xaa4] sm:$0xf]
  %v729 = vld [vmem:[%s1 + $0xaa8] sm:$0xf]
  %v730 = vld [vmem:[%s1 + $0xaac] sm:$0xf]
  %v731 = vld [vmem:[%s1 + $0xab0] sm:$0xf]
  %v732 = vld [vmem:[%s1 + $0xab4] sm:$0xf]
  %v733 = vld [vmem:[%s1 + $0xab8] sm:$0xf]
  %v734 = vld [vmem:[%s1 + $0xabc] sm:$0xf]
  %v735 = vld [vmem:[%s1 + $0xac0] sm:$0xf]
  %v736 = vld [vmem:[%s1 + $0xac4] sm:$0xf]
  %v737 = vld [vmem:[%s1 + $0xac8] sm:$0xf]
  %v738 = vld [vmem:[%s1 + $0xacc] sm:$0xf]
  %v739 = vld [vmem:[%s1 + $0xad0] sm:$0xf]
  %v740 = vld [vmem:[%s1 + $0xad4] sm:$0xf]
  %v741 = vld [vmem:[%s1 + $0xad8] sm:$0xf]
  %v742 = vld [vmem:[%s1 + $0xadc] sm:$0xf]
  %v743 = vld [vmem:[%s1 + $0xae0] sm:$0xf]
  %v744 = vld [vmem:[%s1 + $0xae4] sm:$0xf]
  %v745 = vld [vmem:[%s1 + $0xae8] sm:$0xf]
  %v746 = vld [vmem:[%s1 + $0xaec] sm:$0xf]
  %v747 = vld [vmem:[%s1 + $0xaf0] sm:$0xf]
  %v748 = vld [vmem:[%s1 + $0xaf4] sm:$0xf]
  %v749 = vld [vmem:[%s1 + $0xaf8] sm:$0xf]
  %v750 = vld [vmem:[%s1 + $0xafc] sm:$0xf]
  %v751 = vld [vmem:[%s1 + $0xb00] sm:$0xf]
  %v752 = vld [vmem:[%s1 + $0xb04] sm:$0xf]
  %v753 = vld [vmem:[%s1 + $0xb08] sm:$0xf]
  %v754 = vld [vmem:[%s1 + $0xb0c] sm:$0xf]
  %v755 = vld [vmem:[%s1 + $0xb10] sm:$0xf]
  %v756 = vld [vmem:[%s1 + $0xb14] sm:$0xf]
  %v757 = vld [vmem:[%s1 + $0xb18] sm:$0xf]
  %v758 = vld [vmem:[%s1 + $0xb1c] sm:$0xf]
  %v759 = vld [vmem:[%s1 + $0xb20] sm:$0xf]
  %v760 = vld [vmem:[%s1 + $0xb24] sm:$0xf]
  %v761 = vld [vmem:[%s1 + $0xb28] sm:$0xf]
  %v762 = vld [vmem:[%s1 + $0xb2c] sm:$0xf]
  %v763 = vld [vmem:[%s1 + $0xb30] sm:$0xf]
  %v764 = vld [vmem:[%s1 + $0xb34] sm:$0xf]
  %v765 = vld [vmem:[%s1 + $0xb38] sm:$0xf]
  %v766 = vld [vmem:[%s1 + $0xb3c] sm:$0xf]
  %v767 = vld [vmem:[%s1 + $0xb40] sm:$0xf]
  %v768 = vld [vmem:[%s1 + $0xb44] sm:$0xf]
  %v769 = vld [vmem:[%s1 + $0xb48] sm:$0xf]
  %v770 = vld [vmem:[%s1 + $0xb4c] sm:$0xf]
  %v771 = vld [vmem:[%s1 + $0xb50] sm:$0xf]
  %v772 = vld [vmem:[%s1 + $0xb54] sm:$0xf]
  %v773 = vld [vmem:[%s1 + $0xb58] sm:$0xf]
  %v774 = vld [vmem:[%s1 + $0xb5c] sm:$0xf]
  %v775 = vld [vmem:[%s1 + $0xb60] sm:$0xf]
  %v776 = vld [vmem:[%s1 + $0xb64] sm:$0xf]
  %v777 = vld [vmem:[%s1 + $0xb68] sm:$0xf]
  %v778 = vld [vmem:[%s1 + $0xb6c] sm:$0xf]
  %v779 = vld [vmem:[%s1 + $0xb70] sm:$0xf]
  %v780 = vld [vmem:[%s1 + $0xb74] sm:$0xf]
  %v781 = vld [vmem:[%s1 + $0xb78] sm:$0xf]
  %v782 = vld [vmem:[%s1 + $0xb7c] sm:$0xf]
  %v783 = vld [vmem:[%s1 + $0xb80] sm:$0xf]
  %v784 = vld [vmem:[%s1 + $0xb84] sm:$0xf]
  %v785 = vld [vmem:[%s1 + $0xb88] sm:$0xf]
  %v786 = vld [vmem:[%s1 + $0xb8c] sm:$0xf]
  %v787 = vld [vmem:[%s1 + $0xb90] sm:$0xf]
  %v788 = vld [vmem:[%s1 + $0xb94] sm:$0xf]
  %v789 = vld [vmem:[%s1 + $0xb98] sm:$0xf]
  %v790 = vld [vmem:[%s1 + $0xb9c] sm:$0xf]
  %v791 = vld [vmem:[%s1 + $0xba0] sm:$0xf]
  %v792 = vld [vmem:[%s1 + $0xba4] sm:$0xf]
  %v793 = vld [vmem:[%s1 + $0xba8] sm:$0xf]
  %v794 = vld [vmem:[%s1 + $0xbac] sm:$0xf]
  %v795 = vld [vmem:[%s1 + $0xbb0] sm:$0xf]
  %v796 = vld [vmem:[%s1 + $0xbb4] sm:$0xf]
  %v797 = vld [vmem:[%s1 + $0xbb8] sm:$0xf]
  %v798 = vld [vmem:[%s1 + $0xbbc] sm:$0xf]
  %v799 = vld [vmem:[%s1 + $0xbc0] sm:$0xf]
  %v800 = vld [vmem:[%s1 + $0xbc4] sm:$0xf]
  %v801 = vld [vmem:[%s1 + $0xbc8] sm:$0xf]
  %v802 = vld [vmem:[%s1 + $0xbcc] sm:$0xf]
  %v803 = vld [vmem:[%s1 + $0xbd0] sm:$0xf]
  %v804 = vld [vmem:[%s1 + $0xbd4] sm:$0xf]
  %v805 = vld [vmem:[%s1 + $0xbd8] sm:$0xf]
  %v806 = vld [vmem:[%s1 + $0xbdc] sm:$0xf]
  %v807 = vld [vmem:[%s1 + $0xbe0] sm:$0xf]
  %v808 = vld [vmem:[%s1 + $0xbe4] sm:$0xf]
  %v809 = vld [vmem:[%s1 + $0xbe8] sm:$0xf]
  %v810 = vld [vmem:[%s1 + $0xbec] sm:$0xf]
  %v811 = vld [vmem:[%s1 + $0xbf0] sm:$0xf]
  %v812 = vld [vmem:[%s1 + $0xbf4] sm:$0xf]
  %v813 = vld [vmem:[%s1 + $0xbf8] sm:$0xf]
  %v814 = vld [vmem:[%s1 + $0xbfc] sm:$0xf]
  %v815 = vld [vmem:[%s1 + $0xc00] sm:$0xf]
  %v816 = vld [vmem:[%s1 + $0xc04] sm:$0xf]
  %v817 = vld [vmem:[%s1 + $0xc08] sm:$0xf]
  %v818 = vld [vmem:[%s1 + $0xc0c] sm:$0xf]
  %v819 = vld [vmem:[%s1 + $0xc10] sm:$0xf]
  %v820 = vld [vmem:[%s1 + $0xc14] sm:$0xf]
  %v821 = vld [vmem:[%s1 + $0xc18] sm:$0xf]
  %v822 = vld [vmem:[%s1 + $0xc1c] sm:$0xf]
  %v823 = vld [vmem:[%s1 + $0xc20] sm:$0xf]
  %v824 = vld [vmem:[%s1 + $0xc24] sm:$0xf]
  %v825 = vld [vmem:[%s1 + $0xc28] sm:$0xf]
  %v826 = vld [vmem:[%s1 + $0xc2c] sm:$0xf]
  %v827 = vld [vmem:[%s1 + $0xc30] sm:$0xf]
  %v828 = vld [vmem:[%s1 + $0xc34] sm:$0xf]
  %v829 = vld [vmem:[%s1 + $0xc38] sm:$0xf]
  %v830 = vld [vmem:[%s1 + $0xc3c] sm:$0xf]
  %v831 = vld [vmem:[%s1 + $0xc40] sm:$0xf]
  %v832 = vld [vmem:[%s1 + $0xc44] sm:$0xf]
  %v833 = vld [vmem:[%s1 + $0xc48] sm:$0xf]
  %v834 = vld [vmem:[%s1 + $0xc4c] sm:$0xf]
  %v835 = vld [vmem:[%s1 + $0xc50] sm:$0xf]
  %v836 = vld [vmem:[%s1 + $0xc54] sm:$0xf]
  %v837 = vld [vmem:[%s1 + $0xc58] sm:$0xf]
  %v838 = vld [vmem:[%s1 + $0xc5c] sm:$0xf]
  %v839 = vld [vmem:[%s1 + $0xc60] sm:$0xf]
  %v840 = vld [vmem:[%s1 + $0xc64] sm:$0xf]
  %v841 = vld [vmem:[%s1 + $0xc68] sm:$0xf]
  %v842 = vld [vmem:[%s1 + $0xc6c] sm:$0xf]
  %v843 = vld [vmem:[%s1 + $0xc70] sm:$0xf]
  %v844 = vld [vmem:[%s1 + $0xc74] sm:$0xf]
  %v845 = vld [vmem:[%s1 + $0xc78] sm:$0xf]
  %v846 = vld [vmem:[%s1 + $0xc7c] sm:$0xf]
  %v847 = vld [vmem:[%s1 + $0xc80] sm:$0xf]
  %v848 = vld [vmem:[%s1 + $0xc84] sm:$0xf]
  %v849 = vld [vmem:[%s1 + $0xc88] sm:$0xf]
  %v850 = vld [vmem:[%s1 + $0xc8c] sm:$0xf]
  %v851 = vld [vmem:[%s1 + $0xc90] sm:$0xf]
  %v852 = vld [vmem:[%s1 + $0xc94] sm:$0xf]
  %v853 = vld [vmem:[%s1 + $0xc98] sm:$0xf]
  %v854 = vld [vmem:[%s1 + $0xc9c] sm:$0xf]
  %v855 = vld [vmem:[%s1 + $0xca0] sm:$0xf]
  %v856 = vld [vmem:[%s1 + $0xca4] sm:$0xf]
  %v857 = vld [vmem:[%s1 + $0xca8] sm:$0xf]
  %v858 = vld [vmem:[%s1 + $0xcac] sm:$0xf]
  %v859 = vld [vmem:[%s1 + $0xcb0] sm:$0xf]
  %v860 = vld [vmem:[%s1 + $0xcb4] sm:$0xf]
  %v861 = vld [vmem:[%s1 + $0xcb8] sm:$0xf]
  %v862 = vld [vmem:[%s1 + $0xcbc] sm:$0xf]
  %v863 = vld [vmem:[%s1 + $0xcc0] sm:$0xf]
  %v864 = vld [vmem:[%s1 + $0xcc4] sm:$0xf]
  %v865 = vld [vmem:[%s1 + $0xcc8] sm:$0xf]
  %v866 = vld [vmem:[%s1 + $0xccc] sm:$0xf]
  %v867 = vld [vmem:[%s1 + $0xcd0] sm:$0xf]
  %v868 = vld [vmem:[%s1 + $0xcd4] sm:$0xf]
  %v869 = vld [vmem:[%s1 + $0xcd8] sm:$0xf]
  %v870 = vld [vmem:[%s1 + $0xcdc] sm:$0xf]
  %v871 = vld [vmem:[%s1 + $0xce0] sm:$0xf]
  %v872 = vld [vmem:[%s1 + $0xce4] sm:$0xf]
  %v873 = vld [vmem:[%s1 + $0xce8] sm:$0xf]
  %v874 = vld [vmem:[%s1 + $0xcec] sm:$0xf]
  %v875 = vld [vmem:[%s1 + $0xcf0] sm:$0xf]
  %v876 = vld [vmem:[%s1 + $0xcf4] sm:$0xf]
  %v877 = vld [vmem:[%s1 + $0xcf8] sm:$0xf]
  %v878 = vld [vmem:[%s1 + $0xcfc] sm:$0xf]
  %v879 = vld [vmem:[%s1 + $0xd00] sm:$0xf]
  %v880 = vld [vmem:[%s1 + $0xd04] sm:$0xf]
  %v881 = vld [vmem:[%s1 + $0xd08] sm:$0xf]
  %v882 = vld [vmem:[%s1 + $0xd0c] sm:$0xf]
  %v883 = vld [vmem:[%s1 + $0xd10] sm:$0xf]
  %v884 = vld [vmem:[%s1 + $0xd14] sm:$0xf]
  %v885 = vld [vmem:[%s1 + $0xd18] sm:$0xf]
  %v886 = vld [vmem:[%s1 + $0xd1c] sm:$0xf]
  %v887 = vld [vmem:[%s1 + $0xd20] sm:$0xf]
  %v888 = vld [vmem:[%s1 + $0xd24] sm:$0xf]
  %v889 = vld [vmem:[%s1 + $0xd28] sm:$0xf]
  %v890 = vld [vmem:[%s1 + $0xd2c] sm:$0xf]
  %v891 = vld [vmem:[%s1 + $0xd30] sm:$0xf]
  %v892 = vld [vmem:[%s1 + $0xd34] sm:$0xf]
  %v893 = vld [vmem:[%s1 + $0xd38] sm:$0xf]
  %v894 = vld [vmem:[%s1 + $0xd3c] sm:$0xf]
  %v895 = vld [vmem:[%s1 + $0xd40] sm:$0xf]
  %v896 = vld [vmem:[%s1 + $0xd44] sm:$0xf]
  %v897 = vld [vmem:[%s1 + $0xd48] sm:$0xf]
  %v898 = vld [vmem:[%s1 + $0xd4c] sm:$0xf]
  %v899 = vld [vmem:[%s1 + $0xd50] sm:$0xf]
  %v900 = vld [vmem:[%s1 + $0xd54] sm:$0xf]
  %v901 = vld [vmem:[%s1 + $0xd58] sm:$0xf]
  %v902 = vld [vmem:[%s1 + $0xd5c] sm:$0xf]
  %v903 = vld [vmem:[%s1 + $0xd60] sm:$0xf]
  %v904 = vld [vmem:[%s1 + $0xd64] sm:$0xf]
  %v905 = vld [vmem:[%s1 + $0xd68] sm:$0xf]
  %v906 = vld [vmem:[%s1 + $0xd6c] sm:$0xf]
  %v907 = vld [vmem:[%s1 + $0xd70] sm:$0xf]
  %v908 = vld [vmem:[%s1 + $0xd74] sm:$0xf]
  %v909 = vld [vmem:[%s1 + $0xd78] sm:$0xf]
  %v910 = vld [vmem:[%s1 + $0xd7c] sm:$0xf]
  %v911 = vld [vmem:[%s1 + $0xd80] sm:$0xf]
  %v912 = vld [vmem:[%s1 + $0xd84] sm:$0xf]
  %v913 = vld [vmem:[%s1 + $0xd88] sm:$0xf]
  %v914 = vld [vmem:[%s1 + $0xd8c] sm:$0xf]
  %v915 = vld [vmem:[%s1 + $0xd90] sm:$0xf]
  %v916 = vld [vmem:[%s1 + $0xd94] sm:$0xf]
  %v917 = vld [vmem:[%s1 + $0xd98] sm:$0xf]
  %v918 = vld [vmem:[%s1 + $0xd9c] sm:$0xf]
  %v919 = vld [vmem:[%s1 + $0xda0] sm:$0xf]
  %v920 = vld [vmem:[%s1 + $0xda4] sm:$0xf]
  %v921 = vld [vmem:[%s1 + $0xda8] sm:$0xf]
  %v922 = vld [vmem:[%s1 + $0xdac] sm:$0xf]
  %v923 = vld [vmem:[%s1 + $0xdb0] sm:$0xf]
  %v924 = vld [vmem:[%s1 + $0xdb4] sm:$0xf]
  %v925 = vld [vmem:[%s1 + $0xdb8] sm:$0xf]
  %v926 = vld [vmem:[%s1 + $0xdbc] sm:$0xf]
  %v927 = vld [vmem:[%s1 + $0xdc0] sm:$0xf]
  %v928 = vld [vmem:[%s1 + $0xdc4] sm:$0xf]
  %v929 = vld [vmem:[%s1 + $0xdc8] sm:$0xf]
  %v930 = vld [vmem:[%s1 + $0xdcc] sm:$0xf]
  %v931 = vld [vmem:[%s1 + $0xdd0] sm:$0xf]
  %v932 = vld [vmem:[%s1 + $0xdd4] sm:$0xf]
  %v933 = vld [vmem:[%s1 + $0xdd8] sm:$0xf]
  %v934 = vld [vmem:[%s1 + $0xddc] sm:$0xf]
  %v935 = vld [vmem:[%s1 + $0xde0] sm:$0xf]
  %v936 = vld [vmem:[%s1 + $0xde4] sm:$0xf]
  %v937 = vld [vmem:[%s1 + $0xde8] sm:$0xf]
  %v938 = vld [vmem:[%s1 + $0xdec] sm:$0xf]
  %v939 = vld [vmem:[%s1 + $0xdf0] sm:$0xf]
  %v940 = vld [vmem:[%s1 + $0xdf4] sm:$0xf]
  %v941 = vld [vmem:[%s1 + $0xdf8] sm:$0xf]
  %v942 = vld [vmem:[%s1 + $0xdfc] sm:$0xf]
  %v943 = vld [vmem:[%s1 + $0xe00] sm:$0xf]
  %v944 = vld [vmem:[%s1 + $0xe04] sm:$0xf]
  %v945 = vld [vmem:[%s1 + $0xe08] sm:$0xf]
  %v946 = vld [vmem:[%s1 + $0xe0c] sm:$0xf]
  %v947 = vld [vmem:[%s1 + $0xe10] sm:$0xf]
  %v948 = vld [vmem:[%s1 + $0xe14] sm:$0xf]
  %v949 = vld [vmem:[%s1 + $0xe18] sm:$0xf]
  %v950 = vld [vmem:[%s1 + $0xe1c] sm:$0xf]
  %v951 = vld [vmem:[%s1 + $0xe20] sm:$0xf]
  %v952 = vld [vmem:[%s1 + $0xe24] sm:$0xf]
  %v953 = vld [vmem:[%s1 + $0xe28] sm:$0xf]
  %v954 = vld [vmem:[%s1 + $0xe2c] sm:$0xf]
  %v955 = vld [vmem:[%s1 + $0xe30] sm:$0xf]
  %v956 = vld [vmem:[%s1 + $0xe34] sm:$0xf]
  %v957 = vld [vmem:[%s1 + $0xe38] sm:$0xf]
  %v958 = vld [vmem:[%s1 + $0xe3c] sm:$0xf]
  %v959 = vld [vmem:[%s1 + $0xe40] sm:$0xf]
  %v960 = vld [vmem:[%s1 + $0xe44] sm:$0xf]
  %v961 = vld [vmem:[%s1 + $0xe48] sm:$0xf]
  %v962 = vld [vmem:[%s1 + $0xe4c] sm:$0xf]
  %v963 = vld [vmem:[%s1 + $0xe50] sm:$0xf]
  %v964 = vld [vmem:[%s1 + $0xe54] sm:$0xf]
  %v965 = vld [vmem:[%s1 + $0xe58] sm:$0xf]
  %v966 = vld [vmem:[%s1 + $0xe5c] sm:$0xf]
  %v967 = vld [vmem:[%s1 + $0xe60] sm:$0xf]
  %v968 = vld [vmem:[%s1 + $0xe64] sm:$0xf]
  %v969 = vld [vmem:[%s1 + $0xe68] sm:$0xf]
  %v970 = vld [vmem:[%s1 + $0xe6c] sm:$0xf]
  %v971 = vld [vmem:[%s1 + $0xe70] sm:$0xf]
  %v972 = vld [vmem:[%s1 + $0xe74] sm:$0xf]
  %v973 = vld [vmem:[%s1 + $0xe78] sm:$0xf]
  %v974 = vld [vmem:[%s1 + $0xe7c] sm:$0xf]
  %v975 = vld [vmem:[%s1 + $0xe80] sm:$0xf]
  %v976 = vld [vmem:[%s1 + $0xe84] sm:$0xf]
  %v977 = vld [vmem:[%s1 + $0xe88] sm:$0xf]
  %v978 = vld [vmem:[%s1 + $0xe8c] sm:$0xf]
  %v979 = vld [vmem:[%s1 + $0xe90] sm:$0xf]
  %v980 = vld [vmem:[%s1 + $0xe94] sm:$0xf]
  %v981 = vld [vmem:[%s1 + $0xe98] sm:$0xf]
  %v982 = vld [vmem:[%s1 + $0xe9c] sm:$0xf]
  %v983 = vld [vmem:[%s1 + $0xea0] sm:$0xf]
  %v984 = vld [vmem:[%s1 + $0xea4] sm:$0xf]
  %v985 = vld [vmem:[%s1 + $0xea8] sm:$0xf]
  %v986 = vld [vmem:[%s1 + $0xeac] sm:$0xf]
  %v987 = vld [vmem:[%s1 + $0xeb0] sm:$0xf]
  %v988 = vld [vmem:[%s1 + $0xeb4] sm:$0xf]
  %v989 = vld [vmem:[%s1 + $0xeb8] sm:$0xf]
  %v990 = vld [vmem:[%s1 + $0xebc] sm:$0xf]
  %v991 = vld [vmem:[%s1 + $0xec0] sm:$0xf]
  %v992 = vld [vmem:[%s1 + $0xec4] sm:$0xf]
  %v993 = vld [vmem:[%s1 + $0xec8] sm:$0xf]
  %v994 = vld [vmem:[%s1 + $0xecc] sm:$0xf]
  %v995 = vld [vmem:[%s1 + $0xed0] sm:$0xf]
  %v996 = vld [vmem:[%s1 + $0xed4] sm:$0xf]
  %v997 = vld [vmem:[%s1 + $0xed8] sm:$0xf]
  %v998 = vld [vmem:[%s1 + $0xedc] sm:$0xf]
  %v999 = vld [vmem:[%s1 + $0xee0] sm:$0xf]
  %v1000 = vld [vmem:[%s1 + $0xee4] sm:$0xf]
  %v1001 = vld [vmem:[%s1 + $0xee8] sm:$0xf]
  %v1002 = vld [vmem:[%s1 + $0xeec] sm:$0xf]
  %v1003 = vld [vmem:[%s1 + $0xef0] sm:$0xf]
  %v1004 = vld [vmem:[%s1 + $0xef4] sm:$0xf]
  %v1005 = vld [vmem:[%s1 + $0xef8] sm:$0xf]
  %v1006 = vld [vmem:[%s1 + $0xefc] sm:$0xf]
  %v1007 = vld [vmem:[%s1 + $0xf00] sm:$0xf]
  %v1008 = vld [vmem:[%s1 + $0xf04] sm:$0xf]
  %v1009 = vld [vmem:[%s1 + $0xf08] sm:$0xf]
  %v1010 = vld [vmem:[%s1 + $0xf0c] sm:$0xf]
  %v1011 = vld [vmem:[%s1 + $0xf10] sm:$0xf]
  %v1012 = vld [vmem:[%s1 + $0xf14] sm:$0xf]
  %v1013 = vld [vmem:[%s1 + $0xf18] sm:$0xf]
  %v1014 = vld [vmem:[%s1 + $0xf1c] sm:$0xf]
  %v1015 = vld [vmem:[%s1 + $0xf20] sm:$0xf]
  %v1016 = vld [vmem:[%s1 + $0xf24] sm:$0xf]
  %v1017 = vld [vmem:[%s1 + $0xf28] sm:$0xf]
  %v1018 = vld [vmem:[%s1 + $0xf2c] sm:$0xf]
  %v1019 = vld [vmem:[%s1 + $0xf30] sm:$0xf]
  %v1020 = vld [vmem:[%s1 + $0xf34] sm:$0xf]
  %v1021 = vld [vmem:[%s1 + $0xf38] sm:$0xf]
  %v1022 = vld [vmem:[%s1 + $0xf3c] sm:$0xf]
  %v1023 = vld [vmem:[%s1 + $0xf40] sm:$0xf]
  %v1024 = vld [vmem:[%s1 + $0xf44] sm:$0xf]
  %v1025 = vld [vmem:[%s1 + $0xf48] sm:$0xf]
  %v1026 = vld [vmem:[%s1 + $0xf4c] sm:$0xf]
  %v1027 = vld [vmem:[%s1 + $0xf50] sm:$0xf]
  %v1028 = vld [vmem:[%s1 + $0xf54] sm:$0xf]
  %v1029 = vld [vmem:[%s1 + $0xf58] sm:$0xf]
  %v1030 = vld [vmem:[%s1 + $0xf5c] sm:$0xf]
  %v1031 = vld [vmem:[%s1 + $0xf60] sm:$0xf]
  %v1032 = vld [vmem:[%s1 + $0xf64] sm:$0xf]
  %v1033 = vld [vmem:[%s1 + $0xf68] sm:$0xf]
  %v1034 = vld [vmem:[%s1 + $0xf6c] sm:$0xf]
  %v1035 = vld [vmem:[%s1 + $0xf70] sm:$0xf]
  %v1036 = vld [vmem:[%s1 + $0xf74] sm:$0xf]
  %v1037 = vld [vmem:[%s1 + $0xf78] sm:$0xf]
  %v1038 = vld [vmem:[%s1 + $0xf7c] sm:$0xf]
  %v1039 = vld [vmem:[%s1 + $0xf80] sm:$0xf]
  %v1040 = vld [vmem:[%s1 + $0xf84] sm:$0xf]
  %v1041 = vld [vmem:[%s1 + $0xf88] sm:$0xf]
  %v1042 = vld [vmem:[%s1 + $0xf8c] sm:$0xf]
  %v1043 = vld [vmem:[%s1 + $0xf90] sm:$0xf]
  %v1044 = vld [vmem:[%s1 + $0xf94] sm:$0xf]
  %v1045 = vld [vmem:[%s1 + $0xf98] sm:$0xf]
  %v1046 = vld [vmem:[%s1 + $0xf9c] sm:$0xf]
  %v1047 = vld [vmem:[%s1 + $0xfa0] sm:$0xf]
  %v1048 = vld [vmem:[%s1 + $0xfa4] sm:$0xf]
  %v1049 = vld [vmem:[%s1 + $0xfa8] sm:$0xf]
  %v1050 = vld [vmem:[%s1 + $0xfac] sm:$0xf]
  %v1051 = vld [vmem:[%s1 + $0xfb0] sm:$0xf]
  %v1052 = vld [vmem:[%s1 + $0xfb4] sm:$0xf]
  %v1053 = vld [vmem:[%s1 + $0xfb8] sm:$0xf]
  %v1054 = vld [vmem:[%s1 + $0xfbc] sm:$0xf]
  %v1055 = vld [vmem:[%s1 + $0xfc0] sm:$0xf]
  %v1056 = vld [vmem:[%s1 + $0xfc4] sm:$0xf]
  %v1057 = vld [vmem:[%s1 + $0xfc8] sm:$0xf]
  %v1058 = vld [vmem:[%s1 + $0xfcc] sm:$0xf]
  %v1059 = vld [vmem:[%s1 + $0xfd0] sm:$0xf]
  %v1060 = vld [vmem:[%s1 + $0xfd4] sm:$0xf]
  %v1061 = vld [vmem:[%s1 + $0xfd8] sm:$0xf]
  %v1062 = vld [vmem:[%s1 + $0xfdc] sm:$0xf]
  %v1063 = vld [vmem:[%s1 + $0xfe0] sm:$0xf]
  %v1064 = vld [vmem:[%s1 + $0xfe4] sm:$0xf]
  %v1065 = vld [vmem:[%s1 + $0xfe8] sm:$0xf]
  %v1066 = vld [vmem:[%s1 + $0xfec] sm:$0xf]
  %v1067 = vld [vmem:[%s1 + $0xff0] sm:$0xf]
  %v1068 = vld [vmem:[%s1 + $0xff4] sm:$0xf]
  %v1069 = vld [vmem:[%s1 + $0xff8] sm:$0xf]
  %v1070 = vld [vmem:[%s1 + $0xffc] sm:$0xf]
  %v1071 = vld [vmem:[%s2] sm:$0x1]
  %v1073 = vlaneseq
  %v1074 = vshrl.u32 %v1073, 7
  %v1075 = vsub.s32 0, %v1074
  %v1076 = vrot.slane %v1071, %v1075
  %v1110 = vunpack.c.l.b16 %v15
  %v1111 = vunpack.c.h.b16 %v15
  %v1112 = vunpack.c.l.b16 %v16
  %v1113 = vunpack.c.h.b16 %v16
  %v1114 = vunpack.c.l.b16 %v17
  %v1115 = vunpack.c.h.b16 %v17
  %v1116 = vunpack.c.l.b16 %v18
  %v1117 = vunpack.c.h.b16 %v18
  %v1118 = vunpack.c.l.b16 %v19
  %v1119 = vunpack.c.h.b16 %v19
  %v1120 = vunpack.c.l.b16 %v20
  %v1121 = vunpack.c.h.b16 %v20
  %v1122 = vunpack.c.l.b16 %v21
  %v1123 = vunpack.c.h.b16 %v21
  %v1124 = vunpack.c.l.b16 %v22
  %v1125 = vunpack.c.h.b16 %v22
  %v1126 = vunpack.c.l.b16 %v23
  %v1127 = vunpack.c.h.b16 %v23
  %v1128 = vunpack.c.l.b16 %v24
  %v1129 = vunpack.c.h.b16 %v24
  %v1130 = vunpack.c.l.b16 %v25
  %v1131 = vunpack.c.h.b16 %v25
  %v1132 = vunpack.c.l.b16 %v26
  %v1133 = vunpack.c.h.b16 %v26
  %v1134 = vunpack.c.l.b16 %v27
  %v1135 = vunpack.c.h.b16 %v27
  %v1136 = vunpack.c.l.b16 %v28
  %v1137 = vunpack.c.h.b16 %v28
  %v1138 = vunpack.c.l.b16 %v29
  %v1139 = vunpack.c.h.b16 %v29
  %v1140 = vunpack.c.l.b16 %v30
  %v1141 = vunpack.c.h.b16 %v30
  %v1142 = vunpack.c.l.b16 %v31
  %v1143 = vunpack.c.h.b16 %v31
  %v1144 = vunpack.c.l.b16 %v32
  %v1145 = vunpack.c.h.b16 %v32
  %v1146 = vunpack.c.l.b16 %v33
  %v1147 = vunpack.c.h.b16 %v33
  %v1148 = vunpack.c.l.b16 %v34
  %v1149 = vunpack.c.h.b16 %v34
  %v1150 = vunpack.c.l.b16 %v35
  %v1151 = vunpack.c.h.b16 %v35
  %v1152 = vunpack.c.l.b16 %v36
  %v1153 = vunpack.c.h.b16 %v36
  %v1154 = vunpack.c.l.b16 %v37
  %v1155 = vunpack.c.h.b16 %v37
  %v1156 = vunpack.c.l.b16 %v38
  %v1157 = vunpack.c.h.b16 %v38
  %v1158 = vunpack.c.l.b16 %v39
  %v1159 = vunpack.c.h.b16 %v39
  %v1160 = vunpack.c.l.b16 %v40
  %v1161 = vunpack.c.h.b16 %v40
  %v1162 = vunpack.c.l.b16 %v41
  %v1163 = vunpack.c.h.b16 %v41
  %v1164 = vunpack.c.l.b16 %v42
  %v1165 = vunpack.c.h.b16 %v42
  %v1166 = vunpack.c.l.b16 %v43
  %v1167 = vunpack.c.h.b16 %v43
  %v1168 = vunpack.c.l.b16 %v44
  %v1169 = vunpack.c.h.b16 %v44
  %v1170 = vunpack.c.l.b16 %v45
  %v1171 = vunpack.c.h.b16 %v45
  %v1172 = vunpack.c.l.b16 %v46
  %v1173 = vunpack.c.h.b16 %v46
  %v1174 = vpack.c.b16 %v1110, %v1110
  %v1175 = vpack.c.b16 %v1111, %v1111
  %v1176 = vpack.c.b16 %v1112, %v1112
  %v1177 = vpack.c.b16 %v1113, %v1113
  %v1178 = vpack.c.b16 %v1114, %v1114
  %v1179 = vpack.c.b16 %v1115, %v1115
  %v1180 = vpack.c.b16 %v1116, %v1116
  %v1181 = vpack.c.b16 %v1117, %v1117
  %v1182 = vpack.c.b16 %v1118, %v1118
  %v1183 = vpack.c.b16 %v1119, %v1119
  %v1184 = vpack.c.b16 %v1120, %v1120
  %v1185 = vpack.c.b16 %v1121, %v1121
  %v1186 = vpack.c.b16 %v1122, %v1122
  %v1187 = vpack.c.b16 %v1123, %v1123
  %v1188 = vpack.c.b16 %v1124, %v1124
  %v1189 = vpack.c.b16 %v1125, %v1125
  %v1190 = vpack.c.b16 %v1126, %v1126
  %v1191 = vpack.c.b16 %v1127, %v1127
  %v1192 = vpack.c.b16 %v1128, %v1128
  %v1193 = vpack.c.b16 %v1129, %v1129
  %v1194 = vpack.c.b16 %v1130, %v1130
  %v1195 = vpack.c.b16 %v1131, %v1131
  %v1196 = vpack.c.b16 %v1132, %v1132
  %v1197 = vpack.c.b16 %v1133, %v1133
  %v1198 = vpack.c.b16 %v1134, %v1134
  %v1199 = vpack.c.b16 %v1135, %v1135
  %v1200 = vpack.c.b16 %v1136, %v1136
  %v1201 = vpack.c.b16 %v1137, %v1137
  %v1202 = vpack.c.b16 %v1138, %v1138
  %v1203 = vpack.c.b16 %v1139, %v1139
  %v1204 = vpack.c.b16 %v1140, %v1140
  %v1205 = vpack.c.b16 %v1141, %v1141
  %v1206 = vpack.c.b16 %v1142, %v1142
  %v1207 = vpack.c.b16 %v1143, %v1143
  %v1208 = vpack.c.b16 %v1144, %v1144
  %v1209 = vpack.c.b16 %v1145, %v1145
  %v1210 = vpack.c.b16 %v1146, %v1146
  %v1211 = vpack.c.b16 %v1147, %v1147
  %v1212 = vpack.c.b16 %v1148, %v1148
  %v1213 = vpack.c.b16 %v1149, %v1149
  %v1214 = vpack.c.b16 %v1150, %v1150
  %v1215 = vpack.c.b16 %v1151, %v1151
  %v1216 = vpack.c.b16 %v1152, %v1152
  %v1217 = vpack.c.b16 %v1153, %v1153
  %v1218 = vpack.c.b16 %v1154, %v1154
  %v1219 = vpack.c.b16 %v1155, %v1155
  %v1220 = vpack.c.b16 %v1156, %v1156
  %v1221 = vpack.c.b16 %v1157, %v1157
  %v1222 = vpack.c.b16 %v1158, %v1158
  %v1223 = vpack.c.b16 %v1159, %v1159
  %v1224 = vpack.c.b16 %v1160, %v1160
  %v1225 = vpack.c.b16 %v1161, %v1161
  %v1226 = vpack.c.b16 %v1162, %v1162
  %v1227 = vpack.c.b16 %v1163, %v1163
  %v1228 = vpack.c.b16 %v1164, %v1164
  %v1229 = vpack.c.b16 %v1165, %v1165
  %v1230 = vpack.c.b16 %v1166, %v1166
  %v1231 = vpack.c.b16 %v1167, %v1167
  %v1232 = vpack.c.b16 %v1168, %v1168
  %v1233 = vpack.c.b16 %v1169, %v1169
  %v1234 = vpack.c.b16 %v1170, %v1170
  %v1235 = vpack.c.b16 %v1171, %v1171
  %v1236 = vpack.c.b16 %v1172, %v1172
  %v1237 = vpack.c.b16 %v1173, %v1173
  %v2326 = vunpack.c.l.b16 %v47
  %v2327 = vunpack.c.l.b16 %v48
  %v2328 = vunpack.c.l.b16 %v49
  %v2329 = vunpack.c.l.b16 %v50
  %v2330 = vunpack.c.l.b16 %v51
  %v2331 = vunpack.c.l.b16 %v52
  %v2332 = vunpack.c.l.b16 %v53
  %v2333 = vunpack.c.l.b16 %v54
  %v2334 = vunpack.c.l.b16 %v55
  %v2335 = vunpack.c.l.b16 %v56
  %v2336 = vunpack.c.l.b16 %v57
  %v2337 = vunpack.c.l.b16 %v58
  %v2338 = vunpack.c.l.b16 %v59
  %v2339 = vunpack.c.l.b16 %v60
  %v2340 = vunpack.c.l.b16 %v61
  %v2341 = vunpack.c.l.b16 %v62
  %v2342 = vunpack.c.l.b16 %v63
  %v2343 = vunpack.c.l.b16 %v64
  %v2344 = vunpack.c.l.b16 %v65
  %v2345 = vunpack.c.l.b16 %v66
  %v2346 = vunpack.c.l.b16 %v67
  %v2347 = vunpack.c.l.b16 %v68
  %v2348 = vunpack.c.l.b16 %v69
  %v2349 = vunpack.c.l.b16 %v70
  %v2350 = vunpack.c.l.b16 %v71
  %v2351 = vunpack.c.l.b16 %v72
  %v2352 = vunpack.c.l.b16 %v73
  %v2353 = vunpack.c.l.b16 %v74
  %v2354 = vunpack.c.l.b16 %v75
  %v2355 = vunpack.c.l.b16 %v76
  %v2356 = vunpack.c.l.b16 %v77
  %v2357 = vunpack.c.l.b16 %v78
  %v2358 = vunpack.c.l.b16 %v79
  %v2359 = vunpack.c.l.b16 %v80
  %v2360 = vunpack.c.l.b16 %v81
  %v2361 = vunpack.c.l.b16 %v82
  %v2362 = vunpack.c.l.b16 %v83
  %v2363 = vunpack.c.l.b16 %v84
  %v2364 = vunpack.c.l.b16 %v85
  %v2365 = vunpack.c.l.b16 %v86
  %v2366 = vunpack.c.l.b16 %v87
  %v2367 = vunpack.c.l.b16 %v88
  %v2368 = vunpack.c.l.b16 %v89
  %v2369 = vunpack.c.l.b16 %v90
  %v2370 = vunpack.c.l.b16 %v91
  %v2371 = vunpack.c.l.b16 %v92
  %v2372 = vunpack.c.l.b16 %v93
  %v2373 = vunpack.c.l.b16 %v94
  %v2374 = vunpack.c.l.b16 %v95
  %v2375 = vunpack.c.l.b16 %v96
  %v2376 = vunpack.c.l.b16 %v97
  %v2377 = vunpack.c.l.b16 %v98
  %v2378 = vunpack.c.l.b16 %v99
  %v2379 = vunpack.c.l.b16 %v100
  %v2380 = vunpack.c.l.b16 %v101
  %v2381 = vunpack.c.l.b16 %v102
  %v2382 = vunpack.c.l.b16 %v103
  %v2383 = vunpack.c.l.b16 %v104
  %v2384 = vunpack.c.l.b16 %v105
  %v2385 = vunpack.c.l.b16 %v106
  %v2386 = vunpack.c.l.b16 %v107
  %v2387 = vunpack.c.l.b16 %v108
  %v2388 = vunpack.c.l.b16 %v109
  %v2389 = vunpack.c.l.b16 %v110
  %v2390 = vunpack.c.l.b16 %v111
  %v2391 = vunpack.c.l.b16 %v112
  %v2392 = vunpack.c.l.b16 %v113
  %v2393 = vunpack.c.l.b16 %v114
  %v2394 = vunpack.c.l.b16 %v115
  %v2395 = vunpack.c.l.b16 %v116
  %v2396 = vunpack.c.l.b16 %v117
  %v2397 = vunpack.c.l.b16 %v118
  %v2398 = vunpack.c.l.b16 %v119
  %v2399 = vunpack.c.l.b16 %v120
  %v2400 = vunpack.c.l.b16 %v121
  %v2401 = vunpack.c.l.b16 %v122
  %v2402 = vunpack.c.l.b16 %v123
  %v2403 = vunpack.c.l.b16 %v124
  %v2404 = vunpack.c.l.b16 %v125
  %v2405 = vunpack.c.l.b16 %v126
  %v2406 = vunpack.c.l.b16 %v127
  %v2407 = vunpack.c.l.b16 %v128
  %v2408 = vunpack.c.l.b16 %v129
  %v2409 = vunpack.c.l.b16 %v130
  %v2410 = vunpack.c.l.b16 %v131
  %v2411 = vunpack.c.l.b16 %v132
  %v2412 = vunpack.c.l.b16 %v133
  %v2413 = vunpack.c.l.b16 %v134
  %v2414 = vunpack.c.l.b16 %v135
  %v2415 = vunpack.c.l.b16 %v136
  %v2416 = vunpack.c.l.b16 %v137
  %v2417 = vunpack.c.l.b16 %v138
  %v2418 = vunpack.c.l.b16 %v139
  %v2419 = vunpack.c.l.b16 %v140
  %v2420 = vunpack.c.l.b16 %v141
  %v2421 = vunpack.c.l.b16 %v142
  %v2422 = vunpack.c.l.b16 %v143
  %v2423 = vunpack.c.l.b16 %v144
  %v2424 = vunpack.c.l.b16 %v145
  %v2425 = vunpack.c.l.b16 %v146
  %v2426 = vunpack.c.l.b16 %v147
  %v2427 = vunpack.c.l.b16 %v148
  %v2428 = vunpack.c.l.b16 %v149
  %v2429 = vunpack.c.l.b16 %v150
  %v2430 = vunpack.c.l.b16 %v151
  %v2431 = vunpack.c.l.b16 %v152
  %v2432 = vunpack.c.l.b16 %v153
  %v2433 = vunpack.c.l.b16 %v154
  %v2434 = vunpack.c.l.b16 %v155
  %v2435 = vunpack.c.l.b16 %v156
  %v2436 = vunpack.c.l.b16 %v157
  %v2437 = vunpack.c.l.b16 %v158
  %v2438 = vunpack.c.l.b16 %v159
  %v2439 = vunpack.c.l.b16 %v160
  %v2440 = vunpack.c.l.b16 %v161
  %v2441 = vunpack.c.l.b16 %v162
  %v2442 = vunpack.c.l.b16 %v163
  %v2443 = vunpack.c.l.b16 %v164
  %v2444 = vunpack.c.l.b16 %v165
  %v2445 = vunpack.c.l.b16 %v166
  %v2446 = vunpack.c.l.b16 %v167
  %v2447 = vunpack.c.l.b16 %v168
  %v2448 = vunpack.c.l.b16 %v169
  %v2449 = vunpack.c.l.b16 %v170
  %v2450 = vunpack.c.l.b16 %v171
  %v2451 = vunpack.c.l.b16 %v172
  %v2452 = vunpack.c.l.b16 %v173
  %v2453 = vunpack.c.l.b16 %v174
  %v2454 = vunpack.c.l.b16 %v175
  %v2455 = vunpack.c.l.b16 %v176
  %v2456 = vunpack.c.l.b16 %v177
  %v2457 = vunpack.c.l.b16 %v178
  %v2458 = vunpack.c.l.b16 %v179
  %v2459 = vunpack.c.l.b16 %v180
  %v2460 = vunpack.c.l.b16 %v181
  %v2461 = vunpack.c.l.b16 %v182
  %v2462 = vunpack.c.l.b16 %v183
  %v2463 = vunpack.c.l.b16 %v184
  %v2464 = vunpack.c.l.b16 %v185
  %v2465 = vunpack.c.l.b16 %v186
  %v2466 = vunpack.c.l.b16 %v187
  %v2467 = vunpack.c.l.b16 %v188
  %v2468 = vunpack.c.l.b16 %v189
  %v2469 = vunpack.c.l.b16 %v190
  %v2470 = vunpack.c.l.b16 %v191
  %v2471 = vunpack.c.l.b16 %v192
  %v2472 = vunpack.c.l.b16 %v193
  %v2473 = vunpack.c.l.b16 %v194
  %v2474 = vunpack.c.l.b16 %v195
  %v2475 = vunpack.c.l.b16 %v196
  %v2476 = vunpack.c.l.b16 %v197
  %v2477 = vunpack.c.l.b16 %v198
  %v2478 = vunpack.c.l.b16 %v199
  %v2479 = vunpack.c.l.b16 %v200
  %v2480 = vunpack.c.l.b16 %v201
  %v2481 = vunpack.c.l.b16 %v202
  %v2482 = vunpack.c.l.b16 %v203
  %v2483 = vunpack.c.l.b16 %v204
  %v2484 = vunpack.c.l.b16 %v205
  %v2485 = vunpack.c.l.b16 %v206
  %v2486 = vunpack.c.l.b16 %v207
  %v2487 = vunpack.c.l.b16 %v208
  %v2488 = vunpack.c.l.b16 %v209
  %v2489 = vunpack.c.l.b16 %v210
  %v2490 = vunpack.c.l.b16 %v211
  %v2491 = vunpack.c.l.b16 %v212
  %v2492 = vunpack.c.l.b16 %v213
  %v2493 = vunpack.c.l.b16 %v214
  %v2494 = vunpack.c.l.b16 %v215
  %v2495 = vunpack.c.l.b16 %v216
  %v2496 = vunpack.c.l.b16 %v217
  %v2497 = vunpack.c.l.b16 %v218
  %v2498 = vunpack.c.l.b16 %v219
  %v2499 = vunpack.c.l.b16 %v220
  %v2500 = vunpack.c.l.b16 %v221
  %v2501 = vunpack.c.l.b16 %v222
  %v2502 = vunpack.c.l.b16 %v223
  %v2503 = vunpack.c.l.b16 %v224
  %v2504 = vunpack.c.l.b16 %v225
  %v2505 = vunpack.c.l.b16 %v226
  %v2506 = vunpack.c.l.b16 %v227
  %v2507 = vunpack.c.l.b16 %v228
  %v2508 = vunpack.c.l.b16 %v229
  %v2509 = vunpack.c.l.b16 %v230
  %v2510 = vunpack.c.l.b16 %v231
  %v2511 = vunpack.c.l.b16 %v232
  %v2512 = vunpack.c.l.b16 %v233
  %v2513 = vunpack.c.l.b16 %v234
  %v2514 = vunpack.c.l.b16 %v235
  %v2515 = vunpack.c.l.b16 %v236
  %v2516 = vunpack.c.l.b16 %v237
  %v2517 = vunpack.c.l.b16 %v238
  %v2518 = vunpack.c.l.b16 %v239
  %v2519 = vunpack.c.l.b16 %v240
  %v2520 = vunpack.c.l.b16 %v241
  %v2521 = vunpack.c.l.b16 %v242
  %v2522 = vunpack.c.l.b16 %v243
  %v2523 = vunpack.c.l.b16 %v244
  %v2524 = vunpack.c.l.b16 %v245
  %v2525 = vunpack.c.l.b16 %v246
  %v2526 = vunpack.c.l.b16 %v247
  %v2527 = vunpack.c.l.b16 %v248
  %v2528 = vunpack.c.l.b16 %v249
  %v2529 = vunpack.c.l.b16 %v250
  %v2530 = vunpack.c.l.b16 %v251
  %v2531 = vunpack.c.l.b16 %v252
  %v2532 = vunpack.c.l.b16 %v253
  %v2533 = vunpack.c.l.b16 %v254
  %v2534 = vunpack.c.l.b16 %v255
  %v2535 = vunpack.c.l.b16 %v256
  %v2536 = vunpack.c.l.b16 %v257
  %v2537 = vunpack.c.l.b16 %v258
  %v2538 = vunpack.c.l.b16 %v259
  %v2539 = vunpack.c.l.b16 %v260
  %v2540 = vunpack.c.l.b16 %v261
  %v2541 = vunpack.c.l.b16 %v262
  %v2542 = vunpack.c.l.b16 %v263
  %v2543 = vunpack.c.l.b16 %v264
  %v2544 = vunpack.c.l.b16 %v265
  %v2545 = vunpack.c.l.b16 %v266
  %v2546 = vunpack.c.l.b16 %v267
  %v2547 = vunpack.c.l.b16 %v268
  %v2548 = vunpack.c.l.b16 %v269
  %v2549 = vunpack.c.l.b16 %v270
  %v2550 = vunpack.c.l.b16 %v271
  %v2551 = vunpack.c.l.b16 %v272
  %v2552 = vunpack.c.l.b16 %v273
  %v2553 = vunpack.c.l.b16 %v274
  %v2554 = vunpack.c.l.b16 %v275
  %v2555 = vunpack.c.l.b16 %v276
  %v2556 = vunpack.c.l.b16 %v277
  %v2557 = vunpack.c.l.b16 %v278
  %v2558 = vunpack.c.l.b16 %v279
  %v2559 = vunpack.c.l.b16 %v280
  %v2560 = vunpack.c.l.b16 %v281
  %v2561 = vunpack.c.l.b16 %v282
  %v2562 = vunpack.c.l.b16 %v283
  %v2563 = vunpack.c.l.b16 %v284
  %v2564 = vunpack.c.l.b16 %v285
  %v2565 = vunpack.c.l.b16 %v286
  %v2566 = vunpack.c.l.b16 %v287
  %v2567 = vunpack.c.l.b16 %v288
  %v2568 = vunpack.c.l.b16 %v289
  %v2569 = vunpack.c.l.b16 %v290
  %v2570 = vunpack.c.l.b16 %v291
  %v2571 = vunpack.c.l.b16 %v292
  %v2572 = vunpack.c.l.b16 %v293
  %v2573 = vunpack.c.l.b16 %v294
  %v2574 = vunpack.c.l.b16 %v295
  %v2575 = vunpack.c.l.b16 %v296
  %v2576 = vunpack.c.l.b16 %v297
  %v2577 = vunpack.c.l.b16 %v298
  %v2578 = vunpack.c.l.b16 %v299
  %v2579 = vunpack.c.l.b16 %v300
  %v2580 = vunpack.c.l.b16 %v301
  %v2581 = vunpack.c.l.b16 %v302
  %v2582 = vunpack.c.l.b16 %v303
  %v2583 = vunpack.c.l.b16 %v304
  %v2584 = vunpack.c.l.b16 %v305
  %v2585 = vunpack.c.l.b16 %v306
  %v2586 = vunpack.c.l.b16 %v307
  %v2587 = vunpack.c.l.b16 %v308
  %v2588 = vunpack.c.l.b16 %v309
  %v2589 = vunpack.c.l.b16 %v310
  %v2590 = vunpack.c.l.b16 %v311
  %v2591 = vunpack.c.l.b16 %v312
  %v2592 = vunpack.c.l.b16 %v313
  %v2593 = vunpack.c.l.b16 %v314
  %v2594 = vunpack.c.l.b16 %v315
  %v2595 = vunpack.c.l.b16 %v316
  %v2596 = vunpack.c.l.b16 %v317
  %v2597 = vunpack.c.l.b16 %v318
  %v2598 = vunpack.c.l.b16 %v319
  %v2599 = vunpack.c.l.b16 %v320
  %v2600 = vunpack.c.l.b16 %v321
  %v2601 = vunpack.c.l.b16 %v322
  %v2602 = vunpack.c.l.b16 %v323
  %v2603 = vunpack.c.l.b16 %v324
  %v2604 = vunpack.c.l.b16 %v325
  %v2605 = vunpack.c.l.b16 %v326
  %v2606 = vunpack.c.l.b16 %v327
  %v2607 = vunpack.c.l.b16 %v328
  %v2608 = vunpack.c.l.b16 %v329
  %v2609 = vunpack.c.l.b16 %v330
  %v2610 = vunpack.c.l.b16 %v331
  %v2611 = vunpack.c.l.b16 %v332
  %v2612 = vunpack.c.l.b16 %v333
  %v2613 = vunpack.c.l.b16 %v334
  %v2614 = vunpack.c.l.b16 %v335
  %v2615 = vunpack.c.l.b16 %v336
  %v2616 = vunpack.c.l.b16 %v337
  %v2617 = vunpack.c.l.b16 %v338
  %v2618 = vunpack.c.l.b16 %v339
  %v2619 = vunpack.c.l.b16 %v340
  %v2620 = vunpack.c.l.b16 %v341
  %v2621 = vunpack.c.l.b16 %v342
  %v2622 = vunpack.c.l.b16 %v343
  %v2623 = vunpack.c.l.b16 %v344
  %v2624 = vunpack.c.l.b16 %v345
  %v2625 = vunpack.c.l.b16 %v346
  %v2626 = vunpack.c.l.b16 %v347
  %v2627 = vunpack.c.l.b16 %v348
  %v2628 = vunpack.c.l.b16 %v349
  %v2629 = vunpack.c.l.b16 %v350
  %v2630 = vunpack.c.l.b16 %v351
  %v2631 = vunpack.c.l.b16 %v352
  %v2632 = vunpack.c.l.b16 %v353
  %v2633 = vunpack.c.l.b16 %v354
  %v2634 = vunpack.c.l.b16 %v355
  %v2635 = vunpack.c.l.b16 %v356
  %v2636 = vunpack.c.l.b16 %v357
  %v2637 = vunpack.c.l.b16 %v358
  %v2638 = vunpack.c.l.b16 %v359
  %v2639 = vunpack.c.l.b16 %v360
  %v2640 = vunpack.c.l.b16 %v361
  %v2641 = vunpack.c.l.b16 %v362
  %v2642 = vunpack.c.l.b16 %v363
  %v2643 = vunpack.c.l.b16 %v364
  %v2644 = vunpack.c.l.b16 %v365
  %v2645 = vunpack.c.l.b16 %v366
  %v2646 = vunpack.c.l.b16 %v367
  %v2647 = vunpack.c.l.b16 %v368
  %v2648 = vunpack.c.l.b16 %v369
  %v2649 = vunpack.c.l.b16 %v370
  %v2650 = vunpack.c.l.b16 %v371
  %v2651 = vunpack.c.l.b16 %v372
  %v2652 = vunpack.c.l.b16 %v373
  %v2653 = vunpack.c.l.b16 %v374
  %v2654 = vunpack.c.l.b16 %v375
  %v2655 = vunpack.c.l.b16 %v376
  %v2656 = vunpack.c.l.b16 %v377
  %v2657 = vunpack.c.l.b16 %v378
  %v2658 = vunpack.c.l.b16 %v379
  %v2659 = vunpack.c.l.b16 %v380
  %v2660 = vunpack.c.l.b16 %v381
  %v2661 = vunpack.c.l.b16 %v382
  %v2662 = vunpack.c.l.b16 %v383
  %v2663 = vunpack.c.l.b16 %v384
  %v2664 = vunpack.c.l.b16 %v385
  %v2665 = vunpack.c.l.b16 %v386
  %v2666 = vunpack.c.l.b16 %v387
  %v2667 = vunpack.c.l.b16 %v388
  %v2668 = vunpack.c.l.b16 %v389
  %v2669 = vunpack.c.l.b16 %v390
  %v2670 = vunpack.c.l.b16 %v391
  %v2671 = vunpack.c.l.b16 %v392
  %v2672 = vunpack.c.l.b16 %v393
  %v2673 = vunpack.c.l.b16 %v394
  %v2674 = vunpack.c.l.b16 %v395
  %v2675 = vunpack.c.l.b16 %v396
  %v2676 = vunpack.c.l.b16 %v397
  %v2677 = vunpack.c.l.b16 %v398
  %v2678 = vunpack.c.l.b16 %v399
  %v2679 = vunpack.c.l.b16 %v400
  %v2680 = vunpack.c.l.b16 %v401
  %v2681 = vunpack.c.l.b16 %v402
  %v2682 = vunpack.c.l.b16 %v403
  %v2683 = vunpack.c.l.b16 %v404
  %v2684 = vunpack.c.l.b16 %v405
  %v2685 = vunpack.c.l.b16 %v406
  %v2686 = vunpack.c.l.b16 %v407
  %v2687 = vunpack.c.l.b16 %v408
  %v2688 = vunpack.c.l.b16 %v409
  %v2689 = vunpack.c.l.b16 %v410
  %v2690 = vunpack.c.l.b16 %v411
  %v2691 = vunpack.c.l.b16 %v412
  %v2692 = vunpack.c.l.b16 %v413
  %v2693 = vunpack.c.l.b16 %v414
  %v2694 = vunpack.c.l.b16 %v415
  %v2695 = vunpack.c.l.b16 %v416
  %v2696 = vunpack.c.l.b16 %v417
  %v2697 = vunpack.c.l.b16 %v418
  %v2698 = vunpack.c.l.b16 %v419
  %v2699 = vunpack.c.l.b16 %v420
  %v2700 = vunpack.c.l.b16 %v421
  %v2701 = vunpack.c.l.b16 %v422
  %v2702 = vunpack.c.l.b16 %v423
  %v2703 = vunpack.c.l.b16 %v424
  %v2704 = vunpack.c.l.b16 %v425
  %v2705 = vunpack.c.l.b16 %v426
  %v2706 = vunpack.c.l.b16 %v427
  %v2707 = vunpack.c.l.b16 %v428
  %v2708 = vunpack.c.l.b16 %v429
  %v2709 = vunpack.c.l.b16 %v430
  %v2710 = vunpack.c.l.b16 %v431
  %v2711 = vunpack.c.l.b16 %v432
  %v2712 = vunpack.c.l.b16 %v433
  %v2713 = vunpack.c.l.b16 %v434
  %v2714 = vunpack.c.l.b16 %v435
  %v2715 = vunpack.c.l.b16 %v436
  %v2716 = vunpack.c.l.b16 %v437
  %v2717 = vunpack.c.l.b16 %v438
  %v2718 = vunpack.c.l.b16 %v439
  %v2719 = vunpack.c.l.b16 %v440
  %v2720 = vunpack.c.l.b16 %v441
  %v2721 = vunpack.c.l.b16 %v442
  %v2722 = vunpack.c.l.b16 %v443
  %v2723 = vunpack.c.l.b16 %v444
  %v2724 = vunpack.c.l.b16 %v445
  %v2725 = vunpack.c.l.b16 %v446
  %v2726 = vunpack.c.l.b16 %v447
  %v2727 = vunpack.c.l.b16 %v448
  %v2728 = vunpack.c.l.b16 %v449
  %v2729 = vunpack.c.l.b16 %v450
  %v2730 = vunpack.c.l.b16 %v451
  %v2731 = vunpack.c.l.b16 %v452
  %v2732 = vunpack.c.l.b16 %v453
  %v2733 = vunpack.c.l.b16 %v454
  %v2734 = vunpack.c.l.b16 %v455
  %v2735 = vunpack.c.l.b16 %v456
  %v2736 = vunpack.c.l.b16 %v457
  %v2737 = vunpack.c.l.b16 %v458
  %v2738 = vunpack.c.l.b16 %v459
  %v2739 = vunpack.c.l.b16 %v460
  %v2740 = vunpack.c.l.b16 %v461
  %v2741 = vunpack.c.l.b16 %v462
  %v2742 = vunpack.c.l.b16 %v463
  %v2743 = vunpack.c.l.b16 %v464
  %v2744 = vunpack.c.l.b16 %v465
  %v2745 = vunpack.c.l.b16 %v466
  %v2746 = vunpack.c.l.b16 %v467
  %v2747 = vunpack.c.l.b16 %v468
  %v2748 = vunpack.c.l.b16 %v469
  %v2749 = vunpack.c.l.b16 %v470
  %v2750 = vunpack.c.l.b16 %v471
  %v2751 = vunpack.c.l.b16 %v472
  %v2752 = vunpack.c.l.b16 %v473
  %v2753 = vunpack.c.l.b16 %v474
  %v2754 = vunpack.c.l.b16 %v475
  %v2755 = vunpack.c.l.b16 %v476
  %v2756 = vunpack.c.l.b16 %v477
  %v2757 = vunpack.c.l.b16 %v478
  %v2758 = vunpack.c.l.b16 %v479
  %v2759 = vunpack.c.l.b16 %v480
  %v2760 = vunpack.c.l.b16 %v481
  %v2761 = vunpack.c.l.b16 %v482
  %v2762 = vunpack.c.l.b16 %v483
  %v2763 = vunpack.c.l.b16 %v484
  %v2764 = vunpack.c.l.b16 %v485
  %v2765 = vunpack.c.l.b16 %v486
  %v2766 = vunpack.c.l.b16 %v487
  %v2767 = vunpack.c.l.b16 %v488
  %v2768 = vunpack.c.l.b16 %v489
  %v2769 = vunpack.c.l.b16 %v490
  %v2770 = vunpack.c.l.b16 %v491
  %v2771 = vunpack.c.l.b16 %v492
  %v2772 = vunpack.c.l.b16 %v493
  %v2773 = vunpack.c.l.b16 %v494
  %v2774 = vunpack.c.l.b16 %v495
  %v2775 = vunpack.c.l.b16 %v496
  %v2776 = vunpack.c.l.b16 %v497
  %v2777 = vunpack.c.l.b16 %v498
  %v2778 = vunpack.c.l.b16 %v499
  %v2779 = vunpack.c.l.b16 %v500
  %v2780 = vunpack.c.l.b16 %v501
  %v2781 = vunpack.c.l.b16 %v502
  %v2782 = vunpack.c.l.b16 %v503
  %v2783 = vunpack.c.l.b16 %v504
  %v2784 = vunpack.c.l.b16 %v505
  %v2785 = vunpack.c.l.b16 %v506
  %v2786 = vunpack.c.l.b16 %v507
  %v2787 = vunpack.c.l.b16 %v508
  %v2788 = vunpack.c.l.b16 %v509
  %v2789 = vunpack.c.l.b16 %v510
  %v2790 = vunpack.c.l.b16 %v511
  %v2791 = vunpack.c.l.b16 %v512
  %v2792 = vunpack.c.l.b16 %v513
  %v2793 = vunpack.c.l.b16 %v514
  %v2794 = vunpack.c.l.b16 %v515
  %v2795 = vunpack.c.l.b16 %v516
  %v2796 = vunpack.c.l.b16 %v517
  %v2797 = vunpack.c.l.b16 %v518
  %v2798 = vunpack.c.l.b16 %v519
  %v2799 = vunpack.c.l.b16 %v520
  %v2800 = vunpack.c.l.b16 %v521
  %v2801 = vunpack.c.l.b16 %v522
  %v2802 = vunpack.c.l.b16 %v523
  %v2803 = vunpack.c.l.b16 %v524
  %v2804 = vunpack.c.l.b16 %v525
  %v2805 = vunpack.c.l.b16 %v526
  %v2806 = vunpack.c.l.b16 %v527
  %v2807 = vunpack.c.l.b16 %v528
  %v2808 = vunpack.c.l.b16 %v529
  %v2809 = vunpack.c.l.b16 %v530
  %v2810 = vunpack.c.l.b16 %v531
  %v2811 = vunpack.c.l.b16 %v532
  %v2812 = vunpack.c.l.b16 %v533
  %v2813 = vunpack.c.l.b16 %v534
  %v2814 = vunpack.c.l.b16 %v535
  %v2815 = vunpack.c.l.b16 %v536
  %v2816 = vunpack.c.l.b16 %v537
  %v2817 = vunpack.c.l.b16 %v538
  %v2818 = vunpack.c.l.b16 %v539
  %v2819 = vunpack.c.l.b16 %v540
  %v2820 = vunpack.c.l.b16 %v541
  %v2821 = vunpack.c.l.b16 %v542
  %v2822 = vunpack.c.l.b16 %v543
  %v2823 = vunpack.c.l.b16 %v544
  %v2824 = vunpack.c.l.b16 %v545
  %v2825 = vunpack.c.l.b16 %v546
  %v2826 = vunpack.c.l.b16 %v547
  %v2827 = vunpack.c.l.b16 %v548
  %v2828 = vunpack.c.l.b16 %v549
  %v2829 = vunpack.c.l.b16 %v550
  %v2830 = vunpack.c.l.b16 %v551
  %v2831 = vunpack.c.l.b16 %v552
  %v2832 = vunpack.c.l.b16 %v553
  %v2833 = vunpack.c.l.b16 %v554
  %v2834 = vunpack.c.l.b16 %v555
  %v2835 = vunpack.c.l.b16 %v556
  %v2836 = vunpack.c.l.b16 %v557
  %v2837 = vunpack.c.l.b16 %v558
  %v2838 = vunpack.c.l.b16 %v559
  %v2839 = vunpack.c.l.b16 %v560
  %v2840 = vunpack.c.l.b16 %v561
  %v2841 = vunpack.c.l.b16 %v562
  %v2842 = vunpack.c.l.b16 %v563
  %v2843 = vunpack.c.l.b16 %v564
  %v2844 = vunpack.c.l.b16 %v565
  %v2845 = vunpack.c.l.b16 %v566
  %v2846 = vunpack.c.l.b16 %v567
  %v2847 = vunpack.c.l.b16 %v568
  %v2848 = vunpack.c.l.b16 %v569
  %v2849 = vunpack.c.l.b16 %v570
  %v2850 = vunpack.c.l.b16 %v571
  %v2851 = vunpack.c.l.b16 %v572
  %v2852 = vunpack.c.l.b16 %v573
  %v2853 = vunpack.c.l.b16 %v574
  %v2854 = vunpack.c.l.b16 %v575
  %v2855 = vunpack.c.l.b16 %v576
  %v2856 = vunpack.c.l.b16 %v577
  %v2857 = vunpack.c.l.b16 %v578
  %v2858 = vunpack.c.l.b16 %v579
  %v2859 = vunpack.c.l.b16 %v580
  %v2860 = vunpack.c.l.b16 %v581
  %v2861 = vunpack.c.l.b16 %v582
  %v2862 = vunpack.c.l.b16 %v583
  %v2863 = vunpack.c.l.b16 %v584
  %v2864 = vunpack.c.l.b16 %v585
  %v2865 = vunpack.c.l.b16 %v586
  %v2866 = vunpack.c.l.b16 %v587
  %v2867 = vunpack.c.l.b16 %v588
  %v2868 = vunpack.c.l.b16 %v589
  %v2869 = vunpack.c.l.b16 %v590
  %v2870 = vunpack.c.l.b16 %v591
  %v2871 = vunpack.c.l.b16 %v592
  %v2872 = vunpack.c.l.b16 %v593
  %v2873 = vunpack.c.l.b16 %v594
  %v2874 = vunpack.c.l.b16 %v595
  %v2875 = vunpack.c.l.b16 %v596
  %v2876 = vunpack.c.l.b16 %v597
  %v2877 = vunpack.c.l.b16 %v598
  %v2878 = vunpack.c.l.b16 %v599
  %v2879 = vunpack.c.l.b16 %v600
  %v2880 = vunpack.c.l.b16 %v601
  %v2881 = vunpack.c.l.b16 %v602
  %v2882 = vunpack.c.l.b16 %v603
  %v2883 = vunpack.c.l.b16 %v604
  %v2884 = vunpack.c.l.b16 %v605
  %v2885 = vunpack.c.l.b16 %v606
  %v2886 = vunpack.c.l.b16 %v607
  %v2887 = vunpack.c.l.b16 %v608
  %v2888 = vunpack.c.l.b16 %v609
  %v2889 = vunpack.c.l.b16 %v610
  %v2890 = vunpack.c.l.b16 %v611
  %v2891 = vunpack.c.l.b16 %v612
  %v2892 = vunpack.c.l.b16 %v613
  %v2893 = vunpack.c.l.b16 %v614
  %v2894 = vunpack.c.l.b16 %v615
  %v2895 = vunpack.c.l.b16 %v616
  %v2896 = vunpack.c.l.b16 %v617
  %v2897 = vunpack.c.l.b16 %v618
  %v2898 = vunpack.c.l.b16 %v619
  %v2899 = vunpack.c.l.b16 %v620
  %v2900 = vunpack.c.l.b16 %v621
  %v2901 = vunpack.c.l.b16 %v622
  %v2902 = vunpack.c.l.b16 %v623
  %v2903 = vunpack.c.l.b16 %v624
  %v2904 = vunpack.c.l.b16 %v625
  %v2905 = vunpack.c.l.b16 %v626
  %v2906 = vunpack.c.l.b16 %v627
  %v2907 = vunpack.c.l.b16 %v628
  %v2908 = vunpack.c.l.b16 %v629
  %v2909 = vunpack.c.l.b16 %v630
  %v2910 = vunpack.c.l.b16 %v631
  %v2911 = vunpack.c.l.b16 %v632
  %v2912 = vunpack.c.l.b16 %v633
  %v2913 = vunpack.c.l.b16 %v634
  %v2914 = vunpack.c.l.b16 %v635
  %v2915 = vunpack.c.l.b16 %v636
  %v2916 = vunpack.c.l.b16 %v637
  %v2917 = vunpack.c.l.b16 %v638
  %v2918 = vunpack.c.l.b16 %v639
  %v2919 = vunpack.c.l.b16 %v640
  %v2920 = vunpack.c.l.b16 %v641
  %v2921 = vunpack.c.l.b16 %v642
  %v2922 = vunpack.c.l.b16 %v643
  %v2923 = vunpack.c.l.b16 %v644
  %v2924 = vunpack.c.l.b16 %v645
  %v2925 = vunpack.c.l.b16 %v646
  %v2926 = vunpack.c.l.b16 %v647
  %v2927 = vunpack.c.l.b16 %v648
  %v2928 = vunpack.c.l.b16 %v649
  %v2929 = vunpack.c.l.b16 %v650
  %v2930 = vunpack.c.l.b16 %v651
  %v2931 = vunpack.c.l.b16 %v652
  %v2932 = vunpack.c.l.b16 %v653
  %v2933 = vunpack.c.l.b16 %v654
  %v2934 = vunpack.c.l.b16 %v655
  %v2935 = vunpack.c.l.b16 %v656
  %v2936 = vunpack.c.l.b16 %v657
  %v2937 = vunpack.c.l.b16 %v658
  %v2938 = vunpack.c.l.b16 %v659
  %v2939 = vunpack.c.l.b16 %v660
  %v2940 = vunpack.c.l.b16 %v661
  %v2941 = vunpack.c.l.b16 %v662
  %v2942 = vunpack.c.l.b16 %v663
  %v2943 = vunpack.c.l.b16 %v664
  %v2944 = vunpack.c.l.b16 %v665
  %v2945 = vunpack.c.l.b16 %v666
  %v2946 = vunpack.c.l.b16 %v667
  %v2947 = vunpack.c.l.b16 %v668
  %v2948 = vunpack.c.l.b16 %v669
  %v2949 = vunpack.c.l.b16 %v670
  %v2950 = vunpack.c.l.b16 %v671
  %v2951 = vunpack.c.l.b16 %v672
  %v2952 = vunpack.c.l.b16 %v673
  %v2953 = vunpack.c.l.b16 %v674
  %v2954 = vunpack.c.l.b16 %v675
  %v2955 = vunpack.c.l.b16 %v676
  %v2956 = vunpack.c.l.b16 %v677
  %v2957 = vunpack.c.l.b16 %v678
  %v2958 = vunpack.c.l.b16 %v679
  %v2959 = vunpack.c.l.b16 %v680
  %v2960 = vunpack.c.l.b16 %v681
  %v2961 = vunpack.c.l.b16 %v682
  %v2962 = vunpack.c.l.b16 %v683
  %v2963 = vunpack.c.l.b16 %v684
  %v2964 = vunpack.c.l.b16 %v685
  %v2965 = vunpack.c.l.b16 %v686
  %v2966 = vunpack.c.l.b16 %v687
  %v2967 = vunpack.c.l.b16 %v688
  %v2968 = vunpack.c.l.b16 %v689
  %v2969 = vunpack.c.l.b16 %v690
  %v2970 = vunpack.c.l.b16 %v691
  %v2971 = vunpack.c.l.b16 %v692
  %v2972 = vunpack.c.l.b16 %v693
  %v2973 = vunpack.c.l.b16 %v694
  %v2974 = vunpack.c.l.b16 %v695
  %v2975 = vunpack.c.l.b16 %v696
  %v2976 = vunpack.c.l.b16 %v697
  %v2977 = vunpack.c.l.b16 %v698
  %v2978 = vunpack.c.l.b16 %v699
  %v2979 = vunpack.c.l.b16 %v700
  %v2980 = vunpack.c.l.b16 %v701
  %v2981 = vunpack.c.l.b16 %v702
  %v2982 = vunpack.c.l.b16 %v703
  %v2983 = vunpack.c.l.b16 %v704
  %v2984 = vunpack.c.l.b16 %v705
  %v2985 = vunpack.c.l.b16 %v706
  %v2986 = vunpack.c.l.b16 %v707
  %v2987 = vunpack.c.l.b16 %v708
  %v2988 = vunpack.c.l.b16 %v709
  %v2989 = vunpack.c.l.b16 %v710
  %v2990 = vunpack.c.l.b16 %v711
  %v2991 = vunpack.c.l.b16 %v712
  %v2992 = vunpack.c.l.b16 %v713
  %v2993 = vunpack.c.l.b16 %v714
  %v2994 = vunpack.c.l.b16 %v715
  %v2995 = vunpack.c.l.b16 %v716
  %v2996 = vunpack.c.l.b16 %v717
  %v2997 = vunpack.c.l.b16 %v718
  %v2998 = vunpack.c.l.b16 %v719
  %v2999 = vunpack.c.l.b16 %v720
  %v3000 = vunpack.c.l.b16 %v721
  %v3001 = vunpack.c.l.b16 %v722
  %v3002 = vunpack.c.l.b16 %v723
  %v3003 = vunpack.c.l.b16 %v724
  %v3004 = vunpack.c.l.b16 %v725
  %v3005 = vunpack.c.l.b16 %v726
  %v3006 = vunpack.c.l.b16 %v727
  %v3007 = vunpack.c.l.b16 %v728
  %v3008 = vunpack.c.l.b16 %v729
  %v3009 = vunpack.c.l.b16 %v730
  %v3010 = vunpack.c.l.b16 %v731
  %v3011 = vunpack.c.l.b16 %v732
  %v3012 = vunpack.c.l.b16 %v733
  %v3013 = vunpack.c.l.b16 %v734
  %v3014 = vunpack.c.l.b16 %v735
  %v3015 = vunpack.c.l.b16 %v736
  %v3016 = vunpack.c.l.b16 %v737
  %v3017 = vunpack.c.l.b16 %v738
  %v3018 = vunpack.c.l.b16 %v739
  %v3019 = vunpack.c.l.b16 %v740
  %v3020 = vunpack.c.l.b16 %v741
  %v3021 = vunpack.c.l.b16 %v742
  %v3022 = vunpack.c.l.b16 %v743
  %v3023 = vunpack.c.l.b16 %v744
  %v3024 = vunpack.c.l.b16 %v745
  %v3025 = vunpack.c.l.b16 %v746
  %v3026 = vunpack.c.l.b16 %v747
  %v3027 = vunpack.c.l.b16 %v748
  %v3028 = vunpack.c.l.b16 %v749
  %v3029 = vunpack.c.l.b16 %v750
  %v3030 = vunpack.c.l.b16 %v751
  %v3031 = vunpack.c.l.b16 %v752
  %v3032 = vunpack.c.l.b16 %v753
  %v3033 = vunpack.c.l.b16 %v754
  %v3034 = vunpack.c.l.b16 %v755
  %v3035 = vunpack.c.l.b16 %v756
  %v3036 = vunpack.c.l.b16 %v757
  %v3037 = vunpack.c.l.b16 %v758
  %v3038 = vunpack.c.l.b16 %v759
  %v3039 = vunpack.c.l.b16 %v760
  %v3040 = vunpack.c.l.b16 %v761
  %v3041 = vunpack.c.l.b16 %v762
  %v3042 = vunpack.c.l.b16 %v763
  %v3043 = vunpack.c.l.b16 %v764
  %v3044 = vunpack.c.l.b16 %v765
  %v3045 = vunpack.c.l.b16 %v766
  %v3046 = vunpack.c.l.b16 %v767
  %v3047 = vunpack.c.l.b16 %v768
  %v3048 = vunpack.c.l.b16 %v769
  %v3049 = vunpack.c.l.b16 %v770
  %v3050 = vunpack.c.l.b16 %v771
  %v3051 = vunpack.c.l.b16 %v772
  %v3052 = vunpack.c.l.b16 %v773
  %v3053 = vunpack.c.l.b16 %v774
  %v3054 = vunpack.c.l.b16 %v775
  %v3055 = vunpack.c.l.b16 %v776
  %v3056 = vunpack.c.l.b16 %v777
  %v3057 = vunpack.c.l.b16 %v778
  %v3058 = vunpack.c.l.b16 %v779
  %v3059 = vunpack.c.l.b16 %v780
  %v3060 = vunpack.c.l.b16 %v781
  %v3061 = vunpack.c.l.b16 %v782
  %v3062 = vunpack.c.l.b16 %v783
  %v3063 = vunpack.c.l.b16 %v784
  %v3064 = vunpack.c.l.b16 %v785
  %v3065 = vunpack.c.l.b16 %v786
  %v3066 = vunpack.c.l.b16 %v787
  %v3067 = vunpack.c.l.b16 %v788
  %v3068 = vunpack.c.l.b16 %v789
  %v3069 = vunpack.c.l.b16 %v790
  %v3070 = vunpack.c.l.b16 %v791
  %v3071 = vunpack.c.l.b16 %v792
  %v3072 = vunpack.c.l.b16 %v793
  %v3073 = vunpack.c.l.b16 %v794
  %v3074 = vunpack.c.l.b16 %v795
  %v3075 = vunpack.c.l.b16 %v796
  %v3076 = vunpack.c.l.b16 %v797
  %v3077 = vunpack.c.l.b16 %v798
  %v3078 = vunpack.c.l.b16 %v799
  %v3079 = vunpack.c.l.b16 %v800
  %v3080 = vunpack.c.l.b16 %v801
  %v3081 = vunpack.c.l.b16 %v802
  %v3082 = vunpack.c.l.b16 %v803
  %v3083 = vunpack.c.l.b16 %v804
  %v3084 = vunpack.c.l.b16 %v805
  %v3085 = vunpack.c.l.b16 %v806
  %v3086 = vunpack.c.l.b16 %v807
  %v3087 = vunpack.c.l.b16 %v808
  %v3088 = vunpack.c.l.b16 %v809
  %v3089 = vunpack.c.l.b16 %v810
  %v3090 = vunpack.c.l.b16 %v811
  %v3091 = vunpack.c.l.b16 %v812
  %v3092 = vunpack.c.l.b16 %v813
  %v3093 = vunpack.c.l.b16 %v814
  %v3094 = vunpack.c.l.b16 %v815
  %v3095 = vunpack.c.l.b16 %v816
  %v3096 = vunpack.c.l.b16 %v817
  %v3097 = vunpack.c.l.b16 %v818
  %v3098 = vunpack.c.l.b16 %v819
  %v3099 = vunpack.c.l.b16 %v820
  %v3100 = vunpack.c.l.b16 %v821
  %v3101 = vunpack.c.l.b16 %v822
  %v3102 = vunpack.c.l.b16 %v823
  %v3103 = vunpack.c.l.b16 %v824
  %v3104 = vunpack.c.l.b16 %v825
  %v3105 = vunpack.c.l.b16 %v826
  %v3106 = vunpack.c.l.b16 %v827
  %v3107 = vunpack.c.l.b16 %v828
  %v3108 = vunpack.c.l.b16 %v829
  %v3109 = vunpack.c.l.b16 %v830
  %v3110 = vunpack.c.l.b16 %v831
  %v3111 = vunpack.c.l.b16 %v832
  %v3112 = vunpack.c.l.b16 %v833
  %v3113 = vunpack.c.l.b16 %v834
  %v3114 = vunpack.c.l.b16 %v835
  %v3115 = vunpack.c.l.b16 %v836
  %v3116 = vunpack.c.l.b16 %v837
  %v3117 = vunpack.c.l.b16 %v838
  %v3118 = vunpack.c.l.b16 %v839
  %v3119 = vunpack.c.l.b16 %v840
  %v3120 = vunpack.c.l.b16 %v841
  %v3121 = vunpack.c.l.b16 %v842
  %v3122 = vunpack.c.l.b16 %v843
  %v3123 = vunpack.c.l.b16 %v844
  %v3124 = vunpack.c.l.b16 %v845
  %v3125 = vunpack.c.l.b16 %v846
  %v3126 = vunpack.c.l.b16 %v847
  %v3127 = vunpack.c.l.b16 %v848
  %v3128 = vunpack.c.l.b16 %v849
  %v3129 = vunpack.c.l.b16 %v850
  %v3130 = vunpack.c.l.b16 %v851
  %v3131 = vunpack.c.l.b16 %v852
  %v3132 = vunpack.c.l.b16 %v853
  %v3133 = vunpack.c.l.b16 %v854
  %v3134 = vunpack.c.l.b16 %v855
  %v3135 = vunpack.c.l.b16 %v856
  %v3136 = vunpack.c.l.b16 %v857
  %v3137 = vunpack.c.l.b16 %v858
  %v3138 = vunpack.c.l.b16 %v859
  %v3139 = vunpack.c.l.b16 %v860
  %v3140 = vunpack.c.l.b16 %v861
  %v3141 = vunpack.c.l.b16 %v862
  %v3142 = vunpack.c.l.b16 %v863
  %v3143 = vunpack.c.l.b16 %v864
  %v3144 = vunpack.c.l.b16 %v865
  %v3145 = vunpack.c.l.b16 %v866
  %v3146 = vunpack.c.l.b16 %v867
  %v3147 = vunpack.c.l.b16 %v868
  %v3148 = vunpack.c.l.b16 %v869
  %v3149 = vunpack.c.l.b16 %v870
  %v3150 = vunpack.c.l.b16 %v871
  %v3151 = vunpack.c.l.b16 %v872
  %v3152 = vunpack.c.l.b16 %v873
  %v3153 = vunpack.c.l.b16 %v874
  %v3154 = vunpack.c.l.b16 %v875
  %v3155 = vunpack.c.l.b16 %v876
  %v3156 = vunpack.c.l.b16 %v877
  %v3157 = vunpack.c.l.b16 %v878
  %v3158 = vunpack.c.l.b16 %v879
  %v3159 = vunpack.c.l.b16 %v880
  %v3160 = vunpack.c.l.b16 %v881
  %v3161 = vunpack.c.l.b16 %v882
  %v3162 = vunpack.c.l.b16 %v883
  %v3163 = vunpack.c.l.b16 %v884
  %v3164 = vunpack.c.l.b16 %v885
  %v3165 = vunpack.c.l.b16 %v886
  %v3166 = vunpack.c.l.b16 %v887
  %v3167 = vunpack.c.l.b16 %v888
  %v3168 = vunpack.c.l.b16 %v889
  %v3169 = vunpack.c.l.b16 %v890
  %v3170 = vunpack.c.l.b16 %v891
  %v3171 = vunpack.c.l.b16 %v892
  %v3172 = vunpack.c.l.b16 %v893
  %v3173 = vunpack.c.l.b16 %v894
  %v3174 = vunpack.c.l.b16 %v895
  %v3175 = vunpack.c.l.b16 %v896
  %v3176 = vunpack.c.l.b16 %v897
  %v3177 = vunpack.c.l.b16 %v898
  %v3178 = vunpack.c.l.b16 %v899
  %v3179 = vunpack.c.l.b16 %v900
  %v3180 = vunpack.c.l.b16 %v901
  %v3181 = vunpack.c.l.b16 %v902
  %v3182 = vunpack.c.l.b16 %v903
  %v3183 = vunpack.c.l.b16 %v904
  %v3184 = vunpack.c.l.b16 %v905
  %v3185 = vunpack.c.l.b16 %v906
  %v3186 = vunpack.c.l.b16 %v907
  %v3187 = vunpack.c.l.b16 %v908
  %v3188 = vunpack.c.l.b16 %v909
  %v3189 = vunpack.c.l.b16 %v910
  %v3190 = vunpack.c.l.b16 %v911
  %v3191 = vunpack.c.l.b16 %v912
  %v3192 = vunpack.c.l.b16 %v913
  %v3193 = vunpack.c.l.b16 %v914
  %v3194 = vunpack.c.l.b16 %v915
  %v3195 = vunpack.c.l.b16 %v916
  %v3196 = vunpack.c.l.b16 %v917
  %v3197 = vunpack.c.l.b16 %v918
  %v3198 = vunpack.c.l.b16 %v919
  %v3199 = vunpack.c.l.b16 %v920
  %v3200 = vunpack.c.l.b16 %v921
  %v3201 = vunpack.c.l.b16 %v922
  %v3202 = vunpack.c.l.b16 %v923
  %v3203 = vunpack.c.l.b16 %v924
  %v3204 = vunpack.c.l.b16 %v925
  %v3205 = vunpack.c.l.b16 %v926
  %v3206 = vunpack.c.l.b16 %v927
  %v3207 = vunpack.c.l.b16 %v928
  %v3208 = vunpack.c.l.b16 %v929
  %v3209 = vunpack.c.l.b16 %v930
  %v3210 = vunpack.c.l.b16 %v931
  %v3211 = vunpack.c.l.b16 %v932
  %v3212 = vunpack.c.l.b16 %v933
  %v3213 = vunpack.c.l.b16 %v934
  %v3214 = vunpack.c.l.b16 %v935
  %v3215 = vunpack.c.l.b16 %v936
  %v3216 = vunpack.c.l.b16 %v937
  %v3217 = vunpack.c.l.b16 %v938
  %v3218 = vunpack.c.l.b16 %v939
  %v3219 = vunpack.c.l.b16 %v940
  %v3220 = vunpack.c.l.b16 %v941
  %v3221 = vunpack.c.l.b16 %v942
  %v3222 = vunpack.c.l.b16 %v943
  %v3223 = vunpack.c.l.b16 %v944
  %v3224 = vunpack.c.l.b16 %v945
  %v3225 = vunpack.c.l.b16 %v946
  %v3226 = vunpack.c.l.b16 %v947
  %v3227 = vunpack.c.l.b16 %v948
  %v3228 = vunpack.c.l.b16 %v949
  %v3229 = vunpack.c.l.b16 %v950
  %v3230 = vunpack.c.l.b16 %v951
  %v3231 = vunpack.c.l.b16 %v952
  %v3232 = vunpack.c.l.b16 %v953
  %v3233 = vunpack.c.l.b16 %v954
  %v3234 = vunpack.c.l.b16 %v955
  %v3235 = vunpack.c.l.b16 %v956
  %v3236 = vunpack.c.l.b16 %v957
  %v3237 = vunpack.c.l.b16 %v958
  %v3238 = vunpack.c.l.b16 %v959
  %v3239 = vunpack.c.l.b16 %v960
  %v3240 = vunpack.c.l.b16 %v961
  %v3241 = vunpack.c.l.b16 %v962
  %v3242 = vunpack.c.l.b16 %v963
  %v3243 = vunpack.c.l.b16 %v964
  %v3244 = vunpack.c.l.b16 %v965
  %v3245 = vunpack.c.l.b16 %v966
  %v3246 = vunpack.c.l.b16 %v967
  %v3247 = vunpack.c.l.b16 %v968
  %v3248 = vunpack.c.l.b16 %v969
  %v3249 = vunpack.c.l.b16 %v970
  %v3250 = vunpack.c.l.b16 %v971
  %v3251 = vunpack.c.l.b16 %v972
  %v3252 = vunpack.c.l.b16 %v973
  %v3253 = vunpack.c.l.b16 %v974
  %v3254 = vunpack.c.l.b16 %v975
  %v3255 = vunpack.c.l.b16 %v976
  %v3256 = vunpack.c.l.b16 %v977
  %v3257 = vunpack.c.l.b16 %v978
  %v3258 = vunpack.c.l.b16 %v979
  %v3259 = vunpack.c.l.b16 %v980
  %v3260 = vunpack.c.l.b16 %v981
  %v3261 = vunpack.c.l.b16 %v982
  %v3262 = vunpack.c.l.b16 %v983
  %v3263 = vunpack.c.l.b16 %v984
  %v3264 = vunpack.c.l.b16 %v985
  %v3265 = vunpack.c.l.b16 %v986
  %v3266 = vunpack.c.l.b16 %v987
  %v3267 = vunpack.c.l.b16 %v988
  %v3268 = vunpack.c.l.b16 %v989
  %v3269 = vunpack.c.l.b16 %v990
  %v3270 = vunpack.c.l.b16 %v991
  %v3271 = vunpack.c.l.b16 %v992
  %v3272 = vunpack.c.l.b16 %v993
  %v3273 = vunpack.c.l.b16 %v994
  %v3274 = vunpack.c.l.b16 %v995
  %v3275 = vunpack.c.l.b16 %v996
  %v3276 = vunpack.c.l.b16 %v997
  %v3277 = vunpack.c.l.b16 %v998
  %v3278 = vunpack.c.l.b16 %v999
  %v3279 = vunpack.c.l.b16 %v1000
  %v3280 = vunpack.c.l.b16 %v1001
  %v3281 = vunpack.c.l.b16 %v1002
  %v3282 = vunpack.c.l.b16 %v1003
  %v3283 = vunpack.c.l.b16 %v1004
  %v3284 = vunpack.c.l.b16 %v1005
  %v3285 = vunpack.c.l.b16 %v1006
  %v3286 = vunpack.c.l.b16 %v1007
  %v3287 = vunpack.c.l.b16 %v1008
  %v3288 = vunpack.c.l.b16 %v1009
  %v3289 = vunpack.c.l.b16 %v1010
  %v3290 = vunpack.c.l.b16 %v1011
  %v3291 = vunpack.c.l.b16 %v1012
  %v3292 = vunpack.c.l.b16 %v1013
  %v3293 = vunpack.c.l.b16 %v1014
  %v3294 = vunpack.c.l.b16 %v1015
  %v3295 = vunpack.c.l.b16 %v1016
  %v3296 = vunpack.c.l.b16 %v1017
  %v3297 = vunpack.c.l.b16 %v1018
  %v3298 = vunpack.c.l.b16 %v1019
  %v3299 = vunpack.c.l.b16 %v1020
  %v3300 = vunpack.c.l.b16 %v1021
  %v3301 = vunpack.c.l.b16 %v1022
  %v3302 = vunpack.c.l.b16 %v1023
  %v3303 = vunpack.c.l.b16 %v1024
  %v3304 = vunpack.c.l.b16 %v1025
  %v3305 = vunpack.c.l.b16 %v1026
  %v3306 = vunpack.c.l.b16 %v1027
  %v3307 = vunpack.c.l.b16 %v1028
  %v3308 = vunpack.c.l.b16 %v1029
  %v3309 = vunpack.c.l.b16 %v1030
  %v3310 = vunpack.c.l.b16 %v1031
  %v3311 = vunpack.c.l.b16 %v1032
  %v3312 = vunpack.c.l.b16 %v1033
  %v3313 = vunpack.c.l.b16 %v1034
  %v3314 = vunpack.c.l.b16 %v1035
  %v3315 = vunpack.c.l.b16 %v1036
  %v3316 = vunpack.c.l.b16 %v1037
  %v3317 = vunpack.c.l.b16 %v1038
  %v3318 = vunpack.c.l.b16 %v1039
  %v3319 = vunpack.c.l.b16 %v1040
  %v3320 = vunpack.c.l.b16 %v1041
  %v3321 = vunpack.c.l.b16 %v1042
  %v3322 = vunpack.c.l.b16 %v1043
  %v3323 = vunpack.c.l.b16 %v1044
  %v3324 = vunpack.c.l.b16 %v1045
  %v3325 = vunpack.c.l.b16 %v1046
  %v3326 = vunpack.c.l.b16 %v1047
  %v3327 = vunpack.c.l.b16 %v1048
  %v3328 = vunpack.c.l.b16 %v1049
  %v3329 = vunpack.c.l.b16 %v1050
  %v3330 = vunpack.c.l.b16 %v1051
  %v3331 = vunpack.c.l.b16 %v1052
  %v3332 = vunpack.c.l.b16 %v1053
  %v3333 = vunpack.c.l.b16 %v1054
  %v3334 = vunpack.c.l.b16 %v1055
  %v3335 = vunpack.c.l.b16 %v1056
  %v3336 = vunpack.c.l.b16 %v1057
  %v3337 = vunpack.c.l.b16 %v1058
  %v3338 = vunpack.c.l.b16 %v1059
  %v3339 = vunpack.c.l.b16 %v1060
  %v3340 = vunpack.c.l.b16 %v1061
  %v3341 = vunpack.c.l.b16 %v1062
  %v3342 = vunpack.c.l.b16 %v1063
  %v3343 = vunpack.c.l.b16 %v1064
  %v3344 = vunpack.c.l.b16 %v1065
  %v3345 = vunpack.c.l.b16 %v1066
  %v3346 = vunpack.c.l.b16 %v1067
  %v3347 = vunpack.c.l.b16 %v1068
  %v3348 = vunpack.c.l.b16 %v1069
  %v3349 = vunpack.c.l.b16 %v1070
  %v3350 = vpack.c.b16 %v2327, %v2326
  %v3351 = vpack.c.b16 %v2329, %v2328
  %v3352 = vpack.c.b16 %v2331, %v2330
  %v3353 = vpack.c.b16 %v2333, %v2332
  %v3354 = vpack.c.b16 %v2335, %v2334
  %v3355 = vpack.c.b16 %v2337, %v2336
  %v3356 = vpack.c.b16 %v2339, %v2338
  %v3357 = vpack.c.b16 %v2341, %v2340
  %v3358 = vpack.c.b16 %v2343, %v2342
  %v3359 = vpack.c.b16 %v2345, %v2344
  %v3360 = vpack.c.b16 %v2347, %v2346
  %v3361 = vpack.c.b16 %v2349, %v2348
  %v3362 = vpack.c.b16 %v2351, %v2350
  %v3363 = vpack.c.b16 %v2353, %v2352
  %v3364 = vpack.c.b16 %v2355, %v2354
  %v3365 = vpack.c.b16 %v2357, %v2356
  %v3366 = vpack.c.b16 %v2359, %v2358
  %v3367 = vpack.c.b16 %v2361, %v2360
  %v3368 = vpack.c.b16 %v2363, %v2362
  %v3369 = vpack.c.b16 %v2365, %v2364
  %v3370 = vpack.c.b16 %v2367, %v2366
  %v3371 = vpack.c.b16 %v2369, %v2368
  %v3372 = vpack.c.b16 %v2371, %v2370
  %v3373 = vpack.c.b16 %v2373, %v2372
  %v3374 = vpack.c.b16 %v2375, %v2374
  %v3375 = vpack.c.b16 %v2377, %v2376
  %v3376 = vpack.c.b16 %v2379, %v2378
  %v3377 = vpack.c.b16 %v2381, %v2380
  %v3378 = vpack.c.b16 %v2383, %v2382
  %v3379 = vpack.c.b16 %v2385, %v2384
  %v3380 = vpack.c.b16 %v2387, %v2386
  %v3381 = vpack.c.b16 %v2389, %v2388
  %v3382 = vpack.c.b16 %v2391, %v2390
  %v3383 = vpack.c.b16 %v2393, %v2392
  %v3384 = vpack.c.b16 %v2395, %v2394
  %v3385 = vpack.c.b16 %v2397, %v2396
  %v3386 = vpack.c.b16 %v2399, %v2398
  %v3387 = vpack.c.b16 %v2401, %v2400
  %v3388 = vpack.c.b16 %v2403, %v2402
  %v3389 = vpack.c.b16 %v2405, %v2404
  %v3390 = vpack.c.b16 %v2407, %v2406
  %v3391 = vpack.c.b16 %v2409, %v2408
  %v3392 = vpack.c.b16 %v2411, %v2410
  %v3393 = vpack.c.b16 %v2413, %v2412
  %v3394 = vpack.c.b16 %v2415, %v2414
  %v3395 = vpack.c.b16 %v2417, %v2416
  %v3396 = vpack.c.b16 %v2419, %v2418
  %v3397 = vpack.c.b16 %v2421, %v2420
  %v3398 = vpack.c.b16 %v2423, %v2422
  %v3399 = vpack.c.b16 %v2425, %v2424
  %v3400 = vpack.c.b16 %v2427, %v2426
  %v3401 = vpack.c.b16 %v2429, %v2428
  %v3402 = vpack.c.b16 %v2431, %v2430
  %v3403 = vpack.c.b16 %v2433, %v2432
  %v3404 = vpack.c.b16 %v2435, %v2434
  %v3405 = vpack.c.b16 %v2437, %v2436
  %v3406 = vpack.c.b16 %v2439, %v2438
  %v3407 = vpack.c.b16 %v2441, %v2440
  %v3408 = vpack.c.b16 %v2443, %v2442
  %v3409 = vpack.c.b16 %v2445, %v2444
  %v3410 = vpack.c.b16 %v2447, %v2446
  %v3411 = vpack.c.b16 %v2449, %v2448
  %v3412 = vpack.c.b16 %v2451, %v2450
  %v3413 = vpack.c.b16 %v2453, %v2452
  %v3414 = vpack.c.b16 %v2455, %v2454
  %v3415 = vpack.c.b16 %v2457, %v2456
  %v3416 = vpack.c.b16 %v2459, %v2458
  %v3417 = vpack.c.b16 %v2461, %v2460
  %v3418 = vpack.c.b16 %v2463, %v2462
  %v3419 = vpack.c.b16 %v2465, %v2464
  %v3420 = vpack.c.b16 %v2467, %v2466
  %v3421 = vpack.c.b16 %v2469, %v2468
  %v3422 = vpack.c.b16 %v2471, %v2470
  %v3423 = vpack.c.b16 %v2473, %v2472
  %v3424 = vpack.c.b16 %v2475, %v2474
  %v3425 = vpack.c.b16 %v2477, %v2476
  %v3426 = vpack.c.b16 %v2479, %v2478
  %v3427 = vpack.c.b16 %v2481, %v2480
  %v3428 = vpack.c.b16 %v2483, %v2482
  %v3429 = vpack.c.b16 %v2485, %v2484
  %v3430 = vpack.c.b16 %v2487, %v2486
  %v3431 = vpack.c.b16 %v2489, %v2488
  %v3432 = vpack.c.b16 %v2491, %v2490
  %v3433 = vpack.c.b16 %v2493, %v2492
  %v3434 = vpack.c.b16 %v2495, %v2494
  %v3435 = vpack.c.b16 %v2497, %v2496
  %v3436 = vpack.c.b16 %v2499, %v2498
  %v3437 = vpack.c.b16 %v2501, %v2500
  %v3438 = vpack.c.b16 %v2503, %v2502
  %v3439 = vpack.c.b16 %v2505, %v2504
  %v3440 = vpack.c.b16 %v2507, %v2506
  %v3441 = vpack.c.b16 %v2509, %v2508
  %v3442 = vpack.c.b16 %v2511, %v2510
  %v3443 = vpack.c.b16 %v2513, %v2512
  %v3444 = vpack.c.b16 %v2515, %v2514
  %v3445 = vpack.c.b16 %v2517, %v2516
  %v3446 = vpack.c.b16 %v2519, %v2518
  %v3447 = vpack.c.b16 %v2521, %v2520
  %v3448 = vpack.c.b16 %v2523, %v2522
  %v3449 = vpack.c.b16 %v2525, %v2524
  %v3450 = vpack.c.b16 %v2527, %v2526
  %v3451 = vpack.c.b16 %v2529, %v2528
  %v3452 = vpack.c.b16 %v2531, %v2530
  %v3453 = vpack.c.b16 %v2533, %v2532
  %v3454 = vpack.c.b16 %v2535, %v2534
  %v3455 = vpack.c.b16 %v2537, %v2536
  %v3456 = vpack.c.b16 %v2539, %v2538
  %v3457 = vpack.c.b16 %v2541, %v2540
  %v3458 = vpack.c.b16 %v2543, %v2542
  %v3459 = vpack.c.b16 %v2545, %v2544
  %v3460 = vpack.c.b16 %v2547, %v2546
  %v3461 = vpack.c.b16 %v2549, %v2548
  %v3462 = vpack.c.b16 %v2551, %v2550
  %v3463 = vpack.c.b16 %v2553, %v2552
  %v3464 = vpack.c.b16 %v2555, %v2554
  %v3465 = vpack.c.b16 %v2557, %v2556
  %v3466 = vpack.c.b16 %v2559, %v2558
  %v3467 = vpack.c.b16 %v2561, %v2560
  %v3468 = vpack.c.b16 %v2563, %v2562
  %v3469 = vpack.c.b16 %v2565, %v2564
  %v3470 = vpack.c.b16 %v2567, %v2566
  %v3471 = vpack.c.b16 %v2569, %v2568
  %v3472 = vpack.c.b16 %v2571, %v2570
  %v3473 = vpack.c.b16 %v2573, %v2572
  %v3474 = vpack.c.b16 %v2575, %v2574
  %v3475 = vpack.c.b16 %v2577, %v2576
  %v3476 = vpack.c.b16 %v2579, %v2578
  %v3477 = vpack.c.b16 %v2581, %v2580
  %v3478 = vpack.c.b16 %v2583, %v2582
  %v3479 = vpack.c.b16 %v2585, %v2584
  %v3480 = vpack.c.b16 %v2587, %v2586
  %v3481 = vpack.c.b16 %v2589, %v2588
  %v3482 = vpack.c.b16 %v2591, %v2590
  %v3483 = vpack.c.b16 %v2593, %v2592
  %v3484 = vpack.c.b16 %v2595, %v2594
  %v3485 = vpack.c.b16 %v2597, %v2596
  %v3486 = vpack.c.b16 %v2599, %v2598
  %v3487 = vpack.c.b16 %v2601, %v2600
  %v3488 = vpack.c.b16 %v2603, %v2602
  %v3489 = vpack.c.b16 %v2605, %v2604
  %v3490 = vpack.c.b16 %v2607, %v2606
  %v3491 = vpack.c.b16 %v2609, %v2608
  %v3492 = vpack.c.b16 %v2611, %v2610
  %v3493 = vpack.c.b16 %v2613, %v2612
  %v3494 = vpack.c.b16 %v2615, %v2614
  %v3495 = vpack.c.b16 %v2617, %v2616
  %v3496 = vpack.c.b16 %v2619, %v2618
  %v3497 = vpack.c.b16 %v2621, %v2620
  %v3498 = vpack.c.b16 %v2623, %v2622
  %v3499 = vpack.c.b16 %v2625, %v2624
  %v3500 = vpack.c.b16 %v2627, %v2626
  %v3501 = vpack.c.b16 %v2629, %v2628
  %v3502 = vpack.c.b16 %v2631, %v2630
  %v3503 = vpack.c.b16 %v2633, %v2632
  %v3504 = vpack.c.b16 %v2635, %v2634
  %v3505 = vpack.c.b16 %v2637, %v2636
  %v3506 = vpack.c.b16 %v2639, %v2638
  %v3507 = vpack.c.b16 %v2641, %v2640
  %v3508 = vpack.c.b16 %v2643, %v2642
  %v3509 = vpack.c.b16 %v2645, %v2644
  %v3510 = vpack.c.b16 %v2647, %v2646
  %v3511 = vpack.c.b16 %v2649, %v2648
  %v3512 = vpack.c.b16 %v2651, %v2650
  %v3513 = vpack.c.b16 %v2653, %v2652
  %v3514 = vpack.c.b16 %v2655, %v2654
  %v3515 = vpack.c.b16 %v2657, %v2656
  %v3516 = vpack.c.b16 %v2659, %v2658
  %v3517 = vpack.c.b16 %v2661, %v2660
  %v3518 = vpack.c.b16 %v2663, %v2662
  %v3519 = vpack.c.b16 %v2665, %v2664
  %v3520 = vpack.c.b16 %v2667, %v2666
  %v3521 = vpack.c.b16 %v2669, %v2668
  %v3522 = vpack.c.b16 %v2671, %v2670
  %v3523 = vpack.c.b16 %v2673, %v2672
  %v3524 = vpack.c.b16 %v2675, %v2674
  %v3525 = vpack.c.b16 %v2677, %v2676
  %v3526 = vpack.c.b16 %v2679, %v2678
  %v3527 = vpack.c.b16 %v2681, %v2680
  %v3528 = vpack.c.b16 %v2683, %v2682
  %v3529 = vpack.c.b16 %v2685, %v2684
  %v3530 = vpack.c.b16 %v2687, %v2686
  %v3531 = vpack.c.b16 %v2689, %v2688
  %v3532 = vpack.c.b16 %v2691, %v2690
  %v3533 = vpack.c.b16 %v2693, %v2692
  %v3534 = vpack.c.b16 %v2695, %v2694
  %v3535 = vpack.c.b16 %v2697, %v2696
  %v3536 = vpack.c.b16 %v2699, %v2698
  %v3537 = vpack.c.b16 %v2701, %v2700
  %v3538 = vpack.c.b16 %v2703, %v2702
  %v3539 = vpack.c.b16 %v2705, %v2704
  %v3540 = vpack.c.b16 %v2707, %v2706
  %v3541 = vpack.c.b16 %v2709, %v2708
  %v3542 = vpack.c.b16 %v2711, %v2710
  %v3543 = vpack.c.b16 %v2713, %v2712
  %v3544 = vpack.c.b16 %v2715, %v2714
  %v3545 = vpack.c.b16 %v2717, %v2716
  %v3546 = vpack.c.b16 %v2719, %v2718
  %v3547 = vpack.c.b16 %v2721, %v2720
  %v3548 = vpack.c.b16 %v2723, %v2722
  %v3549 = vpack.c.b16 %v2725, %v2724
  %v3550 = vpack.c.b16 %v2727, %v2726
  %v3551 = vpack.c.b16 %v2729, %v2728
  %v3552 = vpack.c.b16 %v2731, %v2730
  %v3553 = vpack.c.b16 %v2733, %v2732
  %v3554 = vpack.c.b16 %v2735, %v2734
  %v3555 = vpack.c.b16 %v2737, %v2736
  %v3556 = vpack.c.b16 %v2739, %v2738
  %v3557 = vpack.c.b16 %v2741, %v2740
  %v3558 = vpack.c.b16 %v2743, %v2742
  %v3559 = vpack.c.b16 %v2745, %v2744
  %v3560 = vpack.c.b16 %v2747, %v2746
  %v3561 = vpack.c.b16 %v2749, %v2748
  %v3562 = vpack.c.b16 %v2751, %v2750
  %v3563 = vpack.c.b16 %v2753, %v2752
  %v3564 = vpack.c.b16 %v2755, %v2754
  %v3565 = vpack.c.b16 %v2757, %v2756
  %v3566 = vpack.c.b16 %v2759, %v2758
  %v3567 = vpack.c.b16 %v2761, %v2760
  %v3568 = vpack.c.b16 %v2763, %v2762
  %v3569 = vpack.c.b16 %v2765, %v2764
  %v3570 = vpack.c.b16 %v2767, %v2766
  %v3571 = vpack.c.b16 %v2769, %v2768
  %v3572 = vpack.c.b16 %v2771, %v2770
  %v3573 = vpack.c.b16 %v2773, %v2772
  %v3574 = vpack.c.b16 %v2775, %v2774
  %v3575 = vpack.c.b16 %v2777, %v2776
  %v3576 = vpack.c.b16 %v2779, %v2778
  %v3577 = vpack.c.b16 %v2781, %v2780
  %v3578 = vpack.c.b16 %v2783, %v2782
  %v3579 = vpack.c.b16 %v2785, %v2784
  %v3580 = vpack.c.b16 %v2787, %v2786
  %v3581 = vpack.c.b16 %v2789, %v2788
  %v3582 = vpack.c.b16 %v2791, %v2790
  %v3583 = vpack.c.b16 %v2793, %v2792
  %v3584 = vpack.c.b16 %v2795, %v2794
  %v3585 = vpack.c.b16 %v2797, %v2796
  %v3586 = vpack.c.b16 %v2799, %v2798
  %v3587 = vpack.c.b16 %v2801, %v2800
  %v3588 = vpack.c.b16 %v2803, %v2802
  %v3589 = vpack.c.b16 %v2805, %v2804
  %v3590 = vpack.c.b16 %v2807, %v2806
  %v3591 = vpack.c.b16 %v2809, %v2808
  %v3592 = vpack.c.b16 %v2811, %v2810
  %v3593 = vpack.c.b16 %v2813, %v2812
  %v3594 = vpack.c.b16 %v2815, %v2814
  %v3595 = vpack.c.b16 %v2817, %v2816
  %v3596 = vpack.c.b16 %v2819, %v2818
  %v3597 = vpack.c.b16 %v2821, %v2820
  %v3598 = vpack.c.b16 %v2823, %v2822
  %v3599 = vpack.c.b16 %v2825, %v2824
  %v3600 = vpack.c.b16 %v2827, %v2826
  %v3601 = vpack.c.b16 %v2829, %v2828
  %v3602 = vpack.c.b16 %v2831, %v2830
  %v3603 = vpack.c.b16 %v2833, %v2832
  %v3604 = vpack.c.b16 %v2835, %v2834
  %v3605 = vpack.c.b16 %v2837, %v2836
  %v3606 = vpack.c.b16 %v2839, %v2838
  %v3607 = vpack.c.b16 %v2841, %v2840
  %v3608 = vpack.c.b16 %v2843, %v2842
  %v3609 = vpack.c.b16 %v2845, %v2844
  %v3610 = vpack.c.b16 %v2847, %v2846
  %v3611 = vpack.c.b16 %v2849, %v2848
  %v3612 = vpack.c.b16 %v2851, %v2850
  %v3613 = vpack.c.b16 %v2853, %v2852
  %v3614 = vpack.c.b16 %v2855, %v2854
  %v3615 = vpack.c.b16 %v2857, %v2856
  %v3616 = vpack.c.b16 %v2859, %v2858
  %v3617 = vpack.c.b16 %v2861, %v2860
  %v3618 = vpack.c.b16 %v2863, %v2862
  %v3619 = vpack.c.b16 %v2865, %v2864
  %v3620 = vpack.c.b16 %v2867, %v2866
  %v3621 = vpack.c.b16 %v2869, %v2868
  %v3622 = vpack.c.b16 %v2871, %v2870
  %v3623 = vpack.c.b16 %v2873, %v2872
  %v3624 = vpack.c.b16 %v2875, %v2874
  %v3625 = vpack.c.b16 %v2877, %v2876
  %v3626 = vpack.c.b16 %v2879, %v2878
  %v3627 = vpack.c.b16 %v2881, %v2880
  %v3628 = vpack.c.b16 %v2883, %v2882
  %v3629 = vpack.c.b16 %v2885, %v2884
  %v3630 = vpack.c.b16 %v2887, %v2886
  %v3631 = vpack.c.b16 %v2889, %v2888
  %v3632 = vpack.c.b16 %v2891, %v2890
  %v3633 = vpack.c.b16 %v2893, %v2892
  %v3634 = vpack.c.b16 %v2895, %v2894
  %v3635 = vpack.c.b16 %v2897, %v2896
  %v3636 = vpack.c.b16 %v2899, %v2898
  %v3637 = vpack.c.b16 %v2901, %v2900
  %v3638 = vpack.c.b16 %v2903, %v2902
  %v3639 = vpack.c.b16 %v2905, %v2904
  %v3640 = vpack.c.b16 %v2907, %v2906
  %v3641 = vpack.c.b16 %v2909, %v2908
  %v3642 = vpack.c.b16 %v2911, %v2910
  %v3643 = vpack.c.b16 %v2913, %v2912
  %v3644 = vpack.c.b16 %v2915, %v2914
  %v3645 = vpack.c.b16 %v2917, %v2916
  %v3646 = vpack.c.b16 %v2919, %v2918
  %v3647 = vpack.c.b16 %v2921, %v2920
  %v3648 = vpack.c.b16 %v2923, %v2922
  %v3649 = vpack.c.b16 %v2925, %v2924
  %v3650 = vpack.c.b16 %v2927, %v2926
  %v3651 = vpack.c.b16 %v2929, %v2928
  %v3652 = vpack.c.b16 %v2931, %v2930
  %v3653 = vpack.c.b16 %v2933, %v2932
  %v3654 = vpack.c.b16 %v2935, %v2934
  %v3655 = vpack.c.b16 %v2937, %v2936
  %v3656 = vpack.c.b16 %v2939, %v2938
  %v3657 = vpack.c.b16 %v2941, %v2940
  %v3658 = vpack.c.b16 %v2943, %v2942
  %v3659 = vpack.c.b16 %v2945, %v2944
  %v3660 = vpack.c.b16 %v2947, %v2946
  %v3661 = vpack.c.b16 %v2949, %v2948
  %v3662 = vpack.c.b16 %v2951, %v2950
  %v3663 = vpack.c.b16 %v2953, %v2952
  %v3664 = vpack.c.b16 %v2955, %v2954
  %v3665 = vpack.c.b16 %v2957, %v2956
  %v3666 = vpack.c.b16 %v2959, %v2958
  %v3667 = vpack.c.b16 %v2961, %v2960
  %v3668 = vpack.c.b16 %v2963, %v2962
  %v3669 = vpack.c.b16 %v2965, %v2964
  %v3670 = vpack.c.b16 %v2967, %v2966
  %v3671 = vpack.c.b16 %v2969, %v2968
  %v3672 = vpack.c.b16 %v2971, %v2970
  %v3673 = vpack.c.b16 %v2973, %v2972
  %v3674 = vpack.c.b16 %v2975, %v2974
  %v3675 = vpack.c.b16 %v2977, %v2976
  %v3676 = vpack.c.b16 %v2979, %v2978
  %v3677 = vpack.c.b16 %v2981, %v2980
  %v3678 = vpack.c.b16 %v2983, %v2982
  %v3679 = vpack.c.b16 %v2985, %v2984
  %v3680 = vpack.c.b16 %v2987, %v2986
  %v3681 = vpack.c.b16 %v2989, %v2988
  %v3682 = vpack.c.b16 %v2991, %v2990
  %v3683 = vpack.c.b16 %v2993, %v2992
  %v3684 = vpack.c.b16 %v2995, %v2994
  %v3685 = vpack.c.b16 %v2997, %v2996
  %v3686 = vpack.c.b16 %v2999, %v2998
  %v3687 = vpack.c.b16 %v3001, %v3000
  %v3688 = vpack.c.b16 %v3003, %v3002
  %v3689 = vpack.c.b16 %v3005, %v3004
  %v3690 = vpack.c.b16 %v3007, %v3006
  %v3691 = vpack.c.b16 %v3009, %v3008
  %v3692 = vpack.c.b16 %v3011, %v3010
  %v3693 = vpack.c.b16 %v3013, %v3012
  %v3694 = vpack.c.b16 %v3015, %v3014
  %v3695 = vpack.c.b16 %v3017, %v3016
  %v3696 = vpack.c.b16 %v3019, %v3018
  %v3697 = vpack.c.b16 %v3021, %v3020
  %v3698 = vpack.c.b16 %v3023, %v3022
  %v3699 = vpack.c.b16 %v3025, %v3024
  %v3700 = vpack.c.b16 %v3027, %v3026
  %v3701 = vpack.c.b16 %v3029, %v3028
  %v3702 = vpack.c.b16 %v3031, %v3030
  %v3703 = vpack.c.b16 %v3033, %v3032
  %v3704 = vpack.c.b16 %v3035, %v3034
  %v3705 = vpack.c.b16 %v3037, %v3036
  %v3706 = vpack.c.b16 %v3039, %v3038
  %v3707 = vpack.c.b16 %v3041, %v3040
  %v3708 = vpack.c.b16 %v3043, %v3042
  %v3709 = vpack.c.b16 %v3045, %v3044
  %v3710 = vpack.c.b16 %v3047, %v3046
  %v3711 = vpack.c.b16 %v3049, %v3048
  %v3712 = vpack.c.b16 %v3051, %v3050
  %v3713 = vpack.c.b16 %v3053, %v3052
  %v3714 = vpack.c.b16 %v3055, %v3054
  %v3715 = vpack.c.b16 %v3057, %v3056
  %v3716 = vpack.c.b16 %v3059, %v3058
  %v3717 = vpack.c.b16 %v3061, %v3060
  %v3718 = vpack.c.b16 %v3063, %v3062
  %v3719 = vpack.c.b16 %v3065, %v3064
  %v3720 = vpack.c.b16 %v3067, %v3066
  %v3721 = vpack.c.b16 %v3069, %v3068
  %v3722 = vpack.c.b16 %v3071, %v3070
  %v3723 = vpack.c.b16 %v3073, %v3072
  %v3724 = vpack.c.b16 %v3075, %v3074
  %v3725 = vpack.c.b16 %v3077, %v3076
  %v3726 = vpack.c.b16 %v3079, %v3078
  %v3727 = vpack.c.b16 %v3081, %v3080
  %v3728 = vpack.c.b16 %v3083, %v3082
  %v3729 = vpack.c.b16 %v3085, %v3084
  %v3730 = vpack.c.b16 %v3087, %v3086
  %v3731 = vpack.c.b16 %v3089, %v3088
  %v3732 = vpack.c.b16 %v3091, %v3090
  %v3733 = vpack.c.b16 %v3093, %v3092
  %v3734 = vpack.c.b16 %v3095, %v3094
  %v3735 = vpack.c.b16 %v3097, %v3096
  %v3736 = vpack.c.b16 %v3099, %v3098
  %v3737 = vpack.c.b16 %v3101, %v3100
  %v3738 = vpack.c.b16 %v3103, %v3102
  %v3739 = vpack.c.b16 %v3105, %v3104
  %v3740 = vpack.c.b16 %v3107, %v3106
  %v3741 = vpack.c.b16 %v3109, %v3108
  %v3742 = vpack.c.b16 %v3111, %v3110
  %v3743 = vpack.c.b16 %v3113, %v3112
  %v3744 = vpack.c.b16 %v3115, %v3114
  %v3745 = vpack.c.b16 %v3117, %v3116
  %v3746 = vpack.c.b16 %v3119, %v3118
  %v3747 = vpack.c.b16 %v3121, %v3120
  %v3748 = vpack.c.b16 %v3123, %v3122
  %v3749 = vpack.c.b16 %v3125, %v3124
  %v3750 = vpack.c.b16 %v3127, %v3126
  %v3751 = vpack.c.b16 %v3129, %v3128
  %v3752 = vpack.c.b16 %v3131, %v3130
  %v3753 = vpack.c.b16 %v3133, %v3132
  %v3754 = vpack.c.b16 %v3135, %v3134
  %v3755 = vpack.c.b16 %v3137, %v3136
  %v3756 = vpack.c.b16 %v3139, %v3138
  %v3757 = vpack.c.b16 %v3141, %v3140
  %v3758 = vpack.c.b16 %v3143, %v3142
  %v3759 = vpack.c.b16 %v3145, %v3144
  %v3760 = vpack.c.b16 %v3147, %v3146
  %v3761 = vpack.c.b16 %v3149, %v3148
  %v3762 = vpack.c.b16 %v3151, %v3150
  %v3763 = vpack.c.b16 %v3153, %v3152
  %v3764 = vpack.c.b16 %v3155, %v3154
  %v3765 = vpack.c.b16 %v3157, %v3156
  %v3766 = vpack.c.b16 %v3159, %v3158
  %v3767 = vpack.c.b16 %v3161, %v3160
  %v3768 = vpack.c.b16 %v3163, %v3162
  %v3769 = vpack.c.b16 %v3165, %v3164
  %v3770 = vpack.c.b16 %v3167, %v3166
  %v3771 = vpack.c.b16 %v3169, %v3168
  %v3772 = vpack.c.b16 %v3171, %v3170
  %v3773 = vpack.c.b16 %v3173, %v3172
  %v3774 = vpack.c.b16 %v3175, %v3174
  %v3775 = vpack.c.b16 %v3177, %v3176
  %v3776 = vpack.c.b16 %v3179, %v3178
  %v3777 = vpack.c.b16 %v3181, %v3180
  %v3778 = vpack.c.b16 %v3183, %v3182
  %v3779 = vpack.c.b16 %v3185, %v3184
  %v3780 = vpack.c.b16 %v3187, %v3186
  %v3781 = vpack.c.b16 %v3189, %v3188
  %v3782 = vpack.c.b16 %v3191, %v3190
  %v3783 = vpack.c.b16 %v3193, %v3192
  %v3784 = vpack.c.b16 %v3195, %v3194
  %v3785 = vpack.c.b16 %v3197, %v3196
  %v3786 = vpack.c.b16 %v3199, %v3198
  %v3787 = vpack.c.b16 %v3201, %v3200
  %v3788 = vpack.c.b16 %v3203, %v3202
  %v3789 = vpack.c.b16 %v3205, %v3204
  %v3790 = vpack.c.b16 %v3207, %v3206
  %v3791 = vpack.c.b16 %v3209, %v3208
  %v3792 = vpack.c.b16 %v3211, %v3210
  %v3793 = vpack.c.b16 %v3213, %v3212
  %v3794 = vpack.c.b16 %v3215, %v3214
  %v3795 = vpack.c.b16 %v3217, %v3216
  %v3796 = vpack.c.b16 %v3219, %v3218
  %v3797 = vpack.c.b16 %v3221, %v3220
  %v3798 = vpack.c.b16 %v3223, %v3222
  %v3799 = vpack.c.b16 %v3225, %v3224
  %v3800 = vpack.c.b16 %v3227, %v3226
  %v3801 = vpack.c.b16 %v3229, %v3228
  %v3802 = vpack.c.b16 %v3231, %v3230
  %v3803 = vpack.c.b16 %v3233, %v3232
  %v3804 = vpack.c.b16 %v3235, %v3234
  %v3805 = vpack.c.b16 %v3237, %v3236
  %v3806 = vpack.c.b16 %v3239, %v3238
  %v3807 = vpack.c.b16 %v3241, %v3240
  %v3808 = vpack.c.b16 %v3243, %v3242
  %v3809 = vpack.c.b16 %v3245, %v3244
  %v3810 = vpack.c.b16 %v3247, %v3246
  %v3811 = vpack.c.b16 %v3249, %v3248
  %v3812 = vpack.c.b16 %v3251, %v3250
  %v3813 = vpack.c.b16 %v3253, %v3252
  %v3814 = vpack.c.b16 %v3255, %v3254
  %v3815 = vpack.c.b16 %v3257, %v3256
  %v3816 = vpack.c.b16 %v3259, %v3258
  %v3817 = vpack.c.b16 %v3261, %v3260
  %v3818 = vpack.c.b16 %v3263, %v3262
  %v3819 = vpack.c.b16 %v3265, %v3264
  %v3820 = vpack.c.b16 %v3267, %v3266
  %v3821 = vpack.c.b16 %v3269, %v3268
  %v3822 = vpack.c.b16 %v3271, %v3270
  %v3823 = vpack.c.b16 %v3273, %v3272
  %v3824 = vpack.c.b16 %v3275, %v3274
  %v3825 = vpack.c.b16 %v3277, %v3276
  %v3826 = vpack.c.b16 %v3279, %v3278
  %v3827 = vpack.c.b16 %v3281, %v3280
  %v3828 = vpack.c.b16 %v3283, %v3282
  %v3829 = vpack.c.b16 %v3285, %v3284
  %v3830 = vpack.c.b16 %v3287, %v3286
  %v3831 = vpack.c.b16 %v3289, %v3288
  %v3832 = vpack.c.b16 %v3291, %v3290
  %v3833 = vpack.c.b16 %v3293, %v3292
  %v3834 = vpack.c.b16 %v3295, %v3294
  %v3835 = vpack.c.b16 %v3297, %v3296
  %v3836 = vpack.c.b16 %v3299, %v3298
  %v3837 = vpack.c.b16 %v3301, %v3300
  %v3838 = vpack.c.b16 %v3303, %v3302
  %v3839 = vpack.c.b16 %v3305, %v3304
  %v3840 = vpack.c.b16 %v3307, %v3306
  %v3841 = vpack.c.b16 %v3309, %v3308
  %v3842 = vpack.c.b16 %v3311, %v3310
  %v3843 = vpack.c.b16 %v3313, %v3312
  %v3844 = vpack.c.b16 %v3315, %v3314
  %v3845 = vpack.c.b16 %v3317, %v3316
  %v3846 = vpack.c.b16 %v3319, %v3318
  %v3847 = vpack.c.b16 %v3321, %v3320
  %v3848 = vpack.c.b16 %v3323, %v3322
  %v3849 = vpack.c.b16 %v3325, %v3324
  %v3850 = vpack.c.b16 %v3327, %v3326
  %v3851 = vpack.c.b16 %v3329, %v3328
  %v3852 = vpack.c.b16 %v3331, %v3330
  %v3853 = vpack.c.b16 %v3333, %v3332
  %v3854 = vpack.c.b16 %v3335, %v3334
  %v3855 = vpack.c.b16 %v3337, %v3336
  %v3856 = vpack.c.b16 %v3339, %v3338
  %v3857 = vpack.c.b16 %v3341, %v3340
  %v3858 = vpack.c.b16 %v3343, %v3342
  %v3859 = vpack.c.b16 %v3345, %v3344
  %v3860 = vpack.c.b16 %v3347, %v3346
  %v3861 = vpack.c.b16 %v3349, %v3348
  %4374 = vmatprep.subr.bf16.mxu0 0
  %4375 = vmatpush1.bf16.msra.mxu0 %v3350
  %4376 = vmatprep.subr.bf16.mxu0 0
  %4377 = vmatpush1.bf16.msra.mxu0 %v3351
  %4378 = vmatprep.subr.bf16.mxu0 0
  %4379 = vmatpush1.bf16.msra.mxu0 %v3352
  %4380 = vmatprep.subr.bf16.mxu0 0
  %4381 = vmatpush1.bf16.msra.mxu0 %v3353
  %4382 = vmatprep.subr.bf16.mxu0 0
  %4383 = vmatpush1.bf16.msra.mxu0 %v3354
  %4384 = vmatprep.subr.bf16.mxu0 0
  %4385 = vmatpush1.bf16.msra.mxu0 %v3355
  %4386 = vmatprep.subr.bf16.mxu0 0
  %4387 = vmatpush1.bf16.msra.mxu0 %v3356
  %4388 = vmatprep.subr.bf16.mxu0 0
  %4389 = vmatpush1.bf16.msra.mxu0 %v3357
  %4390 = vmatprep.subr.bf16.mxu0 0
  %4391 = vmatpush1.bf16.msra.mxu0 %v3358
  %4392 = vmatprep.subr.bf16.mxu0 0
  %4393 = vmatpush1.bf16.msra.mxu0 %v3359
  %4394 = vmatprep.subr.bf16.mxu0 0
  %4395 = vmatpush1.bf16.msra.mxu0 %v3360
  %4396 = vmatprep.subr.bf16.mxu0 0
  %4397 = vmatpush1.bf16.msra.mxu0 %v3361
  %4398 = vmatprep.subr.bf16.mxu0 0
  %4399 = vmatpush1.bf16.msra.mxu0 %v3362
  %4400 = vmatprep.subr.bf16.mxu0 0
  %4401 = vmatpush1.bf16.msra.mxu0 %v3363
  %4402 = vmatprep.subr.bf16.mxu0 0
  %4403 = vmatpush1.bf16.msra.mxu0 %v3364
  %4404 = vmatprep.subr.bf16.mxu0 0
  %4405 = vmatpush1.bf16.msra.mxu0 %v3365
  %4406 = vmatprep.mubr.bf16.mxu0 %v1175
  %4407 = vmatmul.mubr.bf16.gmra.mrb[0].mxu0 %v1174
  %v4408 = vpop.f32.mrb[0].mxu0
  %v4409 = vadd.f32 %v1076, %v4408
  %v4410 = vpop.f32.mrb[0].mxu0
  %v4411 = vpop.f32.mrb[0].mxu0
  %v4412 = vpop.f32.mrb[0].mxu0
  %4413 = vdwg.mxu0
  %4414 = vmatprep.subr.bf16.mxu0 0
  %4415 = vmatpush1.bf16.msra.mxu0 %v3366
  %4416 = vmatprep.subr.bf16.mxu0 0
  %4417 = vmatpush1.bf16.msra.mxu0 %v3367
  %4418 = vmatprep.subr.bf16.mxu0 0
  %4419 = vmatpush1.bf16.msra.mxu0 %v3368
  %4420 = vmatprep.subr.bf16.mxu0 0
  %4421 = vmatpush1.bf16.msra.mxu0 %v3369
  %4422 = vmatprep.subr.bf16.mxu0 0
  %4423 = vmatpush1.bf16.msra.mxu0 %v3370
  %4424 = vmatprep.subr.bf16.mxu0 0
  %4425 = vmatpush1.bf16.msra.mxu0 %v3371
  %4426 = vmatprep.subr.bf16.mxu0 0
  %4427 = vmatpush1.bf16.msra.mxu0 %v3372
  %4428 = vmatprep.subr.bf16.mxu0 0
  %4429 = vmatpush1.bf16.msra.mxu0 %v3373
  %4430 = vmatprep.subr.bf16.mxu0 0
  %4431 = vmatpush1.bf16.msra.mxu0 %v3374
  %4432 = vmatprep.subr.bf16.mxu0 0
  %4433 = vmatpush1.bf16.msra.mxu0 %v3375
  %4434 = vmatprep.subr.bf16.mxu0 0
  %4435 = vmatpush1.bf16.msra.mxu0 %v3376
  %4436 = vmatprep.subr.bf16.mxu0 0
  %4437 = vmatpush1.bf16.msra.mxu0 %v3377
  %4438 = vmatprep.subr.bf16.mxu0 0
  %4439 = vmatpush1.bf16.msra.mxu0 %v3378
  %4440 = vmatprep.subr.bf16.mxu0 0
  %4441 = vmatpush1.bf16.msra.mxu0 %v3379
  %4442 = vmatprep.subr.bf16.mxu0 0
  %4443 = vmatpush1.bf16.msra.mxu0 %v3380
  %4444 = vmatprep.subr.bf16.mxu0 0
  %4445 = vmatpush1.bf16.msra.mxu0 %v3381
  %4446 = vmatprep.mubr.bf16.mxu0 %v1177
  %4447 = vmatmul.mubr.bf16.gmra.mrb[0].mxu0 %v1176
  %v4448 = vpop.f32.mrb[0].mxu0
  %v4449 = vadd.f32 %v4409, %v4448
  %v4450 = vpop.f32.mrb[0].mxu0
  %v4451 = vpop.f32.mrb[0].mxu0
  %v4452 = vpop.f32.mrb[0].mxu0
  %4453 = vdwg.mxu0
  %4454 = vmatprep.subr.bf16.mxu0 0
  %4455 = vmatpush1.bf16.msra.mxu0 %v3382
  %4456 = vmatprep.subr.bf16.mxu0 0
  %4457 = vmatpush1.bf16.msra.mxu0 %v3383
  %4458 = vmatprep.subr.bf16.mxu0 0
  %4459 = vmatpush1.bf16.msra.mxu0 %v3384
  %4460 = vmatprep.subr.bf16.mxu0 0
  %4461 = vmatpush1.bf16.msra.mxu0 %v3385
  %4462 = vmatprep.subr.bf16.mxu0 0
  %4463 = vmatpush1.bf16.msra.mxu0 %v3386
  %4464 = vmatprep.subr.bf16.mxu0 0
  %4465 = vmatpush1.bf16.msra.mxu0 %v3387
  %4466 = vmatprep.subr.bf16.mxu0 0
  %4467 = vmatpush1.bf16.msra.mxu0 %v3388
  %4468 = vmatprep.subr.bf16.mxu0 0
  %4469 = vmatpush1.bf16.msra.mxu0 %v3389
  %4470 = vmatprep.subr.bf16.mxu0 0
  %4471 = vmatpush1.bf16.msra.mxu0 %v3390
  %4472 = vmatprep.subr.bf16.mxu0 0
  %4473 = vmatpush1.bf16.msra.mxu0 %v3391
  %4474 = vmatprep.subr.bf16.mxu0 0
  %4475 = vmatpush1.bf16.msra.mxu0 %v3392
  %4476 = vmatprep.subr.bf16.mxu0 0
  %4477 = vmatpush1.bf16.msra.mxu0 %v3393
  %4478 = vmatprep.subr.bf16.mxu0 0
  %4479 = vmatpush1.bf16.msra.mxu0 %v3394
  %4480 = vmatprep.subr.bf16.mxu0 0
  %4481 = vmatpush1.bf16.msra.mxu0 %v3395
  %4482 = vmatprep.subr.bf16.mxu0 0
  %4483 = vmatpush1.bf16.msra.mxu0 %v3396
  %4484 = vmatprep.subr.bf16.mxu0 0
  %4485 = vmatpush1.bf16.msra.mxu0 %v3397
  %4486 = vmatprep.mubr.bf16.mxu0 %v1179
  %4487 = vmatmul.mubr.bf16.gmra.mrb[0].mxu0 %v1178
  %v4488 = vpop.f32.mrb[0].mxu0
  %v4489 = vadd.f32 %v4449, %v4488
  %v4490 = vpop.f32.mrb[0].mxu0
  %v4491 = vpop.f32.mrb[0].mxu0
  %v4492 = vpop.f32.mrb[0].mxu0
  %4493 = vdwg.mxu0
  %4494 = vmatprep.subr.bf16.mxu0 0
  %4495 = vmatpush1.bf16.msra.mxu0 %v3398
  %4496 = vmatprep.subr.bf16.mxu0 0
  %4497 = vmatpush1.bf16.msra.mxu0 %v3399
  %4498 = vmatprep.subr.bf16.mxu0 0
  %4499 = vmatpush1.bf16.msra.mxu0 %v3400
  %4500 = vmatprep.subr.bf16.mxu0 0
  %4501 = vmatpush1.bf16.msra.mxu0 %v3401
  %4502 = vmatprep.subr.bf16.mxu0 0
  %4503 = vmatpush1.bf16.msra.mxu0 %v3402
  %4504 = vmatprep.subr.bf16.mxu0 0
  %4505 = vmatpush1.bf16.msra.mxu0 %v3403
  %4506 = vmatprep.subr.bf16.mxu0 0
  %4507 = vmatpush1.bf16.msra.mxu0 %v3404
  %4508 = vmatprep.subr.bf16.mxu0 0
  %4509 = vmatpush1.bf16.msra.mxu0 %v3405
  %4510 = vmatprep.subr.bf16.mxu0 0
  %4511 = vmatpush1.bf16.msra.mxu0 %v3406
  %4512 = vmatprep.subr.bf16.mxu0 0
  %4513 = vmatpush1.bf16.msra.mxu0 %v3407
  %4514 = vmatprep.subr.bf16.mxu0 0
  %4515 = vmatpush1.bf16.msra.mxu0 %v3408
  %4516 = vmatprep.subr.bf16.mxu0 0
  %4517 = vmatpush1.bf16.msra.mxu0 %v3409
  %4518 = vmatprep.subr.bf16.mxu0 0
  %4519 = vmatpush1.bf16.msra.mxu0 %v3410
  %4520 = vmatprep.subr.bf16.mxu0 0
  %4521 = vmatpush1.bf16.msra.mxu0 %v3411
  %4522 = vmatprep.subr.bf16.mxu0 0
  %4523 = vmatpush1.bf16.msra.mxu0 %v3412
  %4524 = vmatprep.subr.bf16.mxu0 0
  %4525 = vmatpush1.bf16.msra.mxu0 %v3413
  %4526 = vmatprep.mubr.bf16.mxu0 %v1181
  %4527 = vmatmul.mubr.bf16.gmra.mrb[0].mxu0 %v1180
  %v4528 = vpop.f32.mrb[0].mxu0
  %v4529 = vadd.f32 %v4489, %v4528
  %v4530 = vpop.f32.mrb[0].mxu0
  %v4531 = vpop.f32.mrb[0].mxu0
  %v4532 = vpop.f32.mrb[0].mxu0
  %4533 = vdwg.mxu0
  %4534 = vmatprep.subr.bf16.mxu0 0
  %4535 = vmatpush1.bf16.msra.mxu0 %v3414
  %4536 = vmatprep.subr.bf16.mxu0 0
  %4537 = vmatpush1.bf16.msra.mxu0 %v3415
  %4538 = vmatprep.subr.bf16.mxu0 0
  %4539 = vmatpush1.bf16.msra.mxu0 %v3416
  %4540 = vmatprep.subr.bf16.mxu0 0
  %4541 = vmatpush1.bf16.msra.mxu0 %v3417
  %4542 = vmatprep.subr.bf16.mxu0 0
  %4543 = vmatpush1.bf16.msra.mxu0 %v3418
  %4544 = vmatprep.subr.bf16.mxu0 0
  %4545 = vmatpush1.bf16.msra.mxu0 %v3419
  %4546 = vmatprep.subr.bf16.mxu0 0
  %4547 = vmatpush1.bf16.msra.mxu0 %v3420
  %4548 = vmatprep.subr.bf16.mxu0 0
  %4549 = vmatpush1.bf16.msra.mxu0 %v3421
  %4550 = vmatprep.subr.bf16.mxu0 0
  %4551 = vmatpush1.bf16.msra.mxu0 %v3422
  %4552 = vmatprep.subr.bf16.mxu0 0
  %4553 = vmatpush1.bf16.msra.mxu0 %v3423
  %4554 = vmatprep.subr.bf16.mxu0 0
  %4555 = vmatpush1.bf16.msra.mxu0 %v3424
  %4556 = vmatprep.subr.bf16.mxu0 0
  %4557 = vmatpush1.bf16.msra.mxu0 %v3425
  %4558 = vmatprep.subr.bf16.mxu0 0
  %4559 = vmatpush1.bf16.msra.mxu0 %v3426
  %4560 = vmatprep.subr.bf16.mxu0 0
  %4561 = vmatpush1.bf16.msra.mxu0 %v3427
  %4562 = vmatprep.subr.bf16.mxu0 0
  %4563 = vmatpush1.bf16.msra.mxu0 %v3428
  %4564 = vmatprep.subr.bf16.mxu0 0
  %4565 = vmatpush1.bf16.msra.mxu0 %v3429
  %4566 = vmatprep.mubr.bf16.mxu0 %v1183
  %4567 = vmatmul.mubr.bf16.gmra.mrb[0].mxu0 %v1182
  %v4568 = vpop.f32.mrb[0].mxu0
  %v4569 = vadd.f32 %v4529, %v4568
  %v4570 = vpop.f32.mrb[0].mxu0
  %v4571 = vpop.f32.mrb[0].mxu0
  %v4572 = vpop.f32.mrb[0].mxu0
  %4573 = vdwg.mxu0
  %4574 = vmatprep.subr.bf16.mxu0 0
  %4575 = vmatpush1.bf16.msra.mxu0 %v3430
  %4576 = vmatprep.subr.bf16.mxu0 0
  %4577 = vmatpush1.bf16.msra.mxu0 %v3431
  %4578 = vmatprep.subr.bf16.mxu0 0
  %4579 = vmatpush1.bf16.msra.mxu0 %v3432
  %4580 = vmatprep.subr.bf16.mxu0 0
  %4581 = vmatpush1.bf16.msra.mxu0 %v3433
  %4582 = vmatprep.subr.bf16.mxu0 0
  %4583 = vmatpush1.bf16.msra.mxu0 %v3434
  %4584 = vmatprep.subr.bf16.mxu0 0
  %4585 = vmatpush1.bf16.msra.mxu0 %v3435
  %4586 = vmatprep.subr.bf16.mxu0 0
  %4587 = vmatpush1.bf16.msra.mxu0 %v3436
  %4588 = vmatprep.subr.bf16.mxu0 0
  %4589 = vmatpush1.bf16.msra.mxu0 %v3437
  %4590 = vmatprep.subr.bf16.mxu0 0
  %4591 = vmatpush1.bf16.msra.mxu0 %v3438
  %4592 = vmatprep.subr.bf16.mxu0 0
  %4593 = vmatpush1.bf16.msra.mxu0 %v3439
  %4594 = vmatprep.subr.bf16.mxu0 0
  %4595 = vmatpush1.bf16.msra.mxu0 %v3440
  %4596 = vmatprep.subr.bf16.mxu0 0
  %4597 = vmatpush1.bf16.msra.mxu0 %v3441
  %4598 = vmatprep.subr.bf16.mxu0 0
  %4599 = vmatpush1.bf16.msra.mxu0 %v3442
  %4600 = vmatprep.subr.bf16.mxu0 0
  %4601 = vmatpush1.bf16.msra.mxu0 %v3443
  %4602 = vmatprep.subr.bf16.mxu0 0
  %4603 = vmatpush1.bf16.msra.mxu0 %v3444
  %4604 = vmatprep.subr.bf16.mxu0 0
  %4605 = vmatpush1.bf16.msra.mxu0 %v3445
  %4606 = vmatprep.mubr.bf16.mxu0 %v1185
  %4607 = vmatmul.mubr.bf16.gmra.mrb[0].mxu0 %v1184
  %v4608 = vpop.f32.mrb[0].mxu0
  %v4609 = vadd.f32 %v4569, %v4608
  %v4610 = vpop.f32.mrb[0].mxu0
  %v4611 = vpop.f32.mrb[0].mxu0
  %v4612 = vpop.f32.mrb[0].mxu0
  %4613 = vdwg.mxu0
  %4614 = vmatprep.subr.bf16.mxu0 0
  %4615 = vmatpush1.bf16.msra.mxu0 %v3446
  %4616 = vmatprep.subr.bf16.mxu0 0
  %4617 = vmatpush1.bf16.msra.mxu0 %v3447
  %4618 = vmatprep.subr.bf16.mxu0 0
  %4619 = vmatpush1.bf16.msra.mxu0 %v3448
  %4620 = vmatprep.subr.bf16.mxu0 0
  %4621 = vmatpush1.bf16.msra.mxu0 %v3449
  %4622 = vmatprep.subr.bf16.mxu0 0
  %4623 = vmatpush1.bf16.msra.mxu0 %v3450
  %4624 = vmatprep.subr.bf16.mxu0 0
  %4625 = vmatpush1.bf16.msra.mxu0 %v3451
  %4626 = vmatprep.subr.bf16.mxu0 0
  %4627 = vmatpush1.bf16.msra.mxu0 %v3452
  %4628 = vmatprep.subr.bf16.mxu0 0
  %4629 = vmatpush1.bf16.msra.mxu0 %v3453
  %4630 = vmatprep.subr.bf16.mxu0 0
  %4631 = vmatpush1.bf16.msra.mxu0 %v3454
  %4632 = vmatprep.subr.bf16.mxu0 0
  %4633 = vmatpush1.bf16.msra.mxu0 %v3455
  %4634 = vmatprep.subr.bf16.mxu0 0
  %4635 = vmatpush1.bf16.msra.mxu0 %v3456
  %4636 = vmatprep.subr.bf16.mxu0 0
  %4637 = vmatpush1.bf16.msra.mxu0 %v3457
  %4638 = vmatprep.subr.bf16.mxu0 0
  %4639 = vmatpush1.bf16.msra.mxu0 %v3458
  %4640 = vmatprep.subr.bf16.mxu0 0
  %4641 = vmatpush1.bf16.msra.mxu0 %v3459
  %4642 = vmatprep.subr.bf16.mxu0 0
  %4643 = vmatpush1.bf16.msra.mxu0 %v3460
  %4644 = vmatprep.subr.bf16.mxu0 0
  %4645 = vmatpush1.bf16.msra.mxu0 %v3461
  %4646 = vmatprep.mubr.bf16.mxu0 %v1187
  %4647 = vmatmul.mubr.bf16.gmra.mrb[0].mxu0 %v1186
  %v4648 = vpop.f32.mrb[0].mxu0
  %v4649 = vadd.f32 %v4609, %v4648
  %v4650 = vpop.f32.mrb[0].mxu0
  %v4651 = vpop.f32.mrb[0].mxu0
  %v4652 = vpop.f32.mrb[0].mxu0
  %4653 = vdwg.mxu0
  %4654 = vmatprep.subr.bf16.mxu0 0
  %4655 = vmatpush1.bf16.msra.mxu0 %v3462
  %4656 = vmatprep.subr.bf16.mxu0 0
  %4657 = vmatpush1.bf16.msra.mxu0 %v3463
  %4658 = vmatprep.subr.bf16.mxu0 0
  %4659 = vmatpush1.bf16.msra.mxu0 %v3464
  %4660 = vmatprep.subr.bf16.mxu0 0
  %4661 = vmatpush1.bf16.msra.mxu0 %v3465
  %4662 = vmatprep.subr.bf16.mxu0 0
  %4663 = vmatpush1.bf16.msra.mxu0 %v3466
  %4664 = vmatprep.subr.bf16.mxu0 0
  %4665 = vmatpush1.bf16.msra.mxu0 %v3467
  %4666 = vmatprep.subr.bf16.mxu0 0
  %4667 = vmatpush1.bf16.msra.mxu0 %v3468
  %4668 = vmatprep.subr.bf16.mxu0 0
  %4669 = vmatpush1.bf16.msra.mxu0 %v3469
  %4670 = vmatprep.subr.bf16.mxu0 0
  %4671 = vmatpush1.bf16.msra.mxu0 %v3470
  %4672 = vmatprep.subr.bf16.mxu0 0
  %4673 = vmatpush1.bf16.msra.mxu0 %v3471
  %4674 = vmatprep.subr.bf16.mxu0 0
  %4675 = vmatpush1.bf16.msra.mxu0 %v3472
  %4676 = vmatprep.subr.bf16.mxu0 0
  %4677 = vmatpush1.bf16.msra.mxu0 %v3473
  %4678 = vmatprep.subr.bf16.mxu0 0
  %4679 = vmatpush1.bf16.msra.mxu0 %v3474
  %4680 = vmatprep.subr.bf16.mxu0 0
  %4681 = vmatpush1.bf16.msra.mxu0 %v3475
  %4682 = vmatprep.subr.bf16.mxu0 0
  %4683 = vmatpush1.bf16.msra.mxu0 %v3476
  %4684 = vmatprep.subr.bf16.mxu0 0
  %4685 = vmatpush1.bf16.msra.mxu0 %v3477
  %4686 = vmatprep.mubr.bf16.mxu0 %v1189
  %4687 = vmatmul.mubr.bf16.gmra.mrb[0].mxu0 %v1188
  %v4688 = vpop.f32.mrb[0].mxu0
  %v4689 = vadd.f32 %v4649, %v4688
  %v4690 = vpop.f32.mrb[0].mxu0
  %v4691 = vpop.f32.mrb[0].mxu0
  %v4692 = vpop.f32.mrb[0].mxu0
  %4693 = vdwg.mxu0
  %4694 = vmatprep.subr.bf16.mxu0 0
  %4695 = vmatpush1.bf16.msra.mxu0 %v3478
  %4696 = vmatprep.subr.bf16.mxu0 0
  %4697 = vmatpush1.bf16.msra.mxu0 %v3479
  %4698 = vmatprep.subr.bf16.mxu0 0
  %4699 = vmatpush1.bf16.msra.mxu0 %v3480
  %4700 = vmatprep.subr.bf16.mxu0 0
  %4701 = vmatpush1.bf16.msra.mxu0 %v3481
  %4702 = vmatprep.subr.bf16.mxu0 0
  %4703 = vmatpush1.bf16.msra.mxu0 %v3482
  %4704 = vmatprep.subr.bf16.mxu0 0
  %4705 = vmatpush1.bf16.msra.mxu0 %v3483
  %4706 = vmatprep.subr.bf16.mxu0 0
  %4707 = vmatpush1.bf16.msra.mxu0 %v3484
  %4708 = vmatprep.subr.bf16.mxu0 0
  %4709 = vmatpush1.bf16.msra.mxu0 %v3485
  %4710 = vmatprep.subr.bf16.mxu0 0
  %4711 = vmatpush1.bf16.msra.mxu0 %v3486
  %4712 = vmatprep.subr.bf16.mxu0 0
  %4713 = vmatpush1.bf16.msra.mxu0 %v3487
  %4714 = vmatprep.subr.bf16.mxu0 0
  %4715 = vmatpush1.bf16.msra.mxu0 %v3488
  %4716 = vmatprep.subr.bf16.mxu0 0
  %4717 = vmatpush1.bf16.msra.mxu0 %v3489
  %4718 = vmatprep.subr.bf16.mxu0 0
  %4719 = vmatpush1.bf16.msra.mxu0 %v3490
  %4720 = vmatprep.subr.bf16.mxu0 0
  %4721 = vmatpush1.bf16.msra.mxu0 %v3491
  %4722 = vmatprep.subr.bf16.mxu0 0
  %4723 = vmatpush1.bf16.msra.mxu0 %v3492
  %4724 = vmatprep.subr.bf16.mxu0 0
  %4725 = vmatpush1.bf16.msra.mxu0 %v3493
  %4726 = vmatprep.mubr.bf16.mxu0 %v1191
  %4727 = vmatmul.mubr.bf16.gmra.mrb[0].mxu0 %v1190
  %v4728 = vpop.f32.mrb[0].mxu0
  %v4729 = vadd.f32 %v4689, %v4728
  %v4730 = vpop.f32.mrb[0].mxu0
  %v4731 = vpop.f32.mrb[0].mxu0
  %v4732 = vpop.f32.mrb[0].mxu0
  %4733 = vdwg.mxu0
  %4734 = vmatprep.subr.bf16.mxu0 0
  %4735 = vmatpush1.bf16.msra.mxu0 %v3494
  %4736 = vmatprep.subr.bf16.mxu0 0
  %4737 = vmatpush1.bf16.msra.mxu0 %v3495
  %4738 = vmatprep.subr.bf16.mxu0 0
  %4739 = vmatpush1.bf16.msra.mxu0 %v3496
  %4740 = vmatprep.subr.bf16.mxu0 0
  %4741 = vmatpush1.bf16.msra.mxu0 %v3497
  %4742 = vmatprep.subr.bf16.mxu0 0
  %4743 = vmatpush1.bf16.msra.mxu0 %v3498
  %4744 = vmatprep.subr.bf16.mxu0 0
  %4745 = vmatpush1.bf16.msra.mxu0 %v3499
  %4746 = vmatprep.subr.bf16.mxu0 0
  %4747 = vmatpush1.bf16.msra.mxu0 %v3500
  %4748 = vmatprep.subr.bf16.mxu0 0
  %4749 = vmatpush1.bf16.msra.mxu0 %v3501
  %4750 = vmatprep.subr.bf16.mxu0 0
  %4751 = vmatpush1.bf16.msra.mxu0 %v3502
  %4752 = vmatprep.subr.bf16.mxu0 0
  %4753 = vmatpush1.bf16.msra.mxu0 %v3503
  %4754 = vmatprep.subr.bf16.mxu0 0
  %4755 = vmatpush1.bf16.msra.mxu0 %v3504
  %4756 = vmatprep.subr.bf16.mxu0 0
  %4757 = vmatpush1.bf16.msra.mxu0 %v3505
  %4758 = vmatprep.subr.bf16.mxu0 0
  %4759 = vmatpush1.bf16.msra.mxu0 %v3506
  %4760 = vmatprep.subr.bf16.mxu0 0
  %4761 = vmatpush1.bf16.msra.mxu0 %v3507
  %4762 = vmatprep.subr.bf16.mxu0 0
  %4763 = vmatpush1.bf16.msra.mxu0 %v3508
  %4764 = vmatprep.subr.bf16.mxu0 0
  %4765 = vmatpush1.bf16.msra.mxu0 %v3509
  %4766 = vmatprep.mubr.bf16.mxu0 %v1193
  %4767 = vmatmul.mubr.bf16.gmra.mrb[0].mxu0 %v1192
  %v4768 = vpop.f32.mrb[0].mxu0
  %v4769 = vadd.f32 %v4729, %v4768
  %v4770 = vpop.f32.mrb[0].mxu0
  %v4771 = vpop.f32.mrb[0].mxu0
  %v4772 = vpop.f32.mrb[0].mxu0
  %4773 = vdwg.mxu0
  %4774 = vmatprep.subr.bf16.mxu0 0
  %4775 = vmatpush1.bf16.msra.mxu0 %v3510
  %4776 = vmatprep.subr.bf16.mxu0 0
  %4777 = vmatpush1.bf16.msra.mxu0 %v3511
  %4778 = vmatprep.subr.bf16.mxu0 0
  %4779 = vmatpush1.bf16.msra.mxu0 %v3512
  %4780 = vmatprep.subr.bf16.mxu0 0
  %4781 = vmatpush1.bf16.msra.mxu0 %v3513
  %4782 = vmatprep.subr.bf16.mxu0 0
  %4783 = vmatpush1.bf16.msra.mxu0 %v3514
  %4784 = vmatprep.subr.bf16.mxu0 0
  %4785 = vmatpush1.bf16.msra.mxu0 %v3515
  %4786 = vmatprep.subr.bf16.mxu0 0
  %4787 = vmatpush1.bf16.msra.mxu0 %v3516
  %4788 = vmatprep.subr.bf16.mxu0 0
  %4789 = vmatpush1.bf16.msra.mxu0 %v3517
  %4790 = vmatprep.subr.bf16.mxu0 0
  %4791 = vmatpush1.bf16.msra.mxu0 %v3518
  %4792 = vmatprep.subr.bf16.mxu0 0
  %4793 = vmatpush1.bf16.msra.mxu0 %v3519
  %4794 = vmatprep.subr.bf16.mxu0 0
  %4795 = vmatpush1.bf16.msra.mxu0 %v3520
  %4796 = vmatprep.subr.bf16.mxu0 0
  %4797 = vmatpush1.bf16.msra.mxu0 %v3521
  %4798 = vmatprep.subr.bf16.mxu0 0
  %4799 = vmatpush1.bf16.msra.mxu0 %v3522
  %4800 = vmatprep.subr.bf16.mxu0 0
  %4801 = vmatpush1.bf16.msra.mxu0 %v3523
  %4802 = vmatprep.subr.bf16.mxu0 0
  %4803 = vmatpush1.bf16.msra.mxu0 %v3524
  %4804 = vmatprep.subr.bf16.mxu0 0
  %4805 = vmatpush1.bf16.msra.mxu0 %v3525
  %4806 = vmatprep.mubr.bf16.mxu0 %v1195
  %4807 = vmatmul.mubr.bf16.gmra.mrb[0].mxu0 %v1194
  %v4808 = vpop.f32.mrb[0].mxu0
  %v4809 = vadd.f32 %v4769, %v4808
  %v4810 = vpop.f32.mrb[0].mxu0
  %v4811 = vpop.f32.mrb[0].mxu0
  %v4812 = vpop.f32.mrb[0].mxu0
  %4813 = vdwg.mxu0
  %4814 = vmatprep.subr.bf16.mxu0 0
  %4815 = vmatpush1.bf16.msra.mxu0 %v3526
  %4816 = vmatprep.subr.bf16.mxu0 0
  %4817 = vmatpush1.bf16.msra.mxu0 %v3527
  %4818 = vmatprep.subr.bf16.mxu0 0
  %4819 = vmatpush1.bf16.msra.mxu0 %v3528
  %4820 = vmatprep.subr.bf16.mxu0 0
  %4821 = vmatpush1.bf16.msra.mxu0 %v3529
  %4822 = vmatprep.subr.bf16.mxu0 0
  %4823 = vmatpush1.bf16.msra.mxu0 %v3530
  %4824 = vmatprep.subr.bf16.mxu0 0
  %4825 = vmatpush1.bf16.msra.mxu0 %v3531
  %4826 = vmatprep.subr.bf16.mxu0 0
  %4827 = vmatpush1.bf16.msra.mxu0 %v3532
  %4828 = vmatprep.subr.bf16.mxu0 0
  %4829 = vmatpush1.bf16.msra.mxu0 %v3533
  %4830 = vmatprep.subr.bf16.mxu0 0
  %4831 = vmatpush1.bf16.msra.mxu0 %v3534
  %4832 = vmatprep.subr.bf16.mxu0 0
  %4833 = vmatpush1.bf16.msra.mxu0 %v3535
  %4834 = vmatprep.subr.bf16.mxu0 0
  %4835 = vmatpush1.bf16.msra.mxu0 %v3536
  %4836 = vmatprep.subr.bf16.mxu0 0
  %4837 = vmatpush1.bf16.msra.mxu0 %v3537
  %4838 = vmatprep.subr.bf16.mxu0 0
  %4839 = vmatpush1.bf16.msra.mxu0 %v3538
  %4840 = vmatprep.subr.bf16.mxu0 0
  %4841 = vmatpush1.bf16.msra.mxu0 %v3539
  %4842 = vmatprep.subr.bf16.mxu0 0
  %4843 = vmatpush1.bf16.msra.mxu0 %v3540
  %4844 = vmatprep.subr.bf16.mxu0 0
  %4845 = vmatpush1.bf16.msra.mxu0 %v3541
  %4846 = vmatprep.mubr.bf16.mxu0 %v1197
  %4847 = vmatmul.mubr.bf16.gmra.mrb[0].mxu0 %v1196
  %v4848 = vpop.f32.mrb[0].mxu0
  %v4849 = vadd.f32 %v4809, %v4848
  %v4850 = vpop.f32.mrb[0].mxu0
  %v4851 = vpop.f32.mrb[0].mxu0
  %v4852 = vpop.f32.mrb[0].mxu0
  %4853 = vdwg.mxu0
  %4854 = vmatprep.subr.bf16.mxu0 0
  %4855 = vmatpush1.bf16.msra.mxu0 %v3542
  %4856 = vmatprep.subr.bf16.mxu0 0
  %4857 = vmatpush1.bf16.msra.mxu0 %v3543
  %4858 = vmatprep.subr.bf16.mxu0 0
  %4859 = vmatpush1.bf16.msra.mxu0 %v3544
  %4860 = vmatprep.subr.bf16.mxu0 0
  %4861 = vmatpush1.bf16.msra.mxu0 %v3545
  %4862 = vmatprep.subr.bf16.mxu0 0
  %4863 = vmatpush1.bf16.msra.mxu0 %v3546
  %4864 = vmatprep.subr.bf16.mxu0 0
  %4865 = vmatpush1.bf16.msra.mxu0 %v3547
  %4866 = vmatprep.subr.bf16.mxu0 0
  %4867 = vmatpush1.bf16.msra.mxu0 %v3548
  %4868 = vmatprep.subr.bf16.mxu0 0
  %4869 = vmatpush1.bf16.msra.mxu0 %v3549
  %4870 = vmatprep.subr.bf16.mxu0 0
  %4871 = vmatpush1.bf16.msra.mxu0 %v3550
  %4872 = vmatprep.subr.bf16.mxu0 0
  %4873 = vmatpush1.bf16.msra.mxu0 %v3551
  %4874 = vmatprep.subr.bf16.mxu0 0
  %4875 = vmatpush1.bf16.msra.mxu0 %v3552
  %4876 = vmatprep.subr.bf16.mxu0 0
  %4877 = vmatpush1.bf16.msra.mxu0 %v3553
  %4878 = vmatprep.subr.bf16.mxu0 0
  %4879 = vmatpush1.bf16.msra.mxu0 %v3554
  %4880 = vmatprep.subr.bf16.mxu0 0
  %4881 = vmatpush1.bf16.msra.mxu0 %v3555
  %4882 = vmatprep.subr.bf16.mxu0 0
  %4883 = vmatpush1.bf16.msra.mxu0 %v3556
  %4884 = vmatprep.subr.bf16.mxu0 0
  %4885 = vmatpush1.bf16.msra.mxu0 %v3557
  %4886 = vmatprep.mubr.bf16.mxu0 %v1199
  %4887 = vmatmul.mubr.bf16.gmra.mrb[0].mxu0 %v1198
  %v4888 = vpop.f32.mrb[0].mxu0
  %v4889 = vadd.f32 %v4849, %v4888
  %v4890 = vpop.f32.mrb[0].mxu0
  %v4891 = vpop.f32.mrb[0].mxu0
  %v4892 = vpop.f32.mrb[0].mxu0
  %4893 = vdwg.mxu0
  %4894 = vmatprep.subr.bf16.mxu0 0
  %4895 = vmatpush1.bf16.msra.mxu0 %v3558
  %4896 = vmatprep.subr.bf16.mxu0 0
  %4897 = vmatpush1.bf16.msra.mxu0 %v3559
  %4898 = vmatprep.subr.bf16.mxu0 0
  %4899 = vmatpush1.bf16.msra.mxu0 %v3560
  %4900 = vmatprep.subr.bf16.mxu0 0
  %4901 = vmatpush1.bf16.msra.mxu0 %v3561
  %4902 = vmatprep.subr.bf16.mxu0 0
  %4903 = vmatpush1.bf16.msra.mxu0 %v3562
  %4904 = vmatprep.subr.bf16.mxu0 0
  %4905 = vmatpush1.bf16.msra.mxu0 %v3563
  %4906 = vmatprep.subr.bf16.mxu0 0
  %4907 = vmatpush1.bf16.msra.mxu0 %v3564
  %4908 = vmatprep.subr.bf16.mxu0 0
  %4909 = vmatpush1.bf16.msra.mxu0 %v3565
  %4910 = vmatprep.subr.bf16.mxu0 0
  %4911 = vmatpush1.bf16.msra.mxu0 %v3566
  %4912 = vmatprep.subr.bf16.mxu0 0
  %4913 = vmatpush1.bf16.msra.mxu0 %v3567
  %4914 = vmatprep.subr.bf16.mxu0 0
  %4915 = vmatpush1.bf16.msra.mxu0 %v3568
  %4916 = vmatprep.subr.bf16.mxu0 0
  %4917 = vmatpush1.bf16.msra.mxu0 %v3569
  %4918 = vmatprep.subr.bf16.mxu0 0
  %4919 = vmatpush1.bf16.msra.mxu0 %v3570
  %4920 = vmatprep.subr.bf16.mxu0 0
  %4921 = vmatpush1.bf16.msra.mxu0 %v3571
  %4922 = vmatprep.subr.bf16.mxu0 0
  %4923 = vmatpush1.bf16.msra.mxu0 %v3572
  %4924 = vmatprep.subr.bf16.mxu0 0
  %4925 = vmatpush1.bf16.msra.mxu0 %v3573
  %4926 = vmatprep.mubr.bf16.mxu0 %v1201
  %4927 = vmatmul.mubr.bf16.gmra.mrb[0].mxu0 %v1200
  %v4928 = vpop.f32.mrb[0].mxu0
  %v4929 = vadd.f32 %v4889, %v4928
  %v4930 = vpop.f32.mrb[0].mxu0
  %v4931 = vpop.f32.mrb[0].mxu0
  %v4932 = vpop.f32.mrb[0].mxu0
  %4933 = vdwg.mxu0
  %4934 = vmatprep.subr.bf16.mxu0 0
  %4935 = vmatpush1.bf16.msra.mxu0 %v3574
  %4936 = vmatprep.subr.bf16.mxu0 0
  %4937 = vmatpush1.bf16.msra.mxu0 %v3575
  %4938 = vmatprep.subr.bf16.mxu0 0
  %4939 = vmatpush1.bf16.msra.mxu0 %v3576
  %4940 = vmatprep.subr.bf16.mxu0 0
  %4941 = vmatpush1.bf16.msra.mxu0 %v3577
  %4942 = vmatprep.subr.bf16.mxu0 0
  %4943 = vmatpush1.bf16.msra.mxu0 %v3578
  %4944 = vmatprep.subr.bf16.mxu0 0
  %4945 = vmatpush1.bf16.msra.mxu0 %v3579
  %4946 = vmatprep.subr.bf16.mxu0 0
  %4947 = vmatpush1.bf16.msra.mxu0 %v3580
  %4948 = vmatprep.subr.bf16.mxu0 0
  %4949 = vmatpush1.bf16.msra.mxu0 %v3581
  %4950 = vmatprep.subr.bf16.mxu0 0
  %4951 = vmatpush1.bf16.msra.mxu0 %v3582
  %4952 = vmatprep.subr.bf16.mxu0 0
  %4953 = vmatpush1.bf16.msra.mxu0 %v3583
  %4954 = vmatprep.subr.bf16.mxu0 0
  %4955 = vmatpush1.bf16.msra.mxu0 %v3584
  %4956 = vmatprep.subr.bf16.mxu0 0
  %4957 = vmatpush1.bf16.msra.mxu0 %v3585
  %4958 = vmatprep.subr.bf16.mxu0 0
  %4959 = vmatpush1.bf16.msra.mxu0 %v3586
  %4960 = vmatprep.subr.bf16.mxu0 0
  %4961 = vmatpush1.bf16.msra.mxu0 %v3587
  %4962 = vmatprep.subr.bf16.mxu0 0
  %4963 = vmatpush1.bf16.msra.mxu0 %v3588
  %4964 = vmatprep.subr.bf16.mxu0 0
  %4965 = vmatpush1.bf16.msra.mxu0 %v3589
  %4966 = vmatprep.mubr.bf16.mxu0 %v1203
  %4967 = vmatmul.mubr.bf16.gmra.mrb[0].mxu0 %v1202
  %v4968 = vpop.f32.mrb[0].mxu0
  %v4969 = vadd.f32 %v4929, %v4968
  %v4970 = vpop.f32.mrb[0].mxu0
  %v4971 = vpop.f32.mrb[0].mxu0
  %v4972 = vpop.f32.mrb[0].mxu0
  %4973 = vdwg.mxu0
  %4974 = vmatprep.subr.bf16.mxu0 0
  %4975 = vmatpush1.bf16.msra.mxu0 %v3590
  %4976 = vmatprep.subr.bf16.mxu0 0
  %4977 = vmatpush1.bf16.msra.mxu0 %v3591
  %4978 = vmatprep.subr.bf16.mxu0 0
  %4979 = vmatpush1.bf16.msra.mxu0 %v3592
  %4980 = vmatprep.subr.bf16.mxu0 0
  %4981 = vmatpush1.bf16.msra.mxu0 %v3593
  %4982 = vmatprep.subr.bf16.mxu0 0
  %4983 = vmatpush1.bf16.msra.mxu0 %v3594
  %4984 = vmatprep.subr.bf16.mxu0 0
  %4985 = vmatpush1.bf16.msra.mxu0 %v3595
  %4986 = vmatprep.subr.bf16.mxu0 0
  %4987 = vmatpush1.bf16.msra.mxu0 %v3596
  %4988 = vmatprep.subr.bf16.mxu0 0
  %4989 = vmatpush1.bf16.msra.mxu0 %v3597
  %4990 = vmatprep.subr.bf16.mxu0 0
  %4991 = vmatpush1.bf16.msra.mxu0 %v3598
  %4992 = vmatprep.subr.bf16.mxu0 0
  %4993 = vmatpush1.bf16.msra.mxu0 %v3599
  %4994 = vmatprep.subr.bf16.mxu0 0
  %4995 = vmatpush1.bf16.msra.mxu0 %v3600
  %4996 = vmatprep.subr.bf16.mxu0 0
  %4997 = vmatpush1.bf16.msra.mxu0 %v3601
  %4998 = vmatprep.subr.bf16.mxu0 0
  %4999 = vmatpush1.bf16.msra.mxu0 %v3602
  %5000 = vmatprep.subr.bf16.mxu0 0
  %5001 = vmatpush1.bf16.msra.mxu0 %v3603
  %5002 = vmatprep.subr.bf16.mxu0 0
  %5003 = vmatpush1.bf16.msra.mxu0 %v3604
  %5004 = vmatprep.subr.bf16.mxu0 0
  %5005 = vmatpush1.bf16.msra.mxu0 %v3605
  %5006 = vmatprep.mubr.bf16.mxu0 %v1205
  %5007 = vmatmul.mubr.bf16.gmra.mrb[0].mxu0 %v1204
  %v5008 = vpop.f32.mrb[0].mxu0
  %v5009 = vadd.f32 %v4969, %v5008
  %v5010 = vpop.f32.mrb[0].mxu0
  %v5011 = vpop.f32.mrb[0].mxu0
  %v5012 = vpop.f32.mrb[0].mxu0
  %5013 = vdwg.mxu0
  %5014 = vmatprep.subr.bf16.mxu0 0
  %5015 = vmatpush1.bf16.msra.mxu0 %v3606
  %5016 = vmatprep.subr.bf16.mxu0 0
  %5017 = vmatpush1.bf16.msra.mxu0 %v3607
  %5018 = vmatprep.subr.bf16.mxu0 0
  %5019 = vmatpush1.bf16.msra.mxu0 %v3608
  %5020 = vmatprep.subr.bf16.mxu0 0
  %5021 = vmatpush1.bf16.msra.mxu0 %v3609
  %5022 = vmatprep.subr.bf16.mxu0 0
  %5023 = vmatpush1.bf16.msra.mxu0 %v3610
  %5024 = vmatprep.subr.bf16.mxu0 0
  %5025 = vmatpush1.bf16.msra.mxu0 %v3611
  %5026 = vmatprep.subr.bf16.mxu0 0
  %5027 = vmatpush1.bf16.msra.mxu0 %v3612
  %5028 = vmatprep.subr.bf16.mxu0 0
  %5029 = vmatpush1.bf16.msra.mxu0 %v3613
  %5030 = vmatprep.subr.bf16.mxu0 0
  %5031 = vmatpush1.bf16.msra.mxu0 %v3614
  %5032 = vmatprep.subr.bf16.mxu0 0
  %5033 = vmatpush1.bf16.msra.mxu0 %v3615
  %5034 = vmatprep.subr.bf16.mxu0 0
  %5035 = vmatpush1.bf16.msra.mxu0 %v3616
  %5036 = vmatprep.subr.bf16.mxu0 0
  %5037 = vmatpush1.bf16.msra.mxu0 %v3617
  %5038 = vmatprep.subr.bf16.mxu0 0
  %5039 = vmatpush1.bf16.msra.mxu0 %v3618
  %5040 = vmatprep.subr.bf16.mxu0 0
  %5041 = vmatpush1.bf16.msra.mxu0 %v3619
  %5042 = vmatprep.subr.bf16.mxu0 0
  %5043 = vmatpush1.bf16.msra.mxu0 %v3620
  %5044 = vmatprep.subr.bf16.mxu0 0
  %5045 = vmatpush1.bf16.msra.mxu0 %v3621
  %5046 = vmatprep.mubr.bf16.mxu0 %v1207
  %5047 = vmatmul.mubr.bf16.gmra.mrb[0].mxu0 %v1206
  %v5048 = vpop.f32.mrb[0].mxu0
  %v5049 = vadd.f32 %v5009, %v5048
  %v5050 = vpop.f32.mrb[0].mxu0
  %v5051 = vpop.f32.mrb[0].mxu0
  %v5052 = vpop.f32.mrb[0].mxu0
  %5053 = vdwg.mxu0
  %5054 = vmatprep.subr.bf16.mxu0 0
  %5055 = vmatpush1.bf16.msra.mxu0 %v3622
  %5056 = vmatprep.subr.bf16.mxu0 0
  %5057 = vmatpush1.bf16.msra.mxu0 %v3623
  %5058 = vmatprep.subr.bf16.mxu0 0
  %5059 = vmatpush1.bf16.msra.mxu0 %v3624
  %5060 = vmatprep.subr.bf16.mxu0 0
  %5061 = vmatpush1.bf16.msra.mxu0 %v3625
  %5062 = vmatprep.subr.bf16.mxu0 0
  %5063 = vmatpush1.bf16.msra.mxu0 %v3626
  %5064 = vmatprep.subr.bf16.mxu0 0
  %5065 = vmatpush1.bf16.msra.mxu0 %v3627
  %5066 = vmatprep.subr.bf16.mxu0 0
  %5067 = vmatpush1.bf16.msra.mxu0 %v3628
  %5068 = vmatprep.subr.bf16.mxu0 0
  %5069 = vmatpush1.bf16.msra.mxu0 %v3629
  %5070 = vmatprep.subr.bf16.mxu0 0
  %5071 = vmatpush1.bf16.msra.mxu0 %v3630
  %5072 = vmatprep.subr.bf16.mxu0 0
  %5073 = vmatpush1.bf16.msra.mxu0 %v3631
  %5074 = vmatprep.subr.bf16.mxu0 0
  %5075 = vmatpush1.bf16.msra.mxu0 %v3632
  %5076 = vmatprep.subr.bf16.mxu0 0
  %5077 = vmatpush1.bf16.msra.mxu0 %v3633
  %5078 = vmatprep.subr.bf16.mxu0 0
  %5079 = vmatpush1.bf16.msra.mxu0 %v3634
  %5080 = vmatprep.subr.bf16.mxu0 0
  %5081 = vmatpush1.bf16.msra.mxu0 %v3635
  %5082 = vmatprep.subr.bf16.mxu0 0
  %5083 = vmatpush1.bf16.msra.mxu0 %v3636
  %5084 = vmatprep.subr.bf16.mxu0 0
  %5085 = vmatpush1.bf16.msra.mxu0 %v3637
  %5086 = vmatprep.mubr.bf16.mxu0 %v1209
  %5087 = vmatmul.mubr.bf16.gmra.mrb[0].mxu0 %v1208
  %v5088 = vpop.f32.mrb[0].mxu0
  %v5089 = vadd.f32 %v5049, %v5088
  %v5090 = vpop.f32.mrb[0].mxu0
  %v5091 = vpop.f32.mrb[0].mxu0
  %v5092 = vpop.f32.mrb[0].mxu0
  %5093 = vdwg.mxu0
  %5094 = vmatprep.subr.bf16.mxu0 0
  %5095 = vmatpush1.bf16.msra.mxu0 %v3638
  %5096 = vmatprep.subr.bf16.mxu0 0
  %5097 = vmatpush1.bf16.msra.mxu0 %v3639
  %5098 = vmatprep.subr.bf16.mxu0 0
  %5099 = vmatpush1.bf16.msra.mxu0 %v3640
  %5100 = vmatprep.subr.bf16.mxu0 0
  %5101 = vmatpush1.bf16.msra.mxu0 %v3641
  %5102 = vmatprep.subr.bf16.mxu0 0
  %5103 = vmatpush1.bf16.msra.mxu0 %v3642
  %5104 = vmatprep.subr.bf16.mxu0 0
  %5105 = vmatpush1.bf16.msra.mxu0 %v3643
  %5106 = vmatprep.subr.bf16.mxu0 0
  %5107 = vmatpush1.bf16.msra.mxu0 %v3644
  %5108 = vmatprep.subr.bf16.mxu0 0
  %5109 = vmatpush1.bf16.msra.mxu0 %v3645
  %5110 = vmatprep.subr.bf16.mxu0 0
  %5111 = vmatpush1.bf16.msra.mxu0 %v3646
  %5112 = vmatprep.subr.bf16.mxu0 0
  %5113 = vmatpush1.bf16.msra.mxu0 %v3647
  %5114 = vmatprep.subr.bf16.mxu0 0
  %5115 = vmatpush1.bf16.msra.mxu0 %v3648
  %5116 = vmatprep.subr.bf16.mxu0 0
  %5117 = vmatpush1.bf16.msra.mxu0 %v3649
  %5118 = vmatprep.subr.bf16.mxu0 0
  %5119 = vmatpush1.bf16.msra.mxu0 %v3650
  %5120 = vmatprep.subr.bf16.mxu0 0
  %5121 = vmatpush1.bf16.msra.mxu0 %v3651
  %5122 = vmatprep.subr.bf16.mxu0 0
  %5123 = vmatpush1.bf16.msra.mxu0 %v3652
  %5124 = vmatprep.subr.bf16.mxu0 0
  %5125 = vmatpush1.bf16.msra.mxu0 %v3653
  %5126 = vmatprep.mubr.bf16.mxu0 %v1211
  %5127 = vmatmul.mubr.bf16.gmra.mrb[0].mxu0 %v1210
  %v5128 = vpop.f32.mrb[0].mxu0
  %v5129 = vadd.f32 %v5089, %v5128
  %v5130 = vpop.f32.mrb[0].mxu0
  %v5131 = vpop.f32.mrb[0].mxu0
  %v5132 = vpop.f32.mrb[0].mxu0
  %5133 = vdwg.mxu0
  %5134 = vmatprep.subr.bf16.mxu0 0
  %5135 = vmatpush1.bf16.msra.mxu0 %v3654
  %5136 = vmatprep.subr.bf16.mxu0 0
  %5137 = vmatpush1.bf16.msra.mxu0 %v3655
  %5138 = vmatprep.subr.bf16.mxu0 0
  %5139 = vmatpush1.bf16.msra.mxu0 %v3656
  %5140 = vmatprep.subr.bf16.mxu0 0
  %5141 = vmatpush1.bf16.msra.mxu0 %v3657
  %5142 = vmatprep.subr.bf16.mxu0 0
  %5143 = vmatpush1.bf16.msra.mxu0 %v3658
  %5144 = vmatprep.subr.bf16.mxu0 0
  %5145 = vmatpush1.bf16.msra.mxu0 %v3659
  %5146 = vmatprep.subr.bf16.mxu0 0
  %5147 = vmatpush1.bf16.msra.mxu0 %v3660
  %5148 = vmatprep.subr.bf16.mxu0 0
  %5149 = vmatpush1.bf16.msra.mxu0 %v3661
  %5150 = vmatprep.subr.bf16.mxu0 0
  %5151 = vmatpush1.bf16.msra.mxu0 %v3662
  %5152 = vmatprep.subr.bf16.mxu0 0
  %5153 = vmatpush1.bf16.msra.mxu0 %v3663
  %5154 = vmatprep.subr.bf16.mxu0 0
  %5155 = vmatpush1.bf16.msra.mxu0 %v3664
  %5156 = vmatprep.subr.bf16.mxu0 0
  %5157 = vmatpush1.bf16.msra.mxu0 %v3665
  %5158 = vmatprep.subr.bf16.mxu0 0
  %5159 = vmatpush1.bf16.msra.mxu0 %v3666
  %5160 = vmatprep.subr.bf16.mxu0 0
  %5161 = vmatpush1.bf16.msra.mxu0 %v3667
  %5162 = vmatprep.subr.bf16.mxu0 0
  %5163 = vmatpush1.bf16.msra.mxu0 %v3668
  %5164 = vmatprep.subr.bf16.mxu0 0
  %5165 = vmatpush1.bf16.msra.mxu0 %v3669
  %5166 = vmatprep.mubr.bf16.mxu0 %v1213
  %5167 = vmatmul.mubr.bf16.gmra.mrb[0].mxu0 %v1212
  %v5168 = vpop.f32.mrb[0].mxu0
  %v5169 = vadd.f32 %v5129, %v5168
  %v5170 = vpop.f32.mrb[0].mxu0
  %v5171 = vpop.f32.mrb[0].mxu0
  %v5172 = vpop.f32.mrb[0].mxu0
  %5173 = vdwg.mxu0
  %5174 = vmatprep.subr.bf16.mxu0 0
  %5175 = vmatpush1.bf16.msra.mxu0 %v3670
  %5176 = vmatprep.subr.bf16.mxu0 0
  %5177 = vmatpush1.bf16.msra.mxu0 %v3671
  %5178 = vmatprep.subr.bf16.mxu0 0
  %5179 = vmatpush1.bf16.msra.mxu0 %v3672
  %5180 = vmatprep.subr.bf16.mxu0 0
  %5181 = vmatpush1.bf16.msra.mxu0 %v3673
  %5182 = vmatprep.subr.bf16.mxu0 0
  %5183 = vmatpush1.bf16.msra.mxu0 %v3674
  %5184 = vmatprep.subr.bf16.mxu0 0
  %5185 = vmatpush1.bf16.msra.mxu0 %v3675
  %5186 = vmatprep.subr.bf16.mxu0 0
  %5187 = vmatpush1.bf16.msra.mxu0 %v3676
  %5188 = vmatprep.subr.bf16.mxu0 0
  %5189 = vmatpush1.bf16.msra.mxu0 %v3677
  %5190 = vmatprep.subr.bf16.mxu0 0
  %5191 = vmatpush1.bf16.msra.mxu0 %v3678
  %5192 = vmatprep.subr.bf16.mxu0 0
  %5193 = vmatpush1.bf16.msra.mxu0 %v3679
  %5194 = vmatprep.subr.bf16.mxu0 0
  %5195 = vmatpush1.bf16.msra.mxu0 %v3680
  %5196 = vmatprep.subr.bf16.mxu0 0
  %5197 = vmatpush1.bf16.msra.mxu0 %v3681
  %5198 = vmatprep.subr.bf16.mxu0 0
  %5199 = vmatpush1.bf16.msra.mxu0 %v3682
  %5200 = vmatprep.subr.bf16.mxu0 0
  %5201 = vmatpush1.bf16.msra.mxu0 %v3683
  %5202 = vmatprep.subr.bf16.mxu0 0
  %5203 = vmatpush1.bf16.msra.mxu0 %v3684
  %5204 = vmatprep.subr.bf16.mxu0 0
  %5205 = vmatpush1.bf16.msra.mxu0 %v3685
  %5206 = vmatprep.mubr.bf16.mxu0 %v1215
  %5207 = vmatmul.mubr.bf16.gmra.mrb[0].mxu0 %v1214
  %v5208 = vpop.f32.mrb[0].mxu0
  %v5209 = vadd.f32 %v5169, %v5208
  %v5210 = vpop.f32.mrb[0].mxu0
  %v5211 = vpop.f32.mrb[0].mxu0
  %v5212 = vpop.f32.mrb[0].mxu0
  %5213 = vdwg.mxu0
  %5214 = vmatprep.subr.bf16.mxu0 0
  %5215 = vmatpush1.bf16.msra.mxu0 %v3686
  %5216 = vmatprep.subr.bf16.mxu0 0
  %5217 = vmatpush1.bf16.msra.mxu0 %v3687
  %5218 = vmatprep.subr.bf16.mxu0 0
  %5219 = vmatpush1.bf16.msra.mxu0 %v3688
  %5220 = vmatprep.subr.bf16.mxu0 0
  %5221 = vmatpush1.bf16.msra.mxu0 %v3689
  %5222 = vmatprep.subr.bf16.mxu0 0
  %5223 = vmatpush1.bf16.msra.mxu0 %v3690
  %5224 = vmatprep.subr.bf16.mxu0 0
  %5225 = vmatpush1.bf16.msra.mxu0 %v3691
  %5226 = vmatprep.subr.bf16.mxu0 0
  %5227 = vmatpush1.bf16.msra.mxu0 %v3692
  %5228 = vmatprep.subr.bf16.mxu0 0
  %5229 = vmatpush1.bf16.msra.mxu0 %v3693
  %5230 = vmatprep.subr.bf16.mxu0 0
  %5231 = vmatpush1.bf16.msra.mxu0 %v3694
  %5232 = vmatprep.subr.bf16.mxu0 0
  %5233 = vmatpush1.bf16.msra.mxu0 %v3695
  %5234 = vmatprep.subr.bf16.mxu0 0
  %5235 = vmatpush1.bf16.msra.mxu0 %v3696
  %5236 = vmatprep.subr.bf16.mxu0 0
  %5237 = vmatpush1.bf16.msra.mxu0 %v3697
  %5238 = vmatprep.subr.bf16.mxu0 0
  %5239 = vmatpush1.bf16.msra.mxu0 %v3698
  %5240 = vmatprep.subr.bf16.mxu0 0
  %5241 = vmatpush1.bf16.msra.mxu0 %v3699
  %5242 = vmatprep.subr.bf16.mxu0 0
  %5243 = vmatpush1.bf16.msra.mxu0 %v3700
  %5244 = vmatprep.subr.bf16.mxu0 0
  %5245 = vmatpush1.bf16.msra.mxu0 %v3701
  %5246 = vmatprep.mubr.bf16.mxu0 %v1217
  %5247 = vmatmul.mubr.bf16.gmra.mrb[0].mxu0 %v1216
  %v5248 = vpop.f32.mrb[0].mxu0
  %v5249 = vadd.f32 %v5209, %v5248
  %v5250 = vpop.f32.mrb[0].mxu0
  %v5251 = vpop.f32.mrb[0].mxu0
  %v5252 = vpop.f32.mrb[0].mxu0
  %5253 = vdwg.mxu0
  %5254 = vmatprep.subr.bf16.mxu0 0
  %5255 = vmatpush1.bf16.msra.mxu0 %v3702
  %5256 = vmatprep.subr.bf16.mxu0 0
  %5257 = vmatpush1.bf16.msra.mxu0 %v3703
  %5258 = vmatprep.subr.bf16.mxu0 0
  %5259 = vmatpush1.bf16.msra.mxu0 %v3704
  %5260 = vmatprep.subr.bf16.mxu0 0
  %5261 = vmatpush1.bf16.msra.mxu0 %v3705
  %5262 = vmatprep.subr.bf16.mxu0 0
  %5263 = vmatpush1.bf16.msra.mxu0 %v3706
  %5264 = vmatprep.subr.bf16.mxu0 0
  %5265 = vmatpush1.bf16.msra.mxu0 %v3707
  %5266 = vmatprep.subr.bf16.mxu0 0
  %5267 = vmatpush1.bf16.msra.mxu0 %v3708
  %5268 = vmatprep.subr.bf16.mxu0 0
  %5269 = vmatpush1.bf16.msra.mxu0 %v3709
  %5270 = vmatprep.subr.bf16.mxu0 0
  %5271 = vmatpush1.bf16.msra.mxu0 %v3710
  %5272 = vmatprep.subr.bf16.mxu0 0
  %5273 = vmatpush1.bf16.msra.mxu0 %v3711
  %5274 = vmatprep.subr.bf16.mxu0 0
  %5275 = vmatpush1.bf16.msra.mxu0 %v3712
  %5276 = vmatprep.subr.bf16.mxu0 0
  %5277 = vmatpush1.bf16.msra.mxu0 %v3713
  %5278 = vmatprep.subr.bf16.mxu0 0
  %5279 = vmatpush1.bf16.msra.mxu0 %v3714
  %5280 = vmatprep.subr.bf16.mxu0 0
  %5281 = vmatpush1.bf16.msra.mxu0 %v3715
  %5282 = vmatprep.subr.bf16.mxu0 0
  %5283 = vmatpush1.bf16.msra.mxu0 %v3716
  %5284 = vmatprep.subr.bf16.mxu0 0
  %5285 = vmatpush1.bf16.msra.mxu0 %v3717
  %5286 = vmatprep.mubr.bf16.mxu0 %v1219
  %5287 = vmatmul.mubr.bf16.gmra.mrb[0].mxu0 %v1218
  %v5288 = vpop.f32.mrb[0].mxu0
  %v5289 = vadd.f32 %v5249, %v5288
  %v5290 = vpop.f32.mrb[0].mxu0
  %v5291 = vpop.f32.mrb[0].mxu0
  %v5292 = vpop.f32.mrb[0].mxu0
  %5293 = vdwg.mxu0
  %5294 = vmatprep.subr.bf16.mxu0 0
  %5295 = vmatpush1.bf16.msra.mxu0 %v3718
  %5296 = vmatprep.subr.bf16.mxu0 0
  %5297 = vmatpush1.bf16.msra.mxu0 %v3719
  %5298 = vmatprep.subr.bf16.mxu0 0
  %5299 = vmatpush1.bf16.msra.mxu0 %v3720
  %5300 = vmatprep.subr.bf16.mxu0 0
  %5301 = vmatpush1.bf16.msra.mxu0 %v3721
  %5302 = vmatprep.subr.bf16.mxu0 0
  %5303 = vmatpush1.bf16.msra.mxu0 %v3722
  %5304 = vmatprep.subr.bf16.mxu0 0
  %5305 = vmatpush1.bf16.msra.mxu0 %v3723
  %5306 = vmatprep.subr.bf16.mxu0 0
  %5307 = vmatpush1.bf16.msra.mxu0 %v3724
  %5308 = vmatprep.subr.bf16.mxu0 0
  %5309 = vmatpush1.bf16.msra.mxu0 %v3725
  %5310 = vmatprep.subr.bf16.mxu0 0
  %5311 = vmatpush1.bf16.msra.mxu0 %v3726
  %5312 = vmatprep.subr.bf16.mxu0 0
  %5313 = vmatpush1.bf16.msra.mxu0 %v3727
  %5314 = vmatprep.subr.bf16.mxu0 0
  %5315 = vmatpush1.bf16.msra.mxu0 %v3728
  %5316 = vmatprep.subr.bf16.mxu0 0
  %5317 = vmatpush1.bf16.msra.mxu0 %v3729
  %5318 = vmatprep.subr.bf16.mxu0 0
  %5319 = vmatpush1.bf16.msra.mxu0 %v3730
  %5320 = vmatprep.subr.bf16.mxu0 0
  %5321 = vmatpush1.bf16.msra.mxu0 %v3731
  %5322 = vmatprep.subr.bf16.mxu0 0
  %5323 = vmatpush1.bf16.msra.mxu0 %v3732
  %5324 = vmatprep.subr.bf16.mxu0 0
  %5325 = vmatpush1.bf16.msra.mxu0 %v3733
  %5326 = vmatprep.mubr.bf16.mxu0 %v1221
  %5327 = vmatmul.mubr.bf16.gmra.mrb[0].mxu0 %v1220
  %v5328 = vpop.f32.mrb[0].mxu0
  %v5329 = vadd.f32 %v5289, %v5328
  %v5330 = vpop.f32.mrb[0].mxu0
  %v5331 = vpop.f32.mrb[0].mxu0
  %v5332 = vpop.f32.mrb[0].mxu0
  %5333 = vdwg.mxu0
  %5334 = vmatprep.subr.bf16.mxu0 0
  %5335 = vmatpush1.bf16.msra.mxu0 %v3734
  %5336 = vmatprep.subr.bf16.mxu0 0
  %5337 = vmatpush1.bf16.msra.mxu0 %v3735
  %5338 = vmatprep.subr.bf16.mxu0 0
  %5339 = vmatpush1.bf16.msra.mxu0 %v3736
  %5340 = vmatprep.subr.bf16.mxu0 0
  %5341 = vmatpush1.bf16.msra.mxu0 %v3737
  %5342 = vmatprep.subr.bf16.mxu0 0
  %5343 = vmatpush1.bf16.msra.mxu0 %v3738
  %5344 = vmatprep.subr.bf16.mxu0 0
  %5345 = vmatpush1.bf16.msra.mxu0 %v3739
  %5346 = vmatprep.subr.bf16.mxu0 0
  %5347 = vmatpush1.bf16.msra.mxu0 %v3740
  %5348 = vmatprep.subr.bf16.mxu0 0
  %5349 = vmatpush1.bf16.msra.mxu0 %v3741
  %5350 = vmatprep.subr.bf16.mxu0 0
  %5351 = vmatpush1.bf16.msra.mxu0 %v3742
  %5352 = vmatprep.subr.bf16.mxu0 0
  %5353 = vmatpush1.bf16.msra.mxu0 %v3743
  %5354 = vmatprep.subr.bf16.mxu0 0
  %5355 = vmatpush1.bf16.msra.mxu0 %v3744
  %5356 = vmatprep.subr.bf16.mxu0 0
  %5357 = vmatpush1.bf16.msra.mxu0 %v3745
  %5358 = vmatprep.subr.bf16.mxu0 0
  %5359 = vmatpush1.bf16.msra.mxu0 %v3746
  %5360 = vmatprep.subr.bf16.mxu0 0
  %5361 = vmatpush1.bf16.msra.mxu0 %v3747
  %5362 = vmatprep.subr.bf16.mxu0 0
  %5363 = vmatpush1.bf16.msra.mxu0 %v3748
  %5364 = vmatprep.subr.bf16.mxu0 0
  %5365 = vmatpush1.bf16.msra.mxu0 %v3749
  %5366 = vmatprep.mubr.bf16.mxu0 %v1223
  %5367 = vmatmul.mubr.bf16.gmra.mrb[0].mxu0 %v1222
  %v5368 = vpop.f32.mrb[0].mxu0
  %v5369 = vadd.f32 %v5329, %v5368
  %v5370 = vpop.f32.mrb[0].mxu0
  %v5371 = vpop.f32.mrb[0].mxu0
  %v5372 = vpop.f32.mrb[0].mxu0
  %5373 = vdwg.mxu0
  %5374 = vmatprep.subr.bf16.mxu0 0
  %5375 = vmatpush1.bf16.msra.mxu0 %v3750
  %5376 = vmatprep.subr.bf16.mxu0 0
  %5377 = vmatpush1.bf16.msra.mxu0 %v3751
  %5378 = vmatprep.subr.bf16.mxu0 0
  %5379 = vmatpush1.bf16.msra.mxu0 %v3752
  %5380 = vmatprep.subr.bf16.mxu0 0
  %5381 = vmatpush1.bf16.msra.mxu0 %v3753
  %5382 = vmatprep.subr.bf16.mxu0 0
  %5383 = vmatpush1.bf16.msra.mxu0 %v3754
  %5384 = vmatprep.subr.bf16.mxu0 0
  %5385 = vmatpush1.bf16.msra.mxu0 %v3755
  %5386 = vmatprep.subr.bf16.mxu0 0
  %5387 = vmatpush1.bf16.msra.mxu0 %v3756
  %5388 = vmatprep.subr.bf16.mxu0 0
  %5389 = vmatpush1.bf16.msra.mxu0 %v3757
  %5390 = vmatprep.subr.bf16.mxu0 0
  %5391 = vmatpush1.bf16.msra.mxu0 %v3758
  %5392 = vmatprep.subr.bf16.mxu0 0
  %5393 = vmatpush1.bf16.msra.mxu0 %v3759
  %5394 = vmatprep.subr.bf16.mxu0 0
  %5395 = vmatpush1.bf16.msra.mxu0 %v3760
  %5396 = vmatprep.subr.bf16.mxu0 0
  %5397 = vmatpush1.bf16.msra.mxu0 %v3761
  %5398 = vmatprep.subr.bf16.mxu0 0
  %5399 = vmatpush1.bf16.msra.mxu0 %v3762
  %5400 = vmatprep.subr.bf16.mxu0 0
  %5401 = vmatpush1.bf16.msra.mxu0 %v3763
  %5402 = vmatprep.subr.bf16.mxu0 0
  %5403 = vmatpush1.bf16.msra.mxu0 %v3764
  %5404 = vmatprep.subr.bf16.mxu0 0
  %5405 = vmatpush1.bf16.msra.mxu0 %v3765
  %5406 = vmatprep.mubr.bf16.mxu0 %v1225
  %5407 = vmatmul.mubr.bf16.gmra.mrb[0].mxu0 %v1224
  %v5408 = vpop.f32.mrb[0].mxu0
  %v5409 = vadd.f32 %v5369, %v5408
  %v5410 = vpop.f32.mrb[0].mxu0
  %v5411 = vpop.f32.mrb[0].mxu0
  %v5412 = vpop.f32.mrb[0].mxu0
  %5413 = vdwg.mxu0
  %5414 = vmatprep.subr.bf16.mxu0 0
  %5415 = vmatpush1.bf16.msra.mxu0 %v3766
  %5416 = vmatprep.subr.bf16.mxu0 0
  %5417 = vmatpush1.bf16.msra.mxu0 %v3767
  %5418 = vmatprep.subr.bf16.mxu0 0
  %5419 = vmatpush1.bf16.msra.mxu0 %v3768
  %5420 = vmatprep.subr.bf16.mxu0 0
  %5421 = vmatpush1.bf16.msra.mxu0 %v3769
  %5422 = vmatprep.subr.bf16.mxu0 0
  %5423 = vmatpush1.bf16.msra.mxu0 %v3770
  %5424 = vmatprep.subr.bf16.mxu0 0
  %5425 = vmatpush1.bf16.msra.mxu0 %v3771
  %5426 = vmatprep.subr.bf16.mxu0 0
  %5427 = vmatpush1.bf16.msra.mxu0 %v3772
  %5428 = vmatprep.subr.bf16.mxu0 0
  %5429 = vmatpush1.bf16.msra.mxu0 %v3773
  %5430 = vmatprep.subr.bf16.mxu0 0
  %5431 = vmatpush1.bf16.msra.mxu0 %v3774
  %5432 = vmatprep.subr.bf16.mxu0 0
  %5433 = vmatpush1.bf16.msra.mxu0 %v3775
  %5434 = vmatprep.subr.bf16.mxu0 0
  %5435 = vmatpush1.bf16.msra.mxu0 %v3776
  %5436 = vmatprep.subr.bf16.mxu0 0
  %5437 = vmatpush1.bf16.msra.mxu0 %v3777
  %5438 = vmatprep.subr.bf16.mxu0 0
  %5439 = vmatpush1.bf16.msra.mxu0 %v3778
  %5440 = vmatprep.subr.bf16.mxu0 0
  %5441 = vmatpush1.bf16.msra.mxu0 %v3779
  %5442 = vmatprep.subr.bf16.mxu0 0
  %5443 = vmatpush1.bf16.msra.mxu0 %v3780
  %5444 = vmatprep.subr.bf16.mxu0 0
  %5445 = vmatpush1.bf16.msra.mxu0 %v3781
  %5446 = vmatprep.mubr.bf16.mxu0 %v1227
  %5447 = vmatmul.mubr.bf16.gmra.mrb[0].mxu0 %v1226
  %v5448 = vpop.f32.mrb[0].mxu0
  %v5449 = vadd.f32 %v5409, %v5448
  %v5450 = vpop.f32.mrb[0].mxu0
  %v5451 = vpop.f32.mrb[0].mxu0
  %v5452 = vpop.f32.mrb[0].mxu0
  %5453 = vdwg.mxu0
  %5454 = vmatprep.subr.bf16.mxu0 0
  %5455 = vmatpush1.bf16.msra.mxu0 %v3782
  %5456 = vmatprep.subr.bf16.mxu0 0
  %5457 = vmatpush1.bf16.msra.mxu0 %v3783
  %5458 = vmatprep.subr.bf16.mxu0 0
  %5459 = vmatpush1.bf16.msra.mxu0 %v3784
  %5460 = vmatprep.subr.bf16.mxu0 0
  %5461 = vmatpush1.bf16.msra.mxu0 %v3785
  %5462 = vmatprep.subr.bf16.mxu0 0
  %5463 = vmatpush1.bf16.msra.mxu0 %v3786
  %5464 = vmatprep.subr.bf16.mxu0 0
  %5465 = vmatpush1.bf16.msra.mxu0 %v3787
  %5466 = vmatprep.subr.bf16.mxu0 0
  %5467 = vmatpush1.bf16.msra.mxu0 %v3788
  %5468 = vmatprep.subr.bf16.mxu0 0
  %5469 = vmatpush1.bf16.msra.mxu0 %v3789
  %5470 = vmatprep.subr.bf16.mxu0 0
  %5471 = vmatpush1.bf16.msra.mxu0 %v3790
  %5472 = vmatprep.subr.bf16.mxu0 0
  %5473 = vmatpush1.bf16.msra.mxu0 %v3791
  %5474 = vmatprep.subr.bf16.mxu0 0
  %5475 = vmatpush1.bf16.msra.mxu0 %v3792
  %5476 = vmatprep.subr.bf16.mxu0 0
  %5477 = vmatpush1.bf16.msra.mxu0 %v3793
  %5478 = vmatprep.subr.bf16.mxu0 0
  %5479 = vmatpush1.bf16.msra.mxu0 %v3794
  %5480 = vmatprep.subr.bf16.mxu0 0
  %5481 = vmatpush1.bf16.msra.mxu0 %v3795
  %5482 = vmatprep.subr.bf16.mxu0 0
  %5483 = vmatpush1.bf16.msra.mxu0 %v3796
  %5484 = vmatprep.subr.bf16.mxu0 0
  %5485 = vmatpush1.bf16.msra.mxu0 %v3797
  %5486 = vmatprep.mubr.bf16.mxu0 %v1229
  %5487 = vmatmul.mubr.bf16.gmra.mrb[0].mxu0 %v1228
  %v5488 = vpop.f32.mrb[0].mxu0
  %v5489 = vadd.f32 %v5449, %v5488
  %v5490 = vpop.f32.mrb[0].mxu0
  %v5491 = vpop.f32.mrb[0].mxu0
  %v5492 = vpop.f32.mrb[0].mxu0
  %5493 = vdwg.mxu0
  %5494 = vmatprep.subr.bf16.mxu0 0
  %5495 = vmatpush1.bf16.msra.mxu0 %v3798
  %5496 = vmatprep.subr.bf16.mxu0 0
  %5497 = vmatpush1.bf16.msra.mxu0 %v3799
  %5498 = vmatprep.subr.bf16.mxu0 0
  %5499 = vmatpush1.bf16.msra.mxu0 %v3800
  %5500 = vmatprep.subr.bf16.mxu0 0
  %5501 = vmatpush1.bf16.msra.mxu0 %v3801
  %5502 = vmatprep.subr.bf16.mxu0 0
  %5503 = vmatpush1.bf16.msra.mxu0 %v3802
  %5504 = vmatprep.subr.bf16.mxu0 0
  %5505 = vmatpush1.bf16.msra.mxu0 %v3803
  %5506 = vmatprep.subr.bf16.mxu0 0
  %5507 = vmatpush1.bf16.msra.mxu0 %v3804
  %5508 = vmatprep.subr.bf16.mxu0 0
  %5509 = vmatpush1.bf16.msra.mxu0 %v3805
  %5510 = vmatprep.subr.bf16.mxu0 0
  %5511 = vmatpush1.bf16.msra.mxu0 %v3806
  %5512 = vmatprep.subr.bf16.mxu0 0
  %5513 = vmatpush1.bf16.msra.mxu0 %v3807
  %5514 = vmatprep.subr.bf16.mxu0 0
  %5515 = vmatpush1.bf16.msra.mxu0 %v3808
  %5516 = vmatprep.subr.bf16.mxu0 0
  %5517 = vmatpush1.bf16.msra.mxu0 %v3809
  %5518 = vmatprep.subr.bf16.mxu0 0
  %5519 = vmatpush1.bf16.msra.mxu0 %v3810
  %5520 = vmatprep.subr.bf16.mxu0 0
  %5521 = vmatpush1.bf16.msra.mxu0 %v3811
  %5522 = vmatprep.subr.bf16.mxu0 0
  %5523 = vmatpush1.bf16.msra.mxu0 %v3812
  %5524 = vmatprep.subr.bf16.mxu0 0
  %5525 = vmatpush1.bf16.msra.mxu0 %v3813
  %5526 = vmatprep.mubr.bf16.mxu0 %v1231
  %5527 = vmatmul.mubr.bf16.gmra.mrb[0].mxu0 %v1230
  %v5528 = vpop.f32.mrb[0].mxu0
  %v5529 = vadd.f32 %v5489, %v5528
  %v5530 = vpop.f32.mrb[0].mxu0
  %v5531 = vpop.f32.mrb[0].mxu0
  %v5532 = vpop.f32.mrb[0].mxu0
  %5533 = vdwg.mxu0
  %5534 = vmatprep.subr.bf16.mxu0 0
  %5535 = vmatpush1.bf16.msra.mxu0 %v3814
  %5536 = vmatprep.subr.bf16.mxu0 0
  %5537 = vmatpush1.bf16.msra.mxu0 %v3815
  %5538 = vmatprep.subr.bf16.mxu0 0
  %5539 = vmatpush1.bf16.msra.mxu0 %v3816
  %5540 = vmatprep.subr.bf16.mxu0 0
  %5541 = vmatpush1.bf16.msra.mxu0 %v3817
  %5542 = vmatprep.subr.bf16.mxu0 0
  %5543 = vmatpush1.bf16.msra.mxu0 %v3818
  %5544 = vmatprep.subr.bf16.mxu0 0
  %5545 = vmatpush1.bf16.msra.mxu0 %v3819
  %5546 = vmatprep.subr.bf16.mxu0 0
  %5547 = vmatpush1.bf16.msra.mxu0 %v3820
  %5548 = vmatprep.subr.bf16.mxu0 0
  %5549 = vmatpush1.bf16.msra.mxu0 %v3821
  %5550 = vmatprep.subr.bf16.mxu0 0
  %5551 = vmatpush1.bf16.msra.mxu0 %v3822
  %5552 = vmatprep.subr.bf16.mxu0 0
  %5553 = vmatpush1.bf16.msra.mxu0 %v3823
  %5554 = vmatprep.subr.bf16.mxu0 0
  %5555 = vmatpush1.bf16.msra.mxu0 %v3824
  %5556 = vmatprep.subr.bf16.mxu0 0
  %5557 = vmatpush1.bf16.msra.mxu0 %v3825
  %5558 = vmatprep.subr.bf16.mxu0 0
  %5559 = vmatpush1.bf16.msra.mxu0 %v3826
  %5560 = vmatprep.subr.bf16.mxu0 0
  %5561 = vmatpush1.bf16.msra.mxu0 %v3827
  %5562 = vmatprep.subr.bf16.mxu0 0
  %5563 = vmatpush1.bf16.msra.mxu0 %v3828
  %5564 = vmatprep.subr.bf16.mxu0 0
  %5565 = vmatpush1.bf16.msra.mxu0 %v3829
  %5566 = vmatprep.mubr.bf16.mxu0 %v1233
  %5567 = vmatmul.mubr.bf16.gmra.mrb[0].mxu0 %v1232
  %v5568 = vpop.f32.mrb[0].mxu0
  %v5569 = vadd.f32 %v5529, %v5568
  %v5570 = vpop.f32.mrb[0].mxu0
  %v5571 = vpop.f32.mrb[0].mxu0
  %v5572 = vpop.f32.mrb[0].mxu0
  %5573 = vdwg.mxu0
  %5574 = vmatprep.subr.bf16.mxu0 0
  %5575 = vmatpush1.bf16.msra.mxu0 %v3830
  %5576 = vmatprep.subr.bf16.mxu0 0
  %5577 = vmatpush1.bf16.msra.mxu0 %v3831
  %5578 = vmatprep.subr.bf16.mxu0 0
  %5579 = vmatpush1.bf16.msra.mxu0 %v3832
  %5580 = vmatprep.subr.bf16.mxu0 0
  %5581 = vmatpush1.bf16.msra.mxu0 %v3833
  %5582 = vmatprep.subr.bf16.mxu0 0
  %5583 = vmatpush1.bf16.msra.mxu0 %v3834
  %5584 = vmatprep.subr.bf16.mxu0 0
  %5585 = vmatpush1.bf16.msra.mxu0 %v3835
  %5586 = vmatprep.subr.bf16.mxu0 0
  %5587 = vmatpush1.bf16.msra.mxu0 %v3836
  %5588 = vmatprep.subr.bf16.mxu0 0
  %5589 = vmatpush1.bf16.msra.mxu0 %v3837
  %5590 = vmatprep.subr.bf16.mxu0 0
  %5591 = vmatpush1.bf16.msra.mxu0 %v3838
  %5592 = vmatprep.subr.bf16.mxu0 0
  %5593 = vmatpush1.bf16.msra.mxu0 %v3839
  %5594 = vmatprep.subr.bf16.mxu0 0
  %5595 = vmatpush1.bf16.msra.mxu0 %v3840
  %5596 = vmatprep.subr.bf16.mxu0 0
  %5597 = vmatpush1.bf16.msra.mxu0 %v3841
  %5598 = vmatprep.subr.bf16.mxu0 0
  %5599 = vmatpush1.bf16.msra.mxu0 %v3842
  %5600 = vmatprep.subr.bf16.mxu0 0
  %5601 = vmatpush1.bf16.msra.mxu0 %v3843
  %5602 = vmatprep.subr.bf16.mxu0 0
  %5603 = vmatpush1.bf16.msra.mxu0 %v3844
  %5604 = vmatprep.subr.bf16.mxu0 0
  %5605 = vmatpush1.bf16.msra.mxu0 %v3845
  %5606 = vmatprep.mubr.bf16.mxu0 %v1235
  %5607 = vmatmul.mubr.bf16.gmra.mrb[0].mxu0 %v1234
  %v5608 = vpop.f32.mrb[0].mxu0
  %v5609 = vadd.f32 %v5569, %v5608
  %v5610 = vpop.f32.mrb[0].mxu0
  %v5611 = vpop.f32.mrb[0].mxu0
  %v5612 = vpop.f32.mrb[0].mxu0
  %5613 = vdwg.mxu0
  %5614 = vmatprep.subr.bf16.mxu0 0
  %5615 = vmatpush1.bf16.msra.mxu0 %v3846
  %5616 = vmatprep.subr.bf16.mxu0 0
  %5617 = vmatpush1.bf16.msra.mxu0 %v3847
  %5618 = vmatprep.subr.bf16.mxu0 0
  %5619 = vmatpush1.bf16.msra.mxu0 %v3848
  %5620 = vmatprep.subr.bf16.mxu0 0
  %5621 = vmatpush1.bf16.msra.mxu0 %v3849
  %5622 = vmatprep.subr.bf16.mxu0 0
  %5623 = vmatpush1.bf16.msra.mxu0 %v3850
  %5624 = vmatprep.subr.bf16.mxu0 0
  %5625 = vmatpush1.bf16.msra.mxu0 %v3851
  %5626 = vmatprep.subr.bf16.mxu0 0
  %5627 = vmatpush1.bf16.msra.mxu0 %v3852
  %5628 = vmatprep.subr.bf16.mxu0 0
  %5629 = vmatpush1.bf16.msra.mxu0 %v3853
  %5630 = vmatprep.subr.bf16.mxu0 0
  %5631 = vmatpush1.bf16.msra.mxu0 %v3854
  %5632 = vmatprep.subr.bf16.mxu0 0
  %5633 = vmatpush1.bf16.msra.mxu0 %v3855
  %5634 = vmatprep.subr.bf16.mxu0 0
  %5635 = vmatpush1.bf16.msra.mxu0 %v3856
  %5636 = vmatprep.subr.bf16.mxu0 0
  %5637 = vmatpush1.bf16.msra.mxu0 %v3857
  %5638 = vmatprep.subr.bf16.mxu0 0
  %5639 = vmatpush1.bf16.msra.mxu0 %v3858
  %5640 = vmatprep.subr.bf16.mxu0 0
  %5641 = vmatpush1.bf16.msra.mxu0 %v3859
  %5642 = vmatprep.subr.bf16.mxu0 0
  %5643 = vmatpush1.bf16.msra.mxu0 %v3860
  %5644 = vmatprep.subr.bf16.mxu0 0
  %5645 = vmatpush1.bf16.msra.mxu0 %v3861
  %5646 = vmatprep.mubr.bf16.mxu0 %v1237
  %5647 = vmatmul.mubr.bf16.gmra.mrb[0].mxu0 %v1236
  %v5648 = vpop.f32.mrb[0].mxu0
  %v5649 = vadd.f32 %v5609, %v5648
  %v5650 = vpop.f32.mrb[0].mxu0
  %v5651 = vpop.f32.mrb[0].mxu0
  %v5652 = vpop.f32.mrb[0].mxu0
  %5653 = vdwg.mxu0
  %5654 = vst [vmem:[%s3] sm:$0xff] %v5649
  // Predicated region
  $region14: #{resnlh_forward.3} parent=0 // pred_check
    _
  $region15: #{resnlh_forward.3} parent=0 // pred_check_branch
    %5656 = sbr.rel (0) target = $region17
  $region16: #{resnlh_forward.3} parent=0 // pred_region
    _
  $region17: #{resnlh_forward.3} parent=0 // pred_fallthru
    _
  // Predicated region
  $region18: #{resnlh_forward.3} parent=0 // pred_check
    _
  $region19: #{resnlh_forward.3} parent=0 // pred_check_branch
    %5658 = sbr.rel (0) target = $region21
  $region20: #{resnlh_forward.3} parent=0 // pred_region
    _
  $region21: #{resnlh_forward.3} parent=0 // pred_fallthru
    _

</llo_original>
